<compile_context>
chip_gen: v5e
topology: v5e:2x2
jax: 0.10.0
libtpu: 0.0.40
codegen_flags: <defaults>
</compile_context>

<pallas_src>
import jax
import jax.numpy as jnp
from jax import lax
from jax.experimental import pallas as pl
from jax.experimental.pallas import tpu as pltpu

IH, IW = 32, 32          # iheight, iwidth
CIN = 32                 # vector_length  (conv in_channels)
COUT = 2                 # sequence_length (conv out_channels)
K = 3                    # conv kernel size
HW = IH * IW             # spatial extent
FDIM = CIN * HW          # 32768 — flattened reduction width (lane-dense)


def conv_gap_kernel(x_ref, w_ref, b_ref, o_ref):
    # x_ref: (Bt, FDIM)    lane-dense activation slab (NCHW flattened per row)
    # w_ref: (COUT, FDIM)  effective weights (taps + zero-pad + 1/HW folded)
    # b_ref: (1, COUT)     bias
    # o_ref: (Bt, COUT)
    o_ref[...] = lax.dot_general(
        x_ref[...], w_ref[...],
        dimension_numbers=(((1,), (1,)), ((), ())),   # x @ w^T on the MXU
        preferred_element_type=jnp.float32,
    ) + b_ref[...]


def _tap_mask(length):
    # mask[p, t] = 1.0 iff input position p contributes to conv tap t for at
    # least one output position (stride 1, pad 1, kernel 3): t-1 <= p <= t+L-2.
    p = jnp.arange(length)[:, None]
    t = jnp.arange(K)[None, :]
    return ((p >= t - 1) & (p <= t + length - 2)).astype(jnp.float32)   # (L, K)


def _pick_bt(n):
    if n <= 8:
        return n
    # >= 2 grid steps (v7x has 2 TensorCores), tile a multiple of 8, cap at 32
    # so double-buffered f32 input (2 x 4 MiB) fits every generation's default
    # scoped VMEM.
    half = pl.cdiv(n, 2)
    return min(32, max(8, (half // 8) * 8))


def model_forward(x_nchw, w_oihw, bias):
    n = x_nchw.shape[0]

    # Metadata-only reshape of contiguous NCHW: (N, 32768) lane-dense rows.
    x2 = x_nchw.reshape(n, FDIM)

    # Fold conv taps + zero padding + global average pool into one effective
    # per-input-position weight:
    #   mean_{i,j} conv(x)[o,i,j] = sum_{c,h,w} x[c,h,w] * weff[o,c,h,w] + bias[o]
    mh = _tap_mask(IH)                                        # (IH, K)
    mw = _tap_mask(IW)                                        # (IW, K)
    weff = jnp.einsum("hi,wj,ocij->ochw", mh, mw, w_oihw.astype(jnp.float32))
    weff = (weff * (1.0 / HW)).reshape(COUT, FDIM)            # (COUT, 32768)

    bias2 = bias.astype(jnp.float32).reshape(1, COUT)

    bt = _pick_bt(n)
    grid = pl.cdiv(n, bt)

    out = pl.pallas_call(
        conv_gap_kernel,
        out_shape=jax.ShapeDtypeStruct((n, COUT), jnp.float32),
        grid=(grid,),
        in_specs=[
            pl.BlockSpec((bt, FDIM), lambda i: (i, 0)),
            pl.BlockSpec((COUT, FDIM), lambda i: (0, 0)),     # constant block
            pl.BlockSpec((1, COUT), lambda i: (0, 0)),        # constant block
        ],
        out_specs=pl.BlockSpec((bt, COUT), lambda i: (i, 0)),
        compiler_params=pltpu.CompilerParams(dimension_semantics=("parallel",)),
    )(x2, weff, bias2)
    return out


def reference_forward(x_nchw, w_oihw, bias):
    y = lax.conv_general_dilated(
        x_nchw, w_oihw,
        window_strides=(1, 1),
        padding=((1, 1), (1, 1)),
        dimension_numbers=("NCHW", "OIHW", "NCHW"),
    )
    y = y + bias.reshape(1, COUT, 1, 1)
    return jnp.mean(y, axis=(2, 3))


if __name__ == "__main__":
    key = jax.random.PRNGKey(0)
    kx, kw, kb = jax.random.split(key, 3)

    batch = 2
    x = jax.random.normal(kx, (batch, CIN, IH, IW), dtype=jnp.float32)

    # Deterministic parameter init (uniform +-1/sqrt(fan_in), like torch defaults)
    fan_in = CIN * K * K
    bound = 1.0 / (fan_in ** 0.5)
    w = jax.random.uniform(kw, (COUT, CIN, K, K), jnp.float32, -bound, bound)
    b = jax.random.uniform(kb, (COUT,), jnp.float32, -bound, bound)

    out = model_forward(x, w, b)
    out = jax.block_until_ready(out)

    ref = reference_forward(x, w, b)
    assert out.shape == (batch, COUT)
    assert jnp.allclose(out, ref, atol=1e-4, rtol=1e-4)

    print("KERNEL_OK")
</pallas_src>

<mosaic_0001>
module attributes {stable_mosaic.version = 11 : i64} {
  func.func @conv_gap_kernel(%arg0: i32, %arg1: memref<2x32768xf32, #tpu.memory_space<vmem>>, %arg2: memref<2x32768xf32, #tpu.memory_space<vmem>>, %arg3: memref<1x2xf32, #tpu.memory_space<vmem>>, %arg4: memref<2x2xf32, #tpu.memory_space<vmem>>) attributes {dimension_semantics = [#tpu.dimension_semantics<parallel>], iteration_bounds = array<i64: 1>, scalar_prefetch = 0 : i64, scratch_operands = 0 : i64, tpu.core_type = #tpu.core_type<tc>, window_params = [{transform_indices = @transform_0, window_bounds = array<i64: 2, 32768>}, {pipeline_mode = #tpu.pipeline_mode<synchronous>, transform_indices = @transform_1, window_bounds = array<i64: 2, 32768>}, {pipeline_mode = #tpu.pipeline_mode<synchronous>, transform_indices = @transform_2, window_bounds = array<i64: 1, 2>}, {transform_indices = @transform_3, window_bounds = array<i64: 2, 2>}]} {
    %c0 = arith.constant 0 : index
    %c0_0 = arith.constant 0 : index
    %0 = vector.load %arg1[%c0, %c0_0] : memref<2x32768xf32, #tpu.memory_space<vmem>>, vector<2x32768xf32>
    %c0_1 = arith.constant 0 : index
    %c0_2 = arith.constant 0 : index
    %1 = vector.load %arg2[%c0_1, %c0_2] : memref<2x32768xf32, #tpu.memory_space<vmem>>, vector<2x32768xf32>
    %cst = arith.constant dense<0.000000e+00> : vector<2x2xf32>
    %2 = tpu.matmul %0, %1, %cst {dimension_numbers = #tpu.dot_dimension_numbers<[1], [1], [0], [0], [0, 0, 1, 0], [], []>} : vector<2x32768xf32>, vector<2x32768xf32>, vector<2x2xf32> -> vector<2x2xf32>
    %c0_3 = arith.constant 0 : index
    %c0_4 = arith.constant 0 : index
    %3 = vector.load %arg3[%c0_3, %c0_4] : memref<1x2xf32, #tpu.memory_space<vmem>>, vector<1x2xf32>
    %4 = vector.broadcast %3 : vector<1x2xf32> to vector<2x2xf32>
    %5 = arith.addf %2, %4 : vector<2x2xf32>
    %c0_5 = arith.constant 0 : index
    %c0_6 = arith.constant 0 : index
    %6 = vector.load %arg4[%c0_5, %c0_6] : memref<2x2xf32, #tpu.memory_space<vmem>>, vector<2x2xf32>
    tpu.vector_store %arg4[%c0_5, %c0_6], %5 {strides = array<i32>} : memref<2x2xf32, #tpu.memory_space<vmem>>, vector<2x2xf32>,
    return
  }
  func.func @transform_0(%arg0: i32) -> (i32, i32) {
    %c0_i32 = arith.constant 0 : i32
    %c0_i32_0 = arith.constant 0 : i32
    return %arg0, %c0_i32 : i32, i32
  }
  func.func @transform_1(%arg0: i32) -> (i32, i32) {
    %c0_i32 = arith.constant 0 : i32
    %c0_i32_0 = arith.constant 0 : i32
    %c0_i32_1 = arith.constant 0 : i32
    return %c0_i32, %c0_i32_0 : i32, i32
  }
  func.func @transform_2(%arg0: i32) -> (i32, i32) {
    %c0_i32 = arith.constant 0 : i32
    %c0_i32_0 = arith.constant 0 : i32
    %c0_i32_1 = arith.constant 0 : i32
    return %c0_i32, %c0_i32_0 : i32, i32
  }
  func.func @transform_3(%arg0: i32) -> (i32, i32) {
    %c0_i32 = arith.constant 0 : i32
    %c0_i32_0 = arith.constant 0 : i32
    return %arg0, %c0_i32 : i32, i32
  }
}

</mosaic_0001>

<llo_original>
// kernel: tpu_custom_call.1
$region0: #{tpu_custom_call.1}
  #allocation0 [shape = 'u32[]', space=smem, size = 0x4, offset = 0x4, fixed_abs, tag = 'smem constant byte address 0x4 - core index']
  #allocation1 [shape = 'u32[72,128]{1,0:T(1,128)}', space=vmem, size = 0x9000, scoped, tag = 'internal scratch']
  %s0 = inlined_call_operand.hbm [shape: f32[2,32768], index: 0, kind: input, shape index: {}]
  %s1 = inlined_call_operand.hbm [shape: f32[2,32768], index: 1, kind: input, shape index: {}]
  %s2 = inlined_call_operand.vmem [shape: f32[1,2], index: 2, kind: input, shape index: {}]
  %s3 = inlined_call_operand.hbm [shape: f32[2,2], index: 3, kind: output, shape index: {}]
  %s4 = sld [smem:[#allocation0]]
  $region30: #{tpu_custom_call.1} parent=0
    _
  %s6 = ssub.s32 1, %s4
  %s7 = scalar_select 0, %s6, %s4
  $region1: #{tpu_custom_call.1} parent=0
    #allocation2 [shape = 'u8[262144]{0}', space=vmem, size = 0x40000, scoped, tag = 'input window, operand 0, single buffered']
    #allocation3 [shape = 's32[1]{0}', space=sflag, size = 0x4, scoped, tag = 'scoped memory for tpu_custom_call.1']
    #allocation4 [shape = 's32[1]{0}', space=sflag, size = 0x4, scoped, tag = 'scoped memory for tpu_custom_call.1']
    #allocation5 [shape = 'u8[262144]{0}', space=vmem, size = 0x40000, scoped, tag = 'input window, operand 1, single buffered']
    #allocation6 [shape = 's32[1]{0}', space=sflag, size = 0x4, scoped, tag = 'scoped memory for tpu_custom_call.1']
    #allocation7 [shape = 'u8[1024]{0}', space=vmem, size = 0x400, scoped, tag = 'output window, operand 0, single buffered']
    %8 = vsyncpa [#allocation3], 0
    %9 = vsyncpa [#allocation6], 0
    %10 = vsyncpa [#allocation4], 0
    // Predicated region
    $region2: #{tpu_custom_call.1} parent=1 // pred_check
      _
    $region3: #{tpu_custom_call.1} parent=1 // pred_check_branch
      %12 = sbr.rel (0) target = $region5
    $region4: #{tpu_custom_call.1} parent=1 // pred_region
      %14 = vsyncadd [#allocation3], 0
      %s16 = sshll.u32 %s0, 4
      %s17 = int_to_ptr.hbm [resolvable:$true] %s16
      %s18 = sshll.u32 [#allocation2], 4
      %s19 = int_to_ptr.vmem [resolvable:$true] %s18
      %21 = dma.hbm_to_vmem [thread:$0]  %s17, 8192, %s19, [#allocation3]
    $region5: #{tpu_custom_call.1} parent=1 // pred_fallthru
      _
    // Predicated region
    $region6: #{tpu_custom_call.1} parent=1 // pred_check
      _
    $region7: #{tpu_custom_call.1} parent=1 // pred_check_branch
      %23 = sbr.rel (0) target = $region9
    $region8: #{tpu_custom_call.1} parent=1 // pred_region
      %25 = vsyncadd [#allocation6], 0
      %s27 = sshll.u32 %s1, 4
      %s28 = int_to_ptr.hbm [resolvable:$true] %s27
      %s29 = sshll.u32 [#allocation5], 4
      %s30 = int_to_ptr.vmem [resolvable:$true] %s29
      %32 = dma.hbm_to_vmem [thread:$0]  %s28, 8192, %s30, [#allocation6]
    $region9: #{tpu_custom_call.1} parent=1 // pred_fallthru
      _
    // Predicated region
    $region10: #{tpu_custom_call.1} parent=1 // pred_check
      _
    $region11: #{tpu_custom_call.1} parent=1 // pred_check_branch
      %34 = sbr.rel (0) target = $region13
    $region12: #{tpu_custom_call.1} parent=1 // pred_region
      _
    $region13: #{tpu_custom_call.1} parent=1 // pred_fallthru
      _
    // Predicated region
    $region14: #{tpu_custom_call.1} parent=1 // pred_check
      _
    $region15: #{tpu_custom_call.1} parent=1 // pred_check_branch
      %36 = sbr.rel (0) target = $region17
    $region16: #{tpu_custom_call.1} parent=1 // pred_region
      %38 = dma.done [#allocation3], 8192
    $region17: #{tpu_custom_call.1} parent=1 // pred_fallthru
      _
    // Predicated region
    $region18: #{tpu_custom_call.1} parent=1 // pred_check
      _
    $region19: #{tpu_custom_call.1} parent=1 // pred_check_branch
      %40 = sbr.rel (0) target = $region21
    $region20: #{tpu_custom_call.1} parent=1 // pred_region
      %42 = dma.done [#allocation6], 8192
    $region21: #{tpu_custom_call.1} parent=1 // pred_fallthru
      _
    %v43 = vld [vmem:[#allocation2] sm:$0xff]
    %v44 = vld [vmem:[#allocation2 + $0x8] sm:$0xff]
    %v45 = vld [vmem:[#allocation2 + $0x10] sm:$0xff]
    %v46 = vld [vmem:[#allocation2 + $0x18] sm:$0xff]
    %v47 = vld [vmem:[#allocation2 + $0x20] sm:$0xff]
    %v48 = vld [vmem:[#allocation2 + $0x28] sm:$0xff]
    %v49 = vld [vmem:[#allocation2 + $0x30] sm:$0xff]
    %v50 = vld [vmem:[#allocation2 + $0x38] sm:$0xff]
    %v51 = vld [vmem:[#allocation2 + $0x40] sm:$0xff]
    %v52 = vld [vmem:[#allocation2 + $0x48] sm:$0xff]
    %v53 = vld [vmem:[#allocation2 + $0x50] sm:$0xff]
    %v54 = vld [vmem:[#allocation2 + $0x58] sm:$0xff]
    %v55 = vld [vmem:[#allocation2 + $0x60] sm:$0xff]
    %v56 = vld [vmem:[#allocation2 + $0x68] sm:$0xff]
    %v57 = vld [vmem:[#allocation2 + $0x70] sm:$0xff]
    %v58 = vld [vmem:[#allocation2 + $0x78] sm:$0xff]
    %v59 = vld [vmem:[#allocation2 + $0x80] sm:$0xff]
    %v60 = vld [vmem:[#allocation2 + $0x88] sm:$0xff]
    %v61 = vld [vmem:[#allocation2 + $0x90] sm:$0xff]
    %v62 = vld [vmem:[#allocation2 + $0x98] sm:$0xff]
    %v63 = vld [vmem:[#allocation2 + $0xa0] sm:$0xff]
    %v64 = vld [vmem:[#allocation2 + $0xa8] sm:$0xff]
    %v65 = vld [vmem:[#allocation2 + $0xb0] sm:$0xff]
    %v66 = vld [vmem:[#allocation2 + $0xb8] sm:$0xff]
    %v67 = vld [vmem:[#allocation2 + $0xc0] sm:$0xff]
    %v68 = vld [vmem:[#allocation2 + $0xc8] sm:$0xff]
    %v69 = vld [vmem:[#allocation2 + $0xd0] sm:$0xff]
    %v70 = vld [vmem:[#allocation2 + $0xd8] sm:$0xff]
    %v71 = vld [vmem:[#allocation2 + $0xe0] sm:$0xff]
    %v72 = vld [vmem:[#allocation2 + $0xe8] sm:$0xff]
    %v73 = vld [vmem:[#allocation2 + $0xf0] sm:$0xff]
    %v74 = vld [vmem:[#allocation2 + $0xf8] sm:$0xff]
    %v75 = vld [vmem:[#allocation2 + $0x100] sm:$0xff]
    %v76 = vld [vmem:[#allocation2 + $0x108] sm:$0xff]
    %v77 = vld [vmem:[#allocation2 + $0x110] sm:$0xff]
    %v78 = vld [vmem:[#allocation2 + $0x118] sm:$0xff]
    %v79 = vld [vmem:[#allocation2 + $0x120] sm:$0xff]
    %v80 = vld [vmem:[#allocation2 + $0x128] sm:$0xff]
    %v81 = vld [vmem:[#allocation2 + $0x130] sm:$0xff]
    %v82 = vld [vmem:[#allocation2 + $0x138] sm:$0xff]
    %v83 = vld [vmem:[#allocation2 + $0x140] sm:$0xff]
    %v84 = vld [vmem:[#allocation2 + $0x148] sm:$0xff]
    %v85 = vld [vmem:[#allocation2 + $0x150] sm:$0xff]
    %v86 = vld [vmem:[#allocation2 + $0x158] sm:$0xff]
    %v87 = vld [vmem:[#allocation2 + $0x160] sm:$0xff]
    %v88 = vld [vmem:[#allocation2 + $0x168] sm:$0xff]
    %v89 = vld [vmem:[#allocation2 + $0x170] sm:$0xff]
    %v90 = vld [vmem:[#allocation2 + $0x178] sm:$0xff]
    %v91 = vld [vmem:[#allocation2 + $0x180] sm:$0xff]
    %v92 = vld [vmem:[#allocation2 + $0x188] sm:$0xff]
    %v93 = vld [vmem:[#allocation2 + $0x190] sm:$0xff]
    %v94 = vld [vmem:[#allocation2 + $0x198] sm:$0xff]
    %v95 = vld [vmem:[#allocation2 + $0x1a0] sm:$0xff]
    %v96 = vld [vmem:[#allocation2 + $0x1a8] sm:$0xff]
    %v97 = vld [vmem:[#allocation2 + $0x1b0] sm:$0xff]
    %v98 = vld [vmem:[#allocation2 + $0x1b8] sm:$0xff]
    %v99 = vld [vmem:[#allocation2 + $0x1c0] sm:$0xff]
    %v100 = vld [vmem:[#allocation2 + $0x1c8] sm:$0xff]
    %v101 = vld [vmem:[#allocation2 + $0x1d0] sm:$0xff]
    %v102 = vld [vmem:[#allocation2 + $0x1d8] sm:$0xff]
    %v103 = vld [vmem:[#allocation2 + $0x1e0] sm:$0xff]
    %v104 = vld [vmem:[#allocation2 + $0x1e8] sm:$0xff]
    %v105 = vld [vmem:[#allocation2 + $0x1f0] sm:$0xff]
    %v106 = vld [vmem:[#allocation2 + $0x1f8] sm:$0xff]
    %v107 = vld [vmem:[#allocation5] sm:$0xff]
    %v108 = vld [vmem:[#allocation5 + $0x8] sm:$0xff]
    %v109 = vld [vmem:[#allocation5 + $0x10] sm:$0xff]
    %v110 = vld [vmem:[#allocation5 + $0x18] sm:$0xff]
    %v111 = vld [vmem:[#allocation5 + $0x20] sm:$0xff]
    %v112 = vld [vmem:[#allocation5 + $0x28] sm:$0xff]
    %v113 = vld [vmem:[#allocation5 + $0x30] sm:$0xff]
    %v114 = vld [vmem:[#allocation5 + $0x38] sm:$0xff]
    %v115 = vld [vmem:[#allocation5 + $0x40] sm:$0xff]
    %v116 = vld [vmem:[#allocation5 + $0x48] sm:$0xff]
    %v117 = vld [vmem:[#allocation5 + $0x50] sm:$0xff]
    %v118 = vld [vmem:[#allocation5 + $0x58] sm:$0xff]
    %v119 = vld [vmem:[#allocation5 + $0x60] sm:$0xff]
    %v120 = vld [vmem:[#allocation5 + $0x68] sm:$0xff]
    %v121 = vld [vmem:[#allocation5 + $0x70] sm:$0xff]
    %v122 = vld [vmem:[#allocation5 + $0x78] sm:$0xff]
    %v123 = vld [vmem:[#allocation5 + $0x80] sm:$0xff]
    %v124 = vld [vmem:[#allocation5 + $0x88] sm:$0xff]
    %v125 = vld [vmem:[#allocation5 + $0x90] sm:$0xff]
    %v126 = vld [vmem:[#allocation5 + $0x98] sm:$0xff]
    %v127 = vld [vmem:[#allocation5 + $0xa0] sm:$0xff]
    %v128 = vld [vmem:[#allocation5 + $0xa8] sm:$0xff]
    %v129 = vld [vmem:[#allocation5 + $0xb0] sm:$0xff]
    %v130 = vld [vmem:[#allocation5 + $0xb8] sm:$0xff]
    %v131 = vld [vmem:[#allocation5 + $0xc0] sm:$0xff]
    %v132 = vld [vmem:[#allocation5 + $0xc8] sm:$0xff]
    %v133 = vld [vmem:[#allocation5 + $0xd0] sm:$0xff]
    %v134 = vld [vmem:[#allocation5 + $0xd8] sm:$0xff]
    %v135 = vld [vmem:[#allocation5 + $0xe0] sm:$0xff]
    %v136 = vld [vmem:[#allocation5 + $0xe8] sm:$0xff]
    %v137 = vld [vmem:[#allocation5 + $0xf0] sm:$0xff]
    %v138 = vld [vmem:[#allocation5 + $0xf8] sm:$0xff]
    %v139 = vld [vmem:[#allocation5 + $0x100] sm:$0xff]
    %v140 = vld [vmem:[#allocation5 + $0x108] sm:$0xff]
    %v141 = vld [vmem:[#allocation5 + $0x110] sm:$0xff]
    %v142 = vld [vmem:[#allocation5 + $0x118] sm:$0xff]
    %v143 = vld [vmem:[#allocation5 + $0x120] sm:$0xff]
    %v144 = vld [vmem:[#allocation5 + $0x128] sm:$0xff]
    %v145 = vld [vmem:[#allocation5 + $0x130] sm:$0xff]
    %v146 = vld [vmem:[#allocation5 + $0x138] sm:$0xff]
    %v147 = vld [vmem:[#allocation5 + $0x140] sm:$0xff]
    %v148 = vld [vmem:[#allocation5 + $0x148] sm:$0xff]
    %v149 = vld [vmem:[#allocation5 + $0x150] sm:$0xff]
    %v150 = vld [vmem:[#allocation5 + $0x158] sm:$0xff]
    %v151 = vld [vmem:[#allocation5 + $0x160] sm:$0xff]
    %v152 = vld [vmem:[#allocation5 + $0x168] sm:$0xff]
    %v153 = vld [vmem:[#allocation5 + $0x170] sm:$0xff]
    %v154 = vld [vmem:[#allocation5 + $0x178] sm:$0xff]
    %v155 = vld [vmem:[#allocation5 + $0x180] sm:$0xff]
    %v156 = vld [vmem:[#allocation5 + $0x188] sm:$0xff]
    %v157 = vld [vmem:[#allocation5 + $0x190] sm:$0xff]
    %v158 = vld [vmem:[#allocation5 + $0x198] sm:$0xff]
    %v159 = vld [vmem:[#allocation5 + $0x1a0] sm:$0xff]
    %v160 = vld [vmem:[#allocation5 + $0x1a8] sm:$0xff]
    %v161 = vld [vmem:[#allocation5 + $0x1b0] sm:$0xff]
    %v162 = vld [vmem:[#allocation5 + $0x1b8] sm:$0xff]
    %v163 = vld [vmem:[#allocation5 + $0x1c0] sm:$0xff]
    %v164 = vld [vmem:[#allocation5 + $0x1c8] sm:$0xff]
    %v165 = vld [vmem:[#allocation5 + $0x1d0] sm:$0xff]
    %v166 = vld [vmem:[#allocation5 + $0x1d8] sm:$0xff]
    %v167 = vld [vmem:[#allocation5 + $0x1e0] sm:$0xff]
    %v168 = vld [vmem:[#allocation5 + $0x1e8] sm:$0xff]
    %v169 = vld [vmem:[#allocation5 + $0x1f0] sm:$0xff]
    %v170 = vld [vmem:[#allocation5 + $0x1f8] sm:$0xff]
    %v171 = vld [vmem:[%s2] sm:$0x1]
    %v173 = vperm.slane %v171, 0
    %239 = vst [vmem:[#allocation1] ss:$4 sm:$0xff] %v43
    %s240 = scalar_lea.vmem [#allocation1], 32
    %241 = vst [vmem:[%s240] ss:$4 sm:$0xff] %v44
    %v242 = vld.sshfl [vmem:[#allocation1] sm:$0xff pattern:$0x73625140]
    %v243 = vld.sshfl [vmem:[#allocation1 + $0x8] sm:$0xff pattern:$0x73625140]
    %v244 = vld.sshfl [vmem:[#allocation1 + $0x10] sm:$0xff pattern:$0x73625140]
    %v245 = vld.sshfl [vmem:[#allocation1 + $0x18] sm:$0xff pattern:$0x73625140]
    %v246 = vld.sshfl [vmem:[#allocation1 + $0x20] sm:$0xff pattern:$0x73625140]
    %v247 = vld.sshfl [vmem:[#allocation1 + $0x28] sm:$0xff pattern:$0x73625140]
    %v248 = vld.sshfl [vmem:[#allocation1 + $0x30] sm:$0xff pattern:$0x73625140]
    %v249 = vld.sshfl [vmem:[#allocation1 + $0x38] sm:$0xff pattern:$0x73625140]
    %250 = vst [vmem:[#allocation1] ss:$4 sm:$0xff] %v45
    %251 = vst [vmem:[%s240] ss:$4 sm:$0xff] %v46
    %v252 = vld.sshfl [vmem:[#allocation1] sm:$0xff pattern:$0x73625140]
    %v253 = vld.sshfl [vmem:[#allocation1 + $0x8] sm:$0xff pattern:$0x73625140]
    %v254 = vld.sshfl [vmem:[#allocation1 + $0x10] sm:$0xff pattern:$0x73625140]
    %v255 = vld.sshfl [vmem:[#allocation1 + $0x18] sm:$0xff pattern:$0x73625140]
    %v256 = vld.sshfl [vmem:[#allocation1 + $0x20] sm:$0xff pattern:$0x73625140]
    %v257 = vld.sshfl [vmem:[#allocation1 + $0x28] sm:$0xff pattern:$0x73625140]
    %v258 = vld.sshfl [vmem:[#allocation1 + $0x30] sm:$0xff pattern:$0x73625140]
    %v259 = vld.sshfl [vmem:[#allocation1 + $0x38] sm:$0xff pattern:$0x73625140]
    %260 = vst [vmem:[#allocation1] ss:$4 sm:$0xff] %v47
    %261 = vst [vmem:[%s240] ss:$4 sm:$0xff] %v48
    %v262 = vld.sshfl [vmem:[#allocation1] sm:$0xff pattern:$0x73625140]
    %v263 = vld.sshfl [vmem:[#allocation1 + $0x8] sm:$0xff pattern:$0x73625140]
    %v264 = vld.sshfl [vmem:[#allocation1 + $0x10] sm:$0xff pattern:$0x73625140]
    %v265 = vld.sshfl [vmem:[#allocation1 + $0x18] sm:$0xff pattern:$0x73625140]
    %v266 = vld.sshfl [vmem:[#allocation1 + $0x20] sm:$0xff pattern:$0x73625140]
    %v267 = vld.sshfl [vmem:[#allocation1 + $0x28] sm:$0xff pattern:$0x73625140]
    %v268 = vld.sshfl [vmem:[#allocation1 + $0x30] sm:$0xff pattern:$0x73625140]
    %v269 = vld.sshfl [vmem:[#allocation1 + $0x38] sm:$0xff pattern:$0x73625140]
    %270 = vst [vmem:[#allocation1] ss:$4 sm:$0xff] %v49
    %271 = vst [vmem:[%s240] ss:$4 sm:$0xff] %v50
    %v272 = vld.sshfl [vmem:[#allocation1] sm:$0xff pattern:$0x73625140]
    %v273 = vld.sshfl [vmem:[#allocation1 + $0x8] sm:$0xff pattern:$0x73625140]
    %v274 = vld.sshfl [vmem:[#allocation1 + $0x10] sm:$0xff pattern:$0x73625140]
    %v275 = vld.sshfl [vmem:[#allocation1 + $0x18] sm:$0xff pattern:$0x73625140]
    %v276 = vld.sshfl [vmem:[#allocation1 + $0x20] sm:$0xff pattern:$0x73625140]
    %v277 = vld.sshfl [vmem:[#allocation1 + $0x28] sm:$0xff pattern:$0x73625140]
    %v278 = vld.sshfl [vmem:[#allocation1 + $0x30] sm:$0xff pattern:$0x73625140]
    %v279 = vld.sshfl [vmem:[#allocation1 + $0x38] sm:$0xff pattern:$0x73625140]
    %280 = vst [vmem:[#allocation1] ss:$4 sm:$0xff] %v51
    %281 = vst [vmem:[%s240] ss:$4 sm:$0xff] %v52
    %v282 = vld.sshfl [vmem:[#allocation1] sm:$0xff pattern:$0x73625140]
    %v283 = vld.sshfl [vmem:[#allocation1 + $0x8] sm:$0xff pattern:$0x73625140]
    %v284 = vld.sshfl [vmem:[#allocation1 + $0x10] sm:$0xff pattern:$0x73625140]
    %v285 = vld.sshfl [vmem:[#allocation1 + $0x18] sm:$0xff pattern:$0x73625140]
    %v286 = vld.sshfl [vmem:[#allocation1 + $0x20] sm:$0xff pattern:$0x73625140]
    %v287 = vld.sshfl [vmem:[#allocation1 + $0x28] sm:$0xff pattern:$0x73625140]
    %v288 = vld.sshfl [vmem:[#allocation1 + $0x30] sm:$0xff pattern:$0x73625140]
    %v289 = vld.sshfl [vmem:[#allocation1 + $0x38] sm:$0xff pattern:$0x73625140]
    %290 = vst [vmem:[#allocation1] ss:$4 sm:$0xff] %v53
    %291 = vst [vmem:[%s240] ss:$4 sm:$0xff] %v54
    %v292 = vld.sshfl [vmem:[#allocation1] sm:$0xff pattern:$0x73625140]
    %v293 = vld.sshfl [vmem:[#allocation1 + $0x8] sm:$0xff pattern:$0x73625140]
    %v294 = vld.sshfl [vmem:[#allocation1 + $0x10] sm:$0xff pattern:$0x73625140]
    %v295 = vld.sshfl [vmem:[#allocation1 + $0x18] sm:$0xff pattern:$0x73625140]
    %v296 = vld.sshfl [vmem:[#allocation1 + $0x20] sm:$0xff pattern:$0x73625140]
    %v297 = vld.sshfl [vmem:[#allocation1 + $0x28] sm:$0xff pattern:$0x73625140]
    %v298 = vld.sshfl [vmem:[#allocation1 + $0x30] sm:$0xff pattern:$0x73625140]
    %v299 = vld.sshfl [vmem:[#allocation1 + $0x38] sm:$0xff pattern:$0x73625140]
    %300 = vst [vmem:[#allocation1] ss:$4 sm:$0xff] %v55
    %301 = vst [vmem:[%s240] ss:$4 sm:$0xff] %v56
    %v302 = vld.sshfl [vmem:[#allocation1] sm:$0xff pattern:$0x73625140]
    %v303 = vld.sshfl [vmem:[#allocation1 + $0x8] sm:$0xff pattern:$0x73625140]
    %v304 = vld.sshfl [vmem:[#allocation1 + $0x10] sm:$0xff pattern:$0x73625140]
    %v305 = vld.sshfl [vmem:[#allocation1 + $0x18] sm:$0xff pattern:$0x73625140]
    %v306 = vld.sshfl [vmem:[#allocation1 + $0x20] sm:$0xff pattern:$0x73625140]
    %v307 = vld.sshfl [vmem:[#allocation1 + $0x28] sm:$0xff pattern:$0x73625140]
    %v308 = vld.sshfl [vmem:[#allocation1 + $0x30] sm:$0xff pattern:$0x73625140]
    %v309 = vld.sshfl [vmem:[#allocation1 + $0x38] sm:$0xff pattern:$0x73625140]
    %310 = vst [vmem:[#allocation1] ss:$4 sm:$0xff] %v57
    %311 = vst [vmem:[%s240] ss:$4 sm:$0xff] %v58
    %v312 = vld.sshfl [vmem:[#allocation1] sm:$0xff pattern:$0x73625140]
    %v313 = vld.sshfl [vmem:[#allocation1 + $0x8] sm:$0xff pattern:$0x73625140]
    %v314 = vld.sshfl [vmem:[#allocation1 + $0x10] sm:$0xff pattern:$0x73625140]
    %v315 = vld.sshfl [vmem:[#allocation1 + $0x18] sm:$0xff pattern:$0x73625140]
    %v316 = vld.sshfl [vmem:[#allocation1 + $0x20] sm:$0xff pattern:$0x73625140]
    %v317 = vld.sshfl [vmem:[#allocation1 + $0x28] sm:$0xff pattern:$0x73625140]
    %v318 = vld.sshfl [vmem:[#allocation1 + $0x30] sm:$0xff pattern:$0x73625140]
    %v319 = vld.sshfl [vmem:[#allocation1 + $0x38] sm:$0xff pattern:$0x73625140]
    %320 = vst [vmem:[#allocation1] ss:$4 sm:$0xff] %v59
    %321 = vst [vmem:[%s240] ss:$4 sm:$0xff] %v60
    %v322 = vld.sshfl [vmem:[#allocation1] sm:$0xff pattern:$0x73625140]
    %v323 = vld.sshfl [vmem:[#allocation1 + $0x8] sm:$0xff pattern:$0x73625140]
    %v324 = vld.sshfl [vmem:[#allocation1 + $0x10] sm:$0xff pattern:$0x73625140]
    %v325 = vld.sshfl [vmem:[#allocation1 + $0x18] sm:$0xff pattern:$0x73625140]
    %v326 = vld.sshfl [vmem:[#allocation1 + $0x20] sm:$0xff pattern:$0x73625140]
    %v327 = vld.sshfl [vmem:[#allocation1 + $0x28] sm:$0xff pattern:$0x73625140]
    %v328 = vld.sshfl [vmem:[#allocation1 + $0x30] sm:$0xff pattern:$0x73625140]
    %v329 = vld.sshfl [vmem:[#allocation1 + $0x38] sm:$0xff pattern:$0x73625140]
    %330 = vst [vmem:[#allocation1] ss:$4 sm:$0xff] %v61
    %331 = vst [vmem:[%s240] ss:$4 sm:$0xff] %v62
    %v332 = vld.sshfl [vmem:[#allocation1] sm:$0xff pattern:$0x73625140]
    %v333 = vld.sshfl [vmem:[#allocation1 + $0x8] sm:$0xff pattern:$0x73625140]
    %v334 = vld.sshfl [vmem:[#allocation1 + $0x10] sm:$0xff pattern:$0x73625140]
    %v335 = vld.sshfl [vmem:[#allocation1 + $0x18] sm:$0xff pattern:$0x73625140]
    %v336 = vld.sshfl [vmem:[#allocation1 + $0x20] sm:$0xff pattern:$0x73625140]
    %v337 = vld.sshfl [vmem:[#allocation1 + $0x28] sm:$0xff pattern:$0x73625140]
    %v338 = vld.sshfl [vmem:[#allocation1 + $0x30] sm:$0xff pattern:$0x73625140]
    %v339 = vld.sshfl [vmem:[#allocation1 + $0x38] sm:$0xff pattern:$0x73625140]
    %340 = vst [vmem:[#allocation1] ss:$4 sm:$0xff] %v63
    %341 = vst [vmem:[%s240] ss:$4 sm:$0xff] %v64
    %v342 = vld.sshfl [vmem:[#allocation1] sm:$0xff pattern:$0x73625140]
    %v343 = vld.sshfl [vmem:[#allocation1 + $0x8] sm:$0xff pattern:$0x73625140]
    %v344 = vld.sshfl [vmem:[#allocation1 + $0x10] sm:$0xff pattern:$0x73625140]
    %v345 = vld.sshfl [vmem:[#allocation1 + $0x18] sm:$0xff pattern:$0x73625140]
    %v346 = vld.sshfl [vmem:[#allocation1 + $0x20] sm:$0xff pattern:$0x73625140]
    %v347 = vld.sshfl [vmem:[#allocation1 + $0x28] sm:$0xff pattern:$0x73625140]
    %v348 = vld.sshfl [vmem:[#allocation1 + $0x30] sm:$0xff pattern:$0x73625140]
    %v349 = vld.sshfl [vmem:[#allocation1 + $0x38] sm:$0xff pattern:$0x73625140]
    %350 = vst [vmem:[#allocation1] ss:$4 sm:$0xff] %v65
    %351 = vst [vmem:[%s240] ss:$4 sm:$0xff] %v66
    %v352 = vld.sshfl [vmem:[#allocation1] sm:$0xff pattern:$0x73625140]
    %v353 = vld.sshfl [vmem:[#allocation1 + $0x8] sm:$0xff pattern:$0x73625140]
    %v354 = vld.sshfl [vmem:[#allocation1 + $0x10] sm:$0xff pattern:$0x73625140]
    %v355 = vld.sshfl [vmem:[#allocation1 + $0x18] sm:$0xff pattern:$0x73625140]
    %v356 = vld.sshfl [vmem:[#allocation1 + $0x20] sm:$0xff pattern:$0x73625140]
    %v357 = vld.sshfl [vmem:[#allocation1 + $0x28] sm:$0xff pattern:$0x73625140]
    %v358 = vld.sshfl [vmem:[#allocation1 + $0x30] sm:$0xff pattern:$0x73625140]
    %v359 = vld.sshfl [vmem:[#allocation1 + $0x38] sm:$0xff pattern:$0x73625140]
    %360 = vst [vmem:[#allocation1] ss:$4 sm:$0xff] %v67
    %361 = vst [vmem:[%s240] ss:$4 sm:$0xff] %v68
    %v362 = vld.sshfl [vmem:[#allocation1] sm:$0xff pattern:$0x73625140]
    %v363 = vld.sshfl [vmem:[#allocation1 + $0x8] sm:$0xff pattern:$0x73625140]
    %v364 = vld.sshfl [vmem:[#allocation1 + $0x10] sm:$0xff pattern:$0x73625140]
    %v365 = vld.sshfl [vmem:[#allocation1 + $0x18] sm:$0xff pattern:$0x73625140]
    %v366 = vld.sshfl [vmem:[#allocation1 + $0x20] sm:$0xff pattern:$0x73625140]
    %v367 = vld.sshfl [vmem:[#allocation1 + $0x28] sm:$0xff pattern:$0x73625140]
    %v368 = vld.sshfl [vmem:[#allocation1 + $0x30] sm:$0xff pattern:$0x73625140]
    %v369 = vld.sshfl [vmem:[#allocation1 + $0x38] sm:$0xff pattern:$0x73625140]
    %370 = vst [vmem:[#allocation1] ss:$4 sm:$0xff] %v69
    %371 = vst [vmem:[%s240] ss:$4 sm:$0xff] %v70
    %v372 = vld.sshfl [vmem:[#allocation1] sm:$0xff pattern:$0x73625140]
    %v373 = vld.sshfl [vmem:[#allocation1 + $0x8] sm:$0xff pattern:$0x73625140]
    %v374 = vld.sshfl [vmem:[#allocation1 + $0x10] sm:$0xff pattern:$0x73625140]
    %v375 = vld.sshfl [vmem:[#allocation1 + $0x18] sm:$0xff pattern:$0x73625140]
    %v376 = vld.sshfl [vmem:[#allocation1 + $0x20] sm:$0xff pattern:$0x73625140]
    %v377 = vld.sshfl [vmem:[#allocation1 + $0x28] sm:$0xff pattern:$0x73625140]
    %v378 = vld.sshfl [vmem:[#allocation1 + $0x30] sm:$0xff pattern:$0x73625140]
    %v379 = vld.sshfl [vmem:[#allocation1 + $0x38] sm:$0xff pattern:$0x73625140]
    %380 = vst [vmem:[#allocation1] ss:$4 sm:$0xff] %v71
    %381 = vst [vmem:[%s240] ss:$4 sm:$0xff] %v72
    %v382 = vld.sshfl [vmem:[#allocation1] sm:$0xff pattern:$0x73625140]
    %v383 = vld.sshfl [vmem:[#allocation1 + $0x8] sm:$0xff pattern:$0x73625140]
    %v384 = vld.sshfl [vmem:[#allocation1 + $0x10] sm:$0xff pattern:$0x73625140]
    %v385 = vld.sshfl [vmem:[#allocation1 + $0x18] sm:$0xff pattern:$0x73625140]
    %v386 = vld.sshfl [vmem:[#allocation1 + $0x20] sm:$0xff pattern:$0x73625140]
    %v387 = vld.sshfl [vmem:[#allocation1 + $0x28] sm:$0xff pattern:$0x73625140]
    %v388 = vld.sshfl [vmem:[#allocation1 + $0x30] sm:$0xff pattern:$0x73625140]
    %v389 = vld.sshfl [vmem:[#allocation1 + $0x38] sm:$0xff pattern:$0x73625140]
    %390 = vst [vmem:[#allocation1] ss:$4 sm:$0xff] %v73
    %391 = vst [vmem:[%s240] ss:$4 sm:$0xff] %v74
    %v392 = vld.sshfl [vmem:[#allocation1] sm:$0xff pattern:$0x73625140]
    %v393 = vld.sshfl [vmem:[#allocation1 + $0x8] sm:$0xff pattern:$0x73625140]
    %v394 = vld.sshfl [vmem:[#allocation1 + $0x10] sm:$0xff pattern:$0x73625140]
    %v395 = vld.sshfl [vmem:[#allocation1 + $0x18] sm:$0xff pattern:$0x73625140]
    %v396 = vld.sshfl [vmem:[#allocation1 + $0x20] sm:$0xff pattern:$0x73625140]
    %v397 = vld.sshfl [vmem:[#allocation1 + $0x28] sm:$0xff pattern:$0x73625140]
    %v398 = vld.sshfl [vmem:[#allocation1 + $0x30] sm:$0xff pattern:$0x73625140]
    %v399 = vld.sshfl [vmem:[#allocation1 + $0x38] sm:$0xff pattern:$0x73625140]
    %400 = vst [vmem:[#allocation1] ss:$4 sm:$0xff] %v75
    %401 = vst [vmem:[%s240] ss:$4 sm:$0xff] %v76
    %v402 = vld.sshfl [vmem:[#allocation1] sm:$0xff pattern:$0x73625140]
    %v403 = vld.sshfl [vmem:[#allocation1 + $0x8] sm:$0xff pattern:$0x73625140]
    %v404 = vld.sshfl [vmem:[#allocation1 + $0x10] sm:$0xff pattern:$0x73625140]
    %v405 = vld.sshfl [vmem:[#allocation1 + $0x18] sm:$0xff pattern:$0x73625140]
    %v406 = vld.sshfl [vmem:[#allocation1 + $0x20] sm:$0xff pattern:$0x73625140]
    %v407 = vld.sshfl [vmem:[#allocation1 + $0x28] sm:$0xff pattern:$0x73625140]
    %v408 = vld.sshfl [vmem:[#allocation1 + $0x30] sm:$0xff pattern:$0x73625140]
    %v409 = vld.sshfl [vmem:[#allocation1 + $0x38] sm:$0xff pattern:$0x73625140]
    %410 = vst [vmem:[#allocation1] ss:$4 sm:$0xff] %v77
    %411 = vst [vmem:[%s240] ss:$4 sm:$0xff] %v78
    %v412 = vld.sshfl [vmem:[#allocation1] sm:$0xff pattern:$0x73625140]
    %v413 = vld.sshfl [vmem:[#allocation1 + $0x8] sm:$0xff pattern:$0x73625140]
    %v414 = vld.sshfl [vmem:[#allocation1 + $0x10] sm:$0xff pattern:$0x73625140]
    %v415 = vld.sshfl [vmem:[#allocation1 + $0x18] sm:$0xff pattern:$0x73625140]
    %v416 = vld.sshfl [vmem:[#allocation1 + $0x20] sm:$0xff pattern:$0x73625140]
    %v417 = vld.sshfl [vmem:[#allocation1 + $0x28] sm:$0xff pattern:$0x73625140]
    %v418 = vld.sshfl [vmem:[#allocation1 + $0x30] sm:$0xff pattern:$0x73625140]
    %v419 = vld.sshfl [vmem:[#allocation1 + $0x38] sm:$0xff pattern:$0x73625140]
    %420 = vst [vmem:[#allocation1] ss:$4 sm:$0xff] %v79
    %421 = vst [vmem:[%s240] ss:$4 sm:$0xff] %v80
    %v422 = vld.sshfl [vmem:[#allocation1] sm:$0xff pattern:$0x73625140]
    %v423 = vld.sshfl [vmem:[#allocation1 + $0x8] sm:$0xff pattern:$0x73625140]
    %v424 = vld.sshfl [vmem:[#allocation1 + $0x10] sm:$0xff pattern:$0x73625140]
    %v425 = vld.sshfl [vmem:[#allocation1 + $0x18] sm:$0xff pattern:$0x73625140]
    %v426 = vld.sshfl [vmem:[#allocation1 + $0x20] sm:$0xff pattern:$0x73625140]
    %v427 = vld.sshfl [vmem:[#allocation1 + $0x28] sm:$0xff pattern:$0x73625140]
    %v428 = vld.sshfl [vmem:[#allocation1 + $0x30] sm:$0xff pattern:$0x73625140]
    %v429 = vld.sshfl [vmem:[#allocation1 + $0x38] sm:$0xff pattern:$0x73625140]
    %430 = vst [vmem:[#allocation1] ss:$4 sm:$0xff] %v81
    %431 = vst [vmem:[%s240] ss:$4 sm:$0xff] %v82
    %v432 = vld.sshfl [vmem:[#allocation1] sm:$0xff pattern:$0x73625140]
    %v433 = vld.sshfl [vmem:[#allocation1 + $0x8] sm:$0xff pattern:$0x73625140]
    %v434 = vld.sshfl [vmem:[#allocation1 + $0x10] sm:$0xff pattern:$0x73625140]
    %v435 = vld.sshfl [vmem:[#allocation1 + $0x18] sm:$0xff pattern:$0x73625140]
    %v436 = vld.sshfl [vmem:[#allocation1 + $0x20] sm:$0xff pattern:$0x73625140]
    %v437 = vld.sshfl [vmem:[#allocation1 + $0x28] sm:$0xff pattern:$0x73625140]
    %v438 = vld.sshfl [vmem:[#allocation1 + $0x30] sm:$0xff pattern:$0x73625140]
    %v439 = vld.sshfl [vmem:[#allocation1 + $0x38] sm:$0xff pattern:$0x73625140]
    %440 = vst [vmem:[#allocation1] ss:$4 sm:$0xff] %v83
    %441 = vst [vmem:[%s240] ss:$4 sm:$0xff] %v84
    %v442 = vld.sshfl [vmem:[#allocation1] sm:$0xff pattern:$0x73625140]
    %v443 = vld.sshfl [vmem:[#allocation1 + $0x8] sm:$0xff pattern:$0x73625140]
    %v444 = vld.sshfl [vmem:[#allocation1 + $0x10] sm:$0xff pattern:$0x73625140]
    %v445 = vld.sshfl [vmem:[#allocation1 + $0x18] sm:$0xff pattern:$0x73625140]
    %v446 = vld.sshfl [vmem:[#allocation1 + $0x20] sm:$0xff pattern:$0x73625140]
    %v447 = vld.sshfl [vmem:[#allocation1 + $0x28] sm:$0xff pattern:$0x73625140]
    %v448 = vld.sshfl [vmem:[#allocation1 + $0x30] sm:$0xff pattern:$0x73625140]
    %v449 = vld.sshfl [vmem:[#allocation1 + $0x38] sm:$0xff pattern:$0x73625140]
    %450 = vst [vmem:[#allocation1] ss:$4 sm:$0xff] %v85
    %451 = vst [vmem:[%s240] ss:$4 sm:$0xff] %v86
    %v452 = vld.sshfl [vmem:[#allocation1] sm:$0xff pattern:$0x73625140]
    %v453 = vld.sshfl [vmem:[#allocation1 + $0x8] sm:$0xff pattern:$0x73625140]
    %v454 = vld.sshfl [vmem:[#allocation1 + $0x10] sm:$0xff pattern:$0x73625140]
    %v455 = vld.sshfl [vmem:[#allocation1 + $0x18] sm:$0xff pattern:$0x73625140]
    %v456 = vld.sshfl [vmem:[#allocation1 + $0x20] sm:$0xff pattern:$0x73625140]
    %v457 = vld.sshfl [vmem:[#allocation1 + $0x28] sm:$0xff pattern:$0x73625140]
    %v458 = vld.sshfl [vmem:[#allocation1 + $0x30] sm:$0xff pattern:$0x73625140]
    %v459 = vld.sshfl [vmem:[#allocation1 + $0x38] sm:$0xff pattern:$0x73625140]
    %460 = vst [vmem:[#allocation1] ss:$4 sm:$0xff] %v87
    %461 = vst [vmem:[%s240] ss:$4 sm:$0xff] %v88
    %v462 = vld.sshfl [vmem:[#allocation1] sm:$0xff pattern:$0x73625140]
    %v463 = vld.sshfl [vmem:[#allocation1 + $0x8] sm:$0xff pattern:$0x73625140]
    %v464 = vld.sshfl [vmem:[#allocation1 + $0x10] sm:$0xff pattern:$0x73625140]
    %v465 = vld.sshfl [vmem:[#allocation1 + $0x18] sm:$0xff pattern:$0x73625140]
    %v466 = vld.sshfl [vmem:[#allocation1 + $0x20] sm:$0xff pattern:$0x73625140]
    %v467 = vld.sshfl [vmem:[#allocation1 + $0x28] sm:$0xff pattern:$0x73625140]
    %v468 = vld.sshfl [vmem:[#allocation1 + $0x30] sm:$0xff pattern:$0x73625140]
    %v469 = vld.sshfl [vmem:[#allocation1 + $0x38] sm:$0xff pattern:$0x73625140]
    %470 = vst [vmem:[#allocation1] ss:$4 sm:$0xff] %v89
    %471 = vst [vmem:[%s240] ss:$4 sm:$0xff] %v90
    %v472 = vld.sshfl [vmem:[#allocation1] sm:$0xff pattern:$0x73625140]
    %v473 = vld.sshfl [vmem:[#allocation1 + $0x8] sm:$0xff pattern:$0x73625140]
    %v474 = vld.sshfl [vmem:[#allocation1 + $0x10] sm:$0xff pattern:$0x73625140]
    %v475 = vld.sshfl [vmem:[#allocation1 + $0x18] sm:$0xff pattern:$0x73625140]
    %v476 = vld.sshfl [vmem:[#allocation1 + $0x20] sm:$0xff pattern:$0x73625140]
    %v477 = vld.sshfl [vmem:[#allocation1 + $0x28] sm:$0xff pattern:$0x73625140]
    %v478 = vld.sshfl [vmem:[#allocation1 + $0x30] sm:$0xff pattern:$0x73625140]
    %v479 = vld.sshfl [vmem:[#allocation1 + $0x38] sm:$0xff pattern:$0x73625140]
    %480 = vst [vmem:[#allocation1] ss:$4 sm:$0xff] %v91
    %481 = vst [vmem:[%s240] ss:$4 sm:$0xff] %v92
    %v482 = vld.sshfl [vmem:[#allocation1] sm:$0xff pattern:$0x73625140]
    %v483 = vld.sshfl [vmem:[#allocation1 + $0x8] sm:$0xff pattern:$0x73625140]
    %v484 = vld.sshfl [vmem:[#allocation1 + $0x10] sm:$0xff pattern:$0x73625140]
    %v485 = vld.sshfl [vmem:[#allocation1 + $0x18] sm:$0xff pattern:$0x73625140]
    %v486 = vld.sshfl [vmem:[#allocation1 + $0x20] sm:$0xff pattern:$0x73625140]
    %v487 = vld.sshfl [vmem:[#allocation1 + $0x28] sm:$0xff pattern:$0x73625140]
    %v488 = vld.sshfl [vmem:[#allocation1 + $0x30] sm:$0xff pattern:$0x73625140]
    %v489 = vld.sshfl [vmem:[#allocation1 + $0x38] sm:$0xff pattern:$0x73625140]
    %490 = vst [vmem:[#allocation1] ss:$4 sm:$0xff] %v93
    %491 = vst [vmem:[%s240] ss:$4 sm:$0xff] %v94
    %v492 = vld.sshfl [vmem:[#allocation1] sm:$0xff pattern:$0x73625140]
    %v493 = vld.sshfl [vmem:[#allocation1 + $0x8] sm:$0xff pattern:$0x73625140]
    %v494 = vld.sshfl [vmem:[#allocation1 + $0x10] sm:$0xff pattern:$0x73625140]
    %v495 = vld.sshfl [vmem:[#allocation1 + $0x18] sm:$0xff pattern:$0x73625140]
    %v496 = vld.sshfl [vmem:[#allocation1 + $0x20] sm:$0xff pattern:$0x73625140]
    %v497 = vld.sshfl [vmem:[#allocation1 + $0x28] sm:$0xff pattern:$0x73625140]
    %v498 = vld.sshfl [vmem:[#allocation1 + $0x30] sm:$0xff pattern:$0x73625140]
    %v499 = vld.sshfl [vmem:[#allocation1 + $0x38] sm:$0xff pattern:$0x73625140]
    %500 = vst [vmem:[#allocation1] ss:$4 sm:$0xff] %v95
    %501 = vst [vmem:[%s240] ss:$4 sm:$0xff] %v96
    %v502 = vld.sshfl [vmem:[#allocation1] sm:$0xff pattern:$0x73625140]
    %v503 = vld.sshfl [vmem:[#allocation1 + $0x8] sm:$0xff pattern:$0x73625140]
    %v504 = vld.sshfl [vmem:[#allocation1 + $0x10] sm:$0xff pattern:$0x73625140]
    %v505 = vld.sshfl [vmem:[#allocation1 + $0x18] sm:$0xff pattern:$0x73625140]
    %v506 = vld.sshfl [vmem:[#allocation1 + $0x20] sm:$0xff pattern:$0x73625140]
    %v507 = vld.sshfl [vmem:[#allocation1 + $0x28] sm:$0xff pattern:$0x73625140]
    %v508 = vld.sshfl [vmem:[#allocation1 + $0x30] sm:$0xff pattern:$0x73625140]
    %v509 = vld.sshfl [vmem:[#allocation1 + $0x38] sm:$0xff pattern:$0x73625140]
    %510 = vst [vmem:[#allocation1] ss:$4 sm:$0xff] %v97
    %511 = vst [vmem:[%s240] ss:$4 sm:$0xff] %v98
    %v512 = vld.sshfl [vmem:[#allocation1] sm:$0xff pattern:$0x73625140]
    %v513 = vld.sshfl [vmem:[#allocation1 + $0x8] sm:$0xff pattern:$0x73625140]
    %v514 = vld.sshfl [vmem:[#allocation1 + $0x10] sm:$0xff pattern:$0x73625140]
    %v515 = vld.sshfl [vmem:[#allocation1 + $0x18] sm:$0xff pattern:$0x73625140]
    %v516 = vld.sshfl [vmem:[#allocation1 + $0x20] sm:$0xff pattern:$0x73625140]
    %v517 = vld.sshfl [vmem:[#allocation1 + $0x28] sm:$0xff pattern:$0x73625140]
    %v518 = vld.sshfl [vmem:[#allocation1 + $0x30] sm:$0xff pattern:$0x73625140]
    %v519 = vld.sshfl [vmem:[#allocation1 + $0x38] sm:$0xff pattern:$0x73625140]
    %520 = vst [vmem:[#allocation1] ss:$4 sm:$0xff] %v99
    %521 = vst [vmem:[%s240] ss:$4 sm:$0xff] %v100
    %v522 = vld.sshfl [vmem:[#allocation1] sm:$0xff pattern:$0x73625140]
    %v523 = vld.sshfl [vmem:[#allocation1 + $0x8] sm:$0xff pattern:$0x73625140]
    %v524 = vld.sshfl [vmem:[#allocation1 + $0x10] sm:$0xff pattern:$0x73625140]
    %v525 = vld.sshfl [vmem:[#allocation1 + $0x18] sm:$0xff pattern:$0x73625140]
    %v526 = vld.sshfl [vmem:[#allocation1 + $0x20] sm:$0xff pattern:$0x73625140]
    %v527 = vld.sshfl [vmem:[#allocation1 + $0x28] sm:$0xff pattern:$0x73625140]
    %v528 = vld.sshfl [vmem:[#allocation1 + $0x30] sm:$0xff pattern:$0x73625140]
    %v529 = vld.sshfl [vmem:[#allocation1 + $0x38] sm:$0xff pattern:$0x73625140]
    %530 = vst [vmem:[#allocation1] ss:$4 sm:$0xff] %v101
    %531 = vst [vmem:[%s240] ss:$4 sm:$0xff] %v102
    %v532 = vld.sshfl [vmem:[#allocation1] sm:$0xff pattern:$0x73625140]
    %v533 = vld.sshfl [vmem:[#allocation1 + $0x8] sm:$0xff pattern:$0x73625140]
    %v534 = vld.sshfl [vmem:[#allocation1 + $0x10] sm:$0xff pattern:$0x73625140]
    %v535 = vld.sshfl [vmem:[#allocation1 + $0x18] sm:$0xff pattern:$0x73625140]
    %v536 = vld.sshfl [vmem:[#allocation1 + $0x20] sm:$0xff pattern:$0x73625140]
    %v537 = vld.sshfl [vmem:[#allocation1 + $0x28] sm:$0xff pattern:$0x73625140]
    %v538 = vld.sshfl [vmem:[#allocation1 + $0x30] sm:$0xff pattern:$0x73625140]
    %v539 = vld.sshfl [vmem:[#allocation1 + $0x38] sm:$0xff pattern:$0x73625140]
    %540 = vst [vmem:[#allocation1] ss:$4 sm:$0xff] %v103
    %541 = vst [vmem:[%s240] ss:$4 sm:$0xff] %v104
    %v542 = vld.sshfl [vmem:[#allocation1] sm:$0xff pattern:$0x73625140]
    %v543 = vld.sshfl [vmem:[#allocation1 + $0x8] sm:$0xff pattern:$0x73625140]
    %v544 = vld.sshfl [vmem:[#allocation1 + $0x10] sm:$0xff pattern:$0x73625140]
    %v545 = vld.sshfl [vmem:[#allocation1 + $0x18] sm:$0xff pattern:$0x73625140]
    %v546 = vld.sshfl [vmem:[#allocation1 + $0x20] sm:$0xff pattern:$0x73625140]
    %v547 = vld.sshfl [vmem:[#allocation1 + $0x28] sm:$0xff pattern:$0x73625140]
    %v548 = vld.sshfl [vmem:[#allocation1 + $0x30] sm:$0xff pattern:$0x73625140]
    %v549 = vld.sshfl [vmem:[#allocation1 + $0x38] sm:$0xff pattern:$0x73625140]
    %550 = vst [vmem:[#allocation1] ss:$4 sm:$0xff] %v105
    %551 = vst [vmem:[%s240] ss:$4 sm:$0xff] %v106
    %v552 = vld.sshfl [vmem:[#allocation1] sm:$0xff pattern:$0x73625140]
    %v553 = vld.sshfl [vmem:[#allocation1 + $0x8] sm:$0xff pattern:$0x73625140]
    %v554 = vld.sshfl [vmem:[#allocation1 + $0x10] sm:$0xff pattern:$0x73625140]
    %v555 = vld.sshfl [vmem:[#allocation1 + $0x18] sm:$0xff pattern:$0x73625140]
    %v556 = vld.sshfl [vmem:[#allocation1 + $0x20] sm:$0xff pattern:$0x73625140]
    %v557 = vld.sshfl [vmem:[#allocation1 + $0x28] sm:$0xff pattern:$0x73625140]
    %v558 = vld.sshfl [vmem:[#allocation1 + $0x30] sm:$0xff pattern:$0x73625140]
    %v559 = vld.sshfl [vmem:[#allocation1 + $0x38] sm:$0xff pattern:$0x73625140]
    %880 = vst [vmem:[#allocation1] ss:$4 sm:$0xff] %v107
    %s881 = scalar_lea.vmem [#allocation1], 32
    %882 = vst [vmem:[%s881] ss:$4 sm:$0xff] %v108
    %v883 = vld.sshfl [vmem:[#allocation1] sm:$0xff pattern:$0x73625140]
    %v884 = vld.sshfl [vmem:[#allocation1 + $0x8] sm:$0xff pattern:$0x73625140]
    %v885 = vld.sshfl [vmem:[#allocation1 + $0x10] sm:$0xff pattern:$0x73625140]
    %v886 = vld.sshfl [vmem:[#allocation1 + $0x18] sm:$0xff pattern:$0x73625140]
    %v887 = vld.sshfl [vmem:[#allocation1 + $0x20] sm:$0xff pattern:$0x73625140]
    %v888 = vld.sshfl [vmem:[#allocation1 + $0x28] sm:$0xff pattern:$0x73625140]
    %v889 = vld.sshfl [vmem:[#allocation1 + $0x30] sm:$0xff pattern:$0x73625140]
    %v890 = vld.sshfl [vmem:[#allocation1 + $0x38] sm:$0xff pattern:$0x73625140]
    %891 = vst [vmem:[#allocation1] ss:$4 sm:$0xff] %v109
    %892 = vst [vmem:[%s881] ss:$4 sm:$0xff] %v110
    %v893 = vld.sshfl [vmem:[#allocation1] sm:$0xff pattern:$0x73625140]
    %v894 = vld.sshfl [vmem:[#allocation1 + $0x8] sm:$0xff pattern:$0x73625140]
    %v895 = vld.sshfl [vmem:[#allocation1 + $0x10] sm:$0xff pattern:$0x73625140]
    %v896 = vld.sshfl [vmem:[#allocation1 + $0x18] sm:$0xff pattern:$0x73625140]
    %v897 = vld.sshfl [vmem:[#allocation1 + $0x20] sm:$0xff pattern:$0x73625140]
    %v898 = vld.sshfl [vmem:[#allocation1 + $0x28] sm:$0xff pattern:$0x73625140]
    %v899 = vld.sshfl [vmem:[#allocation1 + $0x30] sm:$0xff pattern:$0x73625140]
    %v900 = vld.sshfl [vmem:[#allocation1 + $0x38] sm:$0xff pattern:$0x73625140]
    %901 = vst [vmem:[#allocation1] ss:$4 sm:$0xff] %v111
    %902 = vst [vmem:[%s881] ss:$4 sm:$0xff] %v112
    %v903 = vld.sshfl [vmem:[#allocation1] sm:$0xff pattern:$0x73625140]
    %v904 = vld.sshfl [vmem:[#allocation1 + $0x8] sm:$0xff pattern:$0x73625140]
    %v905 = vld.sshfl [vmem:[#allocation1 + $0x10] sm:$0xff pattern:$0x73625140]
    %v906 = vld.sshfl [vmem:[#allocation1 + $0x18] sm:$0xff pattern:$0x73625140]
    %v907 = vld.sshfl [vmem:[#allocation1 + $0x20] sm:$0xff pattern:$0x73625140]
    %v908 = vld.sshfl [vmem:[#allocation1 + $0x28] sm:$0xff pattern:$0x73625140]
    %v909 = vld.sshfl [vmem:[#allocation1 + $0x30] sm:$0xff pattern:$0x73625140]
    %v910 = vld.sshfl [vmem:[#allocation1 + $0x38] sm:$0xff pattern:$0x73625140]
    %911 = vst [vmem:[#allocation1] ss:$4 sm:$0xff] %v113
    %912 = vst [vmem:[%s881] ss:$4 sm:$0xff] %v114
    %v913 = vld.sshfl [vmem:[#allocation1] sm:$0xff pattern:$0x73625140]
    %v914 = vld.sshfl [vmem:[#allocation1 + $0x8] sm:$0xff pattern:$0x73625140]
    %v915 = vld.sshfl [vmem:[#allocation1 + $0x10] sm:$0xff pattern:$0x73625140]
    %v916 = vld.sshfl [vmem:[#allocation1 + $0x18] sm:$0xff pattern:$0x73625140]
    %v917 = vld.sshfl [vmem:[#allocation1 + $0x20] sm:$0xff pattern:$0x73625140]
    %v918 = vld.sshfl [vmem:[#allocation1 + $0x28] sm:$0xff pattern:$0x73625140]
    %v919 = vld.sshfl [vmem:[#allocation1 + $0x30] sm:$0xff pattern:$0x73625140]
    %v920 = vld.sshfl [vmem:[#allocation1 + $0x38] sm:$0xff pattern:$0x73625140]
    %921 = vst [vmem:[#allocation1] ss:$4 sm:$0xff] %v115
    %922 = vst [vmem:[%s881] ss:$4 sm:$0xff] %v116
    %v923 = vld.sshfl [vmem:[#allocation1] sm:$0xff pattern:$0x73625140]
    %v924 = vld.sshfl [vmem:[#allocation1 + $0x8] sm:$0xff pattern:$0x73625140]
    %v925 = vld.sshfl [vmem:[#allocation1 + $0x10] sm:$0xff pattern:$0x73625140]
    %v926 = vld.sshfl [vmem:[#allocation1 + $0x18] sm:$0xff pattern:$0x73625140]
    %v927 = vld.sshfl [vmem:[#allocation1 + $0x20] sm:$0xff pattern:$0x73625140]
    %v928 = vld.sshfl [vmem:[#allocation1 + $0x28] sm:$0xff pattern:$0x73625140]
    %v929 = vld.sshfl [vmem:[#allocation1 + $0x30] sm:$0xff pattern:$0x73625140]
    %v930 = vld.sshfl [vmem:[#allocation1 + $0x38] sm:$0xff pattern:$0x73625140]
    %931 = vst [vmem:[#allocation1] ss:$4 sm:$0xff] %v117
    %932 = vst [vmem:[%s881] ss:$4 sm:$0xff] %v118
    %v933 = vld.sshfl [vmem:[#allocation1] sm:$0xff pattern:$0x73625140]
    %v934 = vld.sshfl [vmem:[#allocation1 + $0x8] sm:$0xff pattern:$0x73625140]
    %v935 = vld.sshfl [vmem:[#allocation1 + $0x10] sm:$0xff pattern:$0x73625140]
    %v936 = vld.sshfl [vmem:[#allocation1 + $0x18] sm:$0xff pattern:$0x73625140]
    %v937 = vld.sshfl [vmem:[#allocation1 + $0x20] sm:$0xff pattern:$0x73625140]
    %v938 = vld.sshfl [vmem:[#allocation1 + $0x28] sm:$0xff pattern:$0x73625140]
    %v939 = vld.sshfl [vmem:[#allocation1 + $0x30] sm:$0xff pattern:$0x73625140]
    %v940 = vld.sshfl [vmem:[#allocation1 + $0x38] sm:$0xff pattern:$0x73625140]
    %941 = vst [vmem:[#allocation1] ss:$4 sm:$0xff] %v119
    %942 = vst [vmem:[%s881] ss:$4 sm:$0xff] %v120
    %v943 = vld.sshfl [vmem:[#allocation1] sm:$0xff pattern:$0x73625140]
    %v944 = vld.sshfl [vmem:[#allocation1 + $0x8] sm:$0xff pattern:$0x73625140]
    %v945 = vld.sshfl [vmem:[#allocation1 + $0x10] sm:$0xff pattern:$0x73625140]
    %v946 = vld.sshfl [vmem:[#allocation1 + $0x18] sm:$0xff pattern:$0x73625140]
    %v947 = vld.sshfl [vmem:[#allocation1 + $0x20] sm:$0xff pattern:$0x73625140]
    %v948 = vld.sshfl [vmem:[#allocation1 + $0x28] sm:$0xff pattern:$0x73625140]
    %v949 = vld.sshfl [vmem:[#allocation1 + $0x30] sm:$0xff pattern:$0x73625140]
    %v950 = vld.sshfl [vmem:[#allocation1 + $0x38] sm:$0xff pattern:$0x73625140]
    %951 = vst [vmem:[#allocation1] ss:$4 sm:$0xff] %v121
    %952 = vst [vmem:[%s881] ss:$4 sm:$0xff] %v122
    %v953 = vld.sshfl [vmem:[#allocation1] sm:$0xff pattern:$0x73625140]
    %v954 = vld.sshfl [vmem:[#allocation1 + $0x8] sm:$0xff pattern:$0x73625140]
    %v955 = vld.sshfl [vmem:[#allocation1 + $0x10] sm:$0xff pattern:$0x73625140]
    %v956 = vld.sshfl [vmem:[#allocation1 + $0x18] sm:$0xff pattern:$0x73625140]
    %v957 = vld.sshfl [vmem:[#allocation1 + $0x20] sm:$0xff pattern:$0x73625140]
    %v958 = vld.sshfl [vmem:[#allocation1 + $0x28] sm:$0xff pattern:$0x73625140]
    %v959 = vld.sshfl [vmem:[#allocation1 + $0x30] sm:$0xff pattern:$0x73625140]
    %v960 = vld.sshfl [vmem:[#allocation1 + $0x38] sm:$0xff pattern:$0x73625140]
    %961 = vst [vmem:[#allocation1] ss:$4 sm:$0xff] %v123
    %962 = vst [vmem:[%s881] ss:$4 sm:$0xff] %v124
    %v963 = vld.sshfl [vmem:[#allocation1] sm:$0xff pattern:$0x73625140]
    %v964 = vld.sshfl [vmem:[#allocation1 + $0x8] sm:$0xff pattern:$0x73625140]
    %v965 = vld.sshfl [vmem:[#allocation1 + $0x10] sm:$0xff pattern:$0x73625140]
    %v966 = vld.sshfl [vmem:[#allocation1 + $0x18] sm:$0xff pattern:$0x73625140]
    %v967 = vld.sshfl [vmem:[#allocation1 + $0x20] sm:$0xff pattern:$0x73625140]
    %v968 = vld.sshfl [vmem:[#allocation1 + $0x28] sm:$0xff pattern:$0x73625140]
    %v969 = vld.sshfl [vmem:[#allocation1 + $0x30] sm:$0xff pattern:$0x73625140]
    %v970 = vld.sshfl [vmem:[#allocation1 + $0x38] sm:$0xff pattern:$0x73625140]
    %971 = vst [vmem:[#allocation1] ss:$4 sm:$0xff] %v125
    %972 = vst [vmem:[%s881] ss:$4 sm:$0xff] %v126
    %v973 = vld.sshfl [vmem:[#allocation1] sm:$0xff pattern:$0x73625140]
    %v974 = vld.sshfl [vmem:[#allocation1 + $0x8] sm:$0xff pattern:$0x73625140]
    %v975 = vld.sshfl [vmem:[#allocation1 + $0x10] sm:$0xff pattern:$0x73625140]
    %v976 = vld.sshfl [vmem:[#allocation1 + $0x18] sm:$0xff pattern:$0x73625140]
    %v977 = vld.sshfl [vmem:[#allocation1 + $0x20] sm:$0xff pattern:$0x73625140]
    %v978 = vld.sshfl [vmem:[#allocation1 + $0x28] sm:$0xff pattern:$0x73625140]
    %v979 = vld.sshfl [vmem:[#allocation1 + $0x30] sm:$0xff pattern:$0x73625140]
    %v980 = vld.sshfl [vmem:[#allocation1 + $0x38] sm:$0xff pattern:$0x73625140]
    %981 = vst [vmem:[#allocation1] ss:$4 sm:$0xff] %v127
    %982 = vst [vmem:[%s881] ss:$4 sm:$0xff] %v128
    %v983 = vld.sshfl [vmem:[#allocation1] sm:$0xff pattern:$0x73625140]
    %v984 = vld.sshfl [vmem:[#allocation1 + $0x8] sm:$0xff pattern:$0x73625140]
    %v985 = vld.sshfl [vmem:[#allocation1 + $0x10] sm:$0xff pattern:$0x73625140]
    %v986 = vld.sshfl [vmem:[#allocation1 + $0x18] sm:$0xff pattern:$0x73625140]
    %v987 = vld.sshfl [vmem:[#allocation1 + $0x20] sm:$0xff pattern:$0x73625140]
    %v988 = vld.sshfl [vmem:[#allocation1 + $0x28] sm:$0xff pattern:$0x73625140]
    %v989 = vld.sshfl [vmem:[#allocation1 + $0x30] sm:$0xff pattern:$0x73625140]
    %v990 = vld.sshfl [vmem:[#allocation1 + $0x38] sm:$0xff pattern:$0x73625140]
    %991 = vst [vmem:[#allocation1] ss:$4 sm:$0xff] %v129
    %992 = vst [vmem:[%s881] ss:$4 sm:$0xff] %v130
    %v993 = vld.sshfl [vmem:[#allocation1] sm:$0xff pattern:$0x73625140]
    %v994 = vld.sshfl [vmem:[#allocation1 + $0x8] sm:$0xff pattern:$0x73625140]
    %v995 = vld.sshfl [vmem:[#allocation1 + $0x10] sm:$0xff pattern:$0x73625140]
    %v996 = vld.sshfl [vmem:[#allocation1 + $0x18] sm:$0xff pattern:$0x73625140]
    %v997 = vld.sshfl [vmem:[#allocation1 + $0x20] sm:$0xff pattern:$0x73625140]
    %v998 = vld.sshfl [vmem:[#allocation1 + $0x28] sm:$0xff pattern:$0x73625140]
    %v999 = vld.sshfl [vmem:[#allocation1 + $0x30] sm:$0xff pattern:$0x73625140]
    %v1000 = vld.sshfl [vmem:[#allocation1 + $0x38] sm:$0xff pattern:$0x73625140]
    %1001 = vst [vmem:[#allocation1] ss:$4 sm:$0xff] %v131
    %1002 = vst [vmem:[%s881] ss:$4 sm:$0xff] %v132
    %v1003 = vld.sshfl [vmem:[#allocation1] sm:$0xff pattern:$0x73625140]
    %v1004 = vld.sshfl [vmem:[#allocation1 + $0x8] sm:$0xff pattern:$0x73625140]
    %v1005 = vld.sshfl [vmem:[#allocation1 + $0x10] sm:$0xff pattern:$0x73625140]
    %v1006 = vld.sshfl [vmem:[#allocation1 + $0x18] sm:$0xff pattern:$0x73625140]
    %v1007 = vld.sshfl [vmem:[#allocation1 + $0x20] sm:$0xff pattern:$0x73625140]
    %v1008 = vld.sshfl [vmem:[#allocation1 + $0x28] sm:$0xff pattern:$0x73625140]
    %v1009 = vld.sshfl [vmem:[#allocation1 + $0x30] sm:$0xff pattern:$0x73625140]
    %v1010 = vld.sshfl [vmem:[#allocation1 + $0x38] sm:$0xff pattern:$0x73625140]
    %1011 = vst [vmem:[#allocation1] ss:$4 sm:$0xff] %v133
    %1012 = vst [vmem:[%s881] ss:$4 sm:$0xff] %v134
    %v1013 = vld.sshfl [vmem:[#allocation1] sm:$0xff pattern:$0x73625140]
    %v1014 = vld.sshfl [vmem:[#allocation1 + $0x8] sm:$0xff pattern:$0x73625140]
    %v1015 = vld.sshfl [vmem:[#allocation1 + $0x10] sm:$0xff pattern:$0x73625140]
    %v1016 = vld.sshfl [vmem:[#allocation1 + $0x18] sm:$0xff pattern:$0x73625140]
    %v1017 = vld.sshfl [vmem:[#allocation1 + $0x20] sm:$0xff pattern:$0x73625140]
    %v1018 = vld.sshfl [vmem:[#allocation1 + $0x28] sm:$0xff pattern:$0x73625140]
    %v1019 = vld.sshfl [vmem:[#allocation1 + $0x30] sm:$0xff pattern:$0x73625140]
    %v1020 = vld.sshfl [vmem:[#allocation1 + $0x38] sm:$0xff pattern:$0x73625140]
    %1021 = vst [vmem:[#allocation1] ss:$4 sm:$0xff] %v135
    %1022 = vst [vmem:[%s881] ss:$4 sm:$0xff] %v136
    %v1023 = vld.sshfl [vmem:[#allocation1] sm:$0xff pattern:$0x73625140]
    %v1024 = vld.sshfl [vmem:[#allocation1 + $0x8] sm:$0xff pattern:$0x73625140]
    %v1025 = vld.sshfl [vmem:[#allocation1 + $0x10] sm:$0xff pattern:$0x73625140]
    %v1026 = vld.sshfl [vmem:[#allocation1 + $0x18] sm:$0xff pattern:$0x73625140]
    %v1027 = vld.sshfl [vmem:[#allocation1 + $0x20] sm:$0xff pattern:$0x73625140]
    %v1028 = vld.sshfl [vmem:[#allocation1 + $0x28] sm:$0xff pattern:$0x73625140]
    %v1029 = vld.sshfl [vmem:[#allocation1 + $0x30] sm:$0xff pattern:$0x73625140]
    %v1030 = vld.sshfl [vmem:[#allocation1 + $0x38] sm:$0xff pattern:$0x73625140]
    %1031 = vst [vmem:[#allocation1] ss:$4 sm:$0xff] %v137
    %1032 = vst [vmem:[%s881] ss:$4 sm:$0xff] %v138
    %v1033 = vld.sshfl [vmem:[#allocation1] sm:$0xff pattern:$0x73625140]
    %v1034 = vld.sshfl [vmem:[#allocation1 + $0x8] sm:$0xff pattern:$0x73625140]
    %v1035 = vld.sshfl [vmem:[#allocation1 + $0x10] sm:$0xff pattern:$0x73625140]
    %v1036 = vld.sshfl [vmem:[#allocation1 + $0x18] sm:$0xff pattern:$0x73625140]
    %v1037 = vld.sshfl [vmem:[#allocation1 + $0x20] sm:$0xff pattern:$0x73625140]
    %v1038 = vld.sshfl [vmem:[#allocation1 + $0x28] sm:$0xff pattern:$0x73625140]
    %v1039 = vld.sshfl [vmem:[#allocation1 + $0x30] sm:$0xff pattern:$0x73625140]
    %v1040 = vld.sshfl [vmem:[#allocation1 + $0x38] sm:$0xff pattern:$0x73625140]
    %1041 = vst [vmem:[#allocation1] ss:$4 sm:$0xff] %v139
    %1042 = vst [vmem:[%s881] ss:$4 sm:$0xff] %v140
    %v1043 = vld.sshfl [vmem:[#allocation1] sm:$0xff pattern:$0x73625140]
    %v1044 = vld.sshfl [vmem:[#allocation1 + $0x8] sm:$0xff pattern:$0x73625140]
    %v1045 = vld.sshfl [vmem:[#allocation1 + $0x10] sm:$0xff pattern:$0x73625140]
    %v1046 = vld.sshfl [vmem:[#allocation1 + $0x18] sm:$0xff pattern:$0x73625140]
    %v1047 = vld.sshfl [vmem:[#allocation1 + $0x20] sm:$0xff pattern:$0x73625140]
    %v1048 = vld.sshfl [vmem:[#allocation1 + $0x28] sm:$0xff pattern:$0x73625140]
    %v1049 = vld.sshfl [vmem:[#allocation1 + $0x30] sm:$0xff pattern:$0x73625140]
    %v1050 = vld.sshfl [vmem:[#allocation1 + $0x38] sm:$0xff pattern:$0x73625140]
    %1051 = vst [vmem:[#allocation1] ss:$4 sm:$0xff] %v141
    %1052 = vst [vmem:[%s881] ss:$4 sm:$0xff] %v142
    %v1053 = vld.sshfl [vmem:[#allocation1] sm:$0xff pattern:$0x73625140]
    %v1054 = vld.sshfl [vmem:[#allocation1 + $0x8] sm:$0xff pattern:$0x73625140]
    %v1055 = vld.sshfl [vmem:[#allocation1 + $0x10] sm:$0xff pattern:$0x73625140]
    %v1056 = vld.sshfl [vmem:[#allocation1 + $0x18] sm:$0xff pattern:$0x73625140]
    %v1057 = vld.sshfl [vmem:[#allocation1 + $0x20] sm:$0xff pattern:$0x73625140]
    %v1058 = vld.sshfl [vmem:[#allocation1 + $0x28] sm:$0xff pattern:$0x73625140]
    %v1059 = vld.sshfl [vmem:[#allocation1 + $0x30] sm:$0xff pattern:$0x73625140]
    %v1060 = vld.sshfl [vmem:[#allocation1 + $0x38] sm:$0xff pattern:$0x73625140]
    %1061 = vst [vmem:[#allocation1] ss:$4 sm:$0xff] %v143
    %1062 = vst [vmem:[%s881] ss:$4 sm:$0xff] %v144
    %v1063 = vld.sshfl [vmem:[#allocation1] sm:$0xff pattern:$0x73625140]
    %v1064 = vld.sshfl [vmem:[#allocation1 + $0x8] sm:$0xff pattern:$0x73625140]
    %v1065 = vld.sshfl [vmem:[#allocation1 + $0x10] sm:$0xff pattern:$0x73625140]
    %v1066 = vld.sshfl [vmem:[#allocation1 + $0x18] sm:$0xff pattern:$0x73625140]
    %v1067 = vld.sshfl [vmem:[#allocation1 + $0x20] sm:$0xff pattern:$0x73625140]
    %v1068 = vld.sshfl [vmem:[#allocation1 + $0x28] sm:$0xff pattern:$0x73625140]
    %v1069 = vld.sshfl [vmem:[#allocation1 + $0x30] sm:$0xff pattern:$0x73625140]
    %v1070 = vld.sshfl [vmem:[#allocation1 + $0x38] sm:$0xff pattern:$0x73625140]
    %1071 = vst [vmem:[#allocation1] ss:$4 sm:$0xff] %v145
    %1072 = vst [vmem:[%s881] ss:$4 sm:$0xff] %v146
    %v1073 = vld.sshfl [vmem:[#allocation1] sm:$0xff pattern:$0x73625140]
    %v1074 = vld.sshfl [vmem:[#allocation1 + $0x8] sm:$0xff pattern:$0x73625140]
    %v1075 = vld.sshfl [vmem:[#allocation1 + $0x10] sm:$0xff pattern:$0x73625140]
    %v1076 = vld.sshfl [vmem:[#allocation1 + $0x18] sm:$0xff pattern:$0x73625140]
    %v1077 = vld.sshfl [vmem:[#allocation1 + $0x20] sm:$0xff pattern:$0x73625140]
    %v1078 = vld.sshfl [vmem:[#allocation1 + $0x28] sm:$0xff pattern:$0x73625140]
    %v1079 = vld.sshfl [vmem:[#allocation1 + $0x30] sm:$0xff pattern:$0x73625140]
    %v1080 = vld.sshfl [vmem:[#allocation1 + $0x38] sm:$0xff pattern:$0x73625140]
    %1081 = vst [vmem:[#allocation1] ss:$4 sm:$0xff] %v147
    %1082 = vst [vmem:[%s881] ss:$4 sm:$0xff] %v148
    %v1083 = vld.sshfl [vmem:[#allocation1] sm:$0xff pattern:$0x73625140]
    %v1084 = vld.sshfl [vmem:[#allocation1 + $0x8] sm:$0xff pattern:$0x73625140]
    %v1085 = vld.sshfl [vmem:[#allocation1 + $0x10] sm:$0xff pattern:$0x73625140]
    %v1086 = vld.sshfl [vmem:[#allocation1 + $0x18] sm:$0xff pattern:$0x73625140]
    %v1087 = vld.sshfl [vmem:[#allocation1 + $0x20] sm:$0xff pattern:$0x73625140]
    %v1088 = vld.sshfl [vmem:[#allocation1 + $0x28] sm:$0xff pattern:$0x73625140]
    %v1089 = vld.sshfl [vmem:[#allocation1 + $0x30] sm:$0xff pattern:$0x73625140]
    %v1090 = vld.sshfl [vmem:[#allocation1 + $0x38] sm:$0xff pattern:$0x73625140]
    %1091 = vst [vmem:[#allocation1] ss:$4 sm:$0xff] %v149
    %1092 = vst [vmem:[%s881] ss:$4 sm:$0xff] %v150
    %v1093 = vld.sshfl [vmem:[#allocation1] sm:$0xff pattern:$0x73625140]
    %v1094 = vld.sshfl [vmem:[#allocation1 + $0x8] sm:$0xff pattern:$0x73625140]
    %v1095 = vld.sshfl [vmem:[#allocation1 + $0x10] sm:$0xff pattern:$0x73625140]
    %v1096 = vld.sshfl [vmem:[#allocation1 + $0x18] sm:$0xff pattern:$0x73625140]
    %v1097 = vld.sshfl [vmem:[#allocation1 + $0x20] sm:$0xff pattern:$0x73625140]
    %v1098 = vld.sshfl [vmem:[#allocation1 + $0x28] sm:$0xff pattern:$0x73625140]
    %v1099 = vld.sshfl [vmem:[#allocation1 + $0x30] sm:$0xff pattern:$0x73625140]
    %v1100 = vld.sshfl [vmem:[#allocation1 + $0x38] sm:$0xff pattern:$0x73625140]
    %1101 = vst [vmem:[#allocation1] ss:$4 sm:$0xff] %v151
    %1102 = vst [vmem:[%s881] ss:$4 sm:$0xff] %v152
    %v1103 = vld.sshfl [vmem:[#allocation1] sm:$0xff pattern:$0x73625140]
    %v1104 = vld.sshfl [vmem:[#allocation1 + $0x8] sm:$0xff pattern:$0x73625140]
    %v1105 = vld.sshfl [vmem:[#allocation1 + $0x10] sm:$0xff pattern:$0x73625140]
    %v1106 = vld.sshfl [vmem:[#allocation1 + $0x18] sm:$0xff pattern:$0x73625140]
    %v1107 = vld.sshfl [vmem:[#allocation1 + $0x20] sm:$0xff pattern:$0x73625140]
    %v1108 = vld.sshfl [vmem:[#allocation1 + $0x28] sm:$0xff pattern:$0x73625140]
    %v1109 = vld.sshfl [vmem:[#allocation1 + $0x30] sm:$0xff pattern:$0x73625140]
    %v1110 = vld.sshfl [vmem:[#allocation1 + $0x38] sm:$0xff pattern:$0x73625140]
    %1111 = vst [vmem:[#allocation1] ss:$4 sm:$0xff] %v153
    %1112 = vst [vmem:[%s881] ss:$4 sm:$0xff] %v154
    %v1113 = vld.sshfl [vmem:[#allocation1] sm:$0xff pattern:$0x73625140]
    %v1114 = vld.sshfl [vmem:[#allocation1 + $0x8] sm:$0xff pattern:$0x73625140]
    %v1115 = vld.sshfl [vmem:[#allocation1 + $0x10] sm:$0xff pattern:$0x73625140]
    %v1116 = vld.sshfl [vmem:[#allocation1 + $0x18] sm:$0xff pattern:$0x73625140]
    %v1117 = vld.sshfl [vmem:[#allocation1 + $0x20] sm:$0xff pattern:$0x73625140]
    %v1118 = vld.sshfl [vmem:[#allocation1 + $0x28] sm:$0xff pattern:$0x73625140]
    %v1119 = vld.sshfl [vmem:[#allocation1 + $0x30] sm:$0xff pattern:$0x73625140]
    %v1120 = vld.sshfl [vmem:[#allocation1 + $0x38] sm:$0xff pattern:$0x73625140]
    %1121 = vst [vmem:[#allocation1] ss:$4 sm:$0xff] %v155
    %1122 = vst [vmem:[%s881] ss:$4 sm:$0xff] %v156
    %v1123 = vld.sshfl [vmem:[#allocation1] sm:$0xff pattern:$0x73625140]
    %v1124 = vld.sshfl [vmem:[#allocation1 + $0x8] sm:$0xff pattern:$0x73625140]
    %v1125 = vld.sshfl [vmem:[#allocation1 + $0x10] sm:$0xff pattern:$0x73625140]
    %v1126 = vld.sshfl [vmem:[#allocation1 + $0x18] sm:$0xff pattern:$0x73625140]
    %v1127 = vld.sshfl [vmem:[#allocation1 + $0x20] sm:$0xff pattern:$0x73625140]
    %v1128 = vld.sshfl [vmem:[#allocation1 + $0x28] sm:$0xff pattern:$0x73625140]
    %v1129 = vld.sshfl [vmem:[#allocation1 + $0x30] sm:$0xff pattern:$0x73625140]
    %v1130 = vld.sshfl [vmem:[#allocation1 + $0x38] sm:$0xff pattern:$0x73625140]
    %1131 = vst [vmem:[#allocation1] ss:$4 sm:$0xff] %v157
    %1132 = vst [vmem:[%s881] ss:$4 sm:$0xff] %v158
    %v1133 = vld.sshfl [vmem:[#allocation1] sm:$0xff pattern:$0x73625140]
    %v1134 = vld.sshfl [vmem:[#allocation1 + $0x8] sm:$0xff pattern:$0x73625140]
    %v1135 = vld.sshfl [vmem:[#allocation1 + $0x10] sm:$0xff pattern:$0x73625140]
    %v1136 = vld.sshfl [vmem:[#allocation1 + $0x18] sm:$0xff pattern:$0x73625140]
    %v1137 = vld.sshfl [vmem:[#allocation1 + $0x20] sm:$0xff pattern:$0x73625140]
    %v1138 = vld.sshfl [vmem:[#allocation1 + $0x28] sm:$0xff pattern:$0x73625140]
    %v1139 = vld.sshfl [vmem:[#allocation1 + $0x30] sm:$0xff pattern:$0x73625140]
    %v1140 = vld.sshfl [vmem:[#allocation1 + $0x38] sm:$0xff pattern:$0x73625140]
    %1141 = vst [vmem:[#allocation1] ss:$4 sm:$0xff] %v159
    %1142 = vst [vmem:[%s881] ss:$4 sm:$0xff] %v160
    %v1143 = vld.sshfl [vmem:[#allocation1] sm:$0xff pattern:$0x73625140]
    %v1144 = vld.sshfl [vmem:[#allocation1 + $0x8] sm:$0xff pattern:$0x73625140]
    %v1145 = vld.sshfl [vmem:[#allocation1 + $0x10] sm:$0xff pattern:$0x73625140]
    %v1146 = vld.sshfl [vmem:[#allocation1 + $0x18] sm:$0xff pattern:$0x73625140]
    %v1147 = vld.sshfl [vmem:[#allocation1 + $0x20] sm:$0xff pattern:$0x73625140]
    %v1148 = vld.sshfl [vmem:[#allocation1 + $0x28] sm:$0xff pattern:$0x73625140]
    %v1149 = vld.sshfl [vmem:[#allocation1 + $0x30] sm:$0xff pattern:$0x73625140]
    %v1150 = vld.sshfl [vmem:[#allocation1 + $0x38] sm:$0xff pattern:$0x73625140]
    %1151 = vst [vmem:[#allocation1] ss:$4 sm:$0xff] %v161
    %1152 = vst [vmem:[%s881] ss:$4 sm:$0xff] %v162
    %v1153 = vld.sshfl [vmem:[#allocation1] sm:$0xff pattern:$0x73625140]
    %v1154 = vld.sshfl [vmem:[#allocation1 + $0x8] sm:$0xff pattern:$0x73625140]
    %v1155 = vld.sshfl [vmem:[#allocation1 + $0x10] sm:$0xff pattern:$0x73625140]
    %v1156 = vld.sshfl [vmem:[#allocation1 + $0x18] sm:$0xff pattern:$0x73625140]
    %v1157 = vld.sshfl [vmem:[#allocation1 + $0x20] sm:$0xff pattern:$0x73625140]
    %v1158 = vld.sshfl [vmem:[#allocation1 + $0x28] sm:$0xff pattern:$0x73625140]
    %v1159 = vld.sshfl [vmem:[#allocation1 + $0x30] sm:$0xff pattern:$0x73625140]
    %v1160 = vld.sshfl [vmem:[#allocation1 + $0x38] sm:$0xff pattern:$0x73625140]
    %1161 = vst [vmem:[#allocation1] ss:$4 sm:$0xff] %v163
    %1162 = vst [vmem:[%s881] ss:$4 sm:$0xff] %v164
    %v1163 = vld.sshfl [vmem:[#allocation1] sm:$0xff pattern:$0x73625140]
    %v1164 = vld.sshfl [vmem:[#allocation1 + $0x8] sm:$0xff pattern:$0x73625140]
    %v1165 = vld.sshfl [vmem:[#allocation1 + $0x10] sm:$0xff pattern:$0x73625140]
    %v1166 = vld.sshfl [vmem:[#allocation1 + $0x18] sm:$0xff pattern:$0x73625140]
    %v1167 = vld.sshfl [vmem:[#allocation1 + $0x20] sm:$0xff pattern:$0x73625140]
    %v1168 = vld.sshfl [vmem:[#allocation1 + $0x28] sm:$0xff pattern:$0x73625140]
    %v1169 = vld.sshfl [vmem:[#allocation1 + $0x30] sm:$0xff pattern:$0x73625140]
    %v1170 = vld.sshfl [vmem:[#allocation1 + $0x38] sm:$0xff pattern:$0x73625140]
    %1171 = vst [vmem:[#allocation1] ss:$4 sm:$0xff] %v165
    %1172 = vst [vmem:[%s881] ss:$4 sm:$0xff] %v166
    %v1173 = vld.sshfl [vmem:[#allocation1] sm:$0xff pattern:$0x73625140]
    %v1174 = vld.sshfl [vmem:[#allocation1 + $0x8] sm:$0xff pattern:$0x73625140]
    %v1175 = vld.sshfl [vmem:[#allocation1 + $0x10] sm:$0xff pattern:$0x73625140]
    %v1176 = vld.sshfl [vmem:[#allocation1 + $0x18] sm:$0xff pattern:$0x73625140]
    %v1177 = vld.sshfl [vmem:[#allocation1 + $0x20] sm:$0xff pattern:$0x73625140]
    %v1178 = vld.sshfl [vmem:[#allocation1 + $0x28] sm:$0xff pattern:$0x73625140]
    %v1179 = vld.sshfl [vmem:[#allocation1 + $0x30] sm:$0xff pattern:$0x73625140]
    %v1180 = vld.sshfl [vmem:[#allocation1 + $0x38] sm:$0xff pattern:$0x73625140]
    %1181 = vst [vmem:[#allocation1] ss:$4 sm:$0xff] %v167
    %1182 = vst [vmem:[%s881] ss:$4 sm:$0xff] %v168
    %v1183 = vld.sshfl [vmem:[#allocation1] sm:$0xff pattern:$0x73625140]
    %v1184 = vld.sshfl [vmem:[#allocation1 + $0x8] sm:$0xff pattern:$0x73625140]
    %v1185 = vld.sshfl [vmem:[#allocation1 + $0x10] sm:$0xff pattern:$0x73625140]
    %v1186 = vld.sshfl [vmem:[#allocation1 + $0x18] sm:$0xff pattern:$0x73625140]
    %v1187 = vld.sshfl [vmem:[#allocation1 + $0x20] sm:$0xff pattern:$0x73625140]
    %v1188 = vld.sshfl [vmem:[#allocation1 + $0x28] sm:$0xff pattern:$0x73625140]
    %v1189 = vld.sshfl [vmem:[#allocation1 + $0x30] sm:$0xff pattern:$0x73625140]
    %v1190 = vld.sshfl [vmem:[#allocation1 + $0x38] sm:$0xff pattern:$0x73625140]
    %1191 = vst [vmem:[#allocation1] ss:$4 sm:$0xff] %v169
    %1192 = vst [vmem:[%s881] ss:$4 sm:$0xff] %v170
    %v1193 = vld.sshfl [vmem:[#allocation1] sm:$0xff pattern:$0x73625140]
    %v1194 = vld.sshfl [vmem:[#allocation1 + $0x8] sm:$0xff pattern:$0x73625140]
    %v1195 = vld.sshfl [vmem:[#allocation1 + $0x10] sm:$0xff pattern:$0x73625140]
    %v1196 = vld.sshfl [vmem:[#allocation1 + $0x18] sm:$0xff pattern:$0x73625140]
    %v1197 = vld.sshfl [vmem:[#allocation1 + $0x20] sm:$0xff pattern:$0x73625140]
    %v1198 = vld.sshfl [vmem:[#allocation1 + $0x28] sm:$0xff pattern:$0x73625140]
    %v1199 = vld.sshfl [vmem:[#allocation1 + $0x30] sm:$0xff pattern:$0x73625140]
    %v1200 = vld.sshfl [vmem:[#allocation1 + $0x38] sm:$0xff pattern:$0x73625140]
    %1457 = vmatpush.xpose.msra.mxu0 0.0
    %1458 = vmatpush.xpose.msra.mxu0 0.0
    %1459 = vmatpush.xpose.msra.mxu0 0.0
    %1460 = vmatpush.xpose.msra.mxu0 0.0
    %1461 = vmatpush.xpose.msra.mxu0 0.0
    %1462 = vmatpush.xpose.msra.mxu0 0.0
    %1463 = vmatpush.xpose.msra.mxu0 0.0
    %1464 = vmatpush.xpose.msra.mxu0 0.0
    %1465 = vmatpush.xpose.msra.mxu0 0.0
    %1466 = vmatpush.xpose.msra.mxu0 0.0
    %1467 = vmatpush.xpose.msra.mxu0 0.0
    %1468 = vmatpush.xpose.msra.mxu0 0.0
    %1469 = vmatpush.xpose.msra.mxu0 0.0
    %1470 = vmatpush.xpose.msra.mxu0 0.0
    %1471 = vmatpush.xpose.msra.mxu0 0.0
    %1472 = vmatpush.xpose.msra.mxu0 %v883
    %1473 = vmatmul.f32.gmra.mxu0 %v242
    %v1474 = vpop.f32.mrf.mxu0
    %v1475 = vadd.f32 %v173, %v1474
    %1476 = vdwg.mxu0
    %1477 = vmatpush.xpose.msra.mxu0 0.0
    %1478 = vmatpush.xpose.msra.mxu0 0.0
    %1479 = vmatpush.xpose.msra.mxu0 0.0
    %1480 = vmatpush.xpose.msra.mxu0 0.0
    %1481 = vmatpush.xpose.msra.mxu0 0.0
    %1482 = vmatpush.xpose.msra.mxu0 0.0
    %1483 = vmatpush.xpose.msra.mxu0 0.0
    %1484 = vmatpush.xpose.msra.mxu0 0.0
    %1485 = vmatpush.xpose.msra.mxu0 0.0
    %1486 = vmatpush.xpose.msra.mxu0 0.0
    %1487 = vmatpush.xpose.msra.mxu0 0.0
    %1488 = vmatpush.xpose.msra.mxu0 0.0
    %1489 = vmatpush.xpose.msra.mxu0 0.0
    %1490 = vmatpush.xpose.msra.mxu0 0.0
    %1491 = vmatpush.xpose.msra.mxu0 0.0
    %1492 = vmatpush.xpose.msra.mxu0 %v884
    %1493 = vmatmul.f32.gmra.mxu0 %v243
    %v1494 = vpop.f32.mrf.mxu0
    %v1495 = vadd.f32 %v1475, %v1494
    %1496 = vdwg.mxu0
    %1497 = vmatpush.xpose.msra.mxu0 0.0
    %1498 = vmatpush.xpose.msra.mxu0 0.0
    %1499 = vmatpush.xpose.msra.mxu0 0.0
    %1500 = vmatpush.xpose.msra.mxu0 0.0
    %1501 = vmatpush.xpose.msra.mxu0 0.0
    %1502 = vmatpush.xpose.msra.mxu0 0.0
    %1503 = vmatpush.xpose.msra.mxu0 0.0
    %1504 = vmatpush.xpose.msra.mxu0 0.0
    %1505 = vmatpush.xpose.msra.mxu0 0.0
    %1506 = vmatpush.xpose.msra.mxu0 0.0
    %1507 = vmatpush.xpose.msra.mxu0 0.0
    %1508 = vmatpush.xpose.msra.mxu0 0.0
    %1509 = vmatpush.xpose.msra.mxu0 0.0
    %1510 = vmatpush.xpose.msra.mxu0 0.0
    %1511 = vmatpush.xpose.msra.mxu0 0.0
    %1512 = vmatpush.xpose.msra.mxu0 %v885
    %1513 = vmatmul.f32.gmra.mxu0 %v244
    %v1514 = vpop.f32.mrf.mxu0
    %v1515 = vadd.f32 %v1495, %v1514
    %1516 = vdwg.mxu0
    %1517 = vmatpush.xpose.msra.mxu0 0.0
    %1518 = vmatpush.xpose.msra.mxu0 0.0
    %1519 = vmatpush.xpose.msra.mxu0 0.0
    %1520 = vmatpush.xpose.msra.mxu0 0.0
    %1521 = vmatpush.xpose.msra.mxu0 0.0
    %1522 = vmatpush.xpose.msra.mxu0 0.0
    %1523 = vmatpush.xpose.msra.mxu0 0.0
    %1524 = vmatpush.xpose.msra.mxu0 0.0
    %1525 = vmatpush.xpose.msra.mxu0 0.0
    %1526 = vmatpush.xpose.msra.mxu0 0.0
    %1527 = vmatpush.xpose.msra.mxu0 0.0
    %1528 = vmatpush.xpose.msra.mxu0 0.0
    %1529 = vmatpush.xpose.msra.mxu0 0.0
    %1530 = vmatpush.xpose.msra.mxu0 0.0
    %1531 = vmatpush.xpose.msra.mxu0 0.0
    %1532 = vmatpush.xpose.msra.mxu0 %v886
    %1533 = vmatmul.f32.gmra.mxu0 %v245
    %v1534 = vpop.f32.mrf.mxu0
    %v1535 = vadd.f32 %v1515, %v1534
    %1536 = vdwg.mxu0
    %1537 = vmatpush.xpose.msra.mxu0 0.0
    %1538 = vmatpush.xpose.msra.mxu0 0.0
    %1539 = vmatpush.xpose.msra.mxu0 0.0
    %1540 = vmatpush.xpose.msra.mxu0 0.0
    %1541 = vmatpush.xpose.msra.mxu0 0.0
    %1542 = vmatpush.xpose.msra.mxu0 0.0
    %1543 = vmatpush.xpose.msra.mxu0 0.0
    %1544 = vmatpush.xpose.msra.mxu0 0.0
    %1545 = vmatpush.xpose.msra.mxu0 0.0
    %1546 = vmatpush.xpose.msra.mxu0 0.0
    %1547 = vmatpush.xpose.msra.mxu0 0.0
    %1548 = vmatpush.xpose.msra.mxu0 0.0
    %1549 = vmatpush.xpose.msra.mxu0 0.0
    %1550 = vmatpush.xpose.msra.mxu0 0.0
    %1551 = vmatpush.xpose.msra.mxu0 0.0
    %1552 = vmatpush.xpose.msra.mxu0 %v887
    %1553 = vmatmul.f32.gmra.mxu0 %v246
    %v1554 = vpop.f32.mrf.mxu0
    %v1555 = vadd.f32 %v1535, %v1554
    %1556 = vdwg.mxu0
    %1557 = vmatpush.xpose.msra.mxu0 0.0
    %1558 = vmatpush.xpose.msra.mxu0 0.0
    %1559 = vmatpush.xpose.msra.mxu0 0.0
    %1560 = vmatpush.xpose.msra.mxu0 0.0
    %1561 = vmatpush.xpose.msra.mxu0 0.0
    %1562 = vmatpush.xpose.msra.mxu0 0.0
    %1563 = vmatpush.xpose.msra.mxu0 0.0
    %1564 = vmatpush.xpose.msra.mxu0 0.0
    %1565 = vmatpush.xpose.msra.mxu0 0.0
    %1566 = vmatpush.xpose.msra.mxu0 0.0
    %1567 = vmatpush.xpose.msra.mxu0 0.0
    %1568 = vmatpush.xpose.msra.mxu0 0.0
    %1569 = vmatpush.xpose.msra.mxu0 0.0
    %1570 = vmatpush.xpose.msra.mxu0 0.0
    %1571 = vmatpush.xpose.msra.mxu0 0.0
    %1572 = vmatpush.xpose.msra.mxu0 %v888
    %1573 = vmatmul.f32.gmra.mxu0 %v247
    %v1574 = vpop.f32.mrf.mxu0
    %v1575 = vadd.f32 %v1555, %v1574
    %1576 = vdwg.mxu0
    %1577 = vmatpush.xpose.msra.mxu0 0.0
    %1578 = vmatpush.xpose.msra.mxu0 0.0
    %1579 = vmatpush.xpose.msra.mxu0 0.0
    %1580 = vmatpush.xpose.msra.mxu0 0.0
    %1581 = vmatpush.xpose.msra.mxu0 0.0
    %1582 = vmatpush.xpose.msra.mxu0 0.0
    %1583 = vmatpush.xpose.msra.mxu0 0.0
    %1584 = vmatpush.xpose.msra.mxu0 0.0
    %1585 = vmatpush.xpose.msra.mxu0 0.0
    %1586 = vmatpush.xpose.msra.mxu0 0.0
    %1587 = vmatpush.xpose.msra.mxu0 0.0
    %1588 = vmatpush.xpose.msra.mxu0 0.0
    %1589 = vmatpush.xpose.msra.mxu0 0.0
    %1590 = vmatpush.xpose.msra.mxu0 0.0
    %1591 = vmatpush.xpose.msra.mxu0 0.0
    %1592 = vmatpush.xpose.msra.mxu0 %v889
    %1593 = vmatmul.f32.gmra.mxu0 %v248
    %v1594 = vpop.f32.mrf.mxu0
    %v1595 = vadd.f32 %v1575, %v1594
    %1596 = vdwg.mxu0
    %1597 = vmatpush.xpose.msra.mxu0 0.0
    %1598 = vmatpush.xpose.msra.mxu0 0.0
    %1599 = vmatpush.xpose.msra.mxu0 0.0
    %1600 = vmatpush.xpose.msra.mxu0 0.0
    %1601 = vmatpush.xpose.msra.mxu0 0.0
    %1602 = vmatpush.xpose.msra.mxu0 0.0
    %1603 = vmatpush.xpose.msra.mxu0 0.0
    %1604 = vmatpush.xpose.msra.mxu0 0.0
    %1605 = vmatpush.xpose.msra.mxu0 0.0
    %1606 = vmatpush.xpose.msra.mxu0 0.0
    %1607 = vmatpush.xpose.msra.mxu0 0.0
    %1608 = vmatpush.xpose.msra.mxu0 0.0
    %1609 = vmatpush.xpose.msra.mxu0 0.0
    %1610 = vmatpush.xpose.msra.mxu0 0.0
    %1611 = vmatpush.xpose.msra.mxu0 0.0
    %1612 = vmatpush.xpose.msra.mxu0 %v890
    %1613 = vmatmul.f32.gmra.mxu0 %v249
    %v1614 = vpop.f32.mrf.mxu0
    %v1615 = vadd.f32 %v1595, %v1614
    %1616 = vdwg.mxu0
    %1617 = vmatpush.xpose.msra.mxu0 0.0
    %1618 = vmatpush.xpose.msra.mxu0 0.0
    %1619 = vmatpush.xpose.msra.mxu0 0.0
    %1620 = vmatpush.xpose.msra.mxu0 0.0
    %1621 = vmatpush.xpose.msra.mxu0 0.0
    %1622 = vmatpush.xpose.msra.mxu0 0.0
    %1623 = vmatpush.xpose.msra.mxu0 0.0
    %1624 = vmatpush.xpose.msra.mxu0 0.0
    %1625 = vmatpush.xpose.msra.mxu0 0.0
    %1626 = vmatpush.xpose.msra.mxu0 0.0
    %1627 = vmatpush.xpose.msra.mxu0 0.0
    %1628 = vmatpush.xpose.msra.mxu0 0.0
    %1629 = vmatpush.xpose.msra.mxu0 0.0
    %1630 = vmatpush.xpose.msra.mxu0 0.0
    %1631 = vmatpush.xpose.msra.mxu0 0.0
    %1632 = vmatpush.xpose.msra.mxu0 %v893
    %1633 = vmatmul.f32.gmra.mxu0 %v252
    %v1634 = vpop.f32.mrf.mxu0
    %v1635 = vadd.f32 %v1615, %v1634
    %1636 = vdwg.mxu0
    %1637 = vmatpush.xpose.msra.mxu0 0.0
    %1638 = vmatpush.xpose.msra.mxu0 0.0
    %1639 = vmatpush.xpose.msra.mxu0 0.0
    %1640 = vmatpush.xpose.msra.mxu0 0.0
    %1641 = vmatpush.xpose.msra.mxu0 0.0
    %1642 = vmatpush.xpose.msra.mxu0 0.0
    %1643 = vmatpush.xpose.msra.mxu0 0.0
    %1644 = vmatpush.xpose.msra.mxu0 0.0
    %1645 = vmatpush.xpose.msra.mxu0 0.0
    %1646 = vmatpush.xpose.msra.mxu0 0.0
    %1647 = vmatpush.xpose.msra.mxu0 0.0
    %1648 = vmatpush.xpose.msra.mxu0 0.0
    %1649 = vmatpush.xpose.msra.mxu0 0.0
    %1650 = vmatpush.xpose.msra.mxu0 0.0
    %1651 = vmatpush.xpose.msra.mxu0 0.0
    %1652 = vmatpush.xpose.msra.mxu0 %v894
    %1653 = vmatmul.f32.gmra.mxu0 %v253
    %v1654 = vpop.f32.mrf.mxu0
    %v1655 = vadd.f32 %v1635, %v1654
    %1656 = vdwg.mxu0
    %1657 = vmatpush.xpose.msra.mxu0 0.0
    %1658 = vmatpush.xpose.msra.mxu0 0.0
    %1659 = vmatpush.xpose.msra.mxu0 0.0
    %1660 = vmatpush.xpose.msra.mxu0 0.0
    %1661 = vmatpush.xpose.msra.mxu0 0.0
    %1662 = vmatpush.xpose.msra.mxu0 0.0
    %1663 = vmatpush.xpose.msra.mxu0 0.0
    %1664 = vmatpush.xpose.msra.mxu0 0.0
    %1665 = vmatpush.xpose.msra.mxu0 0.0
    %1666 = vmatpush.xpose.msra.mxu0 0.0
    %1667 = vmatpush.xpose.msra.mxu0 0.0
    %1668 = vmatpush.xpose.msra.mxu0 0.0
    %1669 = vmatpush.xpose.msra.mxu0 0.0
    %1670 = vmatpush.xpose.msra.mxu0 0.0
    %1671 = vmatpush.xpose.msra.mxu0 0.0
    %1672 = vmatpush.xpose.msra.mxu0 %v895
    %1673 = vmatmul.f32.gmra.mxu0 %v254
    %v1674 = vpop.f32.mrf.mxu0
    %v1675 = vadd.f32 %v1655, %v1674
    %1676 = vdwg.mxu0
    %1677 = vmatpush.xpose.msra.mxu0 0.0
    %1678 = vmatpush.xpose.msra.mxu0 0.0
    %1679 = vmatpush.xpose.msra.mxu0 0.0
    %1680 = vmatpush.xpose.msra.mxu0 0.0
    %1681 = vmatpush.xpose.msra.mxu0 0.0
    %1682 = vmatpush.xpose.msra.mxu0 0.0
    %1683 = vmatpush.xpose.msra.mxu0 0.0
    %1684 = vmatpush.xpose.msra.mxu0 0.0
    %1685 = vmatpush.xpose.msra.mxu0 0.0
    %1686 = vmatpush.xpose.msra.mxu0 0.0
    %1687 = vmatpush.xpose.msra.mxu0 0.0
    %1688 = vmatpush.xpose.msra.mxu0 0.0
    %1689 = vmatpush.xpose.msra.mxu0 0.0
    %1690 = vmatpush.xpose.msra.mxu0 0.0
    %1691 = vmatpush.xpose.msra.mxu0 0.0
    %1692 = vmatpush.xpose.msra.mxu0 %v896
    %1693 = vmatmul.f32.gmra.mxu0 %v255
    %v1694 = vpop.f32.mrf.mxu0
    %v1695 = vadd.f32 %v1675, %v1694
    %1696 = vdwg.mxu0
    %1697 = vmatpush.xpose.msra.mxu0 0.0
    %1698 = vmatpush.xpose.msra.mxu0 0.0
    %1699 = vmatpush.xpose.msra.mxu0 0.0
    %1700 = vmatpush.xpose.msra.mxu0 0.0
    %1701 = vmatpush.xpose.msra.mxu0 0.0
    %1702 = vmatpush.xpose.msra.mxu0 0.0
    %1703 = vmatpush.xpose.msra.mxu0 0.0
    %1704 = vmatpush.xpose.msra.mxu0 0.0
    %1705 = vmatpush.xpose.msra.mxu0 0.0
    %1706 = vmatpush.xpose.msra.mxu0 0.0
    %1707 = vmatpush.xpose.msra.mxu0 0.0
    %1708 = vmatpush.xpose.msra.mxu0 0.0
    %1709 = vmatpush.xpose.msra.mxu0 0.0
    %1710 = vmatpush.xpose.msra.mxu0 0.0
    %1711 = vmatpush.xpose.msra.mxu0 0.0
    %1712 = vmatpush.xpose.msra.mxu0 %v897
    %1713 = vmatmul.f32.gmra.mxu0 %v256
    %v1714 = vpop.f32.mrf.mxu0
    %v1715 = vadd.f32 %v1695, %v1714
    %1716 = vdwg.mxu0
    %1717 = vmatpush.xpose.msra.mxu0 0.0
    %1718 = vmatpush.xpose.msra.mxu0 0.0
    %1719 = vmatpush.xpose.msra.mxu0 0.0
    %1720 = vmatpush.xpose.msra.mxu0 0.0
    %1721 = vmatpush.xpose.msra.mxu0 0.0
    %1722 = vmatpush.xpose.msra.mxu0 0.0
    %1723 = vmatpush.xpose.msra.mxu0 0.0
    %1724 = vmatpush.xpose.msra.mxu0 0.0
    %1725 = vmatpush.xpose.msra.mxu0 0.0
    %1726 = vmatpush.xpose.msra.mxu0 0.0
    %1727 = vmatpush.xpose.msra.mxu0 0.0
    %1728 = vmatpush.xpose.msra.mxu0 0.0
    %1729 = vmatpush.xpose.msra.mxu0 0.0
    %1730 = vmatpush.xpose.msra.mxu0 0.0
    %1731 = vmatpush.xpose.msra.mxu0 0.0
    %1732 = vmatpush.xpose.msra.mxu0 %v898
    %1733 = vmatmul.f32.gmra.mxu0 %v257
    %v1734 = vpop.f32.mrf.mxu0
    %v1735 = vadd.f32 %v1715, %v1734
    %1736 = vdwg.mxu0
    %1737 = vmatpush.xpose.msra.mxu0 0.0
    %1738 = vmatpush.xpose.msra.mxu0 0.0
    %1739 = vmatpush.xpose.msra.mxu0 0.0
    %1740 = vmatpush.xpose.msra.mxu0 0.0
    %1741 = vmatpush.xpose.msra.mxu0 0.0
    %1742 = vmatpush.xpose.msra.mxu0 0.0
    %1743 = vmatpush.xpose.msra.mxu0 0.0
    %1744 = vmatpush.xpose.msra.mxu0 0.0
    %1745 = vmatpush.xpose.msra.mxu0 0.0
    %1746 = vmatpush.xpose.msra.mxu0 0.0
    %1747 = vmatpush.xpose.msra.mxu0 0.0
    %1748 = vmatpush.xpose.msra.mxu0 0.0
    %1749 = vmatpush.xpose.msra.mxu0 0.0
    %1750 = vmatpush.xpose.msra.mxu0 0.0
    %1751 = vmatpush.xpose.msra.mxu0 0.0
    %1752 = vmatpush.xpose.msra.mxu0 %v899
    %1753 = vmatmul.f32.gmra.mxu0 %v258
    %v1754 = vpop.f32.mrf.mxu0
    %v1755 = vadd.f32 %v1735, %v1754
    %1756 = vdwg.mxu0
    %1757 = vmatpush.xpose.msra.mxu0 0.0
    %1758 = vmatpush.xpose.msra.mxu0 0.0
    %1759 = vmatpush.xpose.msra.mxu0 0.0
    %1760 = vmatpush.xpose.msra.mxu0 0.0
    %1761 = vmatpush.xpose.msra.mxu0 0.0
    %1762 = vmatpush.xpose.msra.mxu0 0.0
    %1763 = vmatpush.xpose.msra.mxu0 0.0
    %1764 = vmatpush.xpose.msra.mxu0 0.0
    %1765 = vmatpush.xpose.msra.mxu0 0.0
    %1766 = vmatpush.xpose.msra.mxu0 0.0
    %1767 = vmatpush.xpose.msra.mxu0 0.0
    %1768 = vmatpush.xpose.msra.mxu0 0.0
    %1769 = vmatpush.xpose.msra.mxu0 0.0
    %1770 = vmatpush.xpose.msra.mxu0 0.0
    %1771 = vmatpush.xpose.msra.mxu0 0.0
    %1772 = vmatpush.xpose.msra.mxu0 %v900
    %1773 = vmatmul.f32.gmra.mxu0 %v259
    %v1774 = vpop.f32.mrf.mxu0
    %v1775 = vadd.f32 %v1755, %v1774
    %1776 = vdwg.mxu0
    %1777 = vmatpush.xpose.msra.mxu0 0.0
    %1778 = vmatpush.xpose.msra.mxu0 0.0
    %1779 = vmatpush.xpose.msra.mxu0 0.0
    %1780 = vmatpush.xpose.msra.mxu0 0.0
    %1781 = vmatpush.xpose.msra.mxu0 0.0
    %1782 = vmatpush.xpose.msra.mxu0 0.0
    %1783 = vmatpush.xpose.msra.mxu0 0.0
    %1784 = vmatpush.xpose.msra.mxu0 0.0
    %1785 = vmatpush.xpose.msra.mxu0 0.0
    %1786 = vmatpush.xpose.msra.mxu0 0.0
    %1787 = vmatpush.xpose.msra.mxu0 0.0
    %1788 = vmatpush.xpose.msra.mxu0 0.0
    %1789 = vmatpush.xpose.msra.mxu0 0.0
    %1790 = vmatpush.xpose.msra.mxu0 0.0
    %1791 = vmatpush.xpose.msra.mxu0 0.0
    %1792 = vmatpush.xpose.msra.mxu0 %v903
    %1793 = vmatmul.f32.gmra.mxu0 %v262
    %v1794 = vpop.f32.mrf.mxu0
    %v1795 = vadd.f32 %v1775, %v1794
    %1796 = vdwg.mxu0
    %1797 = vmatpush.xpose.msra.mxu0 0.0
    %1798 = vmatpush.xpose.msra.mxu0 0.0
    %1799 = vmatpush.xpose.msra.mxu0 0.0
    %1800 = vmatpush.xpose.msra.mxu0 0.0
    %1801 = vmatpush.xpose.msra.mxu0 0.0
    %1802 = vmatpush.xpose.msra.mxu0 0.0
    %1803 = vmatpush.xpose.msra.mxu0 0.0
    %1804 = vmatpush.xpose.msra.mxu0 0.0
    %1805 = vmatpush.xpose.msra.mxu0 0.0
    %1806 = vmatpush.xpose.msra.mxu0 0.0
    %1807 = vmatpush.xpose.msra.mxu0 0.0
    %1808 = vmatpush.xpose.msra.mxu0 0.0
    %1809 = vmatpush.xpose.msra.mxu0 0.0
    %1810 = vmatpush.xpose.msra.mxu0 0.0
    %1811 = vmatpush.xpose.msra.mxu0 0.0
    %1812 = vmatpush.xpose.msra.mxu0 %v904
    %1813 = vmatmul.f32.gmra.mxu0 %v263
    %v1814 = vpop.f32.mrf.mxu0
    %v1815 = vadd.f32 %v1795, %v1814
    %1816 = vdwg.mxu0
    %1817 = vmatpush.xpose.msra.mxu0 0.0
    %1818 = vmatpush.xpose.msra.mxu0 0.0
    %1819 = vmatpush.xpose.msra.mxu0 0.0
    %1820 = vmatpush.xpose.msra.mxu0 0.0
    %1821 = vmatpush.xpose.msra.mxu0 0.0
    %1822 = vmatpush.xpose.msra.mxu0 0.0
    %1823 = vmatpush.xpose.msra.mxu0 0.0
    %1824 = vmatpush.xpose.msra.mxu0 0.0
    %1825 = vmatpush.xpose.msra.mxu0 0.0
    %1826 = vmatpush.xpose.msra.mxu0 0.0
    %1827 = vmatpush.xpose.msra.mxu0 0.0
    %1828 = vmatpush.xpose.msra.mxu0 0.0
    %1829 = vmatpush.xpose.msra.mxu0 0.0
    %1830 = vmatpush.xpose.msra.mxu0 0.0
    %1831 = vmatpush.xpose.msra.mxu0 0.0
    %1832 = vmatpush.xpose.msra.mxu0 %v905
    %1833 = vmatmul.f32.gmra.mxu0 %v264
    %v1834 = vpop.f32.mrf.mxu0
    %v1835 = vadd.f32 %v1815, %v1834
    %1836 = vdwg.mxu0
    %1837 = vmatpush.xpose.msra.mxu0 0.0
    %1838 = vmatpush.xpose.msra.mxu0 0.0
    %1839 = vmatpush.xpose.msra.mxu0 0.0
    %1840 = vmatpush.xpose.msra.mxu0 0.0
    %1841 = vmatpush.xpose.msra.mxu0 0.0
    %1842 = vmatpush.xpose.msra.mxu0 0.0
    %1843 = vmatpush.xpose.msra.mxu0 0.0
    %1844 = vmatpush.xpose.msra.mxu0 0.0
    %1845 = vmatpush.xpose.msra.mxu0 0.0
    %1846 = vmatpush.xpose.msra.mxu0 0.0
    %1847 = vmatpush.xpose.msra.mxu0 0.0
    %1848 = vmatpush.xpose.msra.mxu0 0.0
    %1849 = vmatpush.xpose.msra.mxu0 0.0
    %1850 = vmatpush.xpose.msra.mxu0 0.0
    %1851 = vmatpush.xpose.msra.mxu0 0.0
    %1852 = vmatpush.xpose.msra.mxu0 %v906
    %1853 = vmatmul.f32.gmra.mxu0 %v265
    %v1854 = vpop.f32.mrf.mxu0
    %v1855 = vadd.f32 %v1835, %v1854
    %1856 = vdwg.mxu0
    %1857 = vmatpush.xpose.msra.mxu0 0.0
    %1858 = vmatpush.xpose.msra.mxu0 0.0
    %1859 = vmatpush.xpose.msra.mxu0 0.0
    %1860 = vmatpush.xpose.msra.mxu0 0.0
    %1861 = vmatpush.xpose.msra.mxu0 0.0
    %1862 = vmatpush.xpose.msra.mxu0 0.0
    %1863 = vmatpush.xpose.msra.mxu0 0.0
    %1864 = vmatpush.xpose.msra.mxu0 0.0
    %1865 = vmatpush.xpose.msra.mxu0 0.0
    %1866 = vmatpush.xpose.msra.mxu0 0.0
    %1867 = vmatpush.xpose.msra.mxu0 0.0
    %1868 = vmatpush.xpose.msra.mxu0 0.0
    %1869 = vmatpush.xpose.msra.mxu0 0.0
    %1870 = vmatpush.xpose.msra.mxu0 0.0
    %1871 = vmatpush.xpose.msra.mxu0 0.0
    %1872 = vmatpush.xpose.msra.mxu0 %v907
    %1873 = vmatmul.f32.gmra.mxu0 %v266
    %v1874 = vpop.f32.mrf.mxu0
    %v1875 = vadd.f32 %v1855, %v1874
    %1876 = vdwg.mxu0
    %1877 = vmatpush.xpose.msra.mxu0 0.0
    %1878 = vmatpush.xpose.msra.mxu0 0.0
    %1879 = vmatpush.xpose.msra.mxu0 0.0
    %1880 = vmatpush.xpose.msra.mxu0 0.0
    %1881 = vmatpush.xpose.msra.mxu0 0.0
    %1882 = vmatpush.xpose.msra.mxu0 0.0
    %1883 = vmatpush.xpose.msra.mxu0 0.0
    %1884 = vmatpush.xpose.msra.mxu0 0.0
    %1885 = vmatpush.xpose.msra.mxu0 0.0
    %1886 = vmatpush.xpose.msra.mxu0 0.0
    %1887 = vmatpush.xpose.msra.mxu0 0.0
    %1888 = vmatpush.xpose.msra.mxu0 0.0
    %1889 = vmatpush.xpose.msra.mxu0 0.0
    %1890 = vmatpush.xpose.msra.mxu0 0.0
    %1891 = vmatpush.xpose.msra.mxu0 0.0
    %1892 = vmatpush.xpose.msra.mxu0 %v908
    %1893 = vmatmul.f32.gmra.mxu0 %v267
    %v1894 = vpop.f32.mrf.mxu0
    %v1895 = vadd.f32 %v1875, %v1894
    %1896 = vdwg.mxu0
    %1897 = vmatpush.xpose.msra.mxu0 0.0
    %1898 = vmatpush.xpose.msra.mxu0 0.0
    %1899 = vmatpush.xpose.msra.mxu0 0.0
    %1900 = vmatpush.xpose.msra.mxu0 0.0
    %1901 = vmatpush.xpose.msra.mxu0 0.0
    %1902 = vmatpush.xpose.msra.mxu0 0.0
    %1903 = vmatpush.xpose.msra.mxu0 0.0
    %1904 = vmatpush.xpose.msra.mxu0 0.0
    %1905 = vmatpush.xpose.msra.mxu0 0.0
    %1906 = vmatpush.xpose.msra.mxu0 0.0
    %1907 = vmatpush.xpose.msra.mxu0 0.0
    %1908 = vmatpush.xpose.msra.mxu0 0.0
    %1909 = vmatpush.xpose.msra.mxu0 0.0
    %1910 = vmatpush.xpose.msra.mxu0 0.0
    %1911 = vmatpush.xpose.msra.mxu0 0.0
    %1912 = vmatpush.xpose.msra.mxu0 %v909
    %1913 = vmatmul.f32.gmra.mxu0 %v268
    %v1914 = vpop.f32.mrf.mxu0
    %v1915 = vadd.f32 %v1895, %v1914
    %1916 = vdwg.mxu0
    %1917 = vmatpush.xpose.msra.mxu0 0.0
    %1918 = vmatpush.xpose.msra.mxu0 0.0
    %1919 = vmatpush.xpose.msra.mxu0 0.0
    %1920 = vmatpush.xpose.msra.mxu0 0.0
    %1921 = vmatpush.xpose.msra.mxu0 0.0
    %1922 = vmatpush.xpose.msra.mxu0 0.0
    %1923 = vmatpush.xpose.msra.mxu0 0.0
    %1924 = vmatpush.xpose.msra.mxu0 0.0
    %1925 = vmatpush.xpose.msra.mxu0 0.0
    %1926 = vmatpush.xpose.msra.mxu0 0.0
    %1927 = vmatpush.xpose.msra.mxu0 0.0
    %1928 = vmatpush.xpose.msra.mxu0 0.0
    %1929 = vmatpush.xpose.msra.mxu0 0.0
    %1930 = vmatpush.xpose.msra.mxu0 0.0
    %1931 = vmatpush.xpose.msra.mxu0 0.0
    %1932 = vmatpush.xpose.msra.mxu0 %v910
    %1933 = vmatmul.f32.gmra.mxu0 %v269
    %v1934 = vpop.f32.mrf.mxu0
    %v1935 = vadd.f32 %v1915, %v1934
    %1936 = vdwg.mxu0
    %1937 = vmatpush.xpose.msra.mxu0 0.0
    %1938 = vmatpush.xpose.msra.mxu0 0.0
    %1939 = vmatpush.xpose.msra.mxu0 0.0
    %1940 = vmatpush.xpose.msra.mxu0 0.0
    %1941 = vmatpush.xpose.msra.mxu0 0.0
    %1942 = vmatpush.xpose.msra.mxu0 0.0
    %1943 = vmatpush.xpose.msra.mxu0 0.0
    %1944 = vmatpush.xpose.msra.mxu0 0.0
    %1945 = vmatpush.xpose.msra.mxu0 0.0
    %1946 = vmatpush.xpose.msra.mxu0 0.0
    %1947 = vmatpush.xpose.msra.mxu0 0.0
    %1948 = vmatpush.xpose.msra.mxu0 0.0
    %1949 = vmatpush.xpose.msra.mxu0 0.0
    %1950 = vmatpush.xpose.msra.mxu0 0.0
    %1951 = vmatpush.xpose.msra.mxu0 0.0
    %1952 = vmatpush.xpose.msra.mxu0 %v913
    %1953 = vmatmul.f32.gmra.mxu0 %v272
    %v1954 = vpop.f32.mrf.mxu0
    %v1955 = vadd.f32 %v1935, %v1954
    %1956 = vdwg.mxu0
    %1957 = vmatpush.xpose.msra.mxu0 0.0
    %1958 = vmatpush.xpose.msra.mxu0 0.0
    %1959 = vmatpush.xpose.msra.mxu0 0.0
    %1960 = vmatpush.xpose.msra.mxu0 0.0
    %1961 = vmatpush.xpose.msra.mxu0 0.0
    %1962 = vmatpush.xpose.msra.mxu0 0.0
    %1963 = vmatpush.xpose.msra.mxu0 0.0
    %1964 = vmatpush.xpose.msra.mxu0 0.0
    %1965 = vmatpush.xpose.msra.mxu0 0.0
    %1966 = vmatpush.xpose.msra.mxu0 0.0
    %1967 = vmatpush.xpose.msra.mxu0 0.0
    %1968 = vmatpush.xpose.msra.mxu0 0.0
    %1969 = vmatpush.xpose.msra.mxu0 0.0
    %1970 = vmatpush.xpose.msra.mxu0 0.0
    %1971 = vmatpush.xpose.msra.mxu0 0.0
    %1972 = vmatpush.xpose.msra.mxu0 %v914
    %1973 = vmatmul.f32.gmra.mxu0 %v273
    %v1974 = vpop.f32.mrf.mxu0
    %v1975 = vadd.f32 %v1955, %v1974
    %1976 = vdwg.mxu0
    %1977 = vmatpush.xpose.msra.mxu0 0.0
    %1978 = vmatpush.xpose.msra.mxu0 0.0
    %1979 = vmatpush.xpose.msra.mxu0 0.0
    %1980 = vmatpush.xpose.msra.mxu0 0.0
    %1981 = vmatpush.xpose.msra.mxu0 0.0
    %1982 = vmatpush.xpose.msra.mxu0 0.0
    %1983 = vmatpush.xpose.msra.mxu0 0.0
    %1984 = vmatpush.xpose.msra.mxu0 0.0
    %1985 = vmatpush.xpose.msra.mxu0 0.0
    %1986 = vmatpush.xpose.msra.mxu0 0.0
    %1987 = vmatpush.xpose.msra.mxu0 0.0
    %1988 = vmatpush.xpose.msra.mxu0 0.0
    %1989 = vmatpush.xpose.msra.mxu0 0.0
    %1990 = vmatpush.xpose.msra.mxu0 0.0
    %1991 = vmatpush.xpose.msra.mxu0 0.0
    %1992 = vmatpush.xpose.msra.mxu0 %v915
    %1993 = vmatmul.f32.gmra.mxu0 %v274
    %v1994 = vpop.f32.mrf.mxu0
    %v1995 = vadd.f32 %v1975, %v1994
    %1996 = vdwg.mxu0
    %1997 = vmatpush.xpose.msra.mxu0 0.0
    %1998 = vmatpush.xpose.msra.mxu0 0.0
    %1999 = vmatpush.xpose.msra.mxu0 0.0
    %2000 = vmatpush.xpose.msra.mxu0 0.0
    %2001 = vmatpush.xpose.msra.mxu0 0.0
    %2002 = vmatpush.xpose.msra.mxu0 0.0
    %2003 = vmatpush.xpose.msra.mxu0 0.0
    %2004 = vmatpush.xpose.msra.mxu0 0.0
    %2005 = vmatpush.xpose.msra.mxu0 0.0
    %2006 = vmatpush.xpose.msra.mxu0 0.0
    %2007 = vmatpush.xpose.msra.mxu0 0.0
    %2008 = vmatpush.xpose.msra.mxu0 0.0
    %2009 = vmatpush.xpose.msra.mxu0 0.0
    %2010 = vmatpush.xpose.msra.mxu0 0.0
    %2011 = vmatpush.xpose.msra.mxu0 0.0
    %2012 = vmatpush.xpose.msra.mxu0 %v916
    %2013 = vmatmul.f32.gmra.mxu0 %v275
    %v2014 = vpop.f32.mrf.mxu0
    %v2015 = vadd.f32 %v1995, %v2014
    %2016 = vdwg.mxu0
    %2017 = vmatpush.xpose.msra.mxu0 0.0
    %2018 = vmatpush.xpose.msra.mxu0 0.0
    %2019 = vmatpush.xpose.msra.mxu0 0.0
    %2020 = vmatpush.xpose.msra.mxu0 0.0
    %2021 = vmatpush.xpose.msra.mxu0 0.0
    %2022 = vmatpush.xpose.msra.mxu0 0.0
    %2023 = vmatpush.xpose.msra.mxu0 0.0
    %2024 = vmatpush.xpose.msra.mxu0 0.0
    %2025 = vmatpush.xpose.msra.mxu0 0.0
    %2026 = vmatpush.xpose.msra.mxu0 0.0
    %2027 = vmatpush.xpose.msra.mxu0 0.0
    %2028 = vmatpush.xpose.msra.mxu0 0.0
    %2029 = vmatpush.xpose.msra.mxu0 0.0
    %2030 = vmatpush.xpose.msra.mxu0 0.0
    %2031 = vmatpush.xpose.msra.mxu0 0.0
    %2032 = vmatpush.xpose.msra.mxu0 %v917
    %2033 = vmatmul.f32.gmra.mxu0 %v276
    %v2034 = vpop.f32.mrf.mxu0
    %v2035 = vadd.f32 %v2015, %v2034
    %2036 = vdwg.mxu0
    %2037 = vmatpush.xpose.msra.mxu0 0.0
    %2038 = vmatpush.xpose.msra.mxu0 0.0
    %2039 = vmatpush.xpose.msra.mxu0 0.0
    %2040 = vmatpush.xpose.msra.mxu0 0.0
    %2041 = vmatpush.xpose.msra.mxu0 0.0
    %2042 = vmatpush.xpose.msra.mxu0 0.0
    %2043 = vmatpush.xpose.msra.mxu0 0.0
    %2044 = vmatpush.xpose.msra.mxu0 0.0
    %2045 = vmatpush.xpose.msra.mxu0 0.0
    %2046 = vmatpush.xpose.msra.mxu0 0.0
    %2047 = vmatpush.xpose.msra.mxu0 0.0
    %2048 = vmatpush.xpose.msra.mxu0 0.0
    %2049 = vmatpush.xpose.msra.mxu0 0.0
    %2050 = vmatpush.xpose.msra.mxu0 0.0
    %2051 = vmatpush.xpose.msra.mxu0 0.0
    %2052 = vmatpush.xpose.msra.mxu0 %v918
    %2053 = vmatmul.f32.gmra.mxu0 %v277
    %v2054 = vpop.f32.mrf.mxu0
    %v2055 = vadd.f32 %v2035, %v2054
    %2056 = vdwg.mxu0
    %2057 = vmatpush.xpose.msra.mxu0 0.0
    %2058 = vmatpush.xpose.msra.mxu0 0.0
    %2059 = vmatpush.xpose.msra.mxu0 0.0
    %2060 = vmatpush.xpose.msra.mxu0 0.0
    %2061 = vmatpush.xpose.msra.mxu0 0.0
    %2062 = vmatpush.xpose.msra.mxu0 0.0
    %2063 = vmatpush.xpose.msra.mxu0 0.0
    %2064 = vmatpush.xpose.msra.mxu0 0.0
    %2065 = vmatpush.xpose.msra.mxu0 0.0
    %2066 = vmatpush.xpose.msra.mxu0 0.0
    %2067 = vmatpush.xpose.msra.mxu0 0.0
    %2068 = vmatpush.xpose.msra.mxu0 0.0
    %2069 = vmatpush.xpose.msra.mxu0 0.0
    %2070 = vmatpush.xpose.msra.mxu0 0.0
    %2071 = vmatpush.xpose.msra.mxu0 0.0
    %2072 = vmatpush.xpose.msra.mxu0 %v919
    %2073 = vmatmul.f32.gmra.mxu0 %v278
    %v2074 = vpop.f32.mrf.mxu0
    %v2075 = vadd.f32 %v2055, %v2074
    %2076 = vdwg.mxu0
    %2077 = vmatpush.xpose.msra.mxu0 0.0
    %2078 = vmatpush.xpose.msra.mxu0 0.0
    %2079 = vmatpush.xpose.msra.mxu0 0.0
    %2080 = vmatpush.xpose.msra.mxu0 0.0
    %2081 = vmatpush.xpose.msra.mxu0 0.0
    %2082 = vmatpush.xpose.msra.mxu0 0.0
    %2083 = vmatpush.xpose.msra.mxu0 0.0
    %2084 = vmatpush.xpose.msra.mxu0 0.0
    %2085 = vmatpush.xpose.msra.mxu0 0.0
    %2086 = vmatpush.xpose.msra.mxu0 0.0
    %2087 = vmatpush.xpose.msra.mxu0 0.0
    %2088 = vmatpush.xpose.msra.mxu0 0.0
    %2089 = vmatpush.xpose.msra.mxu0 0.0
    %2090 = vmatpush.xpose.msra.mxu0 0.0
    %2091 = vmatpush.xpose.msra.mxu0 0.0
    %2092 = vmatpush.xpose.msra.mxu0 %v920
    %2093 = vmatmul.f32.gmra.mxu0 %v279
    %v2094 = vpop.f32.mrf.mxu0
    %v2095 = vadd.f32 %v2075, %v2094
    %2096 = vdwg.mxu0
    %2097 = vmatpush.xpose.msra.mxu0 0.0
    %2098 = vmatpush.xpose.msra.mxu0 0.0
    %2099 = vmatpush.xpose.msra.mxu0 0.0
    %2100 = vmatpush.xpose.msra.mxu0 0.0
    %2101 = vmatpush.xpose.msra.mxu0 0.0
    %2102 = vmatpush.xpose.msra.mxu0 0.0
    %2103 = vmatpush.xpose.msra.mxu0 0.0
    %2104 = vmatpush.xpose.msra.mxu0 0.0
    %2105 = vmatpush.xpose.msra.mxu0 0.0
    %2106 = vmatpush.xpose.msra.mxu0 0.0
    %2107 = vmatpush.xpose.msra.mxu0 0.0
    %2108 = vmatpush.xpose.msra.mxu0 0.0
    %2109 = vmatpush.xpose.msra.mxu0 0.0
    %2110 = vmatpush.xpose.msra.mxu0 0.0
    %2111 = vmatpush.xpose.msra.mxu0 0.0
    %2112 = vmatpush.xpose.msra.mxu0 %v923
    %2113 = vmatmul.f32.gmra.mxu0 %v282
    %v2114 = vpop.f32.mrf.mxu0
    %v2115 = vadd.f32 %v2095, %v2114
    %2116 = vdwg.mxu0
    %2117 = vmatpush.xpose.msra.mxu0 0.0
    %2118 = vmatpush.xpose.msra.mxu0 0.0
    %2119 = vmatpush.xpose.msra.mxu0 0.0
    %2120 = vmatpush.xpose.msra.mxu0 0.0
    %2121 = vmatpush.xpose.msra.mxu0 0.0
    %2122 = vmatpush.xpose.msra.mxu0 0.0
    %2123 = vmatpush.xpose.msra.mxu0 0.0
    %2124 = vmatpush.xpose.msra.mxu0 0.0
    %2125 = vmatpush.xpose.msra.mxu0 0.0
    %2126 = vmatpush.xpose.msra.mxu0 0.0
    %2127 = vmatpush.xpose.msra.mxu0 0.0
    %2128 = vmatpush.xpose.msra.mxu0 0.0
    %2129 = vmatpush.xpose.msra.mxu0 0.0
    %2130 = vmatpush.xpose.msra.mxu0 0.0
    %2131 = vmatpush.xpose.msra.mxu0 0.0
    %2132 = vmatpush.xpose.msra.mxu0 %v924
    %2133 = vmatmul.f32.gmra.mxu0 %v283
    %v2134 = vpop.f32.mrf.mxu0
    %v2135 = vadd.f32 %v2115, %v2134
    %2136 = vdwg.mxu0
    %2137 = vmatpush.xpose.msra.mxu0 0.0
    %2138 = vmatpush.xpose.msra.mxu0 0.0
    %2139 = vmatpush.xpose.msra.mxu0 0.0
    %2140 = vmatpush.xpose.msra.mxu0 0.0
    %2141 = vmatpush.xpose.msra.mxu0 0.0
    %2142 = vmatpush.xpose.msra.mxu0 0.0
    %2143 = vmatpush.xpose.msra.mxu0 0.0
    %2144 = vmatpush.xpose.msra.mxu0 0.0
    %2145 = vmatpush.xpose.msra.mxu0 0.0
    %2146 = vmatpush.xpose.msra.mxu0 0.0
    %2147 = vmatpush.xpose.msra.mxu0 0.0
    %2148 = vmatpush.xpose.msra.mxu0 0.0
    %2149 = vmatpush.xpose.msra.mxu0 0.0
    %2150 = vmatpush.xpose.msra.mxu0 0.0
    %2151 = vmatpush.xpose.msra.mxu0 0.0
    %2152 = vmatpush.xpose.msra.mxu0 %v925
    %2153 = vmatmul.f32.gmra.mxu0 %v284
    %v2154 = vpop.f32.mrf.mxu0
    %v2155 = vadd.f32 %v2135, %v2154
    %2156 = vdwg.mxu0
    %2157 = vmatpush.xpose.msra.mxu0 0.0
    %2158 = vmatpush.xpose.msra.mxu0 0.0
    %2159 = vmatpush.xpose.msra.mxu0 0.0
    %2160 = vmatpush.xpose.msra.mxu0 0.0
    %2161 = vmatpush.xpose.msra.mxu0 0.0
    %2162 = vmatpush.xpose.msra.mxu0 0.0
    %2163 = vmatpush.xpose.msra.mxu0 0.0
    %2164 = vmatpush.xpose.msra.mxu0 0.0
    %2165 = vmatpush.xpose.msra.mxu0 0.0
    %2166 = vmatpush.xpose.msra.mxu0 0.0
    %2167 = vmatpush.xpose.msra.mxu0 0.0
    %2168 = vmatpush.xpose.msra.mxu0 0.0
    %2169 = vmatpush.xpose.msra.mxu0 0.0
    %2170 = vmatpush.xpose.msra.mxu0 0.0
    %2171 = vmatpush.xpose.msra.mxu0 0.0
    %2172 = vmatpush.xpose.msra.mxu0 %v926
    %2173 = vmatmul.f32.gmra.mxu0 %v285
    %v2174 = vpop.f32.mrf.mxu0
    %v2175 = vadd.f32 %v2155, %v2174
    %2176 = vdwg.mxu0
    %2177 = vmatpush.xpose.msra.mxu0 0.0
    %2178 = vmatpush.xpose.msra.mxu0 0.0
    %2179 = vmatpush.xpose.msra.mxu0 0.0
    %2180 = vmatpush.xpose.msra.mxu0 0.0
    %2181 = vmatpush.xpose.msra.mxu0 0.0
    %2182 = vmatpush.xpose.msra.mxu0 0.0
    %2183 = vmatpush.xpose.msra.mxu0 0.0
    %2184 = vmatpush.xpose.msra.mxu0 0.0
    %2185 = vmatpush.xpose.msra.mxu0 0.0
    %2186 = vmatpush.xpose.msra.mxu0 0.0
    %2187 = vmatpush.xpose.msra.mxu0 0.0
    %2188 = vmatpush.xpose.msra.mxu0 0.0
    %2189 = vmatpush.xpose.msra.mxu0 0.0
    %2190 = vmatpush.xpose.msra.mxu0 0.0
    %2191 = vmatpush.xpose.msra.mxu0 0.0
    %2192 = vmatpush.xpose.msra.mxu0 %v927
    %2193 = vmatmul.f32.gmra.mxu0 %v286
    %v2194 = vpop.f32.mrf.mxu0
    %v2195 = vadd.f32 %v2175, %v2194
    %2196 = vdwg.mxu0
    %2197 = vmatpush.xpose.msra.mxu0 0.0
    %2198 = vmatpush.xpose.msra.mxu0 0.0
    %2199 = vmatpush.xpose.msra.mxu0 0.0
    %2200 = vmatpush.xpose.msra.mxu0 0.0
    %2201 = vmatpush.xpose.msra.mxu0 0.0
    %2202 = vmatpush.xpose.msra.mxu0 0.0
    %2203 = vmatpush.xpose.msra.mxu0 0.0
    %2204 = vmatpush.xpose.msra.mxu0 0.0
    %2205 = vmatpush.xpose.msra.mxu0 0.0
    %2206 = vmatpush.xpose.msra.mxu0 0.0
    %2207 = vmatpush.xpose.msra.mxu0 0.0
    %2208 = vmatpush.xpose.msra.mxu0 0.0
    %2209 = vmatpush.xpose.msra.mxu0 0.0
    %2210 = vmatpush.xpose.msra.mxu0 0.0
    %2211 = vmatpush.xpose.msra.mxu0 0.0
    %2212 = vmatpush.xpose.msra.mxu0 %v928
    %2213 = vmatmul.f32.gmra.mxu0 %v287
    %v2214 = vpop.f32.mrf.mxu0
    %v2215 = vadd.f32 %v2195, %v2214
    %2216 = vdwg.mxu0
    %2217 = vmatpush.xpose.msra.mxu0 0.0
    %2218 = vmatpush.xpose.msra.mxu0 0.0
    %2219 = vmatpush.xpose.msra.mxu0 0.0
    %2220 = vmatpush.xpose.msra.mxu0 0.0
    %2221 = vmatpush.xpose.msra.mxu0 0.0
    %2222 = vmatpush.xpose.msra.mxu0 0.0
    %2223 = vmatpush.xpose.msra.mxu0 0.0
    %2224 = vmatpush.xpose.msra.mxu0 0.0
    %2225 = vmatpush.xpose.msra.mxu0 0.0
    %2226 = vmatpush.xpose.msra.mxu0 0.0
    %2227 = vmatpush.xpose.msra.mxu0 0.0
    %2228 = vmatpush.xpose.msra.mxu0 0.0
    %2229 = vmatpush.xpose.msra.mxu0 0.0
    %2230 = vmatpush.xpose.msra.mxu0 0.0
    %2231 = vmatpush.xpose.msra.mxu0 0.0
    %2232 = vmatpush.xpose.msra.mxu0 %v929
    %2233 = vmatmul.f32.gmra.mxu0 %v288
    %v2234 = vpop.f32.mrf.mxu0
    %v2235 = vadd.f32 %v2215, %v2234
    %2236 = vdwg.mxu0
    %2237 = vmatpush.xpose.msra.mxu0 0.0
    %2238 = vmatpush.xpose.msra.mxu0 0.0
    %2239 = vmatpush.xpose.msra.mxu0 0.0
    %2240 = vmatpush.xpose.msra.mxu0 0.0
    %2241 = vmatpush.xpose.msra.mxu0 0.0
    %2242 = vmatpush.xpose.msra.mxu0 0.0
    %2243 = vmatpush.xpose.msra.mxu0 0.0
    %2244 = vmatpush.xpose.msra.mxu0 0.0
    %2245 = vmatpush.xpose.msra.mxu0 0.0
    %2246 = vmatpush.xpose.msra.mxu0 0.0
    %2247 = vmatpush.xpose.msra.mxu0 0.0
    %2248 = vmatpush.xpose.msra.mxu0 0.0
    %2249 = vmatpush.xpose.msra.mxu0 0.0
    %2250 = vmatpush.xpose.msra.mxu0 0.0
    %2251 = vmatpush.xpose.msra.mxu0 0.0
    %2252 = vmatpush.xpose.msra.mxu0 %v930
    %2253 = vmatmul.f32.gmra.mxu0 %v289
    %v2254 = vpop.f32.mrf.mxu0
    %v2255 = vadd.f32 %v2235, %v2254
    %2256 = vdwg.mxu0
    %2257 = vmatpush.xpose.msra.mxu0 0.0
    %2258 = vmatpush.xpose.msra.mxu0 0.0
    %2259 = vmatpush.xpose.msra.mxu0 0.0
    %2260 = vmatpush.xpose.msra.mxu0 0.0
    %2261 = vmatpush.xpose.msra.mxu0 0.0
    %2262 = vmatpush.xpose.msra.mxu0 0.0
    %2263 = vmatpush.xpose.msra.mxu0 0.0
    %2264 = vmatpush.xpose.msra.mxu0 0.0
    %2265 = vmatpush.xpose.msra.mxu0 0.0
    %2266 = vmatpush.xpose.msra.mxu0 0.0
    %2267 = vmatpush.xpose.msra.mxu0 0.0
    %2268 = vmatpush.xpose.msra.mxu0 0.0
    %2269 = vmatpush.xpose.msra.mxu0 0.0
    %2270 = vmatpush.xpose.msra.mxu0 0.0
    %2271 = vmatpush.xpose.msra.mxu0 0.0
    %2272 = vmatpush.xpose.msra.mxu0 %v933
    %2273 = vmatmul.f32.gmra.mxu0 %v292
    %v2274 = vpop.f32.mrf.mxu0
    %v2275 = vadd.f32 %v2255, %v2274
    %2276 = vdwg.mxu0
    %2277 = vmatpush.xpose.msra.mxu0 0.0
    %2278 = vmatpush.xpose.msra.mxu0 0.0
    %2279 = vmatpush.xpose.msra.mxu0 0.0
    %2280 = vmatpush.xpose.msra.mxu0 0.0
    %2281 = vmatpush.xpose.msra.mxu0 0.0
    %2282 = vmatpush.xpose.msra.mxu0 0.0
    %2283 = vmatpush.xpose.msra.mxu0 0.0
    %2284 = vmatpush.xpose.msra.mxu0 0.0
    %2285 = vmatpush.xpose.msra.mxu0 0.0
    %2286 = vmatpush.xpose.msra.mxu0 0.0
    %2287 = vmatpush.xpose.msra.mxu0 0.0
    %2288 = vmatpush.xpose.msra.mxu0 0.0
    %2289 = vmatpush.xpose.msra.mxu0 0.0
    %2290 = vmatpush.xpose.msra.mxu0 0.0
    %2291 = vmatpush.xpose.msra.mxu0 0.0
    %2292 = vmatpush.xpose.msra.mxu0 %v934
    %2293 = vmatmul.f32.gmra.mxu0 %v293
    %v2294 = vpop.f32.mrf.mxu0
    %v2295 = vadd.f32 %v2275, %v2294
    %2296 = vdwg.mxu0
    %2297 = vmatpush.xpose.msra.mxu0 0.0
    %2298 = vmatpush.xpose.msra.mxu0 0.0
    %2299 = vmatpush.xpose.msra.mxu0 0.0
    %2300 = vmatpush.xpose.msra.mxu0 0.0
    %2301 = vmatpush.xpose.msra.mxu0 0.0
    %2302 = vmatpush.xpose.msra.mxu0 0.0
    %2303 = vmatpush.xpose.msra.mxu0 0.0
    %2304 = vmatpush.xpose.msra.mxu0 0.0
    %2305 = vmatpush.xpose.msra.mxu0 0.0
    %2306 = vmatpush.xpose.msra.mxu0 0.0
    %2307 = vmatpush.xpose.msra.mxu0 0.0
    %2308 = vmatpush.xpose.msra.mxu0 0.0
    %2309 = vmatpush.xpose.msra.mxu0 0.0
    %2310 = vmatpush.xpose.msra.mxu0 0.0
    %2311 = vmatpush.xpose.msra.mxu0 0.0
    %2312 = vmatpush.xpose.msra.mxu0 %v935
    %2313 = vmatmul.f32.gmra.mxu0 %v294
    %v2314 = vpop.f32.mrf.mxu0
    %v2315 = vadd.f32 %v2295, %v2314
    %2316 = vdwg.mxu0
    %2317 = vmatpush.xpose.msra.mxu0 0.0
    %2318 = vmatpush.xpose.msra.mxu0 0.0
    %2319 = vmatpush.xpose.msra.mxu0 0.0
    %2320 = vmatpush.xpose.msra.mxu0 0.0
    %2321 = vmatpush.xpose.msra.mxu0 0.0
    %2322 = vmatpush.xpose.msra.mxu0 0.0
    %2323 = vmatpush.xpose.msra.mxu0 0.0
    %2324 = vmatpush.xpose.msra.mxu0 0.0
    %2325 = vmatpush.xpose.msra.mxu0 0.0
    %2326 = vmatpush.xpose.msra.mxu0 0.0
    %2327 = vmatpush.xpose.msra.mxu0 0.0
    %2328 = vmatpush.xpose.msra.mxu0 0.0
    %2329 = vmatpush.xpose.msra.mxu0 0.0
    %2330 = vmatpush.xpose.msra.mxu0 0.0
    %2331 = vmatpush.xpose.msra.mxu0 0.0
    %2332 = vmatpush.xpose.msra.mxu0 %v936
    %2333 = vmatmul.f32.gmra.mxu0 %v295
    %v2334 = vpop.f32.mrf.mxu0
    %v2335 = vadd.f32 %v2315, %v2334
    %2336 = vdwg.mxu0
    %2337 = vmatpush.xpose.msra.mxu0 0.0
    %2338 = vmatpush.xpose.msra.mxu0 0.0
    %2339 = vmatpush.xpose.msra.mxu0 0.0
    %2340 = vmatpush.xpose.msra.mxu0 0.0
    %2341 = vmatpush.xpose.msra.mxu0 0.0
    %2342 = vmatpush.xpose.msra.mxu0 0.0
    %2343 = vmatpush.xpose.msra.mxu0 0.0
    %2344 = vmatpush.xpose.msra.mxu0 0.0
    %2345 = vmatpush.xpose.msra.mxu0 0.0
    %2346 = vmatpush.xpose.msra.mxu0 0.0
    %2347 = vmatpush.xpose.msra.mxu0 0.0
    %2348 = vmatpush.xpose.msra.mxu0 0.0
    %2349 = vmatpush.xpose.msra.mxu0 0.0
    %2350 = vmatpush.xpose.msra.mxu0 0.0
    %2351 = vmatpush.xpose.msra.mxu0 0.0
    %2352 = vmatpush.xpose.msra.mxu0 %v937
    %2353 = vmatmul.f32.gmra.mxu0 %v296
    %v2354 = vpop.f32.mrf.mxu0
    %v2355 = vadd.f32 %v2335, %v2354
    %2356 = vdwg.mxu0
    %2357 = vmatpush.xpose.msra.mxu0 0.0
    %2358 = vmatpush.xpose.msra.mxu0 0.0
    %2359 = vmatpush.xpose.msra.mxu0 0.0
    %2360 = vmatpush.xpose.msra.mxu0 0.0
    %2361 = vmatpush.xpose.msra.mxu0 0.0
    %2362 = vmatpush.xpose.msra.mxu0 0.0
    %2363 = vmatpush.xpose.msra.mxu0 0.0
    %2364 = vmatpush.xpose.msra.mxu0 0.0
    %2365 = vmatpush.xpose.msra.mxu0 0.0
    %2366 = vmatpush.xpose.msra.mxu0 0.0
    %2367 = vmatpush.xpose.msra.mxu0 0.0
    %2368 = vmatpush.xpose.msra.mxu0 0.0
    %2369 = vmatpush.xpose.msra.mxu0 0.0
    %2370 = vmatpush.xpose.msra.mxu0 0.0
    %2371 = vmatpush.xpose.msra.mxu0 0.0
    %2372 = vmatpush.xpose.msra.mxu0 %v938
    %2373 = vmatmul.f32.gmra.mxu0 %v297
    %v2374 = vpop.f32.mrf.mxu0
    %v2375 = vadd.f32 %v2355, %v2374
    %2376 = vdwg.mxu0
    %2377 = vmatpush.xpose.msra.mxu0 0.0
    %2378 = vmatpush.xpose.msra.mxu0 0.0
    %2379 = vmatpush.xpose.msra.mxu0 0.0
    %2380 = vmatpush.xpose.msra.mxu0 0.0
    %2381 = vmatpush.xpose.msra.mxu0 0.0
    %2382 = vmatpush.xpose.msra.mxu0 0.0
    %2383 = vmatpush.xpose.msra.mxu0 0.0
    %2384 = vmatpush.xpose.msra.mxu0 0.0
    %2385 = vmatpush.xpose.msra.mxu0 0.0
    %2386 = vmatpush.xpose.msra.mxu0 0.0
    %2387 = vmatpush.xpose.msra.mxu0 0.0
    %2388 = vmatpush.xpose.msra.mxu0 0.0
    %2389 = vmatpush.xpose.msra.mxu0 0.0
    %2390 = vmatpush.xpose.msra.mxu0 0.0
    %2391 = vmatpush.xpose.msra.mxu0 0.0
    %2392 = vmatpush.xpose.msra.mxu0 %v939
    %2393 = vmatmul.f32.gmra.mxu0 %v298
    %v2394 = vpop.f32.mrf.mxu0
    %v2395 = vadd.f32 %v2375, %v2394
    %2396 = vdwg.mxu0
    %2397 = vmatpush.xpose.msra.mxu0 0.0
    %2398 = vmatpush.xpose.msra.mxu0 0.0
    %2399 = vmatpush.xpose.msra.mxu0 0.0
    %2400 = vmatpush.xpose.msra.mxu0 0.0
    %2401 = vmatpush.xpose.msra.mxu0 0.0
    %2402 = vmatpush.xpose.msra.mxu0 0.0
    %2403 = vmatpush.xpose.msra.mxu0 0.0
    %2404 = vmatpush.xpose.msra.mxu0 0.0
    %2405 = vmatpush.xpose.msra.mxu0 0.0
    %2406 = vmatpush.xpose.msra.mxu0 0.0
    %2407 = vmatpush.xpose.msra.mxu0 0.0
    %2408 = vmatpush.xpose.msra.mxu0 0.0
    %2409 = vmatpush.xpose.msra.mxu0 0.0
    %2410 = vmatpush.xpose.msra.mxu0 0.0
    %2411 = vmatpush.xpose.msra.mxu0 0.0
    %2412 = vmatpush.xpose.msra.mxu0 %v940
    %2413 = vmatmul.f32.gmra.mxu0 %v299
    %v2414 = vpop.f32.mrf.mxu0
    %v2415 = vadd.f32 %v2395, %v2414
    %2416 = vdwg.mxu0
    %2417 = vmatpush.xpose.msra.mxu0 0.0
    %2418 = vmatpush.xpose.msra.mxu0 0.0
    %2419 = vmatpush.xpose.msra.mxu0 0.0
    %2420 = vmatpush.xpose.msra.mxu0 0.0
    %2421 = vmatpush.xpose.msra.mxu0 0.0
    %2422 = vmatpush.xpose.msra.mxu0 0.0
    %2423 = vmatpush.xpose.msra.mxu0 0.0
    %2424 = vmatpush.xpose.msra.mxu0 0.0
    %2425 = vmatpush.xpose.msra.mxu0 0.0
    %2426 = vmatpush.xpose.msra.mxu0 0.0
    %2427 = vmatpush.xpose.msra.mxu0 0.0
    %2428 = vmatpush.xpose.msra.mxu0 0.0
    %2429 = vmatpush.xpose.msra.mxu0 0.0
    %2430 = vmatpush.xpose.msra.mxu0 0.0
    %2431 = vmatpush.xpose.msra.mxu0 0.0
    %2432 = vmatpush.xpose.msra.mxu0 %v943
    %2433 = vmatmul.f32.gmra.mxu0 %v302
    %v2434 = vpop.f32.mrf.mxu0
    %v2435 = vadd.f32 %v2415, %v2434
    %2436 = vdwg.mxu0
    %2437 = vmatpush.xpose.msra.mxu0 0.0
    %2438 = vmatpush.xpose.msra.mxu0 0.0
    %2439 = vmatpush.xpose.msra.mxu0 0.0
    %2440 = vmatpush.xpose.msra.mxu0 0.0
    %2441 = vmatpush.xpose.msra.mxu0 0.0
    %2442 = vmatpush.xpose.msra.mxu0 0.0
    %2443 = vmatpush.xpose.msra.mxu0 0.0
    %2444 = vmatpush.xpose.msra.mxu0 0.0
    %2445 = vmatpush.xpose.msra.mxu0 0.0
    %2446 = vmatpush.xpose.msra.mxu0 0.0
    %2447 = vmatpush.xpose.msra.mxu0 0.0
    %2448 = vmatpush.xpose.msra.mxu0 0.0
    %2449 = vmatpush.xpose.msra.mxu0 0.0
    %2450 = vmatpush.xpose.msra.mxu0 0.0
    %2451 = vmatpush.xpose.msra.mxu0 0.0
    %2452 = vmatpush.xpose.msra.mxu0 %v944
    %2453 = vmatmul.f32.gmra.mxu0 %v303
    %v2454 = vpop.f32.mrf.mxu0
    %v2455 = vadd.f32 %v2435, %v2454
    %2456 = vdwg.mxu0
    %2457 = vmatpush.xpose.msra.mxu0 0.0
    %2458 = vmatpush.xpose.msra.mxu0 0.0
    %2459 = vmatpush.xpose.msra.mxu0 0.0
    %2460 = vmatpush.xpose.msra.mxu0 0.0
    %2461 = vmatpush.xpose.msra.mxu0 0.0
    %2462 = vmatpush.xpose.msra.mxu0 0.0
    %2463 = vmatpush.xpose.msra.mxu0 0.0
    %2464 = vmatpush.xpose.msra.mxu0 0.0
    %2465 = vmatpush.xpose.msra.mxu0 0.0
    %2466 = vmatpush.xpose.msra.mxu0 0.0
    %2467 = vmatpush.xpose.msra.mxu0 0.0
    %2468 = vmatpush.xpose.msra.mxu0 0.0
    %2469 = vmatpush.xpose.msra.mxu0 0.0
    %2470 = vmatpush.xpose.msra.mxu0 0.0
    %2471 = vmatpush.xpose.msra.mxu0 0.0
    %2472 = vmatpush.xpose.msra.mxu0 %v945
    %2473 = vmatmul.f32.gmra.mxu0 %v304
    %v2474 = vpop.f32.mrf.mxu0
    %v2475 = vadd.f32 %v2455, %v2474
    %2476 = vdwg.mxu0
    %2477 = vmatpush.xpose.msra.mxu0 0.0
    %2478 = vmatpush.xpose.msra.mxu0 0.0
    %2479 = vmatpush.xpose.msra.mxu0 0.0
    %2480 = vmatpush.xpose.msra.mxu0 0.0
    %2481 = vmatpush.xpose.msra.mxu0 0.0
    %2482 = vmatpush.xpose.msra.mxu0 0.0
    %2483 = vmatpush.xpose.msra.mxu0 0.0
    %2484 = vmatpush.xpose.msra.mxu0 0.0
    %2485 = vmatpush.xpose.msra.mxu0 0.0
    %2486 = vmatpush.xpose.msra.mxu0 0.0
    %2487 = vmatpush.xpose.msra.mxu0 0.0
    %2488 = vmatpush.xpose.msra.mxu0 0.0
    %2489 = vmatpush.xpose.msra.mxu0 0.0
    %2490 = vmatpush.xpose.msra.mxu0 0.0
    %2491 = vmatpush.xpose.msra.mxu0 0.0
    %2492 = vmatpush.xpose.msra.mxu0 %v946
    %2493 = vmatmul.f32.gmra.mxu0 %v305
    %v2494 = vpop.f32.mrf.mxu0
    %v2495 = vadd.f32 %v2475, %v2494
    %2496 = vdwg.mxu0
    %2497 = vmatpush.xpose.msra.mxu0 0.0
    %2498 = vmatpush.xpose.msra.mxu0 0.0
    %2499 = vmatpush.xpose.msra.mxu0 0.0
    %2500 = vmatpush.xpose.msra.mxu0 0.0
    %2501 = vmatpush.xpose.msra.mxu0 0.0
    %2502 = vmatpush.xpose.msra.mxu0 0.0
    %2503 = vmatpush.xpose.msra.mxu0 0.0
    %2504 = vmatpush.xpose.msra.mxu0 0.0
    %2505 = vmatpush.xpose.msra.mxu0 0.0
    %2506 = vmatpush.xpose.msra.mxu0 0.0
    %2507 = vmatpush.xpose.msra.mxu0 0.0
    %2508 = vmatpush.xpose.msra.mxu0 0.0
    %2509 = vmatpush.xpose.msra.mxu0 0.0
    %2510 = vmatpush.xpose.msra.mxu0 0.0
    %2511 = vmatpush.xpose.msra.mxu0 0.0
    %2512 = vmatpush.xpose.msra.mxu0 %v947
    %2513 = vmatmul.f32.gmra.mxu0 %v306
    %v2514 = vpop.f32.mrf.mxu0
    %v2515 = vadd.f32 %v2495, %v2514
    %2516 = vdwg.mxu0
    %2517 = vmatpush.xpose.msra.mxu0 0.0
    %2518 = vmatpush.xpose.msra.mxu0 0.0
    %2519 = vmatpush.xpose.msra.mxu0 0.0
    %2520 = vmatpush.xpose.msra.mxu0 0.0
    %2521 = vmatpush.xpose.msra.mxu0 0.0
    %2522 = vmatpush.xpose.msra.mxu0 0.0
    %2523 = vmatpush.xpose.msra.mxu0 0.0
    %2524 = vmatpush.xpose.msra.mxu0 0.0
    %2525 = vmatpush.xpose.msra.mxu0 0.0
    %2526 = vmatpush.xpose.msra.mxu0 0.0
    %2527 = vmatpush.xpose.msra.mxu0 0.0
    %2528 = vmatpush.xpose.msra.mxu0 0.0
    %2529 = vmatpush.xpose.msra.mxu0 0.0
    %2530 = vmatpush.xpose.msra.mxu0 0.0
    %2531 = vmatpush.xpose.msra.mxu0 0.0
    %2532 = vmatpush.xpose.msra.mxu0 %v948
    %2533 = vmatmul.f32.gmra.mxu0 %v307
    %v2534 = vpop.f32.mrf.mxu0
    %v2535 = vadd.f32 %v2515, %v2534
    %2536 = vdwg.mxu0
    %2537 = vmatpush.xpose.msra.mxu0 0.0
    %2538 = vmatpush.xpose.msra.mxu0 0.0
    %2539 = vmatpush.xpose.msra.mxu0 0.0
    %2540 = vmatpush.xpose.msra.mxu0 0.0
    %2541 = vmatpush.xpose.msra.mxu0 0.0
    %2542 = vmatpush.xpose.msra.mxu0 0.0
    %2543 = vmatpush.xpose.msra.mxu0 0.0
    %2544 = vmatpush.xpose.msra.mxu0 0.0
    %2545 = vmatpush.xpose.msra.mxu0 0.0
    %2546 = vmatpush.xpose.msra.mxu0 0.0
    %2547 = vmatpush.xpose.msra.mxu0 0.0
    %2548 = vmatpush.xpose.msra.mxu0 0.0
    %2549 = vmatpush.xpose.msra.mxu0 0.0
    %2550 = vmatpush.xpose.msra.mxu0 0.0
    %2551 = vmatpush.xpose.msra.mxu0 0.0
    %2552 = vmatpush.xpose.msra.mxu0 %v949
    %2553 = vmatmul.f32.gmra.mxu0 %v308
    %v2554 = vpop.f32.mrf.mxu0
    %v2555 = vadd.f32 %v2535, %v2554
    %2556 = vdwg.mxu0
    %2557 = vmatpush.xpose.msra.mxu0 0.0
    %2558 = vmatpush.xpose.msra.mxu0 0.0
    %2559 = vmatpush.xpose.msra.mxu0 0.0
    %2560 = vmatpush.xpose.msra.mxu0 0.0
    %2561 = vmatpush.xpose.msra.mxu0 0.0
    %2562 = vmatpush.xpose.msra.mxu0 0.0
    %2563 = vmatpush.xpose.msra.mxu0 0.0
    %2564 = vmatpush.xpose.msra.mxu0 0.0
    %2565 = vmatpush.xpose.msra.mxu0 0.0
    %2566 = vmatpush.xpose.msra.mxu0 0.0
    %2567 = vmatpush.xpose.msra.mxu0 0.0
    %2568 = vmatpush.xpose.msra.mxu0 0.0
    %2569 = vmatpush.xpose.msra.mxu0 0.0
    %2570 = vmatpush.xpose.msra.mxu0 0.0
    %2571 = vmatpush.xpose.msra.mxu0 0.0
    %2572 = vmatpush.xpose.msra.mxu0 %v950
    %2573 = vmatmul.f32.gmra.mxu0 %v309
    %v2574 = vpop.f32.mrf.mxu0
    %v2575 = vadd.f32 %v2555, %v2574
    %2576 = vdwg.mxu0
    %2577 = vmatpush.xpose.msra.mxu0 0.0
    %2578 = vmatpush.xpose.msra.mxu0 0.0
    %2579 = vmatpush.xpose.msra.mxu0 0.0
    %2580 = vmatpush.xpose.msra.mxu0 0.0
    %2581 = vmatpush.xpose.msra.mxu0 0.0
    %2582 = vmatpush.xpose.msra.mxu0 0.0
    %2583 = vmatpush.xpose.msra.mxu0 0.0
    %2584 = vmatpush.xpose.msra.mxu0 0.0
    %2585 = vmatpush.xpose.msra.mxu0 0.0
    %2586 = vmatpush.xpose.msra.mxu0 0.0
    %2587 = vmatpush.xpose.msra.mxu0 0.0
    %2588 = vmatpush.xpose.msra.mxu0 0.0
    %2589 = vmatpush.xpose.msra.mxu0 0.0
    %2590 = vmatpush.xpose.msra.mxu0 0.0
    %2591 = vmatpush.xpose.msra.mxu0 0.0
    %2592 = vmatpush.xpose.msra.mxu0 %v953
    %2593 = vmatmul.f32.gmra.mxu0 %v312
    %v2594 = vpop.f32.mrf.mxu0
    %v2595 = vadd.f32 %v2575, %v2594
    %2596 = vdwg.mxu0
    %2597 = vmatpush.xpose.msra.mxu0 0.0
    %2598 = vmatpush.xpose.msra.mxu0 0.0
    %2599 = vmatpush.xpose.msra.mxu0 0.0
    %2600 = vmatpush.xpose.msra.mxu0 0.0
    %2601 = vmatpush.xpose.msra.mxu0 0.0
    %2602 = vmatpush.xpose.msra.mxu0 0.0
    %2603 = vmatpush.xpose.msra.mxu0 0.0
    %2604 = vmatpush.xpose.msra.mxu0 0.0
    %2605 = vmatpush.xpose.msra.mxu0 0.0
    %2606 = vmatpush.xpose.msra.mxu0 0.0
    %2607 = vmatpush.xpose.msra.mxu0 0.0
    %2608 = vmatpush.xpose.msra.mxu0 0.0
    %2609 = vmatpush.xpose.msra.mxu0 0.0
    %2610 = vmatpush.xpose.msra.mxu0 0.0
    %2611 = vmatpush.xpose.msra.mxu0 0.0
    %2612 = vmatpush.xpose.msra.mxu0 %v954
    %2613 = vmatmul.f32.gmra.mxu0 %v313
    %v2614 = vpop.f32.mrf.mxu0
    %v2615 = vadd.f32 %v2595, %v2614
    %2616 = vdwg.mxu0
    %2617 = vmatpush.xpose.msra.mxu0 0.0
    %2618 = vmatpush.xpose.msra.mxu0 0.0
    %2619 = vmatpush.xpose.msra.mxu0 0.0
    %2620 = vmatpush.xpose.msra.mxu0 0.0
    %2621 = vmatpush.xpose.msra.mxu0 0.0
    %2622 = vmatpush.xpose.msra.mxu0 0.0
    %2623 = vmatpush.xpose.msra.mxu0 0.0
    %2624 = vmatpush.xpose.msra.mxu0 0.0
    %2625 = vmatpush.xpose.msra.mxu0 0.0
    %2626 = vmatpush.xpose.msra.mxu0 0.0
    %2627 = vmatpush.xpose.msra.mxu0 0.0
    %2628 = vmatpush.xpose.msra.mxu0 0.0
    %2629 = vmatpush.xpose.msra.mxu0 0.0
    %2630 = vmatpush.xpose.msra.mxu0 0.0
    %2631 = vmatpush.xpose.msra.mxu0 0.0
    %2632 = vmatpush.xpose.msra.mxu0 %v955
    %2633 = vmatmul.f32.gmra.mxu0 %v314
    %v2634 = vpop.f32.mrf.mxu0
    %v2635 = vadd.f32 %v2615, %v2634
    %2636 = vdwg.mxu0
    %2637 = vmatpush.xpose.msra.mxu0 0.0
    %2638 = vmatpush.xpose.msra.mxu0 0.0
    %2639 = vmatpush.xpose.msra.mxu0 0.0
    %2640 = vmatpush.xpose.msra.mxu0 0.0
    %2641 = vmatpush.xpose.msra.mxu0 0.0
    %2642 = vmatpush.xpose.msra.mxu0 0.0
    %2643 = vmatpush.xpose.msra.mxu0 0.0
    %2644 = vmatpush.xpose.msra.mxu0 0.0
    %2645 = vmatpush.xpose.msra.mxu0 0.0
    %2646 = vmatpush.xpose.msra.mxu0 0.0
    %2647 = vmatpush.xpose.msra.mxu0 0.0
    %2648 = vmatpush.xpose.msra.mxu0 0.0
    %2649 = vmatpush.xpose.msra.mxu0 0.0
    %2650 = vmatpush.xpose.msra.mxu0 0.0
    %2651 = vmatpush.xpose.msra.mxu0 0.0
    %2652 = vmatpush.xpose.msra.mxu0 %v956
    %2653 = vmatmul.f32.gmra.mxu0 %v315
    %v2654 = vpop.f32.mrf.mxu0
    %v2655 = vadd.f32 %v2635, %v2654
    %2656 = vdwg.mxu0
    %2657 = vmatpush.xpose.msra.mxu0 0.0
    %2658 = vmatpush.xpose.msra.mxu0 0.0
    %2659 = vmatpush.xpose.msra.mxu0 0.0
    %2660 = vmatpush.xpose.msra.mxu0 0.0
    %2661 = vmatpush.xpose.msra.mxu0 0.0
    %2662 = vmatpush.xpose.msra.mxu0 0.0
    %2663 = vmatpush.xpose.msra.mxu0 0.0
    %2664 = vmatpush.xpose.msra.mxu0 0.0
    %2665 = vmatpush.xpose.msra.mxu0 0.0
    %2666 = vmatpush.xpose.msra.mxu0 0.0
    %2667 = vmatpush.xpose.msra.mxu0 0.0
    %2668 = vmatpush.xpose.msra.mxu0 0.0
    %2669 = vmatpush.xpose.msra.mxu0 0.0
    %2670 = vmatpush.xpose.msra.mxu0 0.0
    %2671 = vmatpush.xpose.msra.mxu0 0.0
    %2672 = vmatpush.xpose.msra.mxu0 %v957
    %2673 = vmatmul.f32.gmra.mxu0 %v316
    %v2674 = vpop.f32.mrf.mxu0
    %v2675 = vadd.f32 %v2655, %v2674
    %2676 = vdwg.mxu0
    %2677 = vmatpush.xpose.msra.mxu0 0.0
    %2678 = vmatpush.xpose.msra.mxu0 0.0
    %2679 = vmatpush.xpose.msra.mxu0 0.0
    %2680 = vmatpush.xpose.msra.mxu0 0.0
    %2681 = vmatpush.xpose.msra.mxu0 0.0
    %2682 = vmatpush.xpose.msra.mxu0 0.0
    %2683 = vmatpush.xpose.msra.mxu0 0.0
    %2684 = vmatpush.xpose.msra.mxu0 0.0
    %2685 = vmatpush.xpose.msra.mxu0 0.0
    %2686 = vmatpush.xpose.msra.mxu0 0.0
    %2687 = vmatpush.xpose.msra.mxu0 0.0
    %2688 = vmatpush.xpose.msra.mxu0 0.0
    %2689 = vmatpush.xpose.msra.mxu0 0.0
    %2690 = vmatpush.xpose.msra.mxu0 0.0
    %2691 = vmatpush.xpose.msra.mxu0 0.0
    %2692 = vmatpush.xpose.msra.mxu0 %v958
    %2693 = vmatmul.f32.gmra.mxu0 %v317
    %v2694 = vpop.f32.mrf.mxu0
    %v2695 = vadd.f32 %v2675, %v2694
    %2696 = vdwg.mxu0
    %2697 = vmatpush.xpose.msra.mxu0 0.0
    %2698 = vmatpush.xpose.msra.mxu0 0.0
    %2699 = vmatpush.xpose.msra.mxu0 0.0
    %2700 = vmatpush.xpose.msra.mxu0 0.0
    %2701 = vmatpush.xpose.msra.mxu0 0.0
    %2702 = vmatpush.xpose.msra.mxu0 0.0
    %2703 = vmatpush.xpose.msra.mxu0 0.0
    %2704 = vmatpush.xpose.msra.mxu0 0.0
    %2705 = vmatpush.xpose.msra.mxu0 0.0
    %2706 = vmatpush.xpose.msra.mxu0 0.0
    %2707 = vmatpush.xpose.msra.mxu0 0.0
    %2708 = vmatpush.xpose.msra.mxu0 0.0
    %2709 = vmatpush.xpose.msra.mxu0 0.0
    %2710 = vmatpush.xpose.msra.mxu0 0.0
    %2711 = vmatpush.xpose.msra.mxu0 0.0
    %2712 = vmatpush.xpose.msra.mxu0 %v959
    %2713 = vmatmul.f32.gmra.mxu0 %v318
    %v2714 = vpop.f32.mrf.mxu0
    %v2715 = vadd.f32 %v2695, %v2714
    %2716 = vdwg.mxu0
    %2717 = vmatpush.xpose.msra.mxu0 0.0
    %2718 = vmatpush.xpose.msra.mxu0 0.0
    %2719 = vmatpush.xpose.msra.mxu0 0.0
    %2720 = vmatpush.xpose.msra.mxu0 0.0
    %2721 = vmatpush.xpose.msra.mxu0 0.0
    %2722 = vmatpush.xpose.msra.mxu0 0.0
    %2723 = vmatpush.xpose.msra.mxu0 0.0
    %2724 = vmatpush.xpose.msra.mxu0 0.0
    %2725 = vmatpush.xpose.msra.mxu0 0.0
    %2726 = vmatpush.xpose.msra.mxu0 0.0
    %2727 = vmatpush.xpose.msra.mxu0 0.0
    %2728 = vmatpush.xpose.msra.mxu0 0.0
    %2729 = vmatpush.xpose.msra.mxu0 0.0
    %2730 = vmatpush.xpose.msra.mxu0 0.0
    %2731 = vmatpush.xpose.msra.mxu0 0.0
    %2732 = vmatpush.xpose.msra.mxu0 %v960
    %2733 = vmatmul.f32.gmra.mxu0 %v319
    %v2734 = vpop.f32.mrf.mxu0
    %v2735 = vadd.f32 %v2715, %v2734
    %2736 = vdwg.mxu0
    %2737 = vmatpush.xpose.msra.mxu0 0.0
    %2738 = vmatpush.xpose.msra.mxu0 0.0
    %2739 = vmatpush.xpose.msra.mxu0 0.0
    %2740 = vmatpush.xpose.msra.mxu0 0.0
    %2741 = vmatpush.xpose.msra.mxu0 0.0
    %2742 = vmatpush.xpose.msra.mxu0 0.0
    %2743 = vmatpush.xpose.msra.mxu0 0.0
    %2744 = vmatpush.xpose.msra.mxu0 0.0
    %2745 = vmatpush.xpose.msra.mxu0 0.0
    %2746 = vmatpush.xpose.msra.mxu0 0.0
    %2747 = vmatpush.xpose.msra.mxu0 0.0
    %2748 = vmatpush.xpose.msra.mxu0 0.0
    %2749 = vmatpush.xpose.msra.mxu0 0.0
    %2750 = vmatpush.xpose.msra.mxu0 0.0
    %2751 = vmatpush.xpose.msra.mxu0 0.0
    %2752 = vmatpush.xpose.msra.mxu0 %v963
    %2753 = vmatmul.f32.gmra.mxu0 %v322
    %v2754 = vpop.f32.mrf.mxu0
    %v2755 = vadd.f32 %v2735, %v2754
    %2756 = vdwg.mxu0
    %2757 = vmatpush.xpose.msra.mxu0 0.0
    %2758 = vmatpush.xpose.msra.mxu0 0.0
    %2759 = vmatpush.xpose.msra.mxu0 0.0
    %2760 = vmatpush.xpose.msra.mxu0 0.0
    %2761 = vmatpush.xpose.msra.mxu0 0.0
    %2762 = vmatpush.xpose.msra.mxu0 0.0
    %2763 = vmatpush.xpose.msra.mxu0 0.0
    %2764 = vmatpush.xpose.msra.mxu0 0.0
    %2765 = vmatpush.xpose.msra.mxu0 0.0
    %2766 = vmatpush.xpose.msra.mxu0 0.0
    %2767 = vmatpush.xpose.msra.mxu0 0.0
    %2768 = vmatpush.xpose.msra.mxu0 0.0
    %2769 = vmatpush.xpose.msra.mxu0 0.0
    %2770 = vmatpush.xpose.msra.mxu0 0.0
    %2771 = vmatpush.xpose.msra.mxu0 0.0
    %2772 = vmatpush.xpose.msra.mxu0 %v964
    %2773 = vmatmul.f32.gmra.mxu0 %v323
    %v2774 = vpop.f32.mrf.mxu0
    %v2775 = vadd.f32 %v2755, %v2774
    %2776 = vdwg.mxu0
    %2777 = vmatpush.xpose.msra.mxu0 0.0
    %2778 = vmatpush.xpose.msra.mxu0 0.0
    %2779 = vmatpush.xpose.msra.mxu0 0.0
    %2780 = vmatpush.xpose.msra.mxu0 0.0
    %2781 = vmatpush.xpose.msra.mxu0 0.0
    %2782 = vmatpush.xpose.msra.mxu0 0.0
    %2783 = vmatpush.xpose.msra.mxu0 0.0
    %2784 = vmatpush.xpose.msra.mxu0 0.0
    %2785 = vmatpush.xpose.msra.mxu0 0.0
    %2786 = vmatpush.xpose.msra.mxu0 0.0
    %2787 = vmatpush.xpose.msra.mxu0 0.0
    %2788 = vmatpush.xpose.msra.mxu0 0.0
    %2789 = vmatpush.xpose.msra.mxu0 0.0
    %2790 = vmatpush.xpose.msra.mxu0 0.0
    %2791 = vmatpush.xpose.msra.mxu0 0.0
    %2792 = vmatpush.xpose.msra.mxu0 %v965
    %2793 = vmatmul.f32.gmra.mxu0 %v324
    %v2794 = vpop.f32.mrf.mxu0
    %v2795 = vadd.f32 %v2775, %v2794
    %2796 = vdwg.mxu0
    %2797 = vmatpush.xpose.msra.mxu0 0.0
    %2798 = vmatpush.xpose.msra.mxu0 0.0
    %2799 = vmatpush.xpose.msra.mxu0 0.0
    %2800 = vmatpush.xpose.msra.mxu0 0.0
    %2801 = vmatpush.xpose.msra.mxu0 0.0
    %2802 = vmatpush.xpose.msra.mxu0 0.0
    %2803 = vmatpush.xpose.msra.mxu0 0.0
    %2804 = vmatpush.xpose.msra.mxu0 0.0
    %2805 = vmatpush.xpose.msra.mxu0 0.0
    %2806 = vmatpush.xpose.msra.mxu0 0.0
    %2807 = vmatpush.xpose.msra.mxu0 0.0
    %2808 = vmatpush.xpose.msra.mxu0 0.0
    %2809 = vmatpush.xpose.msra.mxu0 0.0
    %2810 = vmatpush.xpose.msra.mxu0 0.0
    %2811 = vmatpush.xpose.msra.mxu0 0.0
    %2812 = vmatpush.xpose.msra.mxu0 %v966
    %2813 = vmatmul.f32.gmra.mxu0 %v325
    %v2814 = vpop.f32.mrf.mxu0
    %v2815 = vadd.f32 %v2795, %v2814
    %2816 = vdwg.mxu0
    %2817 = vmatpush.xpose.msra.mxu0 0.0
    %2818 = vmatpush.xpose.msra.mxu0 0.0
    %2819 = vmatpush.xpose.msra.mxu0 0.0
    %2820 = vmatpush.xpose.msra.mxu0 0.0
    %2821 = vmatpush.xpose.msra.mxu0 0.0
    %2822 = vmatpush.xpose.msra.mxu0 0.0
    %2823 = vmatpush.xpose.msra.mxu0 0.0
    %2824 = vmatpush.xpose.msra.mxu0 0.0
    %2825 = vmatpush.xpose.msra.mxu0 0.0
    %2826 = vmatpush.xpose.msra.mxu0 0.0
    %2827 = vmatpush.xpose.msra.mxu0 0.0
    %2828 = vmatpush.xpose.msra.mxu0 0.0
    %2829 = vmatpush.xpose.msra.mxu0 0.0
    %2830 = vmatpush.xpose.msra.mxu0 0.0
    %2831 = vmatpush.xpose.msra.mxu0 0.0
    %2832 = vmatpush.xpose.msra.mxu0 %v967
    %2833 = vmatmul.f32.gmra.mxu0 %v326
    %v2834 = vpop.f32.mrf.mxu0
    %v2835 = vadd.f32 %v2815, %v2834
    %2836 = vdwg.mxu0
    %2837 = vmatpush.xpose.msra.mxu0 0.0
    %2838 = vmatpush.xpose.msra.mxu0 0.0
    %2839 = vmatpush.xpose.msra.mxu0 0.0
    %2840 = vmatpush.xpose.msra.mxu0 0.0
    %2841 = vmatpush.xpose.msra.mxu0 0.0
    %2842 = vmatpush.xpose.msra.mxu0 0.0
    %2843 = vmatpush.xpose.msra.mxu0 0.0
    %2844 = vmatpush.xpose.msra.mxu0 0.0
    %2845 = vmatpush.xpose.msra.mxu0 0.0
    %2846 = vmatpush.xpose.msra.mxu0 0.0
    %2847 = vmatpush.xpose.msra.mxu0 0.0
    %2848 = vmatpush.xpose.msra.mxu0 0.0
    %2849 = vmatpush.xpose.msra.mxu0 0.0
    %2850 = vmatpush.xpose.msra.mxu0 0.0
    %2851 = vmatpush.xpose.msra.mxu0 0.0
    %2852 = vmatpush.xpose.msra.mxu0 %v968
    %2853 = vmatmul.f32.gmra.mxu0 %v327
    %v2854 = vpop.f32.mrf.mxu0
    %v2855 = vadd.f32 %v2835, %v2854
    %2856 = vdwg.mxu0
    %2857 = vmatpush.xpose.msra.mxu0 0.0
    %2858 = vmatpush.xpose.msra.mxu0 0.0
    %2859 = vmatpush.xpose.msra.mxu0 0.0
    %2860 = vmatpush.xpose.msra.mxu0 0.0
    %2861 = vmatpush.xpose.msra.mxu0 0.0
    %2862 = vmatpush.xpose.msra.mxu0 0.0
    %2863 = vmatpush.xpose.msra.mxu0 0.0
    %2864 = vmatpush.xpose.msra.mxu0 0.0
    %2865 = vmatpush.xpose.msra.mxu0 0.0
    %2866 = vmatpush.xpose.msra.mxu0 0.0
    %2867 = vmatpush.xpose.msra.mxu0 0.0
    %2868 = vmatpush.xpose.msra.mxu0 0.0
    %2869 = vmatpush.xpose.msra.mxu0 0.0
    %2870 = vmatpush.xpose.msra.mxu0 0.0
    %2871 = vmatpush.xpose.msra.mxu0 0.0
    %2872 = vmatpush.xpose.msra.mxu0 %v969
    %2873 = vmatmul.f32.gmra.mxu0 %v328
    %v2874 = vpop.f32.mrf.mxu0
    %v2875 = vadd.f32 %v2855, %v2874
    %2876 = vdwg.mxu0
    %2877 = vmatpush.xpose.msra.mxu0 0.0
    %2878 = vmatpush.xpose.msra.mxu0 0.0
    %2879 = vmatpush.xpose.msra.mxu0 0.0
    %2880 = vmatpush.xpose.msra.mxu0 0.0
    %2881 = vmatpush.xpose.msra.mxu0 0.0
    %2882 = vmatpush.xpose.msra.mxu0 0.0
    %2883 = vmatpush.xpose.msra.mxu0 0.0
    %2884 = vmatpush.xpose.msra.mxu0 0.0
    %2885 = vmatpush.xpose.msra.mxu0 0.0
    %2886 = vmatpush.xpose.msra.mxu0 0.0
    %2887 = vmatpush.xpose.msra.mxu0 0.0
    %2888 = vmatpush.xpose.msra.mxu0 0.0
    %2889 = vmatpush.xpose.msra.mxu0 0.0
    %2890 = vmatpush.xpose.msra.mxu0 0.0
    %2891 = vmatpush.xpose.msra.mxu0 0.0
    %2892 = vmatpush.xpose.msra.mxu0 %v970
    %2893 = vmatmul.f32.gmra.mxu0 %v329
    %v2894 = vpop.f32.mrf.mxu0
    %v2895 = vadd.f32 %v2875, %v2894
    %2896 = vdwg.mxu0
    %2897 = vmatpush.xpose.msra.mxu0 0.0
    %2898 = vmatpush.xpose.msra.mxu0 0.0
    %2899 = vmatpush.xpose.msra.mxu0 0.0
    %2900 = vmatpush.xpose.msra.mxu0 0.0
    %2901 = vmatpush.xpose.msra.mxu0 0.0
    %2902 = vmatpush.xpose.msra.mxu0 0.0
    %2903 = vmatpush.xpose.msra.mxu0 0.0
    %2904 = vmatpush.xpose.msra.mxu0 0.0
    %2905 = vmatpush.xpose.msra.mxu0 0.0
    %2906 = vmatpush.xpose.msra.mxu0 0.0
    %2907 = vmatpush.xpose.msra.mxu0 0.0
    %2908 = vmatpush.xpose.msra.mxu0 0.0
    %2909 = vmatpush.xpose.msra.mxu0 0.0
    %2910 = vmatpush.xpose.msra.mxu0 0.0
    %2911 = vmatpush.xpose.msra.mxu0 0.0
    %2912 = vmatpush.xpose.msra.mxu0 %v973
    %2913 = vmatmul.f32.gmra.mxu0 %v332
    %v2914 = vpop.f32.mrf.mxu0
    %v2915 = vadd.f32 %v2895, %v2914
    %2916 = vdwg.mxu0
    %2917 = vmatpush.xpose.msra.mxu0 0.0
    %2918 = vmatpush.xpose.msra.mxu0 0.0
    %2919 = vmatpush.xpose.msra.mxu0 0.0
    %2920 = vmatpush.xpose.msra.mxu0 0.0
    %2921 = vmatpush.xpose.msra.mxu0 0.0
    %2922 = vmatpush.xpose.msra.mxu0 0.0
    %2923 = vmatpush.xpose.msra.mxu0 0.0
    %2924 = vmatpush.xpose.msra.mxu0 0.0
    %2925 = vmatpush.xpose.msra.mxu0 0.0
    %2926 = vmatpush.xpose.msra.mxu0 0.0
    %2927 = vmatpush.xpose.msra.mxu0 0.0
    %2928 = vmatpush.xpose.msra.mxu0 0.0
    %2929 = vmatpush.xpose.msra.mxu0 0.0
    %2930 = vmatpush.xpose.msra.mxu0 0.0
    %2931 = vmatpush.xpose.msra.mxu0 0.0
    %2932 = vmatpush.xpose.msra.mxu0 %v974
    %2933 = vmatmul.f32.gmra.mxu0 %v333
    %v2934 = vpop.f32.mrf.mxu0
    %v2935 = vadd.f32 %v2915, %v2934
    %2936 = vdwg.mxu0
    %2937 = vmatpush.xpose.msra.mxu0 0.0
    %2938 = vmatpush.xpose.msra.mxu0 0.0
    %2939 = vmatpush.xpose.msra.mxu0 0.0
    %2940 = vmatpush.xpose.msra.mxu0 0.0
    %2941 = vmatpush.xpose.msra.mxu0 0.0
    %2942 = vmatpush.xpose.msra.mxu0 0.0
    %2943 = vmatpush.xpose.msra.mxu0 0.0
    %2944 = vmatpush.xpose.msra.mxu0 0.0
    %2945 = vmatpush.xpose.msra.mxu0 0.0
    %2946 = vmatpush.xpose.msra.mxu0 0.0
    %2947 = vmatpush.xpose.msra.mxu0 0.0
    %2948 = vmatpush.xpose.msra.mxu0 0.0
    %2949 = vmatpush.xpose.msra.mxu0 0.0
    %2950 = vmatpush.xpose.msra.mxu0 0.0
    %2951 = vmatpush.xpose.msra.mxu0 0.0
    %2952 = vmatpush.xpose.msra.mxu0 %v975
    %2953 = vmatmul.f32.gmra.mxu0 %v334
    %v2954 = vpop.f32.mrf.mxu0
    %v2955 = vadd.f32 %v2935, %v2954
    %2956 = vdwg.mxu0
    %2957 = vmatpush.xpose.msra.mxu0 0.0
    %2958 = vmatpush.xpose.msra.mxu0 0.0
    %2959 = vmatpush.xpose.msra.mxu0 0.0
    %2960 = vmatpush.xpose.msra.mxu0 0.0
    %2961 = vmatpush.xpose.msra.mxu0 0.0
    %2962 = vmatpush.xpose.msra.mxu0 0.0
    %2963 = vmatpush.xpose.msra.mxu0 0.0
    %2964 = vmatpush.xpose.msra.mxu0 0.0
    %2965 = vmatpush.xpose.msra.mxu0 0.0
    %2966 = vmatpush.xpose.msra.mxu0 0.0
    %2967 = vmatpush.xpose.msra.mxu0 0.0
    %2968 = vmatpush.xpose.msra.mxu0 0.0
    %2969 = vmatpush.xpose.msra.mxu0 0.0
    %2970 = vmatpush.xpose.msra.mxu0 0.0
    %2971 = vmatpush.xpose.msra.mxu0 0.0
    %2972 = vmatpush.xpose.msra.mxu0 %v976
    %2973 = vmatmul.f32.gmra.mxu0 %v335
    %v2974 = vpop.f32.mrf.mxu0
    %v2975 = vadd.f32 %v2955, %v2974
    %2976 = vdwg.mxu0
    %2977 = vmatpush.xpose.msra.mxu0 0.0
    %2978 = vmatpush.xpose.msra.mxu0 0.0
    %2979 = vmatpush.xpose.msra.mxu0 0.0
    %2980 = vmatpush.xpose.msra.mxu0 0.0
    %2981 = vmatpush.xpose.msra.mxu0 0.0
    %2982 = vmatpush.xpose.msra.mxu0 0.0
    %2983 = vmatpush.xpose.msra.mxu0 0.0
    %2984 = vmatpush.xpose.msra.mxu0 0.0
    %2985 = vmatpush.xpose.msra.mxu0 0.0
    %2986 = vmatpush.xpose.msra.mxu0 0.0
    %2987 = vmatpush.xpose.msra.mxu0 0.0
    %2988 = vmatpush.xpose.msra.mxu0 0.0
    %2989 = vmatpush.xpose.msra.mxu0 0.0
    %2990 = vmatpush.xpose.msra.mxu0 0.0
    %2991 = vmatpush.xpose.msra.mxu0 0.0
    %2992 = vmatpush.xpose.msra.mxu0 %v977
    %2993 = vmatmul.f32.gmra.mxu0 %v336
    %v2994 = vpop.f32.mrf.mxu0
    %v2995 = vadd.f32 %v2975, %v2994
    %2996 = vdwg.mxu0
    %2997 = vmatpush.xpose.msra.mxu0 0.0
    %2998 = vmatpush.xpose.msra.mxu0 0.0
    %2999 = vmatpush.xpose.msra.mxu0 0.0
    %3000 = vmatpush.xpose.msra.mxu0 0.0
    %3001 = vmatpush.xpose.msra.mxu0 0.0
    %3002 = vmatpush.xpose.msra.mxu0 0.0
    %3003 = vmatpush.xpose.msra.mxu0 0.0
    %3004 = vmatpush.xpose.msra.mxu0 0.0
    %3005 = vmatpush.xpose.msra.mxu0 0.0
    %3006 = vmatpush.xpose.msra.mxu0 0.0
    %3007 = vmatpush.xpose.msra.mxu0 0.0
    %3008 = vmatpush.xpose.msra.mxu0 0.0
    %3009 = vmatpush.xpose.msra.mxu0 0.0
    %3010 = vmatpush.xpose.msra.mxu0 0.0
    %3011 = vmatpush.xpose.msra.mxu0 0.0
    %3012 = vmatpush.xpose.msra.mxu0 %v978
    %3013 = vmatmul.f32.gmra.mxu0 %v337
    %v3014 = vpop.f32.mrf.mxu0
    %v3015 = vadd.f32 %v2995, %v3014
    %3016 = vdwg.mxu0
    %3017 = vmatpush.xpose.msra.mxu0 0.0
    %3018 = vmatpush.xpose.msra.mxu0 0.0
    %3019 = vmatpush.xpose.msra.mxu0 0.0
    %3020 = vmatpush.xpose.msra.mxu0 0.0
    %3021 = vmatpush.xpose.msra.mxu0 0.0
    %3022 = vmatpush.xpose.msra.mxu0 0.0
    %3023 = vmatpush.xpose.msra.mxu0 0.0
    %3024 = vmatpush.xpose.msra.mxu0 0.0
    %3025 = vmatpush.xpose.msra.mxu0 0.0
    %3026 = vmatpush.xpose.msra.mxu0 0.0
    %3027 = vmatpush.xpose.msra.mxu0 0.0
    %3028 = vmatpush.xpose.msra.mxu0 0.0
    %3029 = vmatpush.xpose.msra.mxu0 0.0
    %3030 = vmatpush.xpose.msra.mxu0 0.0
    %3031 = vmatpush.xpose.msra.mxu0 0.0
    %3032 = vmatpush.xpose.msra.mxu0 %v979
    %3033 = vmatmul.f32.gmra.mxu0 %v338
    %v3034 = vpop.f32.mrf.mxu0
    %v3035 = vadd.f32 %v3015, %v3034
    %3036 = vdwg.mxu0
    %3037 = vmatpush.xpose.msra.mxu0 0.0
    %3038 = vmatpush.xpose.msra.mxu0 0.0
    %3039 = vmatpush.xpose.msra.mxu0 0.0
    %3040 = vmatpush.xpose.msra.mxu0 0.0
    %3041 = vmatpush.xpose.msra.mxu0 0.0
    %3042 = vmatpush.xpose.msra.mxu0 0.0
    %3043 = vmatpush.xpose.msra.mxu0 0.0
    %3044 = vmatpush.xpose.msra.mxu0 0.0
    %3045 = vmatpush.xpose.msra.mxu0 0.0
    %3046 = vmatpush.xpose.msra.mxu0 0.0
    %3047 = vmatpush.xpose.msra.mxu0 0.0
    %3048 = vmatpush.xpose.msra.mxu0 0.0
    %3049 = vmatpush.xpose.msra.mxu0 0.0
    %3050 = vmatpush.xpose.msra.mxu0 0.0
    %3051 = vmatpush.xpose.msra.mxu0 0.0
    %3052 = vmatpush.xpose.msra.mxu0 %v980
    %3053 = vmatmul.f32.gmra.mxu0 %v339
    %v3054 = vpop.f32.mrf.mxu0
    %v3055 = vadd.f32 %v3035, %v3054
    %3056 = vdwg.mxu0
    %3057 = vmatpush.xpose.msra.mxu0 0.0
    %3058 = vmatpush.xpose.msra.mxu0 0.0
    %3059 = vmatpush.xpose.msra.mxu0 0.0
    %3060 = vmatpush.xpose.msra.mxu0 0.0
    %3061 = vmatpush.xpose.msra.mxu0 0.0
    %3062 = vmatpush.xpose.msra.mxu0 0.0
    %3063 = vmatpush.xpose.msra.mxu0 0.0
    %3064 = vmatpush.xpose.msra.mxu0 0.0
    %3065 = vmatpush.xpose.msra.mxu0 0.0
    %3066 = vmatpush.xpose.msra.mxu0 0.0
    %3067 = vmatpush.xpose.msra.mxu0 0.0
    %3068 = vmatpush.xpose.msra.mxu0 0.0
    %3069 = vmatpush.xpose.msra.mxu0 0.0
    %3070 = vmatpush.xpose.msra.mxu0 0.0
    %3071 = vmatpush.xpose.msra.mxu0 0.0
    %3072 = vmatpush.xpose.msra.mxu0 %v983
    %3073 = vmatmul.f32.gmra.mxu0 %v342
    %v3074 = vpop.f32.mrf.mxu0
    %v3075 = vadd.f32 %v3055, %v3074
    %3076 = vdwg.mxu0
    %3077 = vmatpush.xpose.msra.mxu0 0.0
    %3078 = vmatpush.xpose.msra.mxu0 0.0
    %3079 = vmatpush.xpose.msra.mxu0 0.0
    %3080 = vmatpush.xpose.msra.mxu0 0.0
    %3081 = vmatpush.xpose.msra.mxu0 0.0
    %3082 = vmatpush.xpose.msra.mxu0 0.0
    %3083 = vmatpush.xpose.msra.mxu0 0.0
    %3084 = vmatpush.xpose.msra.mxu0 0.0
    %3085 = vmatpush.xpose.msra.mxu0 0.0
    %3086 = vmatpush.xpose.msra.mxu0 0.0
    %3087 = vmatpush.xpose.msra.mxu0 0.0
    %3088 = vmatpush.xpose.msra.mxu0 0.0
    %3089 = vmatpush.xpose.msra.mxu0 0.0
    %3090 = vmatpush.xpose.msra.mxu0 0.0
    %3091 = vmatpush.xpose.msra.mxu0 0.0
    %3092 = vmatpush.xpose.msra.mxu0 %v984
    %3093 = vmatmul.f32.gmra.mxu0 %v343
    %v3094 = vpop.f32.mrf.mxu0
    %v3095 = vadd.f32 %v3075, %v3094
    %3096 = vdwg.mxu0
    %3097 = vmatpush.xpose.msra.mxu0 0.0
    %3098 = vmatpush.xpose.msra.mxu0 0.0
    %3099 = vmatpush.xpose.msra.mxu0 0.0
    %3100 = vmatpush.xpose.msra.mxu0 0.0
    %3101 = vmatpush.xpose.msra.mxu0 0.0
    %3102 = vmatpush.xpose.msra.mxu0 0.0
    %3103 = vmatpush.xpose.msra.mxu0 0.0
    %3104 = vmatpush.xpose.msra.mxu0 0.0
    %3105 = vmatpush.xpose.msra.mxu0 0.0
    %3106 = vmatpush.xpose.msra.mxu0 0.0
    %3107 = vmatpush.xpose.msra.mxu0 0.0
    %3108 = vmatpush.xpose.msra.mxu0 0.0
    %3109 = vmatpush.xpose.msra.mxu0 0.0
    %3110 = vmatpush.xpose.msra.mxu0 0.0
    %3111 = vmatpush.xpose.msra.mxu0 0.0
    %3112 = vmatpush.xpose.msra.mxu0 %v985
    %3113 = vmatmul.f32.gmra.mxu0 %v344
    %v3114 = vpop.f32.mrf.mxu0
    %v3115 = vadd.f32 %v3095, %v3114
    %3116 = vdwg.mxu0
    %3117 = vmatpush.xpose.msra.mxu0 0.0
    %3118 = vmatpush.xpose.msra.mxu0 0.0
    %3119 = vmatpush.xpose.msra.mxu0 0.0
    %3120 = vmatpush.xpose.msra.mxu0 0.0
    %3121 = vmatpush.xpose.msra.mxu0 0.0
    %3122 = vmatpush.xpose.msra.mxu0 0.0
    %3123 = vmatpush.xpose.msra.mxu0 0.0
    %3124 = vmatpush.xpose.msra.mxu0 0.0
    %3125 = vmatpush.xpose.msra.mxu0 0.0
    %3126 = vmatpush.xpose.msra.mxu0 0.0
    %3127 = vmatpush.xpose.msra.mxu0 0.0
    %3128 = vmatpush.xpose.msra.mxu0 0.0
    %3129 = vmatpush.xpose.msra.mxu0 0.0
    %3130 = vmatpush.xpose.msra.mxu0 0.0
    %3131 = vmatpush.xpose.msra.mxu0 0.0
    %3132 = vmatpush.xpose.msra.mxu0 %v986
    %3133 = vmatmul.f32.gmra.mxu0 %v345
    %v3134 = vpop.f32.mrf.mxu0
    %v3135 = vadd.f32 %v3115, %v3134
    %3136 = vdwg.mxu0
    %3137 = vmatpush.xpose.msra.mxu0 0.0
    %3138 = vmatpush.xpose.msra.mxu0 0.0
    %3139 = vmatpush.xpose.msra.mxu0 0.0
    %3140 = vmatpush.xpose.msra.mxu0 0.0
    %3141 = vmatpush.xpose.msra.mxu0 0.0
    %3142 = vmatpush.xpose.msra.mxu0 0.0
    %3143 = vmatpush.xpose.msra.mxu0 0.0
    %3144 = vmatpush.xpose.msra.mxu0 0.0
    %3145 = vmatpush.xpose.msra.mxu0 0.0
    %3146 = vmatpush.xpose.msra.mxu0 0.0
    %3147 = vmatpush.xpose.msra.mxu0 0.0
    %3148 = vmatpush.xpose.msra.mxu0 0.0
    %3149 = vmatpush.xpose.msra.mxu0 0.0
    %3150 = vmatpush.xpose.msra.mxu0 0.0
    %3151 = vmatpush.xpose.msra.mxu0 0.0
    %3152 = vmatpush.xpose.msra.mxu0 %v987
    %3153 = vmatmul.f32.gmra.mxu0 %v346
    %v3154 = vpop.f32.mrf.mxu0
    %v3155 = vadd.f32 %v3135, %v3154
    %3156 = vdwg.mxu0
    %3157 = vmatpush.xpose.msra.mxu0 0.0
    %3158 = vmatpush.xpose.msra.mxu0 0.0
    %3159 = vmatpush.xpose.msra.mxu0 0.0
    %3160 = vmatpush.xpose.msra.mxu0 0.0
    %3161 = vmatpush.xpose.msra.mxu0 0.0
    %3162 = vmatpush.xpose.msra.mxu0 0.0
    %3163 = vmatpush.xpose.msra.mxu0 0.0
    %3164 = vmatpush.xpose.msra.mxu0 0.0
    %3165 = vmatpush.xpose.msra.mxu0 0.0
    %3166 = vmatpush.xpose.msra.mxu0 0.0
    %3167 = vmatpush.xpose.msra.mxu0 0.0
    %3168 = vmatpush.xpose.msra.mxu0 0.0
    %3169 = vmatpush.xpose.msra.mxu0 0.0
    %3170 = vmatpush.xpose.msra.mxu0 0.0
    %3171 = vmatpush.xpose.msra.mxu0 0.0
    %3172 = vmatpush.xpose.msra.mxu0 %v988
    %3173 = vmatmul.f32.gmra.mxu0 %v347
    %v3174 = vpop.f32.mrf.mxu0
    %v3175 = vadd.f32 %v3155, %v3174
    %3176 = vdwg.mxu0
    %3177 = vmatpush.xpose.msra.mxu0 0.0
    %3178 = vmatpush.xpose.msra.mxu0 0.0
    %3179 = vmatpush.xpose.msra.mxu0 0.0
    %3180 = vmatpush.xpose.msra.mxu0 0.0
    %3181 = vmatpush.xpose.msra.mxu0 0.0
    %3182 = vmatpush.xpose.msra.mxu0 0.0
    %3183 = vmatpush.xpose.msra.mxu0 0.0
    %3184 = vmatpush.xpose.msra.mxu0 0.0
    %3185 = vmatpush.xpose.msra.mxu0 0.0
    %3186 = vmatpush.xpose.msra.mxu0 0.0
    %3187 = vmatpush.xpose.msra.mxu0 0.0
    %3188 = vmatpush.xpose.msra.mxu0 0.0
    %3189 = vmatpush.xpose.msra.mxu0 0.0
    %3190 = vmatpush.xpose.msra.mxu0 0.0
    %3191 = vmatpush.xpose.msra.mxu0 0.0
    %3192 = vmatpush.xpose.msra.mxu0 %v989
    %3193 = vmatmul.f32.gmra.mxu0 %v348
    %v3194 = vpop.f32.mrf.mxu0
    %v3195 = vadd.f32 %v3175, %v3194
    %3196 = vdwg.mxu0
    %3197 = vmatpush.xpose.msra.mxu0 0.0
    %3198 = vmatpush.xpose.msra.mxu0 0.0
    %3199 = vmatpush.xpose.msra.mxu0 0.0
    %3200 = vmatpush.xpose.msra.mxu0 0.0
    %3201 = vmatpush.xpose.msra.mxu0 0.0
    %3202 = vmatpush.xpose.msra.mxu0 0.0
    %3203 = vmatpush.xpose.msra.mxu0 0.0
    %3204 = vmatpush.xpose.msra.mxu0 0.0
    %3205 = vmatpush.xpose.msra.mxu0 0.0
    %3206 = vmatpush.xpose.msra.mxu0 0.0
    %3207 = vmatpush.xpose.msra.mxu0 0.0
    %3208 = vmatpush.xpose.msra.mxu0 0.0
    %3209 = vmatpush.xpose.msra.mxu0 0.0
    %3210 = vmatpush.xpose.msra.mxu0 0.0
    %3211 = vmatpush.xpose.msra.mxu0 0.0
    %3212 = vmatpush.xpose.msra.mxu0 %v990
    %3213 = vmatmul.f32.gmra.mxu0 %v349
    %v3214 = vpop.f32.mrf.mxu0
    %v3215 = vadd.f32 %v3195, %v3214
    %3216 = vdwg.mxu0
    %3217 = vmatpush.xpose.msra.mxu0 0.0
    %3218 = vmatpush.xpose.msra.mxu0 0.0
    %3219 = vmatpush.xpose.msra.mxu0 0.0
    %3220 = vmatpush.xpose.msra.mxu0 0.0
    %3221 = vmatpush.xpose.msra.mxu0 0.0
    %3222 = vmatpush.xpose.msra.mxu0 0.0
    %3223 = vmatpush.xpose.msra.mxu0 0.0
    %3224 = vmatpush.xpose.msra.mxu0 0.0
    %3225 = vmatpush.xpose.msra.mxu0 0.0
    %3226 = vmatpush.xpose.msra.mxu0 0.0
    %3227 = vmatpush.xpose.msra.mxu0 0.0
    %3228 = vmatpush.xpose.msra.mxu0 0.0
    %3229 = vmatpush.xpose.msra.mxu0 0.0
    %3230 = vmatpush.xpose.msra.mxu0 0.0
    %3231 = vmatpush.xpose.msra.mxu0 0.0
    %3232 = vmatpush.xpose.msra.mxu0 %v993
    %3233 = vmatmul.f32.gmra.mxu0 %v352
    %v3234 = vpop.f32.mrf.mxu0
    %v3235 = vadd.f32 %v3215, %v3234
    %3236 = vdwg.mxu0
    %3237 = vmatpush.xpose.msra.mxu0 0.0
    %3238 = vmatpush.xpose.msra.mxu0 0.0
    %3239 = vmatpush.xpose.msra.mxu0 0.0
    %3240 = vmatpush.xpose.msra.mxu0 0.0
    %3241 = vmatpush.xpose.msra.mxu0 0.0
    %3242 = vmatpush.xpose.msra.mxu0 0.0
    %3243 = vmatpush.xpose.msra.mxu0 0.0
    %3244 = vmatpush.xpose.msra.mxu0 0.0
    %3245 = vmatpush.xpose.msra.mxu0 0.0
    %3246 = vmatpush.xpose.msra.mxu0 0.0
    %3247 = vmatpush.xpose.msra.mxu0 0.0
    %3248 = vmatpush.xpose.msra.mxu0 0.0
    %3249 = vmatpush.xpose.msra.mxu0 0.0
    %3250 = vmatpush.xpose.msra.mxu0 0.0
    %3251 = vmatpush.xpose.msra.mxu0 0.0
    %3252 = vmatpush.xpose.msra.mxu0 %v994
    %3253 = vmatmul.f32.gmra.mxu0 %v353
    %v3254 = vpop.f32.mrf.mxu0
    %v3255 = vadd.f32 %v3235, %v3254
    %3256 = vdwg.mxu0
    %3257 = vmatpush.xpose.msra.mxu0 0.0
    %3258 = vmatpush.xpose.msra.mxu0 0.0
    %3259 = vmatpush.xpose.msra.mxu0 0.0
    %3260 = vmatpush.xpose.msra.mxu0 0.0
    %3261 = vmatpush.xpose.msra.mxu0 0.0
    %3262 = vmatpush.xpose.msra.mxu0 0.0
    %3263 = vmatpush.xpose.msra.mxu0 0.0
    %3264 = vmatpush.xpose.msra.mxu0 0.0
    %3265 = vmatpush.xpose.msra.mxu0 0.0
    %3266 = vmatpush.xpose.msra.mxu0 0.0
    %3267 = vmatpush.xpose.msra.mxu0 0.0
    %3268 = vmatpush.xpose.msra.mxu0 0.0
    %3269 = vmatpush.xpose.msra.mxu0 0.0
    %3270 = vmatpush.xpose.msra.mxu0 0.0
    %3271 = vmatpush.xpose.msra.mxu0 0.0
    %3272 = vmatpush.xpose.msra.mxu0 %v995
    %3273 = vmatmul.f32.gmra.mxu0 %v354
    %v3274 = vpop.f32.mrf.mxu0
    %v3275 = vadd.f32 %v3255, %v3274
    %3276 = vdwg.mxu0
    %3277 = vmatpush.xpose.msra.mxu0 0.0
    %3278 = vmatpush.xpose.msra.mxu0 0.0
    %3279 = vmatpush.xpose.msra.mxu0 0.0
    %3280 = vmatpush.xpose.msra.mxu0 0.0
    %3281 = vmatpush.xpose.msra.mxu0 0.0
    %3282 = vmatpush.xpose.msra.mxu0 0.0
    %3283 = vmatpush.xpose.msra.mxu0 0.0
    %3284 = vmatpush.xpose.msra.mxu0 0.0
    %3285 = vmatpush.xpose.msra.mxu0 0.0
    %3286 = vmatpush.xpose.msra.mxu0 0.0
    %3287 = vmatpush.xpose.msra.mxu0 0.0
    %3288 = vmatpush.xpose.msra.mxu0 0.0
    %3289 = vmatpush.xpose.msra.mxu0 0.0
    %3290 = vmatpush.xpose.msra.mxu0 0.0
    %3291 = vmatpush.xpose.msra.mxu0 0.0
    %3292 = vmatpush.xpose.msra.mxu0 %v996
    %3293 = vmatmul.f32.gmra.mxu0 %v355
    %v3294 = vpop.f32.mrf.mxu0
    %v3295 = vadd.f32 %v3275, %v3294
    %3296 = vdwg.mxu0
    %3297 = vmatpush.xpose.msra.mxu0 0.0
    %3298 = vmatpush.xpose.msra.mxu0 0.0
    %3299 = vmatpush.xpose.msra.mxu0 0.0
    %3300 = vmatpush.xpose.msra.mxu0 0.0
    %3301 = vmatpush.xpose.msra.mxu0 0.0
    %3302 = vmatpush.xpose.msra.mxu0 0.0
    %3303 = vmatpush.xpose.msra.mxu0 0.0
    %3304 = vmatpush.xpose.msra.mxu0 0.0
    %3305 = vmatpush.xpose.msra.mxu0 0.0
    %3306 = vmatpush.xpose.msra.mxu0 0.0
    %3307 = vmatpush.xpose.msra.mxu0 0.0
    %3308 = vmatpush.xpose.msra.mxu0 0.0
    %3309 = vmatpush.xpose.msra.mxu0 0.0
    %3310 = vmatpush.xpose.msra.mxu0 0.0
    %3311 = vmatpush.xpose.msra.mxu0 0.0
    %3312 = vmatpush.xpose.msra.mxu0 %v997
    %3313 = vmatmul.f32.gmra.mxu0 %v356
    %v3314 = vpop.f32.mrf.mxu0
    %v3315 = vadd.f32 %v3295, %v3314
    %3316 = vdwg.mxu0
    %3317 = vmatpush.xpose.msra.mxu0 0.0
    %3318 = vmatpush.xpose.msra.mxu0 0.0
    %3319 = vmatpush.xpose.msra.mxu0 0.0
    %3320 = vmatpush.xpose.msra.mxu0 0.0
    %3321 = vmatpush.xpose.msra.mxu0 0.0
    %3322 = vmatpush.xpose.msra.mxu0 0.0
    %3323 = vmatpush.xpose.msra.mxu0 0.0
    %3324 = vmatpush.xpose.msra.mxu0 0.0
    %3325 = vmatpush.xpose.msra.mxu0 0.0
    %3326 = vmatpush.xpose.msra.mxu0 0.0
    %3327 = vmatpush.xpose.msra.mxu0 0.0
    %3328 = vmatpush.xpose.msra.mxu0 0.0
    %3329 = vmatpush.xpose.msra.mxu0 0.0
    %3330 = vmatpush.xpose.msra.mxu0 0.0
    %3331 = vmatpush.xpose.msra.mxu0 0.0
    %3332 = vmatpush.xpose.msra.mxu0 %v998
    %3333 = vmatmul.f32.gmra.mxu0 %v357
    %v3334 = vpop.f32.mrf.mxu0
    %v3335 = vadd.f32 %v3315, %v3334
    %3336 = vdwg.mxu0
    %3337 = vmatpush.xpose.msra.mxu0 0.0
    %3338 = vmatpush.xpose.msra.mxu0 0.0
    %3339 = vmatpush.xpose.msra.mxu0 0.0
    %3340 = vmatpush.xpose.msra.mxu0 0.0
    %3341 = vmatpush.xpose.msra.mxu0 0.0
    %3342 = vmatpush.xpose.msra.mxu0 0.0
    %3343 = vmatpush.xpose.msra.mxu0 0.0
    %3344 = vmatpush.xpose.msra.mxu0 0.0
    %3345 = vmatpush.xpose.msra.mxu0 0.0
    %3346 = vmatpush.xpose.msra.mxu0 0.0
    %3347 = vmatpush.xpose.msra.mxu0 0.0
    %3348 = vmatpush.xpose.msra.mxu0 0.0
    %3349 = vmatpush.xpose.msra.mxu0 0.0
    %3350 = vmatpush.xpose.msra.mxu0 0.0
    %3351 = vmatpush.xpose.msra.mxu0 0.0
    %3352 = vmatpush.xpose.msra.mxu0 %v999
    %3353 = vmatmul.f32.gmra.mxu0 %v358
    %v3354 = vpop.f32.mrf.mxu0
    %v3355 = vadd.f32 %v3335, %v3354
    %3356 = vdwg.mxu0
    %3357 = vmatpush.xpose.msra.mxu0 0.0
    %3358 = vmatpush.xpose.msra.mxu0 0.0
    %3359 = vmatpush.xpose.msra.mxu0 0.0
    %3360 = vmatpush.xpose.msra.mxu0 0.0
    %3361 = vmatpush.xpose.msra.mxu0 0.0
    %3362 = vmatpush.xpose.msra.mxu0 0.0
    %3363 = vmatpush.xpose.msra.mxu0 0.0
    %3364 = vmatpush.xpose.msra.mxu0 0.0
    %3365 = vmatpush.xpose.msra.mxu0 0.0
    %3366 = vmatpush.xpose.msra.mxu0 0.0
    %3367 = vmatpush.xpose.msra.mxu0 0.0
    %3368 = vmatpush.xpose.msra.mxu0 0.0
    %3369 = vmatpush.xpose.msra.mxu0 0.0
    %3370 = vmatpush.xpose.msra.mxu0 0.0
    %3371 = vmatpush.xpose.msra.mxu0 0.0
    %3372 = vmatpush.xpose.msra.mxu0 %v1000
    %3373 = vmatmul.f32.gmra.mxu0 %v359
    %v3374 = vpop.f32.mrf.mxu0
    %v3375 = vadd.f32 %v3355, %v3374
    %3376 = vdwg.mxu0
    %3377 = vmatpush.xpose.msra.mxu0 0.0
    %3378 = vmatpush.xpose.msra.mxu0 0.0
    %3379 = vmatpush.xpose.msra.mxu0 0.0
    %3380 = vmatpush.xpose.msra.mxu0 0.0
    %3381 = vmatpush.xpose.msra.mxu0 0.0
    %3382 = vmatpush.xpose.msra.mxu0 0.0
    %3383 = vmatpush.xpose.msra.mxu0 0.0
    %3384 = vmatpush.xpose.msra.mxu0 0.0
    %3385 = vmatpush.xpose.msra.mxu0 0.0
    %3386 = vmatpush.xpose.msra.mxu0 0.0
    %3387 = vmatpush.xpose.msra.mxu0 0.0
    %3388 = vmatpush.xpose.msra.mxu0 0.0
    %3389 = vmatpush.xpose.msra.mxu0 0.0
    %3390 = vmatpush.xpose.msra.mxu0 0.0
    %3391 = vmatpush.xpose.msra.mxu0 0.0
    %3392 = vmatpush.xpose.msra.mxu0 %v1003
    %3393 = vmatmul.f32.gmra.mxu0 %v362
    %v3394 = vpop.f32.mrf.mxu0
    %v3395 = vadd.f32 %v3375, %v3394
    %3396 = vdwg.mxu0
    %3397 = vmatpush.xpose.msra.mxu0 0.0
    %3398 = vmatpush.xpose.msra.mxu0 0.0
    %3399 = vmatpush.xpose.msra.mxu0 0.0
    %3400 = vmatpush.xpose.msra.mxu0 0.0
    %3401 = vmatpush.xpose.msra.mxu0 0.0
    %3402 = vmatpush.xpose.msra.mxu0 0.0
    %3403 = vmatpush.xpose.msra.mxu0 0.0
    %3404 = vmatpush.xpose.msra.mxu0 0.0
    %3405 = vmatpush.xpose.msra.mxu0 0.0
    %3406 = vmatpush.xpose.msra.mxu0 0.0
    %3407 = vmatpush.xpose.msra.mxu0 0.0
    %3408 = vmatpush.xpose.msra.mxu0 0.0
    %3409 = vmatpush.xpose.msra.mxu0 0.0
    %3410 = vmatpush.xpose.msra.mxu0 0.0
    %3411 = vmatpush.xpose.msra.mxu0 0.0
    %3412 = vmatpush.xpose.msra.mxu0 %v1004
    %3413 = vmatmul.f32.gmra.mxu0 %v363
    %v3414 = vpop.f32.mrf.mxu0
    %v3415 = vadd.f32 %v3395, %v3414
    %3416 = vdwg.mxu0
    %3417 = vmatpush.xpose.msra.mxu0 0.0
    %3418 = vmatpush.xpose.msra.mxu0 0.0
    %3419 = vmatpush.xpose.msra.mxu0 0.0
    %3420 = vmatpush.xpose.msra.mxu0 0.0
    %3421 = vmatpush.xpose.msra.mxu0 0.0
    %3422 = vmatpush.xpose.msra.mxu0 0.0
    %3423 = vmatpush.xpose.msra.mxu0 0.0
    %3424 = vmatpush.xpose.msra.mxu0 0.0
    %3425 = vmatpush.xpose.msra.mxu0 0.0
    %3426 = vmatpush.xpose.msra.mxu0 0.0
    %3427 = vmatpush.xpose.msra.mxu0 0.0
    %3428 = vmatpush.xpose.msra.mxu0 0.0
    %3429 = vmatpush.xpose.msra.mxu0 0.0
    %3430 = vmatpush.xpose.msra.mxu0 0.0
    %3431 = vmatpush.xpose.msra.mxu0 0.0
    %3432 = vmatpush.xpose.msra.mxu0 %v1005
    %3433 = vmatmul.f32.gmra.mxu0 %v364
    %v3434 = vpop.f32.mrf.mxu0
    %v3435 = vadd.f32 %v3415, %v3434
    %3436 = vdwg.mxu0
    %3437 = vmatpush.xpose.msra.mxu0 0.0
    %3438 = vmatpush.xpose.msra.mxu0 0.0
    %3439 = vmatpush.xpose.msra.mxu0 0.0
    %3440 = vmatpush.xpose.msra.mxu0 0.0
    %3441 = vmatpush.xpose.msra.mxu0 0.0
    %3442 = vmatpush.xpose.msra.mxu0 0.0
    %3443 = vmatpush.xpose.msra.mxu0 0.0
    %3444 = vmatpush.xpose.msra.mxu0 0.0
    %3445 = vmatpush.xpose.msra.mxu0 0.0
    %3446 = vmatpush.xpose.msra.mxu0 0.0
    %3447 = vmatpush.xpose.msra.mxu0 0.0
    %3448 = vmatpush.xpose.msra.mxu0 0.0
    %3449 = vmatpush.xpose.msra.mxu0 0.0
    %3450 = vmatpush.xpose.msra.mxu0 0.0
    %3451 = vmatpush.xpose.msra.mxu0 0.0
    %3452 = vmatpush.xpose.msra.mxu0 %v1006
    %3453 = vmatmul.f32.gmra.mxu0 %v365
    %v3454 = vpop.f32.mrf.mxu0
    %v3455 = vadd.f32 %v3435, %v3454
    %3456 = vdwg.mxu0
    %3457 = vmatpush.xpose.msra.mxu0 0.0
    %3458 = vmatpush.xpose.msra.mxu0 0.0
    %3459 = vmatpush.xpose.msra.mxu0 0.0
    %3460 = vmatpush.xpose.msra.mxu0 0.0
    %3461 = vmatpush.xpose.msra.mxu0 0.0
    %3462 = vmatpush.xpose.msra.mxu0 0.0
    %3463 = vmatpush.xpose.msra.mxu0 0.0
    %3464 = vmatpush.xpose.msra.mxu0 0.0
    %3465 = vmatpush.xpose.msra.mxu0 0.0
    %3466 = vmatpush.xpose.msra.mxu0 0.0
    %3467 = vmatpush.xpose.msra.mxu0 0.0
    %3468 = vmatpush.xpose.msra.mxu0 0.0
    %3469 = vmatpush.xpose.msra.mxu0 0.0
    %3470 = vmatpush.xpose.msra.mxu0 0.0
    %3471 = vmatpush.xpose.msra.mxu0 0.0
    %3472 = vmatpush.xpose.msra.mxu0 %v1007
    %3473 = vmatmul.f32.gmra.mxu0 %v366
    %v3474 = vpop.f32.mrf.mxu0
    %v3475 = vadd.f32 %v3455, %v3474
    %3476 = vdwg.mxu0
    %3477 = vmatpush.xpose.msra.mxu0 0.0
    %3478 = vmatpush.xpose.msra.mxu0 0.0
    %3479 = vmatpush.xpose.msra.mxu0 0.0
    %3480 = vmatpush.xpose.msra.mxu0 0.0
    %3481 = vmatpush.xpose.msra.mxu0 0.0
    %3482 = vmatpush.xpose.msra.mxu0 0.0
    %3483 = vmatpush.xpose.msra.mxu0 0.0
    %3484 = vmatpush.xpose.msra.mxu0 0.0
    %3485 = vmatpush.xpose.msra.mxu0 0.0
    %3486 = vmatpush.xpose.msra.mxu0 0.0
    %3487 = vmatpush.xpose.msra.mxu0 0.0
    %3488 = vmatpush.xpose.msra.mxu0 0.0
    %3489 = vmatpush.xpose.msra.mxu0 0.0
    %3490 = vmatpush.xpose.msra.mxu0 0.0
    %3491 = vmatpush.xpose.msra.mxu0 0.0
    %3492 = vmatpush.xpose.msra.mxu0 %v1008
    %3493 = vmatmul.f32.gmra.mxu0 %v367
    %v3494 = vpop.f32.mrf.mxu0
    %v3495 = vadd.f32 %v3475, %v3494
    %3496 = vdwg.mxu0
    %3497 = vmatpush.xpose.msra.mxu0 0.0
    %3498 = vmatpush.xpose.msra.mxu0 0.0
    %3499 = vmatpush.xpose.msra.mxu0 0.0
    %3500 = vmatpush.xpose.msra.mxu0 0.0
    %3501 = vmatpush.xpose.msra.mxu0 0.0
    %3502 = vmatpush.xpose.msra.mxu0 0.0
    %3503 = vmatpush.xpose.msra.mxu0 0.0
    %3504 = vmatpush.xpose.msra.mxu0 0.0
    %3505 = vmatpush.xpose.msra.mxu0 0.0
    %3506 = vmatpush.xpose.msra.mxu0 0.0
    %3507 = vmatpush.xpose.msra.mxu0 0.0
    %3508 = vmatpush.xpose.msra.mxu0 0.0
    %3509 = vmatpush.xpose.msra.mxu0 0.0
    %3510 = vmatpush.xpose.msra.mxu0 0.0
    %3511 = vmatpush.xpose.msra.mxu0 0.0
    %3512 = vmatpush.xpose.msra.mxu0 %v1009
    %3513 = vmatmul.f32.gmra.mxu0 %v368
    %v3514 = vpop.f32.mrf.mxu0
    %v3515 = vadd.f32 %v3495, %v3514
    %3516 = vdwg.mxu0
    %3517 = vmatpush.xpose.msra.mxu0 0.0
    %3518 = vmatpush.xpose.msra.mxu0 0.0
    %3519 = vmatpush.xpose.msra.mxu0 0.0
    %3520 = vmatpush.xpose.msra.mxu0 0.0
    %3521 = vmatpush.xpose.msra.mxu0 0.0
    %3522 = vmatpush.xpose.msra.mxu0 0.0
    %3523 = vmatpush.xpose.msra.mxu0 0.0
    %3524 = vmatpush.xpose.msra.mxu0 0.0
    %3525 = vmatpush.xpose.msra.mxu0 0.0
    %3526 = vmatpush.xpose.msra.mxu0 0.0
    %3527 = vmatpush.xpose.msra.mxu0 0.0
    %3528 = vmatpush.xpose.msra.mxu0 0.0
    %3529 = vmatpush.xpose.msra.mxu0 0.0
    %3530 = vmatpush.xpose.msra.mxu0 0.0
    %3531 = vmatpush.xpose.msra.mxu0 0.0
    %3532 = vmatpush.xpose.msra.mxu0 %v1010
    %3533 = vmatmul.f32.gmra.mxu0 %v369
    %v3534 = vpop.f32.mrf.mxu0
    %v3535 = vadd.f32 %v3515, %v3534
    %3536 = vdwg.mxu0
    %3537 = vmatpush.xpose.msra.mxu0 0.0
    %3538 = vmatpush.xpose.msra.mxu0 0.0
    %3539 = vmatpush.xpose.msra.mxu0 0.0
    %3540 = vmatpush.xpose.msra.mxu0 0.0
    %3541 = vmatpush.xpose.msra.mxu0 0.0
    %3542 = vmatpush.xpose.msra.mxu0 0.0
    %3543 = vmatpush.xpose.msra.mxu0 0.0
    %3544 = vmatpush.xpose.msra.mxu0 0.0
    %3545 = vmatpush.xpose.msra.mxu0 0.0
    %3546 = vmatpush.xpose.msra.mxu0 0.0
    %3547 = vmatpush.xpose.msra.mxu0 0.0
    %3548 = vmatpush.xpose.msra.mxu0 0.0
    %3549 = vmatpush.xpose.msra.mxu0 0.0
    %3550 = vmatpush.xpose.msra.mxu0 0.0
    %3551 = vmatpush.xpose.msra.mxu0 0.0
    %3552 = vmatpush.xpose.msra.mxu0 %v1013
    %3553 = vmatmul.f32.gmra.mxu0 %v372
    %v3554 = vpop.f32.mrf.mxu0
    %v3555 = vadd.f32 %v3535, %v3554
    %3556 = vdwg.mxu0
    %3557 = vmatpush.xpose.msra.mxu0 0.0
    %3558 = vmatpush.xpose.msra.mxu0 0.0
    %3559 = vmatpush.xpose.msra.mxu0 0.0
    %3560 = vmatpush.xpose.msra.mxu0 0.0
    %3561 = vmatpush.xpose.msra.mxu0 0.0
    %3562 = vmatpush.xpose.msra.mxu0 0.0
    %3563 = vmatpush.xpose.msra.mxu0 0.0
    %3564 = vmatpush.xpose.msra.mxu0 0.0
    %3565 = vmatpush.xpose.msra.mxu0 0.0
    %3566 = vmatpush.xpose.msra.mxu0 0.0
    %3567 = vmatpush.xpose.msra.mxu0 0.0
    %3568 = vmatpush.xpose.msra.mxu0 0.0
    %3569 = vmatpush.xpose.msra.mxu0 0.0
    %3570 = vmatpush.xpose.msra.mxu0 0.0
    %3571 = vmatpush.xpose.msra.mxu0 0.0
    %3572 = vmatpush.xpose.msra.mxu0 %v1014
    %3573 = vmatmul.f32.gmra.mxu0 %v373
    %v3574 = vpop.f32.mrf.mxu0
    %v3575 = vadd.f32 %v3555, %v3574
    %3576 = vdwg.mxu0
    %3577 = vmatpush.xpose.msra.mxu0 0.0
    %3578 = vmatpush.xpose.msra.mxu0 0.0
    %3579 = vmatpush.xpose.msra.mxu0 0.0
    %3580 = vmatpush.xpose.msra.mxu0 0.0
    %3581 = vmatpush.xpose.msra.mxu0 0.0
    %3582 = vmatpush.xpose.msra.mxu0 0.0
    %3583 = vmatpush.xpose.msra.mxu0 0.0
    %3584 = vmatpush.xpose.msra.mxu0 0.0
    %3585 = vmatpush.xpose.msra.mxu0 0.0
    %3586 = vmatpush.xpose.msra.mxu0 0.0
    %3587 = vmatpush.xpose.msra.mxu0 0.0
    %3588 = vmatpush.xpose.msra.mxu0 0.0
    %3589 = vmatpush.xpose.msra.mxu0 0.0
    %3590 = vmatpush.xpose.msra.mxu0 0.0
    %3591 = vmatpush.xpose.msra.mxu0 0.0
    %3592 = vmatpush.xpose.msra.mxu0 %v1015
    %3593 = vmatmul.f32.gmra.mxu0 %v374
    %v3594 = vpop.f32.mrf.mxu0
    %v3595 = vadd.f32 %v3575, %v3594
    %3596 = vdwg.mxu0
    %3597 = vmatpush.xpose.msra.mxu0 0.0
    %3598 = vmatpush.xpose.msra.mxu0 0.0
    %3599 = vmatpush.xpose.msra.mxu0 0.0
    %3600 = vmatpush.xpose.msra.mxu0 0.0
    %3601 = vmatpush.xpose.msra.mxu0 0.0
    %3602 = vmatpush.xpose.msra.mxu0 0.0
    %3603 = vmatpush.xpose.msra.mxu0 0.0
    %3604 = vmatpush.xpose.msra.mxu0 0.0
    %3605 = vmatpush.xpose.msra.mxu0 0.0
    %3606 = vmatpush.xpose.msra.mxu0 0.0
    %3607 = vmatpush.xpose.msra.mxu0 0.0
    %3608 = vmatpush.xpose.msra.mxu0 0.0
    %3609 = vmatpush.xpose.msra.mxu0 0.0
    %3610 = vmatpush.xpose.msra.mxu0 0.0
    %3611 = vmatpush.xpose.msra.mxu0 0.0
    %3612 = vmatpush.xpose.msra.mxu0 %v1016
    %3613 = vmatmul.f32.gmra.mxu0 %v375
    %v3614 = vpop.f32.mrf.mxu0
    %v3615 = vadd.f32 %v3595, %v3614
    %3616 = vdwg.mxu0
    %3617 = vmatpush.xpose.msra.mxu0 0.0
    %3618 = vmatpush.xpose.msra.mxu0 0.0
    %3619 = vmatpush.xpose.msra.mxu0 0.0
    %3620 = vmatpush.xpose.msra.mxu0 0.0
    %3621 = vmatpush.xpose.msra.mxu0 0.0
    %3622 = vmatpush.xpose.msra.mxu0 0.0
    %3623 = vmatpush.xpose.msra.mxu0 0.0
    %3624 = vmatpush.xpose.msra.mxu0 0.0
    %3625 = vmatpush.xpose.msra.mxu0 0.0
    %3626 = vmatpush.xpose.msra.mxu0 0.0
    %3627 = vmatpush.xpose.msra.mxu0 0.0
    %3628 = vmatpush.xpose.msra.mxu0 0.0
    %3629 = vmatpush.xpose.msra.mxu0 0.0
    %3630 = vmatpush.xpose.msra.mxu0 0.0
    %3631 = vmatpush.xpose.msra.mxu0 0.0
    %3632 = vmatpush.xpose.msra.mxu0 %v1017
    %3633 = vmatmul.f32.gmra.mxu0 %v376
    %v3634 = vpop.f32.mrf.mxu0
    %v3635 = vadd.f32 %v3615, %v3634
    %3636 = vdwg.mxu0
    %3637 = vmatpush.xpose.msra.mxu0 0.0
    %3638 = vmatpush.xpose.msra.mxu0 0.0
    %3639 = vmatpush.xpose.msra.mxu0 0.0
    %3640 = vmatpush.xpose.msra.mxu0 0.0
    %3641 = vmatpush.xpose.msra.mxu0 0.0
    %3642 = vmatpush.xpose.msra.mxu0 0.0
    %3643 = vmatpush.xpose.msra.mxu0 0.0
    %3644 = vmatpush.xpose.msra.mxu0 0.0
    %3645 = vmatpush.xpose.msra.mxu0 0.0
    %3646 = vmatpush.xpose.msra.mxu0 0.0
    %3647 = vmatpush.xpose.msra.mxu0 0.0
    %3648 = vmatpush.xpose.msra.mxu0 0.0
    %3649 = vmatpush.xpose.msra.mxu0 0.0
    %3650 = vmatpush.xpose.msra.mxu0 0.0
    %3651 = vmatpush.xpose.msra.mxu0 0.0
    %3652 = vmatpush.xpose.msra.mxu0 %v1018
    %3653 = vmatmul.f32.gmra.mxu0 %v377
    %v3654 = vpop.f32.mrf.mxu0
    %v3655 = vadd.f32 %v3635, %v3654
    %3656 = vdwg.mxu0
    %3657 = vmatpush.xpose.msra.mxu0 0.0
    %3658 = vmatpush.xpose.msra.mxu0 0.0
    %3659 = vmatpush.xpose.msra.mxu0 0.0
    %3660 = vmatpush.xpose.msra.mxu0 0.0
    %3661 = vmatpush.xpose.msra.mxu0 0.0
    %3662 = vmatpush.xpose.msra.mxu0 0.0
    %3663 = vmatpush.xpose.msra.mxu0 0.0
    %3664 = vmatpush.xpose.msra.mxu0 0.0
    %3665 = vmatpush.xpose.msra.mxu0 0.0
    %3666 = vmatpush.xpose.msra.mxu0 0.0
    %3667 = vmatpush.xpose.msra.mxu0 0.0
    %3668 = vmatpush.xpose.msra.mxu0 0.0
    %3669 = vmatpush.xpose.msra.mxu0 0.0
    %3670 = vmatpush.xpose.msra.mxu0 0.0
    %3671 = vmatpush.xpose.msra.mxu0 0.0
    %3672 = vmatpush.xpose.msra.mxu0 %v1019
    %3673 = vmatmul.f32.gmra.mxu0 %v378
    %v3674 = vpop.f32.mrf.mxu0
    %v3675 = vadd.f32 %v3655, %v3674
    %3676 = vdwg.mxu0
    %3677 = vmatpush.xpose.msra.mxu0 0.0
    %3678 = vmatpush.xpose.msra.mxu0 0.0
    %3679 = vmatpush.xpose.msra.mxu0 0.0
    %3680 = vmatpush.xpose.msra.mxu0 0.0
    %3681 = vmatpush.xpose.msra.mxu0 0.0
    %3682 = vmatpush.xpose.msra.mxu0 0.0
    %3683 = vmatpush.xpose.msra.mxu0 0.0
    %3684 = vmatpush.xpose.msra.mxu0 0.0
    %3685 = vmatpush.xpose.msra.mxu0 0.0
    %3686 = vmatpush.xpose.msra.mxu0 0.0
    %3687 = vmatpush.xpose.msra.mxu0 0.0
    %3688 = vmatpush.xpose.msra.mxu0 0.0
    %3689 = vmatpush.xpose.msra.mxu0 0.0
    %3690 = vmatpush.xpose.msra.mxu0 0.0
    %3691 = vmatpush.xpose.msra.mxu0 0.0
    %3692 = vmatpush.xpose.msra.mxu0 %v1020
    %3693 = vmatmul.f32.gmra.mxu0 %v379
    %v3694 = vpop.f32.mrf.mxu0
    %v3695 = vadd.f32 %v3675, %v3694
    %3696 = vdwg.mxu0
    %3697 = vmatpush.xpose.msra.mxu0 0.0
    %3698 = vmatpush.xpose.msra.mxu0 0.0
    %3699 = vmatpush.xpose.msra.mxu0 0.0
    %3700 = vmatpush.xpose.msra.mxu0 0.0
    %3701 = vmatpush.xpose.msra.mxu0 0.0
    %3702 = vmatpush.xpose.msra.mxu0 0.0
    %3703 = vmatpush.xpose.msra.mxu0 0.0
    %3704 = vmatpush.xpose.msra.mxu0 0.0
    %3705 = vmatpush.xpose.msra.mxu0 0.0
    %3706 = vmatpush.xpose.msra.mxu0 0.0
    %3707 = vmatpush.xpose.msra.mxu0 0.0
    %3708 = vmatpush.xpose.msra.mxu0 0.0
    %3709 = vmatpush.xpose.msra.mxu0 0.0
    %3710 = vmatpush.xpose.msra.mxu0 0.0
    %3711 = vmatpush.xpose.msra.mxu0 0.0
    %3712 = vmatpush.xpose.msra.mxu0 %v1023
    %3713 = vmatmul.f32.gmra.mxu0 %v382
    %v3714 = vpop.f32.mrf.mxu0
    %v3715 = vadd.f32 %v3695, %v3714
    %3716 = vdwg.mxu0
    %3717 = vmatpush.xpose.msra.mxu0 0.0
    %3718 = vmatpush.xpose.msra.mxu0 0.0
    %3719 = vmatpush.xpose.msra.mxu0 0.0
    %3720 = vmatpush.xpose.msra.mxu0 0.0
    %3721 = vmatpush.xpose.msra.mxu0 0.0
    %3722 = vmatpush.xpose.msra.mxu0 0.0
    %3723 = vmatpush.xpose.msra.mxu0 0.0
    %3724 = vmatpush.xpose.msra.mxu0 0.0
    %3725 = vmatpush.xpose.msra.mxu0 0.0
    %3726 = vmatpush.xpose.msra.mxu0 0.0
    %3727 = vmatpush.xpose.msra.mxu0 0.0
    %3728 = vmatpush.xpose.msra.mxu0 0.0
    %3729 = vmatpush.xpose.msra.mxu0 0.0
    %3730 = vmatpush.xpose.msra.mxu0 0.0
    %3731 = vmatpush.xpose.msra.mxu0 0.0
    %3732 = vmatpush.xpose.msra.mxu0 %v1024
    %3733 = vmatmul.f32.gmra.mxu0 %v383
    %v3734 = vpop.f32.mrf.mxu0
    %v3735 = vadd.f32 %v3715, %v3734
    %3736 = vdwg.mxu0
    %3737 = vmatpush.xpose.msra.mxu0 0.0
    %3738 = vmatpush.xpose.msra.mxu0 0.0
    %3739 = vmatpush.xpose.msra.mxu0 0.0
    %3740 = vmatpush.xpose.msra.mxu0 0.0
    %3741 = vmatpush.xpose.msra.mxu0 0.0
    %3742 = vmatpush.xpose.msra.mxu0 0.0
    %3743 = vmatpush.xpose.msra.mxu0 0.0
    %3744 = vmatpush.xpose.msra.mxu0 0.0
    %3745 = vmatpush.xpose.msra.mxu0 0.0
    %3746 = vmatpush.xpose.msra.mxu0 0.0
    %3747 = vmatpush.xpose.msra.mxu0 0.0
    %3748 = vmatpush.xpose.msra.mxu0 0.0
    %3749 = vmatpush.xpose.msra.mxu0 0.0
    %3750 = vmatpush.xpose.msra.mxu0 0.0
    %3751 = vmatpush.xpose.msra.mxu0 0.0
    %3752 = vmatpush.xpose.msra.mxu0 %v1025
    %3753 = vmatmul.f32.gmra.mxu0 %v384
    %v3754 = vpop.f32.mrf.mxu0
    %v3755 = vadd.f32 %v3735, %v3754
    %3756 = vdwg.mxu0
    %3757 = vmatpush.xpose.msra.mxu0 0.0
    %3758 = vmatpush.xpose.msra.mxu0 0.0
    %3759 = vmatpush.xpose.msra.mxu0 0.0
    %3760 = vmatpush.xpose.msra.mxu0 0.0
    %3761 = vmatpush.xpose.msra.mxu0 0.0
    %3762 = vmatpush.xpose.msra.mxu0 0.0
    %3763 = vmatpush.xpose.msra.mxu0 0.0
    %3764 = vmatpush.xpose.msra.mxu0 0.0
    %3765 = vmatpush.xpose.msra.mxu0 0.0
    %3766 = vmatpush.xpose.msra.mxu0 0.0
    %3767 = vmatpush.xpose.msra.mxu0 0.0
    %3768 = vmatpush.xpose.msra.mxu0 0.0
    %3769 = vmatpush.xpose.msra.mxu0 0.0
    %3770 = vmatpush.xpose.msra.mxu0 0.0
    %3771 = vmatpush.xpose.msra.mxu0 0.0
    %3772 = vmatpush.xpose.msra.mxu0 %v1026
    %3773 = vmatmul.f32.gmra.mxu0 %v385
    %v3774 = vpop.f32.mrf.mxu0
    %v3775 = vadd.f32 %v3755, %v3774
    %3776 = vdwg.mxu0
    %3777 = vmatpush.xpose.msra.mxu0 0.0
    %3778 = vmatpush.xpose.msra.mxu0 0.0
    %3779 = vmatpush.xpose.msra.mxu0 0.0
    %3780 = vmatpush.xpose.msra.mxu0 0.0
    %3781 = vmatpush.xpose.msra.mxu0 0.0
    %3782 = vmatpush.xpose.msra.mxu0 0.0
    %3783 = vmatpush.xpose.msra.mxu0 0.0
    %3784 = vmatpush.xpose.msra.mxu0 0.0
    %3785 = vmatpush.xpose.msra.mxu0 0.0
    %3786 = vmatpush.xpose.msra.mxu0 0.0
    %3787 = vmatpush.xpose.msra.mxu0 0.0
    %3788 = vmatpush.xpose.msra.mxu0 0.0
    %3789 = vmatpush.xpose.msra.mxu0 0.0
    %3790 = vmatpush.xpose.msra.mxu0 0.0
    %3791 = vmatpush.xpose.msra.mxu0 0.0
    %3792 = vmatpush.xpose.msra.mxu0 %v1027
    %3793 = vmatmul.f32.gmra.mxu0 %v386
    %v3794 = vpop.f32.mrf.mxu0
    %v3795 = vadd.f32 %v3775, %v3794
    %3796 = vdwg.mxu0
    %3797 = vmatpush.xpose.msra.mxu0 0.0
    %3798 = vmatpush.xpose.msra.mxu0 0.0
    %3799 = vmatpush.xpose.msra.mxu0 0.0
    %3800 = vmatpush.xpose.msra.mxu0 0.0
    %3801 = vmatpush.xpose.msra.mxu0 0.0
    %3802 = vmatpush.xpose.msra.mxu0 0.0
    %3803 = vmatpush.xpose.msra.mxu0 0.0
    %3804 = vmatpush.xpose.msra.mxu0 0.0
    %3805 = vmatpush.xpose.msra.mxu0 0.0
    %3806 = vmatpush.xpose.msra.mxu0 0.0
    %3807 = vmatpush.xpose.msra.mxu0 0.0
    %3808 = vmatpush.xpose.msra.mxu0 0.0
    %3809 = vmatpush.xpose.msra.mxu0 0.0
    %3810 = vmatpush.xpose.msra.mxu0 0.0
    %3811 = vmatpush.xpose.msra.mxu0 0.0
    %3812 = vmatpush.xpose.msra.mxu0 %v1028
    %3813 = vmatmul.f32.gmra.mxu0 %v387
    %v3814 = vpop.f32.mrf.mxu0
    %v3815 = vadd.f32 %v3795, %v3814
    %3816 = vdwg.mxu0
    %3817 = vmatpush.xpose.msra.mxu0 0.0
    %3818 = vmatpush.xpose.msra.mxu0 0.0
    %3819 = vmatpush.xpose.msra.mxu0 0.0
    %3820 = vmatpush.xpose.msra.mxu0 0.0
    %3821 = vmatpush.xpose.msra.mxu0 0.0
    %3822 = vmatpush.xpose.msra.mxu0 0.0
    %3823 = vmatpush.xpose.msra.mxu0 0.0
    %3824 = vmatpush.xpose.msra.mxu0 0.0
    %3825 = vmatpush.xpose.msra.mxu0 0.0
    %3826 = vmatpush.xpose.msra.mxu0 0.0
    %3827 = vmatpush.xpose.msra.mxu0 0.0
    %3828 = vmatpush.xpose.msra.mxu0 0.0
    %3829 = vmatpush.xpose.msra.mxu0 0.0
    %3830 = vmatpush.xpose.msra.mxu0 0.0
    %3831 = vmatpush.xpose.msra.mxu0 0.0
    %3832 = vmatpush.xpose.msra.mxu0 %v1029
    %3833 = vmatmul.f32.gmra.mxu0 %v388
    %v3834 = vpop.f32.mrf.mxu0
    %v3835 = vadd.f32 %v3815, %v3834
    %3836 = vdwg.mxu0
    %3837 = vmatpush.xpose.msra.mxu0 0.0
    %3838 = vmatpush.xpose.msra.mxu0 0.0
    %3839 = vmatpush.xpose.msra.mxu0 0.0
    %3840 = vmatpush.xpose.msra.mxu0 0.0
    %3841 = vmatpush.xpose.msra.mxu0 0.0
    %3842 = vmatpush.xpose.msra.mxu0 0.0
    %3843 = vmatpush.xpose.msra.mxu0 0.0
    %3844 = vmatpush.xpose.msra.mxu0 0.0
    %3845 = vmatpush.xpose.msra.mxu0 0.0
    %3846 = vmatpush.xpose.msra.mxu0 0.0
    %3847 = vmatpush.xpose.msra.mxu0 0.0
    %3848 = vmatpush.xpose.msra.mxu0 0.0
    %3849 = vmatpush.xpose.msra.mxu0 0.0
    %3850 = vmatpush.xpose.msra.mxu0 0.0
    %3851 = vmatpush.xpose.msra.mxu0 0.0
    %3852 = vmatpush.xpose.msra.mxu0 %v1030
    %3853 = vmatmul.f32.gmra.mxu0 %v389
    %v3854 = vpop.f32.mrf.mxu0
    %v3855 = vadd.f32 %v3835, %v3854
    %3856 = vdwg.mxu0
    %3857 = vmatpush.xpose.msra.mxu0 0.0
    %3858 = vmatpush.xpose.msra.mxu0 0.0
    %3859 = vmatpush.xpose.msra.mxu0 0.0
    %3860 = vmatpush.xpose.msra.mxu0 0.0
    %3861 = vmatpush.xpose.msra.mxu0 0.0
    %3862 = vmatpush.xpose.msra.mxu0 0.0
    %3863 = vmatpush.xpose.msra.mxu0 0.0
    %3864 = vmatpush.xpose.msra.mxu0 0.0
    %3865 = vmatpush.xpose.msra.mxu0 0.0
    %3866 = vmatpush.xpose.msra.mxu0 0.0
    %3867 = vmatpush.xpose.msra.mxu0 0.0
    %3868 = vmatpush.xpose.msra.mxu0 0.0
    %3869 = vmatpush.xpose.msra.mxu0 0.0
    %3870 = vmatpush.xpose.msra.mxu0 0.0
    %3871 = vmatpush.xpose.msra.mxu0 0.0
    %3872 = vmatpush.xpose.msra.mxu0 %v1033
    %3873 = vmatmul.f32.gmra.mxu0 %v392
    %v3874 = vpop.f32.mrf.mxu0
    %v3875 = vadd.f32 %v3855, %v3874
    %3876 = vdwg.mxu0
    %3877 = vmatpush.xpose.msra.mxu0 0.0
    %3878 = vmatpush.xpose.msra.mxu0 0.0
    %3879 = vmatpush.xpose.msra.mxu0 0.0
    %3880 = vmatpush.xpose.msra.mxu0 0.0
    %3881 = vmatpush.xpose.msra.mxu0 0.0
    %3882 = vmatpush.xpose.msra.mxu0 0.0
    %3883 = vmatpush.xpose.msra.mxu0 0.0
    %3884 = vmatpush.xpose.msra.mxu0 0.0
    %3885 = vmatpush.xpose.msra.mxu0 0.0
    %3886 = vmatpush.xpose.msra.mxu0 0.0
    %3887 = vmatpush.xpose.msra.mxu0 0.0
    %3888 = vmatpush.xpose.msra.mxu0 0.0
    %3889 = vmatpush.xpose.msra.mxu0 0.0
    %3890 = vmatpush.xpose.msra.mxu0 0.0
    %3891 = vmatpush.xpose.msra.mxu0 0.0
    %3892 = vmatpush.xpose.msra.mxu0 %v1034
    %3893 = vmatmul.f32.gmra.mxu0 %v393
    %v3894 = vpop.f32.mrf.mxu0
    %v3895 = vadd.f32 %v3875, %v3894
    %3896 = vdwg.mxu0
    %3897 = vmatpush.xpose.msra.mxu0 0.0
    %3898 = vmatpush.xpose.msra.mxu0 0.0
    %3899 = vmatpush.xpose.msra.mxu0 0.0
    %3900 = vmatpush.xpose.msra.mxu0 0.0
    %3901 = vmatpush.xpose.msra.mxu0 0.0
    %3902 = vmatpush.xpose.msra.mxu0 0.0
    %3903 = vmatpush.xpose.msra.mxu0 0.0
    %3904 = vmatpush.xpose.msra.mxu0 0.0
    %3905 = vmatpush.xpose.msra.mxu0 0.0
    %3906 = vmatpush.xpose.msra.mxu0 0.0
    %3907 = vmatpush.xpose.msra.mxu0 0.0
    %3908 = vmatpush.xpose.msra.mxu0 0.0
    %3909 = vmatpush.xpose.msra.mxu0 0.0
    %3910 = vmatpush.xpose.msra.mxu0 0.0
    %3911 = vmatpush.xpose.msra.mxu0 0.0
    %3912 = vmatpush.xpose.msra.mxu0 %v1035
    %3913 = vmatmul.f32.gmra.mxu0 %v394
    %v3914 = vpop.f32.mrf.mxu0
    %v3915 = vadd.f32 %v3895, %v3914
    %3916 = vdwg.mxu0
    %3917 = vmatpush.xpose.msra.mxu0 0.0
    %3918 = vmatpush.xpose.msra.mxu0 0.0
    %3919 = vmatpush.xpose.msra.mxu0 0.0
    %3920 = vmatpush.xpose.msra.mxu0 0.0
    %3921 = vmatpush.xpose.msra.mxu0 0.0
    %3922 = vmatpush.xpose.msra.mxu0 0.0
    %3923 = vmatpush.xpose.msra.mxu0 0.0
    %3924 = vmatpush.xpose.msra.mxu0 0.0
    %3925 = vmatpush.xpose.msra.mxu0 0.0
    %3926 = vmatpush.xpose.msra.mxu0 0.0
    %3927 = vmatpush.xpose.msra.mxu0 0.0
    %3928 = vmatpush.xpose.msra.mxu0 0.0
    %3929 = vmatpush.xpose.msra.mxu0 0.0
    %3930 = vmatpush.xpose.msra.mxu0 0.0
    %3931 = vmatpush.xpose.msra.mxu0 0.0
    %3932 = vmatpush.xpose.msra.mxu0 %v1036
    %3933 = vmatmul.f32.gmra.mxu0 %v395
    %v3934 = vpop.f32.mrf.mxu0
    %v3935 = vadd.f32 %v3915, %v3934
    %3936 = vdwg.mxu0
    %3937 = vmatpush.xpose.msra.mxu0 0.0
    %3938 = vmatpush.xpose.msra.mxu0 0.0
    %3939 = vmatpush.xpose.msra.mxu0 0.0
    %3940 = vmatpush.xpose.msra.mxu0 0.0
    %3941 = vmatpush.xpose.msra.mxu0 0.0
    %3942 = vmatpush.xpose.msra.mxu0 0.0
    %3943 = vmatpush.xpose.msra.mxu0 0.0
    %3944 = vmatpush.xpose.msra.mxu0 0.0
    %3945 = vmatpush.xpose.msra.mxu0 0.0
    %3946 = vmatpush.xpose.msra.mxu0 0.0
    %3947 = vmatpush.xpose.msra.mxu0 0.0
    %3948 = vmatpush.xpose.msra.mxu0 0.0
    %3949 = vmatpush.xpose.msra.mxu0 0.0
    %3950 = vmatpush.xpose.msra.mxu0 0.0
    %3951 = vmatpush.xpose.msra.mxu0 0.0
    %3952 = vmatpush.xpose.msra.mxu0 %v1037
    %3953 = vmatmul.f32.gmra.mxu0 %v396
    %v3954 = vpop.f32.mrf.mxu0
    %v3955 = vadd.f32 %v3935, %v3954
    %3956 = vdwg.mxu0
    %3957 = vmatpush.xpose.msra.mxu0 0.0
    %3958 = vmatpush.xpose.msra.mxu0 0.0
    %3959 = vmatpush.xpose.msra.mxu0 0.0
    %3960 = vmatpush.xpose.msra.mxu0 0.0
    %3961 = vmatpush.xpose.msra.mxu0 0.0
    %3962 = vmatpush.xpose.msra.mxu0 0.0
    %3963 = vmatpush.xpose.msra.mxu0 0.0
    %3964 = vmatpush.xpose.msra.mxu0 0.0
    %3965 = vmatpush.xpose.msra.mxu0 0.0
    %3966 = vmatpush.xpose.msra.mxu0 0.0
    %3967 = vmatpush.xpose.msra.mxu0 0.0
    %3968 = vmatpush.xpose.msra.mxu0 0.0
    %3969 = vmatpush.xpose.msra.mxu0 0.0
    %3970 = vmatpush.xpose.msra.mxu0 0.0
    %3971 = vmatpush.xpose.msra.mxu0 0.0
    %3972 = vmatpush.xpose.msra.mxu0 %v1038
    %3973 = vmatmul.f32.gmra.mxu0 %v397
    %v3974 = vpop.f32.mrf.mxu0
    %v3975 = vadd.f32 %v3955, %v3974
    %3976 = vdwg.mxu0
    %3977 = vmatpush.xpose.msra.mxu0 0.0
    %3978 = vmatpush.xpose.msra.mxu0 0.0
    %3979 = vmatpush.xpose.msra.mxu0 0.0
    %3980 = vmatpush.xpose.msra.mxu0 0.0
    %3981 = vmatpush.xpose.msra.mxu0 0.0
    %3982 = vmatpush.xpose.msra.mxu0 0.0
    %3983 = vmatpush.xpose.msra.mxu0 0.0
    %3984 = vmatpush.xpose.msra.mxu0 0.0
    %3985 = vmatpush.xpose.msra.mxu0 0.0
    %3986 = vmatpush.xpose.msra.mxu0 0.0
    %3987 = vmatpush.xpose.msra.mxu0 0.0
    %3988 = vmatpush.xpose.msra.mxu0 0.0
    %3989 = vmatpush.xpose.msra.mxu0 0.0
    %3990 = vmatpush.xpose.msra.mxu0 0.0
    %3991 = vmatpush.xpose.msra.mxu0 0.0
    %3992 = vmatpush.xpose.msra.mxu0 %v1039
    %3993 = vmatmul.f32.gmra.mxu0 %v398
    %v3994 = vpop.f32.mrf.mxu0
    %v3995 = vadd.f32 %v3975, %v3994
    %3996 = vdwg.mxu0
    %3997 = vmatpush.xpose.msra.mxu0 0.0
    %3998 = vmatpush.xpose.msra.mxu0 0.0
    %3999 = vmatpush.xpose.msra.mxu0 0.0
    %4000 = vmatpush.xpose.msra.mxu0 0.0
    %4001 = vmatpush.xpose.msra.mxu0 0.0
    %4002 = vmatpush.xpose.msra.mxu0 0.0
    %4003 = vmatpush.xpose.msra.mxu0 0.0
    %4004 = vmatpush.xpose.msra.mxu0 0.0
    %4005 = vmatpush.xpose.msra.mxu0 0.0
    %4006 = vmatpush.xpose.msra.mxu0 0.0
    %4007 = vmatpush.xpose.msra.mxu0 0.0
    %4008 = vmatpush.xpose.msra.mxu0 0.0
    %4009 = vmatpush.xpose.msra.mxu0 0.0
    %4010 = vmatpush.xpose.msra.mxu0 0.0
    %4011 = vmatpush.xpose.msra.mxu0 0.0
    %4012 = vmatpush.xpose.msra.mxu0 %v1040
    %4013 = vmatmul.f32.gmra.mxu0 %v399
    %v4014 = vpop.f32.mrf.mxu0
    %v4015 = vadd.f32 %v3995, %v4014
    %4016 = vdwg.mxu0
    %4017 = vmatpush.xpose.msra.mxu0 0.0
    %4018 = vmatpush.xpose.msra.mxu0 0.0
    %4019 = vmatpush.xpose.msra.mxu0 0.0
    %4020 = vmatpush.xpose.msra.mxu0 0.0
    %4021 = vmatpush.xpose.msra.mxu0 0.0
    %4022 = vmatpush.xpose.msra.mxu0 0.0
    %4023 = vmatpush.xpose.msra.mxu0 0.0
    %4024 = vmatpush.xpose.msra.mxu0 0.0
    %4025 = vmatpush.xpose.msra.mxu0 0.0
    %4026 = vmatpush.xpose.msra.mxu0 0.0
    %4027 = vmatpush.xpose.msra.mxu0 0.0
    %4028 = vmatpush.xpose.msra.mxu0 0.0
    %4029 = vmatpush.xpose.msra.mxu0 0.0
    %4030 = vmatpush.xpose.msra.mxu0 0.0
    %4031 = vmatpush.xpose.msra.mxu0 0.0
    %4032 = vmatpush.xpose.msra.mxu0 %v1043
    %4033 = vmatmul.f32.gmra.mxu0 %v402
    %v4034 = vpop.f32.mrf.mxu0
    %v4035 = vadd.f32 %v4015, %v4034
    %4036 = vdwg.mxu0
    %4037 = vmatpush.xpose.msra.mxu0 0.0
    %4038 = vmatpush.xpose.msra.mxu0 0.0
    %4039 = vmatpush.xpose.msra.mxu0 0.0
    %4040 = vmatpush.xpose.msra.mxu0 0.0
    %4041 = vmatpush.xpose.msra.mxu0 0.0
    %4042 = vmatpush.xpose.msra.mxu0 0.0
    %4043 = vmatpush.xpose.msra.mxu0 0.0
    %4044 = vmatpush.xpose.msra.mxu0 0.0
    %4045 = vmatpush.xpose.msra.mxu0 0.0
    %4046 = vmatpush.xpose.msra.mxu0 0.0
    %4047 = vmatpush.xpose.msra.mxu0 0.0
    %4048 = vmatpush.xpose.msra.mxu0 0.0
    %4049 = vmatpush.xpose.msra.mxu0 0.0
    %4050 = vmatpush.xpose.msra.mxu0 0.0
    %4051 = vmatpush.xpose.msra.mxu0 0.0
    %4052 = vmatpush.xpose.msra.mxu0 %v1044
    %4053 = vmatmul.f32.gmra.mxu0 %v403
    %v4054 = vpop.f32.mrf.mxu0
    %v4055 = vadd.f32 %v4035, %v4054
    %4056 = vdwg.mxu0
    %4057 = vmatpush.xpose.msra.mxu0 0.0
    %4058 = vmatpush.xpose.msra.mxu0 0.0
    %4059 = vmatpush.xpose.msra.mxu0 0.0
    %4060 = vmatpush.xpose.msra.mxu0 0.0
    %4061 = vmatpush.xpose.msra.mxu0 0.0
    %4062 = vmatpush.xpose.msra.mxu0 0.0
    %4063 = vmatpush.xpose.msra.mxu0 0.0
    %4064 = vmatpush.xpose.msra.mxu0 0.0
    %4065 = vmatpush.xpose.msra.mxu0 0.0
    %4066 = vmatpush.xpose.msra.mxu0 0.0
    %4067 = vmatpush.xpose.msra.mxu0 0.0
    %4068 = vmatpush.xpose.msra.mxu0 0.0
    %4069 = vmatpush.xpose.msra.mxu0 0.0
    %4070 = vmatpush.xpose.msra.mxu0 0.0
    %4071 = vmatpush.xpose.msra.mxu0 0.0
    %4072 = vmatpush.xpose.msra.mxu0 %v1045
    %4073 = vmatmul.f32.gmra.mxu0 %v404
    %v4074 = vpop.f32.mrf.mxu0
    %v4075 = vadd.f32 %v4055, %v4074
    %4076 = vdwg.mxu0
    %4077 = vmatpush.xpose.msra.mxu0 0.0
    %4078 = vmatpush.xpose.msra.mxu0 0.0
    %4079 = vmatpush.xpose.msra.mxu0 0.0
    %4080 = vmatpush.xpose.msra.mxu0 0.0
    %4081 = vmatpush.xpose.msra.mxu0 0.0
    %4082 = vmatpush.xpose.msra.mxu0 0.0
    %4083 = vmatpush.xpose.msra.mxu0 0.0
    %4084 = vmatpush.xpose.msra.mxu0 0.0
    %4085 = vmatpush.xpose.msra.mxu0 0.0
    %4086 = vmatpush.xpose.msra.mxu0 0.0
    %4087 = vmatpush.xpose.msra.mxu0 0.0
    %4088 = vmatpush.xpose.msra.mxu0 0.0
    %4089 = vmatpush.xpose.msra.mxu0 0.0
    %4090 = vmatpush.xpose.msra.mxu0 0.0
    %4091 = vmatpush.xpose.msra.mxu0 0.0
    %4092 = vmatpush.xpose.msra.mxu0 %v1046
    %4093 = vmatmul.f32.gmra.mxu0 %v405
    %v4094 = vpop.f32.mrf.mxu0
    %v4095 = vadd.f32 %v4075, %v4094
    %4096 = vdwg.mxu0
    %4097 = vmatpush.xpose.msra.mxu0 0.0
    %4098 = vmatpush.xpose.msra.mxu0 0.0
    %4099 = vmatpush.xpose.msra.mxu0 0.0
    %4100 = vmatpush.xpose.msra.mxu0 0.0
    %4101 = vmatpush.xpose.msra.mxu0 0.0
    %4102 = vmatpush.xpose.msra.mxu0 0.0
    %4103 = vmatpush.xpose.msra.mxu0 0.0
    %4104 = vmatpush.xpose.msra.mxu0 0.0
    %4105 = vmatpush.xpose.msra.mxu0 0.0
    %4106 = vmatpush.xpose.msra.mxu0 0.0
    %4107 = vmatpush.xpose.msra.mxu0 0.0
    %4108 = vmatpush.xpose.msra.mxu0 0.0
    %4109 = vmatpush.xpose.msra.mxu0 0.0
    %4110 = vmatpush.xpose.msra.mxu0 0.0
    %4111 = vmatpush.xpose.msra.mxu0 0.0
    %4112 = vmatpush.xpose.msra.mxu0 %v1047
    %4113 = vmatmul.f32.gmra.mxu0 %v406
    %v4114 = vpop.f32.mrf.mxu0
    %v4115 = vadd.f32 %v4095, %v4114
    %4116 = vdwg.mxu0
    %4117 = vmatpush.xpose.msra.mxu0 0.0
    %4118 = vmatpush.xpose.msra.mxu0 0.0
    %4119 = vmatpush.xpose.msra.mxu0 0.0
    %4120 = vmatpush.xpose.msra.mxu0 0.0
    %4121 = vmatpush.xpose.msra.mxu0 0.0
    %4122 = vmatpush.xpose.msra.mxu0 0.0
    %4123 = vmatpush.xpose.msra.mxu0 0.0
    %4124 = vmatpush.xpose.msra.mxu0 0.0
    %4125 = vmatpush.xpose.msra.mxu0 0.0
    %4126 = vmatpush.xpose.msra.mxu0 0.0
    %4127 = vmatpush.xpose.msra.mxu0 0.0
    %4128 = vmatpush.xpose.msra.mxu0 0.0
    %4129 = vmatpush.xpose.msra.mxu0 0.0
    %4130 = vmatpush.xpose.msra.mxu0 0.0
    %4131 = vmatpush.xpose.msra.mxu0 0.0
    %4132 = vmatpush.xpose.msra.mxu0 %v1048
    %4133 = vmatmul.f32.gmra.mxu0 %v407
    %v4134 = vpop.f32.mrf.mxu0
    %v4135 = vadd.f32 %v4115, %v4134
    %4136 = vdwg.mxu0
    %4137 = vmatpush.xpose.msra.mxu0 0.0
    %4138 = vmatpush.xpose.msra.mxu0 0.0
    %4139 = vmatpush.xpose.msra.mxu0 0.0
    %4140 = vmatpush.xpose.msra.mxu0 0.0
    %4141 = vmatpush.xpose.msra.mxu0 0.0
    %4142 = vmatpush.xpose.msra.mxu0 0.0
    %4143 = vmatpush.xpose.msra.mxu0 0.0
    %4144 = vmatpush.xpose.msra.mxu0 0.0
    %4145 = vmatpush.xpose.msra.mxu0 0.0
    %4146 = vmatpush.xpose.msra.mxu0 0.0
    %4147 = vmatpush.xpose.msra.mxu0 0.0
    %4148 = vmatpush.xpose.msra.mxu0 0.0
    %4149 = vmatpush.xpose.msra.mxu0 0.0
    %4150 = vmatpush.xpose.msra.mxu0 0.0
    %4151 = vmatpush.xpose.msra.mxu0 0.0
    %4152 = vmatpush.xpose.msra.mxu0 %v1049
    %4153 = vmatmul.f32.gmra.mxu0 %v408
    %v4154 = vpop.f32.mrf.mxu0
    %v4155 = vadd.f32 %v4135, %v4154
    %4156 = vdwg.mxu0
    %4157 = vmatpush.xpose.msra.mxu0 0.0
    %4158 = vmatpush.xpose.msra.mxu0 0.0
    %4159 = vmatpush.xpose.msra.mxu0 0.0
    %4160 = vmatpush.xpose.msra.mxu0 0.0
    %4161 = vmatpush.xpose.msra.mxu0 0.0
    %4162 = vmatpush.xpose.msra.mxu0 0.0
    %4163 = vmatpush.xpose.msra.mxu0 0.0
    %4164 = vmatpush.xpose.msra.mxu0 0.0
    %4165 = vmatpush.xpose.msra.mxu0 0.0
    %4166 = vmatpush.xpose.msra.mxu0 0.0
    %4167 = vmatpush.xpose.msra.mxu0 0.0
    %4168 = vmatpush.xpose.msra.mxu0 0.0
    %4169 = vmatpush.xpose.msra.mxu0 0.0
    %4170 = vmatpush.xpose.msra.mxu0 0.0
    %4171 = vmatpush.xpose.msra.mxu0 0.0
    %4172 = vmatpush.xpose.msra.mxu0 %v1050
    %4173 = vmatmul.f32.gmra.mxu0 %v409
    %v4174 = vpop.f32.mrf.mxu0
    %v4175 = vadd.f32 %v4155, %v4174
    %4176 = vdwg.mxu0
    %4177 = vmatpush.xpose.msra.mxu0 0.0
    %4178 = vmatpush.xpose.msra.mxu0 0.0
    %4179 = vmatpush.xpose.msra.mxu0 0.0
    %4180 = vmatpush.xpose.msra.mxu0 0.0
    %4181 = vmatpush.xpose.msra.mxu0 0.0
    %4182 = vmatpush.xpose.msra.mxu0 0.0
    %4183 = vmatpush.xpose.msra.mxu0 0.0
    %4184 = vmatpush.xpose.msra.mxu0 0.0
    %4185 = vmatpush.xpose.msra.mxu0 0.0
    %4186 = vmatpush.xpose.msra.mxu0 0.0
    %4187 = vmatpush.xpose.msra.mxu0 0.0
    %4188 = vmatpush.xpose.msra.mxu0 0.0
    %4189 = vmatpush.xpose.msra.mxu0 0.0
    %4190 = vmatpush.xpose.msra.mxu0 0.0
    %4191 = vmatpush.xpose.msra.mxu0 0.0
    %4192 = vmatpush.xpose.msra.mxu0 %v1053
    %4193 = vmatmul.f32.gmra.mxu0 %v412
    %v4194 = vpop.f32.mrf.mxu0
    %v4195 = vadd.f32 %v4175, %v4194
    %4196 = vdwg.mxu0
    %4197 = vmatpush.xpose.msra.mxu0 0.0
    %4198 = vmatpush.xpose.msra.mxu0 0.0
    %4199 = vmatpush.xpose.msra.mxu0 0.0
    %4200 = vmatpush.xpose.msra.mxu0 0.0
    %4201 = vmatpush.xpose.msra.mxu0 0.0
    %4202 = vmatpush.xpose.msra.mxu0 0.0
    %4203 = vmatpush.xpose.msra.mxu0 0.0
    %4204 = vmatpush.xpose.msra.mxu0 0.0
    %4205 = vmatpush.xpose.msra.mxu0 0.0
    %4206 = vmatpush.xpose.msra.mxu0 0.0
    %4207 = vmatpush.xpose.msra.mxu0 0.0
    %4208 = vmatpush.xpose.msra.mxu0 0.0
    %4209 = vmatpush.xpose.msra.mxu0 0.0
    %4210 = vmatpush.xpose.msra.mxu0 0.0
    %4211 = vmatpush.xpose.msra.mxu0 0.0
    %4212 = vmatpush.xpose.msra.mxu0 %v1054
    %4213 = vmatmul.f32.gmra.mxu0 %v413
    %v4214 = vpop.f32.mrf.mxu0
    %v4215 = vadd.f32 %v4195, %v4214
    %4216 = vdwg.mxu0
    %4217 = vmatpush.xpose.msra.mxu0 0.0
    %4218 = vmatpush.xpose.msra.mxu0 0.0
    %4219 = vmatpush.xpose.msra.mxu0 0.0
    %4220 = vmatpush.xpose.msra.mxu0 0.0
    %4221 = vmatpush.xpose.msra.mxu0 0.0
    %4222 = vmatpush.xpose.msra.mxu0 0.0
    %4223 = vmatpush.xpose.msra.mxu0 0.0
    %4224 = vmatpush.xpose.msra.mxu0 0.0
    %4225 = vmatpush.xpose.msra.mxu0 0.0
    %4226 = vmatpush.xpose.msra.mxu0 0.0
    %4227 = vmatpush.xpose.msra.mxu0 0.0
    %4228 = vmatpush.xpose.msra.mxu0 0.0
    %4229 = vmatpush.xpose.msra.mxu0 0.0
    %4230 = vmatpush.xpose.msra.mxu0 0.0
    %4231 = vmatpush.xpose.msra.mxu0 0.0
    %4232 = vmatpush.xpose.msra.mxu0 %v1055
    %4233 = vmatmul.f32.gmra.mxu0 %v414
    %v4234 = vpop.f32.mrf.mxu0
    %v4235 = vadd.f32 %v4215, %v4234
    %4236 = vdwg.mxu0
    %4237 = vmatpush.xpose.msra.mxu0 0.0
    %4238 = vmatpush.xpose.msra.mxu0 0.0
    %4239 = vmatpush.xpose.msra.mxu0 0.0
    %4240 = vmatpush.xpose.msra.mxu0 0.0
    %4241 = vmatpush.xpose.msra.mxu0 0.0
    %4242 = vmatpush.xpose.msra.mxu0 0.0
    %4243 = vmatpush.xpose.msra.mxu0 0.0
    %4244 = vmatpush.xpose.msra.mxu0 0.0
    %4245 = vmatpush.xpose.msra.mxu0 0.0
    %4246 = vmatpush.xpose.msra.mxu0 0.0
    %4247 = vmatpush.xpose.msra.mxu0 0.0
    %4248 = vmatpush.xpose.msra.mxu0 0.0
    %4249 = vmatpush.xpose.msra.mxu0 0.0
    %4250 = vmatpush.xpose.msra.mxu0 0.0
    %4251 = vmatpush.xpose.msra.mxu0 0.0
    %4252 = vmatpush.xpose.msra.mxu0 %v1056
    %4253 = vmatmul.f32.gmra.mxu0 %v415
    %v4254 = vpop.f32.mrf.mxu0
    %v4255 = vadd.f32 %v4235, %v4254
    %4256 = vdwg.mxu0
    %4257 = vmatpush.xpose.msra.mxu0 0.0
    %4258 = vmatpush.xpose.msra.mxu0 0.0
    %4259 = vmatpush.xpose.msra.mxu0 0.0
    %4260 = vmatpush.xpose.msra.mxu0 0.0
    %4261 = vmatpush.xpose.msra.mxu0 0.0
    %4262 = vmatpush.xpose.msra.mxu0 0.0
    %4263 = vmatpush.xpose.msra.mxu0 0.0
    %4264 = vmatpush.xpose.msra.mxu0 0.0
    %4265 = vmatpush.xpose.msra.mxu0 0.0
    %4266 = vmatpush.xpose.msra.mxu0 0.0
    %4267 = vmatpush.xpose.msra.mxu0 0.0
    %4268 = vmatpush.xpose.msra.mxu0 0.0
    %4269 = vmatpush.xpose.msra.mxu0 0.0
    %4270 = vmatpush.xpose.msra.mxu0 0.0
    %4271 = vmatpush.xpose.msra.mxu0 0.0
    %4272 = vmatpush.xpose.msra.mxu0 %v1057
    %4273 = vmatmul.f32.gmra.mxu0 %v416
    %v4274 = vpop.f32.mrf.mxu0
    %v4275 = vadd.f32 %v4255, %v4274
    %4276 = vdwg.mxu0
    %4277 = vmatpush.xpose.msra.mxu0 0.0
    %4278 = vmatpush.xpose.msra.mxu0 0.0
    %4279 = vmatpush.xpose.msra.mxu0 0.0
    %4280 = vmatpush.xpose.msra.mxu0 0.0
    %4281 = vmatpush.xpose.msra.mxu0 0.0
    %4282 = vmatpush.xpose.msra.mxu0 0.0
    %4283 = vmatpush.xpose.msra.mxu0 0.0
    %4284 = vmatpush.xpose.msra.mxu0 0.0
    %4285 = vmatpush.xpose.msra.mxu0 0.0
    %4286 = vmatpush.xpose.msra.mxu0 0.0
    %4287 = vmatpush.xpose.msra.mxu0 0.0
    %4288 = vmatpush.xpose.msra.mxu0 0.0
    %4289 = vmatpush.xpose.msra.mxu0 0.0
    %4290 = vmatpush.xpose.msra.mxu0 0.0
    %4291 = vmatpush.xpose.msra.mxu0 0.0
    %4292 = vmatpush.xpose.msra.mxu0 %v1058
    %4293 = vmatmul.f32.gmra.mxu0 %v417
    %v4294 = vpop.f32.mrf.mxu0
    %v4295 = vadd.f32 %v4275, %v4294
    %4296 = vdwg.mxu0
    %4297 = vmatpush.xpose.msra.mxu0 0.0
    %4298 = vmatpush.xpose.msra.mxu0 0.0
    %4299 = vmatpush.xpose.msra.mxu0 0.0
    %4300 = vmatpush.xpose.msra.mxu0 0.0
    %4301 = vmatpush.xpose.msra.mxu0 0.0
    %4302 = vmatpush.xpose.msra.mxu0 0.0
    %4303 = vmatpush.xpose.msra.mxu0 0.0
    %4304 = vmatpush.xpose.msra.mxu0 0.0
    %4305 = vmatpush.xpose.msra.mxu0 0.0
    %4306 = vmatpush.xpose.msra.mxu0 0.0
    %4307 = vmatpush.xpose.msra.mxu0 0.0
    %4308 = vmatpush.xpose.msra.mxu0 0.0
    %4309 = vmatpush.xpose.msra.mxu0 0.0
    %4310 = vmatpush.xpose.msra.mxu0 0.0
    %4311 = vmatpush.xpose.msra.mxu0 0.0
    %4312 = vmatpush.xpose.msra.mxu0 %v1059
    %4313 = vmatmul.f32.gmra.mxu0 %v418
    %v4314 = vpop.f32.mrf.mxu0
    %v4315 = vadd.f32 %v4295, %v4314
    %4316 = vdwg.mxu0
    %4317 = vmatpush.xpose.msra.mxu0 0.0
    %4318 = vmatpush.xpose.msra.mxu0 0.0
    %4319 = vmatpush.xpose.msra.mxu0 0.0
    %4320 = vmatpush.xpose.msra.mxu0 0.0
    %4321 = vmatpush.xpose.msra.mxu0 0.0
    %4322 = vmatpush.xpose.msra.mxu0 0.0
    %4323 = vmatpush.xpose.msra.mxu0 0.0
    %4324 = vmatpush.xpose.msra.mxu0 0.0
    %4325 = vmatpush.xpose.msra.mxu0 0.0
    %4326 = vmatpush.xpose.msra.mxu0 0.0
    %4327 = vmatpush.xpose.msra.mxu0 0.0
    %4328 = vmatpush.xpose.msra.mxu0 0.0
    %4329 = vmatpush.xpose.msra.mxu0 0.0
    %4330 = vmatpush.xpose.msra.mxu0 0.0
    %4331 = vmatpush.xpose.msra.mxu0 0.0
    %4332 = vmatpush.xpose.msra.mxu0 %v1060
    %4333 = vmatmul.f32.gmra.mxu0 %v419
    %v4334 = vpop.f32.mrf.mxu0
    %v4335 = vadd.f32 %v4315, %v4334
    %4336 = vdwg.mxu0
    %4337 = vmatpush.xpose.msra.mxu0 0.0
    %4338 = vmatpush.xpose.msra.mxu0 0.0
    %4339 = vmatpush.xpose.msra.mxu0 0.0
    %4340 = vmatpush.xpose.msra.mxu0 0.0
    %4341 = vmatpush.xpose.msra.mxu0 0.0
    %4342 = vmatpush.xpose.msra.mxu0 0.0
    %4343 = vmatpush.xpose.msra.mxu0 0.0
    %4344 = vmatpush.xpose.msra.mxu0 0.0
    %4345 = vmatpush.xpose.msra.mxu0 0.0
    %4346 = vmatpush.xpose.msra.mxu0 0.0
    %4347 = vmatpush.xpose.msra.mxu0 0.0
    %4348 = vmatpush.xpose.msra.mxu0 0.0
    %4349 = vmatpush.xpose.msra.mxu0 0.0
    %4350 = vmatpush.xpose.msra.mxu0 0.0
    %4351 = vmatpush.xpose.msra.mxu0 0.0
    %4352 = vmatpush.xpose.msra.mxu0 %v1063
    %4353 = vmatmul.f32.gmra.mxu0 %v422
    %v4354 = vpop.f32.mrf.mxu0
    %v4355 = vadd.f32 %v4335, %v4354
    %4356 = vdwg.mxu0
    %4357 = vmatpush.xpose.msra.mxu0 0.0
    %4358 = vmatpush.xpose.msra.mxu0 0.0
    %4359 = vmatpush.xpose.msra.mxu0 0.0
    %4360 = vmatpush.xpose.msra.mxu0 0.0
    %4361 = vmatpush.xpose.msra.mxu0 0.0
    %4362 = vmatpush.xpose.msra.mxu0 0.0
    %4363 = vmatpush.xpose.msra.mxu0 0.0
    %4364 = vmatpush.xpose.msra.mxu0 0.0
    %4365 = vmatpush.xpose.msra.mxu0 0.0
    %4366 = vmatpush.xpose.msra.mxu0 0.0
    %4367 = vmatpush.xpose.msra.mxu0 0.0
    %4368 = vmatpush.xpose.msra.mxu0 0.0
    %4369 = vmatpush.xpose.msra.mxu0 0.0
    %4370 = vmatpush.xpose.msra.mxu0 0.0
    %4371 = vmatpush.xpose.msra.mxu0 0.0
    %4372 = vmatpush.xpose.msra.mxu0 %v1064
    %4373 = vmatmul.f32.gmra.mxu0 %v423
    %v4374 = vpop.f32.mrf.mxu0
    %v4375 = vadd.f32 %v4355, %v4374
    %4376 = vdwg.mxu0
    %4377 = vmatpush.xpose.msra.mxu0 0.0
    %4378 = vmatpush.xpose.msra.mxu0 0.0
    %4379 = vmatpush.xpose.msra.mxu0 0.0
    %4380 = vmatpush.xpose.msra.mxu0 0.0
    %4381 = vmatpush.xpose.msra.mxu0 0.0
    %4382 = vmatpush.xpose.msra.mxu0 0.0
    %4383 = vmatpush.xpose.msra.mxu0 0.0
    %4384 = vmatpush.xpose.msra.mxu0 0.0
    %4385 = vmatpush.xpose.msra.mxu0 0.0
    %4386 = vmatpush.xpose.msra.mxu0 0.0
    %4387 = vmatpush.xpose.msra.mxu0 0.0
    %4388 = vmatpush.xpose.msra.mxu0 0.0
    %4389 = vmatpush.xpose.msra.mxu0 0.0
    %4390 = vmatpush.xpose.msra.mxu0 0.0
    %4391 = vmatpush.xpose.msra.mxu0 0.0
    %4392 = vmatpush.xpose.msra.mxu0 %v1065
    %4393 = vmatmul.f32.gmra.mxu0 %v424
    %v4394 = vpop.f32.mrf.mxu0
    %v4395 = vadd.f32 %v4375, %v4394
    %4396 = vdwg.mxu0
    %4397 = vmatpush.xpose.msra.mxu0 0.0
    %4398 = vmatpush.xpose.msra.mxu0 0.0
    %4399 = vmatpush.xpose.msra.mxu0 0.0
    %4400 = vmatpush.xpose.msra.mxu0 0.0
    %4401 = vmatpush.xpose.msra.mxu0 0.0
    %4402 = vmatpush.xpose.msra.mxu0 0.0
    %4403 = vmatpush.xpose.msra.mxu0 0.0
    %4404 = vmatpush.xpose.msra.mxu0 0.0
    %4405 = vmatpush.xpose.msra.mxu0 0.0
    %4406 = vmatpush.xpose.msra.mxu0 0.0
    %4407 = vmatpush.xpose.msra.mxu0 0.0
    %4408 = vmatpush.xpose.msra.mxu0 0.0
    %4409 = vmatpush.xpose.msra.mxu0 0.0
    %4410 = vmatpush.xpose.msra.mxu0 0.0
    %4411 = vmatpush.xpose.msra.mxu0 0.0
    %4412 = vmatpush.xpose.msra.mxu0 %v1066
    %4413 = vmatmul.f32.gmra.mxu0 %v425
    %v4414 = vpop.f32.mrf.mxu0
    %v4415 = vadd.f32 %v4395, %v4414
    %4416 = vdwg.mxu0
    %4417 = vmatpush.xpose.msra.mxu0 0.0
    %4418 = vmatpush.xpose.msra.mxu0 0.0
    %4419 = vmatpush.xpose.msra.mxu0 0.0
    %4420 = vmatpush.xpose.msra.mxu0 0.0
    %4421 = vmatpush.xpose.msra.mxu0 0.0
    %4422 = vmatpush.xpose.msra.mxu0 0.0
    %4423 = vmatpush.xpose.msra.mxu0 0.0
    %4424 = vmatpush.xpose.msra.mxu0 0.0
    %4425 = vmatpush.xpose.msra.mxu0 0.0
    %4426 = vmatpush.xpose.msra.mxu0 0.0
    %4427 = vmatpush.xpose.msra.mxu0 0.0
    %4428 = vmatpush.xpose.msra.mxu0 0.0
    %4429 = vmatpush.xpose.msra.mxu0 0.0
    %4430 = vmatpush.xpose.msra.mxu0 0.0
    %4431 = vmatpush.xpose.msra.mxu0 0.0
    %4432 = vmatpush.xpose.msra.mxu0 %v1067
    %4433 = vmatmul.f32.gmra.mxu0 %v426
    %v4434 = vpop.f32.mrf.mxu0
    %v4435 = vadd.f32 %v4415, %v4434
    %4436 = vdwg.mxu0
    %4437 = vmatpush.xpose.msra.mxu0 0.0
    %4438 = vmatpush.xpose.msra.mxu0 0.0
    %4439 = vmatpush.xpose.msra.mxu0 0.0
    %4440 = vmatpush.xpose.msra.mxu0 0.0
    %4441 = vmatpush.xpose.msra.mxu0 0.0
    %4442 = vmatpush.xpose.msra.mxu0 0.0
    %4443 = vmatpush.xpose.msra.mxu0 0.0
    %4444 = vmatpush.xpose.msra.mxu0 0.0
    %4445 = vmatpush.xpose.msra.mxu0 0.0
    %4446 = vmatpush.xpose.msra.mxu0 0.0
    %4447 = vmatpush.xpose.msra.mxu0 0.0
    %4448 = vmatpush.xpose.msra.mxu0 0.0
    %4449 = vmatpush.xpose.msra.mxu0 0.0
    %4450 = vmatpush.xpose.msra.mxu0 0.0
    %4451 = vmatpush.xpose.msra.mxu0 0.0
    %4452 = vmatpush.xpose.msra.mxu0 %v1068
    %4453 = vmatmul.f32.gmra.mxu0 %v427
    %v4454 = vpop.f32.mrf.mxu0
    %v4455 = vadd.f32 %v4435, %v4454
    %4456 = vdwg.mxu0
    %4457 = vmatpush.xpose.msra.mxu0 0.0
    %4458 = vmatpush.xpose.msra.mxu0 0.0
    %4459 = vmatpush.xpose.msra.mxu0 0.0
    %4460 = vmatpush.xpose.msra.mxu0 0.0
    %4461 = vmatpush.xpose.msra.mxu0 0.0
    %4462 = vmatpush.xpose.msra.mxu0 0.0
    %4463 = vmatpush.xpose.msra.mxu0 0.0
    %4464 = vmatpush.xpose.msra.mxu0 0.0
    %4465 = vmatpush.xpose.msra.mxu0 0.0
    %4466 = vmatpush.xpose.msra.mxu0 0.0
    %4467 = vmatpush.xpose.msra.mxu0 0.0
    %4468 = vmatpush.xpose.msra.mxu0 0.0
    %4469 = vmatpush.xpose.msra.mxu0 0.0
    %4470 = vmatpush.xpose.msra.mxu0 0.0
    %4471 = vmatpush.xpose.msra.mxu0 0.0
    %4472 = vmatpush.xpose.msra.mxu0 %v1069
    %4473 = vmatmul.f32.gmra.mxu0 %v428
    %v4474 = vpop.f32.mrf.mxu0
    %v4475 = vadd.f32 %v4455, %v4474
    %4476 = vdwg.mxu0
    %4477 = vmatpush.xpose.msra.mxu0 0.0
    %4478 = vmatpush.xpose.msra.mxu0 0.0
    %4479 = vmatpush.xpose.msra.mxu0 0.0
    %4480 = vmatpush.xpose.msra.mxu0 0.0
    %4481 = vmatpush.xpose.msra.mxu0 0.0
    %4482 = vmatpush.xpose.msra.mxu0 0.0
    %4483 = vmatpush.xpose.msra.mxu0 0.0
    %4484 = vmatpush.xpose.msra.mxu0 0.0
    %4485 = vmatpush.xpose.msra.mxu0 0.0
    %4486 = vmatpush.xpose.msra.mxu0 0.0
    %4487 = vmatpush.xpose.msra.mxu0 0.0
    %4488 = vmatpush.xpose.msra.mxu0 0.0
    %4489 = vmatpush.xpose.msra.mxu0 0.0
    %4490 = vmatpush.xpose.msra.mxu0 0.0
    %4491 = vmatpush.xpose.msra.mxu0 0.0
    %4492 = vmatpush.xpose.msra.mxu0 %v1070
    %4493 = vmatmul.f32.gmra.mxu0 %v429
    %v4494 = vpop.f32.mrf.mxu0
    %v4495 = vadd.f32 %v4475, %v4494
    %4496 = vdwg.mxu0
    %4497 = vmatpush.xpose.msra.mxu0 0.0
    %4498 = vmatpush.xpose.msra.mxu0 0.0
    %4499 = vmatpush.xpose.msra.mxu0 0.0
    %4500 = vmatpush.xpose.msra.mxu0 0.0
    %4501 = vmatpush.xpose.msra.mxu0 0.0
    %4502 = vmatpush.xpose.msra.mxu0 0.0
    %4503 = vmatpush.xpose.msra.mxu0 0.0
    %4504 = vmatpush.xpose.msra.mxu0 0.0
    %4505 = vmatpush.xpose.msra.mxu0 0.0
    %4506 = vmatpush.xpose.msra.mxu0 0.0
    %4507 = vmatpush.xpose.msra.mxu0 0.0
    %4508 = vmatpush.xpose.msra.mxu0 0.0
    %4509 = vmatpush.xpose.msra.mxu0 0.0
    %4510 = vmatpush.xpose.msra.mxu0 0.0
    %4511 = vmatpush.xpose.msra.mxu0 0.0
    %4512 = vmatpush.xpose.msra.mxu0 %v1073
    %4513 = vmatmul.f32.gmra.mxu0 %v432
    %v4514 = vpop.f32.mrf.mxu0
    %v4515 = vadd.f32 %v4495, %v4514
    %4516 = vdwg.mxu0
    %4517 = vmatpush.xpose.msra.mxu0 0.0
    %4518 = vmatpush.xpose.msra.mxu0 0.0
    %4519 = vmatpush.xpose.msra.mxu0 0.0
    %4520 = vmatpush.xpose.msra.mxu0 0.0
    %4521 = vmatpush.xpose.msra.mxu0 0.0
    %4522 = vmatpush.xpose.msra.mxu0 0.0
    %4523 = vmatpush.xpose.msra.mxu0 0.0
    %4524 = vmatpush.xpose.msra.mxu0 0.0
    %4525 = vmatpush.xpose.msra.mxu0 0.0
    %4526 = vmatpush.xpose.msra.mxu0 0.0
    %4527 = vmatpush.xpose.msra.mxu0 0.0
    %4528 = vmatpush.xpose.msra.mxu0 0.0
    %4529 = vmatpush.xpose.msra.mxu0 0.0
    %4530 = vmatpush.xpose.msra.mxu0 0.0
    %4531 = vmatpush.xpose.msra.mxu0 0.0
    %4532 = vmatpush.xpose.msra.mxu0 %v1074
    %4533 = vmatmul.f32.gmra.mxu0 %v433
    %v4534 = vpop.f32.mrf.mxu0
    %v4535 = vadd.f32 %v4515, %v4534
    %4536 = vdwg.mxu0
    %4537 = vmatpush.xpose.msra.mxu0 0.0
    %4538 = vmatpush.xpose.msra.mxu0 0.0
    %4539 = vmatpush.xpose.msra.mxu0 0.0
    %4540 = vmatpush.xpose.msra.mxu0 0.0
    %4541 = vmatpush.xpose.msra.mxu0 0.0
    %4542 = vmatpush.xpose.msra.mxu0 0.0
    %4543 = vmatpush.xpose.msra.mxu0 0.0
    %4544 = vmatpush.xpose.msra.mxu0 0.0
    %4545 = vmatpush.xpose.msra.mxu0 0.0
    %4546 = vmatpush.xpose.msra.mxu0 0.0
    %4547 = vmatpush.xpose.msra.mxu0 0.0
    %4548 = vmatpush.xpose.msra.mxu0 0.0
    %4549 = vmatpush.xpose.msra.mxu0 0.0
    %4550 = vmatpush.xpose.msra.mxu0 0.0
    %4551 = vmatpush.xpose.msra.mxu0 0.0
    %4552 = vmatpush.xpose.msra.mxu0 %v1075
    %4553 = vmatmul.f32.gmra.mxu0 %v434
    %v4554 = vpop.f32.mrf.mxu0
    %v4555 = vadd.f32 %v4535, %v4554
    %4556 = vdwg.mxu0
    %4557 = vmatpush.xpose.msra.mxu0 0.0
    %4558 = vmatpush.xpose.msra.mxu0 0.0
    %4559 = vmatpush.xpose.msra.mxu0 0.0
    %4560 = vmatpush.xpose.msra.mxu0 0.0
    %4561 = vmatpush.xpose.msra.mxu0 0.0
    %4562 = vmatpush.xpose.msra.mxu0 0.0
    %4563 = vmatpush.xpose.msra.mxu0 0.0
    %4564 = vmatpush.xpose.msra.mxu0 0.0
    %4565 = vmatpush.xpose.msra.mxu0 0.0
    %4566 = vmatpush.xpose.msra.mxu0 0.0
    %4567 = vmatpush.xpose.msra.mxu0 0.0
    %4568 = vmatpush.xpose.msra.mxu0 0.0
    %4569 = vmatpush.xpose.msra.mxu0 0.0
    %4570 = vmatpush.xpose.msra.mxu0 0.0
    %4571 = vmatpush.xpose.msra.mxu0 0.0
    %4572 = vmatpush.xpose.msra.mxu0 %v1076
    %4573 = vmatmul.f32.gmra.mxu0 %v435
    %v4574 = vpop.f32.mrf.mxu0
    %v4575 = vadd.f32 %v4555, %v4574
    %4576 = vdwg.mxu0
    %4577 = vmatpush.xpose.msra.mxu0 0.0
    %4578 = vmatpush.xpose.msra.mxu0 0.0
    %4579 = vmatpush.xpose.msra.mxu0 0.0
    %4580 = vmatpush.xpose.msra.mxu0 0.0
    %4581 = vmatpush.xpose.msra.mxu0 0.0
    %4582 = vmatpush.xpose.msra.mxu0 0.0
    %4583 = vmatpush.xpose.msra.mxu0 0.0
    %4584 = vmatpush.xpose.msra.mxu0 0.0
    %4585 = vmatpush.xpose.msra.mxu0 0.0
    %4586 = vmatpush.xpose.msra.mxu0 0.0
    %4587 = vmatpush.xpose.msra.mxu0 0.0
    %4588 = vmatpush.xpose.msra.mxu0 0.0
    %4589 = vmatpush.xpose.msra.mxu0 0.0
    %4590 = vmatpush.xpose.msra.mxu0 0.0
    %4591 = vmatpush.xpose.msra.mxu0 0.0
    %4592 = vmatpush.xpose.msra.mxu0 %v1077
    %4593 = vmatmul.f32.gmra.mxu0 %v436
    %v4594 = vpop.f32.mrf.mxu0
    %v4595 = vadd.f32 %v4575, %v4594
    %4596 = vdwg.mxu0
    %4597 = vmatpush.xpose.msra.mxu0 0.0
    %4598 = vmatpush.xpose.msra.mxu0 0.0
    %4599 = vmatpush.xpose.msra.mxu0 0.0
    %4600 = vmatpush.xpose.msra.mxu0 0.0
    %4601 = vmatpush.xpose.msra.mxu0 0.0
    %4602 = vmatpush.xpose.msra.mxu0 0.0
    %4603 = vmatpush.xpose.msra.mxu0 0.0
    %4604 = vmatpush.xpose.msra.mxu0 0.0
    %4605 = vmatpush.xpose.msra.mxu0 0.0
    %4606 = vmatpush.xpose.msra.mxu0 0.0
    %4607 = vmatpush.xpose.msra.mxu0 0.0
    %4608 = vmatpush.xpose.msra.mxu0 0.0
    %4609 = vmatpush.xpose.msra.mxu0 0.0
    %4610 = vmatpush.xpose.msra.mxu0 0.0
    %4611 = vmatpush.xpose.msra.mxu0 0.0
    %4612 = vmatpush.xpose.msra.mxu0 %v1078
    %4613 = vmatmul.f32.gmra.mxu0 %v437
    %v4614 = vpop.f32.mrf.mxu0
    %v4615 = vadd.f32 %v4595, %v4614
    %4616 = vdwg.mxu0
    %4617 = vmatpush.xpose.msra.mxu0 0.0
    %4618 = vmatpush.xpose.msra.mxu0 0.0
    %4619 = vmatpush.xpose.msra.mxu0 0.0
    %4620 = vmatpush.xpose.msra.mxu0 0.0
    %4621 = vmatpush.xpose.msra.mxu0 0.0
    %4622 = vmatpush.xpose.msra.mxu0 0.0
    %4623 = vmatpush.xpose.msra.mxu0 0.0
    %4624 = vmatpush.xpose.msra.mxu0 0.0
    %4625 = vmatpush.xpose.msra.mxu0 0.0
    %4626 = vmatpush.xpose.msra.mxu0 0.0
    %4627 = vmatpush.xpose.msra.mxu0 0.0
    %4628 = vmatpush.xpose.msra.mxu0 0.0
    %4629 = vmatpush.xpose.msra.mxu0 0.0
    %4630 = vmatpush.xpose.msra.mxu0 0.0
    %4631 = vmatpush.xpose.msra.mxu0 0.0
    %4632 = vmatpush.xpose.msra.mxu0 %v1079
    %4633 = vmatmul.f32.gmra.mxu0 %v438
    %v4634 = vpop.f32.mrf.mxu0
    %v4635 = vadd.f32 %v4615, %v4634
    %4636 = vdwg.mxu0
    %4637 = vmatpush.xpose.msra.mxu0 0.0
    %4638 = vmatpush.xpose.msra.mxu0 0.0
    %4639 = vmatpush.xpose.msra.mxu0 0.0
    %4640 = vmatpush.xpose.msra.mxu0 0.0
    %4641 = vmatpush.xpose.msra.mxu0 0.0
    %4642 = vmatpush.xpose.msra.mxu0 0.0
    %4643 = vmatpush.xpose.msra.mxu0 0.0
    %4644 = vmatpush.xpose.msra.mxu0 0.0
    %4645 = vmatpush.xpose.msra.mxu0 0.0
    %4646 = vmatpush.xpose.msra.mxu0 0.0
    %4647 = vmatpush.xpose.msra.mxu0 0.0
    %4648 = vmatpush.xpose.msra.mxu0 0.0
    %4649 = vmatpush.xpose.msra.mxu0 0.0
    %4650 = vmatpush.xpose.msra.mxu0 0.0
    %4651 = vmatpush.xpose.msra.mxu0 0.0
    %4652 = vmatpush.xpose.msra.mxu0 %v1080
    %4653 = vmatmul.f32.gmra.mxu0 %v439
    %v4654 = vpop.f32.mrf.mxu0
    %v4655 = vadd.f32 %v4635, %v4654
    %4656 = vdwg.mxu0
    %4657 = vmatpush.xpose.msra.mxu0 0.0
    %4658 = vmatpush.xpose.msra.mxu0 0.0
    %4659 = vmatpush.xpose.msra.mxu0 0.0
    %4660 = vmatpush.xpose.msra.mxu0 0.0
    %4661 = vmatpush.xpose.msra.mxu0 0.0
    %4662 = vmatpush.xpose.msra.mxu0 0.0
    %4663 = vmatpush.xpose.msra.mxu0 0.0
    %4664 = vmatpush.xpose.msra.mxu0 0.0
    %4665 = vmatpush.xpose.msra.mxu0 0.0
    %4666 = vmatpush.xpose.msra.mxu0 0.0
    %4667 = vmatpush.xpose.msra.mxu0 0.0
    %4668 = vmatpush.xpose.msra.mxu0 0.0
    %4669 = vmatpush.xpose.msra.mxu0 0.0
    %4670 = vmatpush.xpose.msra.mxu0 0.0
    %4671 = vmatpush.xpose.msra.mxu0 0.0
    %4672 = vmatpush.xpose.msra.mxu0 %v1083
    %4673 = vmatmul.f32.gmra.mxu0 %v442
    %v4674 = vpop.f32.mrf.mxu0
    %v4675 = vadd.f32 %v4655, %v4674
    %4676 = vdwg.mxu0
    %4677 = vmatpush.xpose.msra.mxu0 0.0
    %4678 = vmatpush.xpose.msra.mxu0 0.0
    %4679 = vmatpush.xpose.msra.mxu0 0.0
    %4680 = vmatpush.xpose.msra.mxu0 0.0
    %4681 = vmatpush.xpose.msra.mxu0 0.0
    %4682 = vmatpush.xpose.msra.mxu0 0.0
    %4683 = vmatpush.xpose.msra.mxu0 0.0
    %4684 = vmatpush.xpose.msra.mxu0 0.0
    %4685 = vmatpush.xpose.msra.mxu0 0.0
    %4686 = vmatpush.xpose.msra.mxu0 0.0
    %4687 = vmatpush.xpose.msra.mxu0 0.0
    %4688 = vmatpush.xpose.msra.mxu0 0.0
    %4689 = vmatpush.xpose.msra.mxu0 0.0
    %4690 = vmatpush.xpose.msra.mxu0 0.0
    %4691 = vmatpush.xpose.msra.mxu0 0.0
    %4692 = vmatpush.xpose.msra.mxu0 %v1084
    %4693 = vmatmul.f32.gmra.mxu0 %v443
    %v4694 = vpop.f32.mrf.mxu0
    %v4695 = vadd.f32 %v4675, %v4694
    %4696 = vdwg.mxu0
    %4697 = vmatpush.xpose.msra.mxu0 0.0
    %4698 = vmatpush.xpose.msra.mxu0 0.0
    %4699 = vmatpush.xpose.msra.mxu0 0.0
    %4700 = vmatpush.xpose.msra.mxu0 0.0
    %4701 = vmatpush.xpose.msra.mxu0 0.0
    %4702 = vmatpush.xpose.msra.mxu0 0.0
    %4703 = vmatpush.xpose.msra.mxu0 0.0
    %4704 = vmatpush.xpose.msra.mxu0 0.0
    %4705 = vmatpush.xpose.msra.mxu0 0.0
    %4706 = vmatpush.xpose.msra.mxu0 0.0
    %4707 = vmatpush.xpose.msra.mxu0 0.0
    %4708 = vmatpush.xpose.msra.mxu0 0.0
    %4709 = vmatpush.xpose.msra.mxu0 0.0
    %4710 = vmatpush.xpose.msra.mxu0 0.0
    %4711 = vmatpush.xpose.msra.mxu0 0.0
    %4712 = vmatpush.xpose.msra.mxu0 %v1085
    %4713 = vmatmul.f32.gmra.mxu0 %v444
    %v4714 = vpop.f32.mrf.mxu0
    %v4715 = vadd.f32 %v4695, %v4714
    %4716 = vdwg.mxu0
    %4717 = vmatpush.xpose.msra.mxu0 0.0
    %4718 = vmatpush.xpose.msra.mxu0 0.0
    %4719 = vmatpush.xpose.msra.mxu0 0.0
    %4720 = vmatpush.xpose.msra.mxu0 0.0
    %4721 = vmatpush.xpose.msra.mxu0 0.0
    %4722 = vmatpush.xpose.msra.mxu0 0.0
    %4723 = vmatpush.xpose.msra.mxu0 0.0
    %4724 = vmatpush.xpose.msra.mxu0 0.0
    %4725 = vmatpush.xpose.msra.mxu0 0.0
    %4726 = vmatpush.xpose.msra.mxu0 0.0
    %4727 = vmatpush.xpose.msra.mxu0 0.0
    %4728 = vmatpush.xpose.msra.mxu0 0.0
    %4729 = vmatpush.xpose.msra.mxu0 0.0
    %4730 = vmatpush.xpose.msra.mxu0 0.0
    %4731 = vmatpush.xpose.msra.mxu0 0.0
    %4732 = vmatpush.xpose.msra.mxu0 %v1086
    %4733 = vmatmul.f32.gmra.mxu0 %v445
    %v4734 = vpop.f32.mrf.mxu0
    %v4735 = vadd.f32 %v4715, %v4734
    %4736 = vdwg.mxu0
    %4737 = vmatpush.xpose.msra.mxu0 0.0
    %4738 = vmatpush.xpose.msra.mxu0 0.0
    %4739 = vmatpush.xpose.msra.mxu0 0.0
    %4740 = vmatpush.xpose.msra.mxu0 0.0
    %4741 = vmatpush.xpose.msra.mxu0 0.0
    %4742 = vmatpush.xpose.msra.mxu0 0.0
    %4743 = vmatpush.xpose.msra.mxu0 0.0
    %4744 = vmatpush.xpose.msra.mxu0 0.0
    %4745 = vmatpush.xpose.msra.mxu0 0.0
    %4746 = vmatpush.xpose.msra.mxu0 0.0
    %4747 = vmatpush.xpose.msra.mxu0 0.0
    %4748 = vmatpush.xpose.msra.mxu0 0.0
    %4749 = vmatpush.xpose.msra.mxu0 0.0
    %4750 = vmatpush.xpose.msra.mxu0 0.0
    %4751 = vmatpush.xpose.msra.mxu0 0.0
    %4752 = vmatpush.xpose.msra.mxu0 %v1087
    %4753 = vmatmul.f32.gmra.mxu0 %v446
    %v4754 = vpop.f32.mrf.mxu0
    %v4755 = vadd.f32 %v4735, %v4754
    %4756 = vdwg.mxu0
    %4757 = vmatpush.xpose.msra.mxu0 0.0
    %4758 = vmatpush.xpose.msra.mxu0 0.0
    %4759 = vmatpush.xpose.msra.mxu0 0.0
    %4760 = vmatpush.xpose.msra.mxu0 0.0
    %4761 = vmatpush.xpose.msra.mxu0 0.0
    %4762 = vmatpush.xpose.msra.mxu0 0.0
    %4763 = vmatpush.xpose.msra.mxu0 0.0
    %4764 = vmatpush.xpose.msra.mxu0 0.0
    %4765 = vmatpush.xpose.msra.mxu0 0.0
    %4766 = vmatpush.xpose.msra.mxu0 0.0
    %4767 = vmatpush.xpose.msra.mxu0 0.0
    %4768 = vmatpush.xpose.msra.mxu0 0.0
    %4769 = vmatpush.xpose.msra.mxu0 0.0
    %4770 = vmatpush.xpose.msra.mxu0 0.0
    %4771 = vmatpush.xpose.msra.mxu0 0.0
    %4772 = vmatpush.xpose.msra.mxu0 %v1088
    %4773 = vmatmul.f32.gmra.mxu0 %v447
    %v4774 = vpop.f32.mrf.mxu0
    %v4775 = vadd.f32 %v4755, %v4774
    %4776 = vdwg.mxu0
    %4777 = vmatpush.xpose.msra.mxu0 0.0
    %4778 = vmatpush.xpose.msra.mxu0 0.0
    %4779 = vmatpush.xpose.msra.mxu0 0.0
    %4780 = vmatpush.xpose.msra.mxu0 0.0
    %4781 = vmatpush.xpose.msra.mxu0 0.0
    %4782 = vmatpush.xpose.msra.mxu0 0.0
    %4783 = vmatpush.xpose.msra.mxu0 0.0
    %4784 = vmatpush.xpose.msra.mxu0 0.0
    %4785 = vmatpush.xpose.msra.mxu0 0.0
    %4786 = vmatpush.xpose.msra.mxu0 0.0
    %4787 = vmatpush.xpose.msra.mxu0 0.0
    %4788 = vmatpush.xpose.msra.mxu0 0.0
    %4789 = vmatpush.xpose.msra.mxu0 0.0
    %4790 = vmatpush.xpose.msra.mxu0 0.0
    %4791 = vmatpush.xpose.msra.mxu0 0.0
    %4792 = vmatpush.xpose.msra.mxu0 %v1089
    %4793 = vmatmul.f32.gmra.mxu0 %v448
    %v4794 = vpop.f32.mrf.mxu0
    %v4795 = vadd.f32 %v4775, %v4794
    %4796 = vdwg.mxu0
    %4797 = vmatpush.xpose.msra.mxu0 0.0
    %4798 = vmatpush.xpose.msra.mxu0 0.0
    %4799 = vmatpush.xpose.msra.mxu0 0.0
    %4800 = vmatpush.xpose.msra.mxu0 0.0
    %4801 = vmatpush.xpose.msra.mxu0 0.0
    %4802 = vmatpush.xpose.msra.mxu0 0.0
    %4803 = vmatpush.xpose.msra.mxu0 0.0
    %4804 = vmatpush.xpose.msra.mxu0 0.0
    %4805 = vmatpush.xpose.msra.mxu0 0.0
    %4806 = vmatpush.xpose.msra.mxu0 0.0
    %4807 = vmatpush.xpose.msra.mxu0 0.0
    %4808 = vmatpush.xpose.msra.mxu0 0.0
    %4809 = vmatpush.xpose.msra.mxu0 0.0
    %4810 = vmatpush.xpose.msra.mxu0 0.0
    %4811 = vmatpush.xpose.msra.mxu0 0.0
    %4812 = vmatpush.xpose.msra.mxu0 %v1090
    %4813 = vmatmul.f32.gmra.mxu0 %v449
    %v4814 = vpop.f32.mrf.mxu0
    %v4815 = vadd.f32 %v4795, %v4814
    %4816 = vdwg.mxu0
    %4817 = vmatpush.xpose.msra.mxu0 0.0
    %4818 = vmatpush.xpose.msra.mxu0 0.0
    %4819 = vmatpush.xpose.msra.mxu0 0.0
    %4820 = vmatpush.xpose.msra.mxu0 0.0
    %4821 = vmatpush.xpose.msra.mxu0 0.0
    %4822 = vmatpush.xpose.msra.mxu0 0.0
    %4823 = vmatpush.xpose.msra.mxu0 0.0
    %4824 = vmatpush.xpose.msra.mxu0 0.0
    %4825 = vmatpush.xpose.msra.mxu0 0.0
    %4826 = vmatpush.xpose.msra.mxu0 0.0
    %4827 = vmatpush.xpose.msra.mxu0 0.0
    %4828 = vmatpush.xpose.msra.mxu0 0.0
    %4829 = vmatpush.xpose.msra.mxu0 0.0
    %4830 = vmatpush.xpose.msra.mxu0 0.0
    %4831 = vmatpush.xpose.msra.mxu0 0.0
    %4832 = vmatpush.xpose.msra.mxu0 %v1093
    %4833 = vmatmul.f32.gmra.mxu0 %v452
    %v4834 = vpop.f32.mrf.mxu0
    %v4835 = vadd.f32 %v4815, %v4834
    %4836 = vdwg.mxu0
    %4837 = vmatpush.xpose.msra.mxu0 0.0
    %4838 = vmatpush.xpose.msra.mxu0 0.0
    %4839 = vmatpush.xpose.msra.mxu0 0.0
    %4840 = vmatpush.xpose.msra.mxu0 0.0
    %4841 = vmatpush.xpose.msra.mxu0 0.0
    %4842 = vmatpush.xpose.msra.mxu0 0.0
    %4843 = vmatpush.xpose.msra.mxu0 0.0
    %4844 = vmatpush.xpose.msra.mxu0 0.0
    %4845 = vmatpush.xpose.msra.mxu0 0.0
    %4846 = vmatpush.xpose.msra.mxu0 0.0
    %4847 = vmatpush.xpose.msra.mxu0 0.0
    %4848 = vmatpush.xpose.msra.mxu0 0.0
    %4849 = vmatpush.xpose.msra.mxu0 0.0
    %4850 = vmatpush.xpose.msra.mxu0 0.0
    %4851 = vmatpush.xpose.msra.mxu0 0.0
    %4852 = vmatpush.xpose.msra.mxu0 %v1094
    %4853 = vmatmul.f32.gmra.mxu0 %v453
    %v4854 = vpop.f32.mrf.mxu0
    %v4855 = vadd.f32 %v4835, %v4854
    %4856 = vdwg.mxu0
    %4857 = vmatpush.xpose.msra.mxu0 0.0
    %4858 = vmatpush.xpose.msra.mxu0 0.0
    %4859 = vmatpush.xpose.msra.mxu0 0.0
    %4860 = vmatpush.xpose.msra.mxu0 0.0
    %4861 = vmatpush.xpose.msra.mxu0 0.0
    %4862 = vmatpush.xpose.msra.mxu0 0.0
    %4863 = vmatpush.xpose.msra.mxu0 0.0
    %4864 = vmatpush.xpose.msra.mxu0 0.0
    %4865 = vmatpush.xpose.msra.mxu0 0.0
    %4866 = vmatpush.xpose.msra.mxu0 0.0
    %4867 = vmatpush.xpose.msra.mxu0 0.0
    %4868 = vmatpush.xpose.msra.mxu0 0.0
    %4869 = vmatpush.xpose.msra.mxu0 0.0
    %4870 = vmatpush.xpose.msra.mxu0 0.0
    %4871 = vmatpush.xpose.msra.mxu0 0.0
    %4872 = vmatpush.xpose.msra.mxu0 %v1095
    %4873 = vmatmul.f32.gmra.mxu0 %v454
    %v4874 = vpop.f32.mrf.mxu0
    %v4875 = vadd.f32 %v4855, %v4874
    %4876 = vdwg.mxu0
    %4877 = vmatpush.xpose.msra.mxu0 0.0
    %4878 = vmatpush.xpose.msra.mxu0 0.0
    %4879 = vmatpush.xpose.msra.mxu0 0.0
    %4880 = vmatpush.xpose.msra.mxu0 0.0
    %4881 = vmatpush.xpose.msra.mxu0 0.0
    %4882 = vmatpush.xpose.msra.mxu0 0.0
    %4883 = vmatpush.xpose.msra.mxu0 0.0
    %4884 = vmatpush.xpose.msra.mxu0 0.0
    %4885 = vmatpush.xpose.msra.mxu0 0.0
    %4886 = vmatpush.xpose.msra.mxu0 0.0
    %4887 = vmatpush.xpose.msra.mxu0 0.0
    %4888 = vmatpush.xpose.msra.mxu0 0.0
    %4889 = vmatpush.xpose.msra.mxu0 0.0
    %4890 = vmatpush.xpose.msra.mxu0 0.0
    %4891 = vmatpush.xpose.msra.mxu0 0.0
    %4892 = vmatpush.xpose.msra.mxu0 %v1096
    %4893 = vmatmul.f32.gmra.mxu0 %v455
    %v4894 = vpop.f32.mrf.mxu0
    %v4895 = vadd.f32 %v4875, %v4894
    %4896 = vdwg.mxu0
    %4897 = vmatpush.xpose.msra.mxu0 0.0
    %4898 = vmatpush.xpose.msra.mxu0 0.0
    %4899 = vmatpush.xpose.msra.mxu0 0.0
    %4900 = vmatpush.xpose.msra.mxu0 0.0
    %4901 = vmatpush.xpose.msra.mxu0 0.0
    %4902 = vmatpush.xpose.msra.mxu0 0.0
    %4903 = vmatpush.xpose.msra.mxu0 0.0
    %4904 = vmatpush.xpose.msra.mxu0 0.0
    %4905 = vmatpush.xpose.msra.mxu0 0.0
    %4906 = vmatpush.xpose.msra.mxu0 0.0
    %4907 = vmatpush.xpose.msra.mxu0 0.0
    %4908 = vmatpush.xpose.msra.mxu0 0.0
    %4909 = vmatpush.xpose.msra.mxu0 0.0
    %4910 = vmatpush.xpose.msra.mxu0 0.0
    %4911 = vmatpush.xpose.msra.mxu0 0.0
    %4912 = vmatpush.xpose.msra.mxu0 %v1097
    %4913 = vmatmul.f32.gmra.mxu0 %v456
    %v4914 = vpop.f32.mrf.mxu0
    %v4915 = vadd.f32 %v4895, %v4914
    %4916 = vdwg.mxu0
    %4917 = vmatpush.xpose.msra.mxu0 0.0
    %4918 = vmatpush.xpose.msra.mxu0 0.0
    %4919 = vmatpush.xpose.msra.mxu0 0.0
    %4920 = vmatpush.xpose.msra.mxu0 0.0
    %4921 = vmatpush.xpose.msra.mxu0 0.0
    %4922 = vmatpush.xpose.msra.mxu0 0.0
    %4923 = vmatpush.xpose.msra.mxu0 0.0
    %4924 = vmatpush.xpose.msra.mxu0 0.0
    %4925 = vmatpush.xpose.msra.mxu0 0.0
    %4926 = vmatpush.xpose.msra.mxu0 0.0
    %4927 = vmatpush.xpose.msra.mxu0 0.0
    %4928 = vmatpush.xpose.msra.mxu0 0.0
    %4929 = vmatpush.xpose.msra.mxu0 0.0
    %4930 = vmatpush.xpose.msra.mxu0 0.0
    %4931 = vmatpush.xpose.msra.mxu0 0.0
    %4932 = vmatpush.xpose.msra.mxu0 %v1098
    %4933 = vmatmul.f32.gmra.mxu0 %v457
    %v4934 = vpop.f32.mrf.mxu0
    %v4935 = vadd.f32 %v4915, %v4934
    %4936 = vdwg.mxu0
    %4937 = vmatpush.xpose.msra.mxu0 0.0
    %4938 = vmatpush.xpose.msra.mxu0 0.0
    %4939 = vmatpush.xpose.msra.mxu0 0.0
    %4940 = vmatpush.xpose.msra.mxu0 0.0
    %4941 = vmatpush.xpose.msra.mxu0 0.0
    %4942 = vmatpush.xpose.msra.mxu0 0.0
    %4943 = vmatpush.xpose.msra.mxu0 0.0
    %4944 = vmatpush.xpose.msra.mxu0 0.0
    %4945 = vmatpush.xpose.msra.mxu0 0.0
    %4946 = vmatpush.xpose.msra.mxu0 0.0
    %4947 = vmatpush.xpose.msra.mxu0 0.0
    %4948 = vmatpush.xpose.msra.mxu0 0.0
    %4949 = vmatpush.xpose.msra.mxu0 0.0
    %4950 = vmatpush.xpose.msra.mxu0 0.0
    %4951 = vmatpush.xpose.msra.mxu0 0.0
    %4952 = vmatpush.xpose.msra.mxu0 %v1099
    %4953 = vmatmul.f32.gmra.mxu0 %v458
    %v4954 = vpop.f32.mrf.mxu0
    %v4955 = vadd.f32 %v4935, %v4954
    %4956 = vdwg.mxu0
    %4957 = vmatpush.xpose.msra.mxu0 0.0
    %4958 = vmatpush.xpose.msra.mxu0 0.0
    %4959 = vmatpush.xpose.msra.mxu0 0.0
    %4960 = vmatpush.xpose.msra.mxu0 0.0
    %4961 = vmatpush.xpose.msra.mxu0 0.0
    %4962 = vmatpush.xpose.msra.mxu0 0.0
    %4963 = vmatpush.xpose.msra.mxu0 0.0
    %4964 = vmatpush.xpose.msra.mxu0 0.0
    %4965 = vmatpush.xpose.msra.mxu0 0.0
    %4966 = vmatpush.xpose.msra.mxu0 0.0
    %4967 = vmatpush.xpose.msra.mxu0 0.0
    %4968 = vmatpush.xpose.msra.mxu0 0.0
    %4969 = vmatpush.xpose.msra.mxu0 0.0
    %4970 = vmatpush.xpose.msra.mxu0 0.0
    %4971 = vmatpush.xpose.msra.mxu0 0.0
    %4972 = vmatpush.xpose.msra.mxu0 %v1100
    %4973 = vmatmul.f32.gmra.mxu0 %v459
    %v4974 = vpop.f32.mrf.mxu0
    %v4975 = vadd.f32 %v4955, %v4974
    %4976 = vdwg.mxu0
    %4977 = vmatpush.xpose.msra.mxu0 0.0
    %4978 = vmatpush.xpose.msra.mxu0 0.0
    %4979 = vmatpush.xpose.msra.mxu0 0.0
    %4980 = vmatpush.xpose.msra.mxu0 0.0
    %4981 = vmatpush.xpose.msra.mxu0 0.0
    %4982 = vmatpush.xpose.msra.mxu0 0.0
    %4983 = vmatpush.xpose.msra.mxu0 0.0
    %4984 = vmatpush.xpose.msra.mxu0 0.0
    %4985 = vmatpush.xpose.msra.mxu0 0.0
    %4986 = vmatpush.xpose.msra.mxu0 0.0
    %4987 = vmatpush.xpose.msra.mxu0 0.0
    %4988 = vmatpush.xpose.msra.mxu0 0.0
    %4989 = vmatpush.xpose.msra.mxu0 0.0
    %4990 = vmatpush.xpose.msra.mxu0 0.0
    %4991 = vmatpush.xpose.msra.mxu0 0.0
    %4992 = vmatpush.xpose.msra.mxu0 %v1103
    %4993 = vmatmul.f32.gmra.mxu0 %v462
    %v4994 = vpop.f32.mrf.mxu0
    %v4995 = vadd.f32 %v4975, %v4994
    %4996 = vdwg.mxu0
    %4997 = vmatpush.xpose.msra.mxu0 0.0
    %4998 = vmatpush.xpose.msra.mxu0 0.0
    %4999 = vmatpush.xpose.msra.mxu0 0.0
    %5000 = vmatpush.xpose.msra.mxu0 0.0
    %5001 = vmatpush.xpose.msra.mxu0 0.0
    %5002 = vmatpush.xpose.msra.mxu0 0.0
    %5003 = vmatpush.xpose.msra.mxu0 0.0
    %5004 = vmatpush.xpose.msra.mxu0 0.0
    %5005 = vmatpush.xpose.msra.mxu0 0.0
    %5006 = vmatpush.xpose.msra.mxu0 0.0
    %5007 = vmatpush.xpose.msra.mxu0 0.0
    %5008 = vmatpush.xpose.msra.mxu0 0.0
    %5009 = vmatpush.xpose.msra.mxu0 0.0
    %5010 = vmatpush.xpose.msra.mxu0 0.0
    %5011 = vmatpush.xpose.msra.mxu0 0.0
    %5012 = vmatpush.xpose.msra.mxu0 %v1104
    %5013 = vmatmul.f32.gmra.mxu0 %v463
    %v5014 = vpop.f32.mrf.mxu0
    %v5015 = vadd.f32 %v4995, %v5014
    %5016 = vdwg.mxu0
    %5017 = vmatpush.xpose.msra.mxu0 0.0
    %5018 = vmatpush.xpose.msra.mxu0 0.0
    %5019 = vmatpush.xpose.msra.mxu0 0.0
    %5020 = vmatpush.xpose.msra.mxu0 0.0
    %5021 = vmatpush.xpose.msra.mxu0 0.0
    %5022 = vmatpush.xpose.msra.mxu0 0.0
    %5023 = vmatpush.xpose.msra.mxu0 0.0
    %5024 = vmatpush.xpose.msra.mxu0 0.0
    %5025 = vmatpush.xpose.msra.mxu0 0.0
    %5026 = vmatpush.xpose.msra.mxu0 0.0
    %5027 = vmatpush.xpose.msra.mxu0 0.0
    %5028 = vmatpush.xpose.msra.mxu0 0.0
    %5029 = vmatpush.xpose.msra.mxu0 0.0
    %5030 = vmatpush.xpose.msra.mxu0 0.0
    %5031 = vmatpush.xpose.msra.mxu0 0.0
    %5032 = vmatpush.xpose.msra.mxu0 %v1105
    %5033 = vmatmul.f32.gmra.mxu0 %v464
    %v5034 = vpop.f32.mrf.mxu0
    %v5035 = vadd.f32 %v5015, %v5034
    %5036 = vdwg.mxu0
    %5037 = vmatpush.xpose.msra.mxu0 0.0
    %5038 = vmatpush.xpose.msra.mxu0 0.0
    %5039 = vmatpush.xpose.msra.mxu0 0.0
    %5040 = vmatpush.xpose.msra.mxu0 0.0
    %5041 = vmatpush.xpose.msra.mxu0 0.0
    %5042 = vmatpush.xpose.msra.mxu0 0.0
    %5043 = vmatpush.xpose.msra.mxu0 0.0
    %5044 = vmatpush.xpose.msra.mxu0 0.0
    %5045 = vmatpush.xpose.msra.mxu0 0.0
    %5046 = vmatpush.xpose.msra.mxu0 0.0
    %5047 = vmatpush.xpose.msra.mxu0 0.0
    %5048 = vmatpush.xpose.msra.mxu0 0.0
    %5049 = vmatpush.xpose.msra.mxu0 0.0
    %5050 = vmatpush.xpose.msra.mxu0 0.0
    %5051 = vmatpush.xpose.msra.mxu0 0.0
    %5052 = vmatpush.xpose.msra.mxu0 %v1106
    %5053 = vmatmul.f32.gmra.mxu0 %v465
    %v5054 = vpop.f32.mrf.mxu0
    %v5055 = vadd.f32 %v5035, %v5054
    %5056 = vdwg.mxu0
    %5057 = vmatpush.xpose.msra.mxu0 0.0
    %5058 = vmatpush.xpose.msra.mxu0 0.0
    %5059 = vmatpush.xpose.msra.mxu0 0.0
    %5060 = vmatpush.xpose.msra.mxu0 0.0
    %5061 = vmatpush.xpose.msra.mxu0 0.0
    %5062 = vmatpush.xpose.msra.mxu0 0.0
    %5063 = vmatpush.xpose.msra.mxu0 0.0
    %5064 = vmatpush.xpose.msra.mxu0 0.0
    %5065 = vmatpush.xpose.msra.mxu0 0.0
    %5066 = vmatpush.xpose.msra.mxu0 0.0
    %5067 = vmatpush.xpose.msra.mxu0 0.0
    %5068 = vmatpush.xpose.msra.mxu0 0.0
    %5069 = vmatpush.xpose.msra.mxu0 0.0
    %5070 = vmatpush.xpose.msra.mxu0 0.0
    %5071 = vmatpush.xpose.msra.mxu0 0.0
    %5072 = vmatpush.xpose.msra.mxu0 %v1107
    %5073 = vmatmul.f32.gmra.mxu0 %v466
    %v5074 = vpop.f32.mrf.mxu0
    %v5075 = vadd.f32 %v5055, %v5074
    %5076 = vdwg.mxu0
    %5077 = vmatpush.xpose.msra.mxu0 0.0
    %5078 = vmatpush.xpose.msra.mxu0 0.0
    %5079 = vmatpush.xpose.msra.mxu0 0.0
    %5080 = vmatpush.xpose.msra.mxu0 0.0
    %5081 = vmatpush.xpose.msra.mxu0 0.0
    %5082 = vmatpush.xpose.msra.mxu0 0.0
    %5083 = vmatpush.xpose.msra.mxu0 0.0
    %5084 = vmatpush.xpose.msra.mxu0 0.0
    %5085 = vmatpush.xpose.msra.mxu0 0.0
    %5086 = vmatpush.xpose.msra.mxu0 0.0
    %5087 = vmatpush.xpose.msra.mxu0 0.0
    %5088 = vmatpush.xpose.msra.mxu0 0.0
    %5089 = vmatpush.xpose.msra.mxu0 0.0
    %5090 = vmatpush.xpose.msra.mxu0 0.0
    %5091 = vmatpush.xpose.msra.mxu0 0.0
    %5092 = vmatpush.xpose.msra.mxu0 %v1108
    %5093 = vmatmul.f32.gmra.mxu0 %v467
    %v5094 = vpop.f32.mrf.mxu0
    %v5095 = vadd.f32 %v5075, %v5094
    %5096 = vdwg.mxu0
    %5097 = vmatpush.xpose.msra.mxu0 0.0
    %5098 = vmatpush.xpose.msra.mxu0 0.0
    %5099 = vmatpush.xpose.msra.mxu0 0.0
    %5100 = vmatpush.xpose.msra.mxu0 0.0
    %5101 = vmatpush.xpose.msra.mxu0 0.0
    %5102 = vmatpush.xpose.msra.mxu0 0.0
    %5103 = vmatpush.xpose.msra.mxu0 0.0
    %5104 = vmatpush.xpose.msra.mxu0 0.0
    %5105 = vmatpush.xpose.msra.mxu0 0.0
    %5106 = vmatpush.xpose.msra.mxu0 0.0
    %5107 = vmatpush.xpose.msra.mxu0 0.0
    %5108 = vmatpush.xpose.msra.mxu0 0.0
    %5109 = vmatpush.xpose.msra.mxu0 0.0
    %5110 = vmatpush.xpose.msra.mxu0 0.0
    %5111 = vmatpush.xpose.msra.mxu0 0.0
    %5112 = vmatpush.xpose.msra.mxu0 %v1109
    %5113 = vmatmul.f32.gmra.mxu0 %v468
    %v5114 = vpop.f32.mrf.mxu0
    %v5115 = vadd.f32 %v5095, %v5114
    %5116 = vdwg.mxu0
    %5117 = vmatpush.xpose.msra.mxu0 0.0
    %5118 = vmatpush.xpose.msra.mxu0 0.0
    %5119 = vmatpush.xpose.msra.mxu0 0.0
    %5120 = vmatpush.xpose.msra.mxu0 0.0
    %5121 = vmatpush.xpose.msra.mxu0 0.0
    %5122 = vmatpush.xpose.msra.mxu0 0.0
    %5123 = vmatpush.xpose.msra.mxu0 0.0
    %5124 = vmatpush.xpose.msra.mxu0 0.0
    %5125 = vmatpush.xpose.msra.mxu0 0.0
    %5126 = vmatpush.xpose.msra.mxu0 0.0
    %5127 = vmatpush.xpose.msra.mxu0 0.0
    %5128 = vmatpush.xpose.msra.mxu0 0.0
    %5129 = vmatpush.xpose.msra.mxu0 0.0
    %5130 = vmatpush.xpose.msra.mxu0 0.0
    %5131 = vmatpush.xpose.msra.mxu0 0.0
    %5132 = vmatpush.xpose.msra.mxu0 %v1110
    %5133 = vmatmul.f32.gmra.mxu0 %v469
    %v5134 = vpop.f32.mrf.mxu0
    %v5135 = vadd.f32 %v5115, %v5134
    %5136 = vdwg.mxu0
    %5137 = vmatpush.xpose.msra.mxu0 0.0
    %5138 = vmatpush.xpose.msra.mxu0 0.0
    %5139 = vmatpush.xpose.msra.mxu0 0.0
    %5140 = vmatpush.xpose.msra.mxu0 0.0
    %5141 = vmatpush.xpose.msra.mxu0 0.0
    %5142 = vmatpush.xpose.msra.mxu0 0.0
    %5143 = vmatpush.xpose.msra.mxu0 0.0
    %5144 = vmatpush.xpose.msra.mxu0 0.0
    %5145 = vmatpush.xpose.msra.mxu0 0.0
    %5146 = vmatpush.xpose.msra.mxu0 0.0
    %5147 = vmatpush.xpose.msra.mxu0 0.0
    %5148 = vmatpush.xpose.msra.mxu0 0.0
    %5149 = vmatpush.xpose.msra.mxu0 0.0
    %5150 = vmatpush.xpose.msra.mxu0 0.0
    %5151 = vmatpush.xpose.msra.mxu0 0.0
    %5152 = vmatpush.xpose.msra.mxu0 %v1113
    %5153 = vmatmul.f32.gmra.mxu0 %v472
    %v5154 = vpop.f32.mrf.mxu0
    %v5155 = vadd.f32 %v5135, %v5154
    %5156 = vdwg.mxu0
    %5157 = vmatpush.xpose.msra.mxu0 0.0
    %5158 = vmatpush.xpose.msra.mxu0 0.0
    %5159 = vmatpush.xpose.msra.mxu0 0.0
    %5160 = vmatpush.xpose.msra.mxu0 0.0
    %5161 = vmatpush.xpose.msra.mxu0 0.0
    %5162 = vmatpush.xpose.msra.mxu0 0.0
    %5163 = vmatpush.xpose.msra.mxu0 0.0
    %5164 = vmatpush.xpose.msra.mxu0 0.0
    %5165 = vmatpush.xpose.msra.mxu0 0.0
    %5166 = vmatpush.xpose.msra.mxu0 0.0
    %5167 = vmatpush.xpose.msra.mxu0 0.0
    %5168 = vmatpush.xpose.msra.mxu0 0.0
    %5169 = vmatpush.xpose.msra.mxu0 0.0
    %5170 = vmatpush.xpose.msra.mxu0 0.0
    %5171 = vmatpush.xpose.msra.mxu0 0.0
    %5172 = vmatpush.xpose.msra.mxu0 %v1114
    %5173 = vmatmul.f32.gmra.mxu0 %v473
    %v5174 = vpop.f32.mrf.mxu0
    %v5175 = vadd.f32 %v5155, %v5174
    %5176 = vdwg.mxu0
    %5177 = vmatpush.xpose.msra.mxu0 0.0
    %5178 = vmatpush.xpose.msra.mxu0 0.0
    %5179 = vmatpush.xpose.msra.mxu0 0.0
    %5180 = vmatpush.xpose.msra.mxu0 0.0
    %5181 = vmatpush.xpose.msra.mxu0 0.0
    %5182 = vmatpush.xpose.msra.mxu0 0.0
    %5183 = vmatpush.xpose.msra.mxu0 0.0
    %5184 = vmatpush.xpose.msra.mxu0 0.0
    %5185 = vmatpush.xpose.msra.mxu0 0.0
    %5186 = vmatpush.xpose.msra.mxu0 0.0
    %5187 = vmatpush.xpose.msra.mxu0 0.0
    %5188 = vmatpush.xpose.msra.mxu0 0.0
    %5189 = vmatpush.xpose.msra.mxu0 0.0
    %5190 = vmatpush.xpose.msra.mxu0 0.0
    %5191 = vmatpush.xpose.msra.mxu0 0.0
    %5192 = vmatpush.xpose.msra.mxu0 %v1115
    %5193 = vmatmul.f32.gmra.mxu0 %v474
    %v5194 = vpop.f32.mrf.mxu0
    %v5195 = vadd.f32 %v5175, %v5194
    %5196 = vdwg.mxu0
    %5197 = vmatpush.xpose.msra.mxu0 0.0
    %5198 = vmatpush.xpose.msra.mxu0 0.0
    %5199 = vmatpush.xpose.msra.mxu0 0.0
    %5200 = vmatpush.xpose.msra.mxu0 0.0
    %5201 = vmatpush.xpose.msra.mxu0 0.0
    %5202 = vmatpush.xpose.msra.mxu0 0.0
    %5203 = vmatpush.xpose.msra.mxu0 0.0
    %5204 = vmatpush.xpose.msra.mxu0 0.0
    %5205 = vmatpush.xpose.msra.mxu0 0.0
    %5206 = vmatpush.xpose.msra.mxu0 0.0
    %5207 = vmatpush.xpose.msra.mxu0 0.0
    %5208 = vmatpush.xpose.msra.mxu0 0.0
    %5209 = vmatpush.xpose.msra.mxu0 0.0
    %5210 = vmatpush.xpose.msra.mxu0 0.0
    %5211 = vmatpush.xpose.msra.mxu0 0.0
    %5212 = vmatpush.xpose.msra.mxu0 %v1116
    %5213 = vmatmul.f32.gmra.mxu0 %v475
    %v5214 = vpop.f32.mrf.mxu0
    %v5215 = vadd.f32 %v5195, %v5214
    %5216 = vdwg.mxu0
    %5217 = vmatpush.xpose.msra.mxu0 0.0
    %5218 = vmatpush.xpose.msra.mxu0 0.0
    %5219 = vmatpush.xpose.msra.mxu0 0.0
    %5220 = vmatpush.xpose.msra.mxu0 0.0
    %5221 = vmatpush.xpose.msra.mxu0 0.0
    %5222 = vmatpush.xpose.msra.mxu0 0.0
    %5223 = vmatpush.xpose.msra.mxu0 0.0
    %5224 = vmatpush.xpose.msra.mxu0 0.0
    %5225 = vmatpush.xpose.msra.mxu0 0.0
    %5226 = vmatpush.xpose.msra.mxu0 0.0
    %5227 = vmatpush.xpose.msra.mxu0 0.0
    %5228 = vmatpush.xpose.msra.mxu0 0.0
    %5229 = vmatpush.xpose.msra.mxu0 0.0
    %5230 = vmatpush.xpose.msra.mxu0 0.0
    %5231 = vmatpush.xpose.msra.mxu0 0.0
    %5232 = vmatpush.xpose.msra.mxu0 %v1117
    %5233 = vmatmul.f32.gmra.mxu0 %v476
    %v5234 = vpop.f32.mrf.mxu0
    %v5235 = vadd.f32 %v5215, %v5234
    %5236 = vdwg.mxu0
    %5237 = vmatpush.xpose.msra.mxu0 0.0
    %5238 = vmatpush.xpose.msra.mxu0 0.0
    %5239 = vmatpush.xpose.msra.mxu0 0.0
    %5240 = vmatpush.xpose.msra.mxu0 0.0
    %5241 = vmatpush.xpose.msra.mxu0 0.0
    %5242 = vmatpush.xpose.msra.mxu0 0.0
    %5243 = vmatpush.xpose.msra.mxu0 0.0
    %5244 = vmatpush.xpose.msra.mxu0 0.0
    %5245 = vmatpush.xpose.msra.mxu0 0.0
    %5246 = vmatpush.xpose.msra.mxu0 0.0
    %5247 = vmatpush.xpose.msra.mxu0 0.0
    %5248 = vmatpush.xpose.msra.mxu0 0.0
    %5249 = vmatpush.xpose.msra.mxu0 0.0
    %5250 = vmatpush.xpose.msra.mxu0 0.0
    %5251 = vmatpush.xpose.msra.mxu0 0.0
    %5252 = vmatpush.xpose.msra.mxu0 %v1118
    %5253 = vmatmul.f32.gmra.mxu0 %v477
    %v5254 = vpop.f32.mrf.mxu0
    %v5255 = vadd.f32 %v5235, %v5254
    %5256 = vdwg.mxu0
    %5257 = vmatpush.xpose.msra.mxu0 0.0
    %5258 = vmatpush.xpose.msra.mxu0 0.0
    %5259 = vmatpush.xpose.msra.mxu0 0.0
    %5260 = vmatpush.xpose.msra.mxu0 0.0
    %5261 = vmatpush.xpose.msra.mxu0 0.0
    %5262 = vmatpush.xpose.msra.mxu0 0.0
    %5263 = vmatpush.xpose.msra.mxu0 0.0
    %5264 = vmatpush.xpose.msra.mxu0 0.0
    %5265 = vmatpush.xpose.msra.mxu0 0.0
    %5266 = vmatpush.xpose.msra.mxu0 0.0
    %5267 = vmatpush.xpose.msra.mxu0 0.0
    %5268 = vmatpush.xpose.msra.mxu0 0.0
    %5269 = vmatpush.xpose.msra.mxu0 0.0
    %5270 = vmatpush.xpose.msra.mxu0 0.0
    %5271 = vmatpush.xpose.msra.mxu0 0.0
    %5272 = vmatpush.xpose.msra.mxu0 %v1119
    %5273 = vmatmul.f32.gmra.mxu0 %v478
    %v5274 = vpop.f32.mrf.mxu0
    %v5275 = vadd.f32 %v5255, %v5274
    %5276 = vdwg.mxu0
    %5277 = vmatpush.xpose.msra.mxu0 0.0
    %5278 = vmatpush.xpose.msra.mxu0 0.0
    %5279 = vmatpush.xpose.msra.mxu0 0.0
    %5280 = vmatpush.xpose.msra.mxu0 0.0
    %5281 = vmatpush.xpose.msra.mxu0 0.0
    %5282 = vmatpush.xpose.msra.mxu0 0.0
    %5283 = vmatpush.xpose.msra.mxu0 0.0
    %5284 = vmatpush.xpose.msra.mxu0 0.0
    %5285 = vmatpush.xpose.msra.mxu0 0.0
    %5286 = vmatpush.xpose.msra.mxu0 0.0
    %5287 = vmatpush.xpose.msra.mxu0 0.0
    %5288 = vmatpush.xpose.msra.mxu0 0.0
    %5289 = vmatpush.xpose.msra.mxu0 0.0
    %5290 = vmatpush.xpose.msra.mxu0 0.0
    %5291 = vmatpush.xpose.msra.mxu0 0.0
    %5292 = vmatpush.xpose.msra.mxu0 %v1120
    %5293 = vmatmul.f32.gmra.mxu0 %v479
    %v5294 = vpop.f32.mrf.mxu0
    %v5295 = vadd.f32 %v5275, %v5294
    %5296 = vdwg.mxu0
    %5297 = vmatpush.xpose.msra.mxu0 0.0
    %5298 = vmatpush.xpose.msra.mxu0 0.0
    %5299 = vmatpush.xpose.msra.mxu0 0.0
    %5300 = vmatpush.xpose.msra.mxu0 0.0
    %5301 = vmatpush.xpose.msra.mxu0 0.0
    %5302 = vmatpush.xpose.msra.mxu0 0.0
    %5303 = vmatpush.xpose.msra.mxu0 0.0
    %5304 = vmatpush.xpose.msra.mxu0 0.0
    %5305 = vmatpush.xpose.msra.mxu0 0.0
    %5306 = vmatpush.xpose.msra.mxu0 0.0
    %5307 = vmatpush.xpose.msra.mxu0 0.0
    %5308 = vmatpush.xpose.msra.mxu0 0.0
    %5309 = vmatpush.xpose.msra.mxu0 0.0
    %5310 = vmatpush.xpose.msra.mxu0 0.0
    %5311 = vmatpush.xpose.msra.mxu0 0.0
    %5312 = vmatpush.xpose.msra.mxu0 %v1123
    %5313 = vmatmul.f32.gmra.mxu0 %v482
    %v5314 = vpop.f32.mrf.mxu0
    %v5315 = vadd.f32 %v5295, %v5314
    %5316 = vdwg.mxu0
    %5317 = vmatpush.xpose.msra.mxu0 0.0
    %5318 = vmatpush.xpose.msra.mxu0 0.0
    %5319 = vmatpush.xpose.msra.mxu0 0.0
    %5320 = vmatpush.xpose.msra.mxu0 0.0
    %5321 = vmatpush.xpose.msra.mxu0 0.0
    %5322 = vmatpush.xpose.msra.mxu0 0.0
    %5323 = vmatpush.xpose.msra.mxu0 0.0
    %5324 = vmatpush.xpose.msra.mxu0 0.0
    %5325 = vmatpush.xpose.msra.mxu0 0.0
    %5326 = vmatpush.xpose.msra.mxu0 0.0
    %5327 = vmatpush.xpose.msra.mxu0 0.0
    %5328 = vmatpush.xpose.msra.mxu0 0.0
    %5329 = vmatpush.xpose.msra.mxu0 0.0
    %5330 = vmatpush.xpose.msra.mxu0 0.0
    %5331 = vmatpush.xpose.msra.mxu0 0.0
    %5332 = vmatpush.xpose.msra.mxu0 %v1124
    %5333 = vmatmul.f32.gmra.mxu0 %v483
    %v5334 = vpop.f32.mrf.mxu0
    %v5335 = vadd.f32 %v5315, %v5334
    %5336 = vdwg.mxu0
    %5337 = vmatpush.xpose.msra.mxu0 0.0
    %5338 = vmatpush.xpose.msra.mxu0 0.0
    %5339 = vmatpush.xpose.msra.mxu0 0.0
    %5340 = vmatpush.xpose.msra.mxu0 0.0
    %5341 = vmatpush.xpose.msra.mxu0 0.0
    %5342 = vmatpush.xpose.msra.mxu0 0.0
    %5343 = vmatpush.xpose.msra.mxu0 0.0
    %5344 = vmatpush.xpose.msra.mxu0 0.0
    %5345 = vmatpush.xpose.msra.mxu0 0.0
    %5346 = vmatpush.xpose.msra.mxu0 0.0
    %5347 = vmatpush.xpose.msra.mxu0 0.0
    %5348 = vmatpush.xpose.msra.mxu0 0.0
    %5349 = vmatpush.xpose.msra.mxu0 0.0
    %5350 = vmatpush.xpose.msra.mxu0 0.0
    %5351 = vmatpush.xpose.msra.mxu0 0.0
    %5352 = vmatpush.xpose.msra.mxu0 %v1125
    %5353 = vmatmul.f32.gmra.mxu0 %v484
    %v5354 = vpop.f32.mrf.mxu0
    %v5355 = vadd.f32 %v5335, %v5354
    %5356 = vdwg.mxu0
    %5357 = vmatpush.xpose.msra.mxu0 0.0
    %5358 = vmatpush.xpose.msra.mxu0 0.0
    %5359 = vmatpush.xpose.msra.mxu0 0.0
    %5360 = vmatpush.xpose.msra.mxu0 0.0
    %5361 = vmatpush.xpose.msra.mxu0 0.0
    %5362 = vmatpush.xpose.msra.mxu0 0.0
    %5363 = vmatpush.xpose.msra.mxu0 0.0
    %5364 = vmatpush.xpose.msra.mxu0 0.0
    %5365 = vmatpush.xpose.msra.mxu0 0.0
    %5366 = vmatpush.xpose.msra.mxu0 0.0
    %5367 = vmatpush.xpose.msra.mxu0 0.0
    %5368 = vmatpush.xpose.msra.mxu0 0.0
    %5369 = vmatpush.xpose.msra.mxu0 0.0
    %5370 = vmatpush.xpose.msra.mxu0 0.0
    %5371 = vmatpush.xpose.msra.mxu0 0.0
    %5372 = vmatpush.xpose.msra.mxu0 %v1126
    %5373 = vmatmul.f32.gmra.mxu0 %v485
    %v5374 = vpop.f32.mrf.mxu0
    %v5375 = vadd.f32 %v5355, %v5374
    %5376 = vdwg.mxu0
    %5377 = vmatpush.xpose.msra.mxu0 0.0
    %5378 = vmatpush.xpose.msra.mxu0 0.0
    %5379 = vmatpush.xpose.msra.mxu0 0.0
    %5380 = vmatpush.xpose.msra.mxu0 0.0
    %5381 = vmatpush.xpose.msra.mxu0 0.0
    %5382 = vmatpush.xpose.msra.mxu0 0.0
    %5383 = vmatpush.xpose.msra.mxu0 0.0
    %5384 = vmatpush.xpose.msra.mxu0 0.0
    %5385 = vmatpush.xpose.msra.mxu0 0.0
    %5386 = vmatpush.xpose.msra.mxu0 0.0
    %5387 = vmatpush.xpose.msra.mxu0 0.0
    %5388 = vmatpush.xpose.msra.mxu0 0.0
    %5389 = vmatpush.xpose.msra.mxu0 0.0
    %5390 = vmatpush.xpose.msra.mxu0 0.0
    %5391 = vmatpush.xpose.msra.mxu0 0.0
    %5392 = vmatpush.xpose.msra.mxu0 %v1127
    %5393 = vmatmul.f32.gmra.mxu0 %v486
    %v5394 = vpop.f32.mrf.mxu0
    %v5395 = vadd.f32 %v5375, %v5394
    %5396 = vdwg.mxu0
    %5397 = vmatpush.xpose.msra.mxu0 0.0
    %5398 = vmatpush.xpose.msra.mxu0 0.0
    %5399 = vmatpush.xpose.msra.mxu0 0.0
    %5400 = vmatpush.xpose.msra.mxu0 0.0
    %5401 = vmatpush.xpose.msra.mxu0 0.0
    %5402 = vmatpush.xpose.msra.mxu0 0.0
    %5403 = vmatpush.xpose.msra.mxu0 0.0
    %5404 = vmatpush.xpose.msra.mxu0 0.0
    %5405 = vmatpush.xpose.msra.mxu0 0.0
    %5406 = vmatpush.xpose.msra.mxu0 0.0
    %5407 = vmatpush.xpose.msra.mxu0 0.0
    %5408 = vmatpush.xpose.msra.mxu0 0.0
    %5409 = vmatpush.xpose.msra.mxu0 0.0
    %5410 = vmatpush.xpose.msra.mxu0 0.0
    %5411 = vmatpush.xpose.msra.mxu0 0.0
    %5412 = vmatpush.xpose.msra.mxu0 %v1128
    %5413 = vmatmul.f32.gmra.mxu0 %v487
    %v5414 = vpop.f32.mrf.mxu0
    %v5415 = vadd.f32 %v5395, %v5414
    %5416 = vdwg.mxu0
    %5417 = vmatpush.xpose.msra.mxu0 0.0
    %5418 = vmatpush.xpose.msra.mxu0 0.0
    %5419 = vmatpush.xpose.msra.mxu0 0.0
    %5420 = vmatpush.xpose.msra.mxu0 0.0
    %5421 = vmatpush.xpose.msra.mxu0 0.0
    %5422 = vmatpush.xpose.msra.mxu0 0.0
    %5423 = vmatpush.xpose.msra.mxu0 0.0
    %5424 = vmatpush.xpose.msra.mxu0 0.0
    %5425 = vmatpush.xpose.msra.mxu0 0.0
    %5426 = vmatpush.xpose.msra.mxu0 0.0
    %5427 = vmatpush.xpose.msra.mxu0 0.0
    %5428 = vmatpush.xpose.msra.mxu0 0.0
    %5429 = vmatpush.xpose.msra.mxu0 0.0
    %5430 = vmatpush.xpose.msra.mxu0 0.0
    %5431 = vmatpush.xpose.msra.mxu0 0.0
    %5432 = vmatpush.xpose.msra.mxu0 %v1129
    %5433 = vmatmul.f32.gmra.mxu0 %v488
    %v5434 = vpop.f32.mrf.mxu0
    %v5435 = vadd.f32 %v5415, %v5434
    %5436 = vdwg.mxu0
    %5437 = vmatpush.xpose.msra.mxu0 0.0
    %5438 = vmatpush.xpose.msra.mxu0 0.0
    %5439 = vmatpush.xpose.msra.mxu0 0.0
    %5440 = vmatpush.xpose.msra.mxu0 0.0
    %5441 = vmatpush.xpose.msra.mxu0 0.0
    %5442 = vmatpush.xpose.msra.mxu0 0.0
    %5443 = vmatpush.xpose.msra.mxu0 0.0
    %5444 = vmatpush.xpose.msra.mxu0 0.0
    %5445 = vmatpush.xpose.msra.mxu0 0.0
    %5446 = vmatpush.xpose.msra.mxu0 0.0
    %5447 = vmatpush.xpose.msra.mxu0 0.0
    %5448 = vmatpush.xpose.msra.mxu0 0.0
    %5449 = vmatpush.xpose.msra.mxu0 0.0
    %5450 = vmatpush.xpose.msra.mxu0 0.0
    %5451 = vmatpush.xpose.msra.mxu0 0.0
    %5452 = vmatpush.xpose.msra.mxu0 %v1130
    %5453 = vmatmul.f32.gmra.mxu0 %v489
    %v5454 = vpop.f32.mrf.mxu0
    %v5455 = vadd.f32 %v5435, %v5454
    %5456 = vdwg.mxu0
    %5457 = vmatpush.xpose.msra.mxu0 0.0
    %5458 = vmatpush.xpose.msra.mxu0 0.0
    %5459 = vmatpush.xpose.msra.mxu0 0.0
    %5460 = vmatpush.xpose.msra.mxu0 0.0
    %5461 = vmatpush.xpose.msra.mxu0 0.0
    %5462 = vmatpush.xpose.msra.mxu0 0.0
    %5463 = vmatpush.xpose.msra.mxu0 0.0
    %5464 = vmatpush.xpose.msra.mxu0 0.0
    %5465 = vmatpush.xpose.msra.mxu0 0.0
    %5466 = vmatpush.xpose.msra.mxu0 0.0
    %5467 = vmatpush.xpose.msra.mxu0 0.0
    %5468 = vmatpush.xpose.msra.mxu0 0.0
    %5469 = vmatpush.xpose.msra.mxu0 0.0
    %5470 = vmatpush.xpose.msra.mxu0 0.0
    %5471 = vmatpush.xpose.msra.mxu0 0.0
    %5472 = vmatpush.xpose.msra.mxu0 %v1133
    %5473 = vmatmul.f32.gmra.mxu0 %v492
    %v5474 = vpop.f32.mrf.mxu0
    %v5475 = vadd.f32 %v5455, %v5474
    %5476 = vdwg.mxu0
    %5477 = vmatpush.xpose.msra.mxu0 0.0
    %5478 = vmatpush.xpose.msra.mxu0 0.0
    %5479 = vmatpush.xpose.msra.mxu0 0.0
    %5480 = vmatpush.xpose.msra.mxu0 0.0
    %5481 = vmatpush.xpose.msra.mxu0 0.0
    %5482 = vmatpush.xpose.msra.mxu0 0.0
    %5483 = vmatpush.xpose.msra.mxu0 0.0
    %5484 = vmatpush.xpose.msra.mxu0 0.0
    %5485 = vmatpush.xpose.msra.mxu0 0.0
    %5486 = vmatpush.xpose.msra.mxu0 0.0
    %5487 = vmatpush.xpose.msra.mxu0 0.0
    %5488 = vmatpush.xpose.msra.mxu0 0.0
    %5489 = vmatpush.xpose.msra.mxu0 0.0
    %5490 = vmatpush.xpose.msra.mxu0 0.0
    %5491 = vmatpush.xpose.msra.mxu0 0.0
    %5492 = vmatpush.xpose.msra.mxu0 %v1134
    %5493 = vmatmul.f32.gmra.mxu0 %v493
    %v5494 = vpop.f32.mrf.mxu0
    %v5495 = vadd.f32 %v5475, %v5494
    %5496 = vdwg.mxu0
    %5497 = vmatpush.xpose.msra.mxu0 0.0
    %5498 = vmatpush.xpose.msra.mxu0 0.0
    %5499 = vmatpush.xpose.msra.mxu0 0.0
    %5500 = vmatpush.xpose.msra.mxu0 0.0
    %5501 = vmatpush.xpose.msra.mxu0 0.0
    %5502 = vmatpush.xpose.msra.mxu0 0.0
    %5503 = vmatpush.xpose.msra.mxu0 0.0
    %5504 = vmatpush.xpose.msra.mxu0 0.0
    %5505 = vmatpush.xpose.msra.mxu0 0.0
    %5506 = vmatpush.xpose.msra.mxu0 0.0
    %5507 = vmatpush.xpose.msra.mxu0 0.0
    %5508 = vmatpush.xpose.msra.mxu0 0.0
    %5509 = vmatpush.xpose.msra.mxu0 0.0
    %5510 = vmatpush.xpose.msra.mxu0 0.0
    %5511 = vmatpush.xpose.msra.mxu0 0.0
    %5512 = vmatpush.xpose.msra.mxu0 %v1135
    %5513 = vmatmul.f32.gmra.mxu0 %v494
    %v5514 = vpop.f32.mrf.mxu0
    %v5515 = vadd.f32 %v5495, %v5514
    %5516 = vdwg.mxu0
    %5517 = vmatpush.xpose.msra.mxu0 0.0
    %5518 = vmatpush.xpose.msra.mxu0 0.0
    %5519 = vmatpush.xpose.msra.mxu0 0.0
    %5520 = vmatpush.xpose.msra.mxu0 0.0
    %5521 = vmatpush.xpose.msra.mxu0 0.0
    %5522 = vmatpush.xpose.msra.mxu0 0.0
    %5523 = vmatpush.xpose.msra.mxu0 0.0
    %5524 = vmatpush.xpose.msra.mxu0 0.0
    %5525 = vmatpush.xpose.msra.mxu0 0.0
    %5526 = vmatpush.xpose.msra.mxu0 0.0
    %5527 = vmatpush.xpose.msra.mxu0 0.0
    %5528 = vmatpush.xpose.msra.mxu0 0.0
    %5529 = vmatpush.xpose.msra.mxu0 0.0
    %5530 = vmatpush.xpose.msra.mxu0 0.0
    %5531 = vmatpush.xpose.msra.mxu0 0.0
    %5532 = vmatpush.xpose.msra.mxu0 %v1136
    %5533 = vmatmul.f32.gmra.mxu0 %v495
    %v5534 = vpop.f32.mrf.mxu0
    %v5535 = vadd.f32 %v5515, %v5534
    %5536 = vdwg.mxu0
    %5537 = vmatpush.xpose.msra.mxu0 0.0
    %5538 = vmatpush.xpose.msra.mxu0 0.0
    %5539 = vmatpush.xpose.msra.mxu0 0.0
    %5540 = vmatpush.xpose.msra.mxu0 0.0
    %5541 = vmatpush.xpose.msra.mxu0 0.0
    %5542 = vmatpush.xpose.msra.mxu0 0.0
    %5543 = vmatpush.xpose.msra.mxu0 0.0
    %5544 = vmatpush.xpose.msra.mxu0 0.0
    %5545 = vmatpush.xpose.msra.mxu0 0.0
    %5546 = vmatpush.xpose.msra.mxu0 0.0
    %5547 = vmatpush.xpose.msra.mxu0 0.0
    %5548 = vmatpush.xpose.msra.mxu0 0.0
    %5549 = vmatpush.xpose.msra.mxu0 0.0
    %5550 = vmatpush.xpose.msra.mxu0 0.0
    %5551 = vmatpush.xpose.msra.mxu0 0.0
    %5552 = vmatpush.xpose.msra.mxu0 %v1137
    %5553 = vmatmul.f32.gmra.mxu0 %v496
    %v5554 = vpop.f32.mrf.mxu0
    %v5555 = vadd.f32 %v5535, %v5554
    %5556 = vdwg.mxu0
    %5557 = vmatpush.xpose.msra.mxu0 0.0
    %5558 = vmatpush.xpose.msra.mxu0 0.0
    %5559 = vmatpush.xpose.msra.mxu0 0.0
    %5560 = vmatpush.xpose.msra.mxu0 0.0
    %5561 = vmatpush.xpose.msra.mxu0 0.0
    %5562 = vmatpush.xpose.msra.mxu0 0.0
    %5563 = vmatpush.xpose.msra.mxu0 0.0
    %5564 = vmatpush.xpose.msra.mxu0 0.0
    %5565 = vmatpush.xpose.msra.mxu0 0.0
    %5566 = vmatpush.xpose.msra.mxu0 0.0
    %5567 = vmatpush.xpose.msra.mxu0 0.0
    %5568 = vmatpush.xpose.msra.mxu0 0.0
    %5569 = vmatpush.xpose.msra.mxu0 0.0
    %5570 = vmatpush.xpose.msra.mxu0 0.0
    %5571 = vmatpush.xpose.msra.mxu0 0.0
    %5572 = vmatpush.xpose.msra.mxu0 %v1138
    %5573 = vmatmul.f32.gmra.mxu0 %v497
    %v5574 = vpop.f32.mrf.mxu0
    %v5575 = vadd.f32 %v5555, %v5574
    %5576 = vdwg.mxu0
    %5577 = vmatpush.xpose.msra.mxu0 0.0
    %5578 = vmatpush.xpose.msra.mxu0 0.0
    %5579 = vmatpush.xpose.msra.mxu0 0.0
    %5580 = vmatpush.xpose.msra.mxu0 0.0
    %5581 = vmatpush.xpose.msra.mxu0 0.0
    %5582 = vmatpush.xpose.msra.mxu0 0.0
    %5583 = vmatpush.xpose.msra.mxu0 0.0
    %5584 = vmatpush.xpose.msra.mxu0 0.0
    %5585 = vmatpush.xpose.msra.mxu0 0.0
    %5586 = vmatpush.xpose.msra.mxu0 0.0
    %5587 = vmatpush.xpose.msra.mxu0 0.0
    %5588 = vmatpush.xpose.msra.mxu0 0.0
    %5589 = vmatpush.xpose.msra.mxu0 0.0
    %5590 = vmatpush.xpose.msra.mxu0 0.0
    %5591 = vmatpush.xpose.msra.mxu0 0.0
    %5592 = vmatpush.xpose.msra.mxu0 %v1139
    %5593 = vmatmul.f32.gmra.mxu0 %v498
    %v5594 = vpop.f32.mrf.mxu0
    %v5595 = vadd.f32 %v5575, %v5594
    %5596 = vdwg.mxu0
    %5597 = vmatpush.xpose.msra.mxu0 0.0
    %5598 = vmatpush.xpose.msra.mxu0 0.0
    %5599 = vmatpush.xpose.msra.mxu0 0.0
    %5600 = vmatpush.xpose.msra.mxu0 0.0
    %5601 = vmatpush.xpose.msra.mxu0 0.0
    %5602 = vmatpush.xpose.msra.mxu0 0.0
    %5603 = vmatpush.xpose.msra.mxu0 0.0
    %5604 = vmatpush.xpose.msra.mxu0 0.0
    %5605 = vmatpush.xpose.msra.mxu0 0.0
    %5606 = vmatpush.xpose.msra.mxu0 0.0
    %5607 = vmatpush.xpose.msra.mxu0 0.0
    %5608 = vmatpush.xpose.msra.mxu0 0.0
    %5609 = vmatpush.xpose.msra.mxu0 0.0
    %5610 = vmatpush.xpose.msra.mxu0 0.0
    %5611 = vmatpush.xpose.msra.mxu0 0.0
    %5612 = vmatpush.xpose.msra.mxu0 %v1140
    %5613 = vmatmul.f32.gmra.mxu0 %v499
    %v5614 = vpop.f32.mrf.mxu0
    %v5615 = vadd.f32 %v5595, %v5614
    %5616 = vdwg.mxu0
    %5617 = vmatpush.xpose.msra.mxu0 0.0
    %5618 = vmatpush.xpose.msra.mxu0 0.0
    %5619 = vmatpush.xpose.msra.mxu0 0.0
    %5620 = vmatpush.xpose.msra.mxu0 0.0
    %5621 = vmatpush.xpose.msra.mxu0 0.0
    %5622 = vmatpush.xpose.msra.mxu0 0.0
    %5623 = vmatpush.xpose.msra.mxu0 0.0
    %5624 = vmatpush.xpose.msra.mxu0 0.0
    %5625 = vmatpush.xpose.msra.mxu0 0.0
    %5626 = vmatpush.xpose.msra.mxu0 0.0
    %5627 = vmatpush.xpose.msra.mxu0 0.0
    %5628 = vmatpush.xpose.msra.mxu0 0.0
    %5629 = vmatpush.xpose.msra.mxu0 0.0
    %5630 = vmatpush.xpose.msra.mxu0 0.0
    %5631 = vmatpush.xpose.msra.mxu0 0.0
    %5632 = vmatpush.xpose.msra.mxu0 %v1143
    %5633 = vmatmul.f32.gmra.mxu0 %v502
    %v5634 = vpop.f32.mrf.mxu0
    %v5635 = vadd.f32 %v5615, %v5634
    %5636 = vdwg.mxu0
    %5637 = vmatpush.xpose.msra.mxu0 0.0
    %5638 = vmatpush.xpose.msra.mxu0 0.0
    %5639 = vmatpush.xpose.msra.mxu0 0.0
    %5640 = vmatpush.xpose.msra.mxu0 0.0
    %5641 = vmatpush.xpose.msra.mxu0 0.0
    %5642 = vmatpush.xpose.msra.mxu0 0.0
    %5643 = vmatpush.xpose.msra.mxu0 0.0
    %5644 = vmatpush.xpose.msra.mxu0 0.0
    %5645 = vmatpush.xpose.msra.mxu0 0.0
    %5646 = vmatpush.xpose.msra.mxu0 0.0
    %5647 = vmatpush.xpose.msra.mxu0 0.0
    %5648 = vmatpush.xpose.msra.mxu0 0.0
    %5649 = vmatpush.xpose.msra.mxu0 0.0
    %5650 = vmatpush.xpose.msra.mxu0 0.0
    %5651 = vmatpush.xpose.msra.mxu0 0.0
    %5652 = vmatpush.xpose.msra.mxu0 %v1144
    %5653 = vmatmul.f32.gmra.mxu0 %v503
    %v5654 = vpop.f32.mrf.mxu0
    %v5655 = vadd.f32 %v5635, %v5654
    %5656 = vdwg.mxu0
    %5657 = vmatpush.xpose.msra.mxu0 0.0
    %5658 = vmatpush.xpose.msra.mxu0 0.0
    %5659 = vmatpush.xpose.msra.mxu0 0.0
    %5660 = vmatpush.xpose.msra.mxu0 0.0
    %5661 = vmatpush.xpose.msra.mxu0 0.0
    %5662 = vmatpush.xpose.msra.mxu0 0.0
    %5663 = vmatpush.xpose.msra.mxu0 0.0
    %5664 = vmatpush.xpose.msra.mxu0 0.0
    %5665 = vmatpush.xpose.msra.mxu0 0.0
    %5666 = vmatpush.xpose.msra.mxu0 0.0
    %5667 = vmatpush.xpose.msra.mxu0 0.0
    %5668 = vmatpush.xpose.msra.mxu0 0.0
    %5669 = vmatpush.xpose.msra.mxu0 0.0
    %5670 = vmatpush.xpose.msra.mxu0 0.0
    %5671 = vmatpush.xpose.msra.mxu0 0.0
    %5672 = vmatpush.xpose.msra.mxu0 %v1145
    %5673 = vmatmul.f32.gmra.mxu0 %v504
    %v5674 = vpop.f32.mrf.mxu0
    %v5675 = vadd.f32 %v5655, %v5674
    %5676 = vdwg.mxu0
    %5677 = vmatpush.xpose.msra.mxu0 0.0
    %5678 = vmatpush.xpose.msra.mxu0 0.0
    %5679 = vmatpush.xpose.msra.mxu0 0.0
    %5680 = vmatpush.xpose.msra.mxu0 0.0
    %5681 = vmatpush.xpose.msra.mxu0 0.0
    %5682 = vmatpush.xpose.msra.mxu0 0.0
    %5683 = vmatpush.xpose.msra.mxu0 0.0
    %5684 = vmatpush.xpose.msra.mxu0 0.0
    %5685 = vmatpush.xpose.msra.mxu0 0.0
    %5686 = vmatpush.xpose.msra.mxu0 0.0
    %5687 = vmatpush.xpose.msra.mxu0 0.0
    %5688 = vmatpush.xpose.msra.mxu0 0.0
    %5689 = vmatpush.xpose.msra.mxu0 0.0
    %5690 = vmatpush.xpose.msra.mxu0 0.0
    %5691 = vmatpush.xpose.msra.mxu0 0.0
    %5692 = vmatpush.xpose.msra.mxu0 %v1146
    %5693 = vmatmul.f32.gmra.mxu0 %v505
    %v5694 = vpop.f32.mrf.mxu0
    %v5695 = vadd.f32 %v5675, %v5694
    %5696 = vdwg.mxu0
    %5697 = vmatpush.xpose.msra.mxu0 0.0
    %5698 = vmatpush.xpose.msra.mxu0 0.0
    %5699 = vmatpush.xpose.msra.mxu0 0.0
    %5700 = vmatpush.xpose.msra.mxu0 0.0
    %5701 = vmatpush.xpose.msra.mxu0 0.0
    %5702 = vmatpush.xpose.msra.mxu0 0.0
    %5703 = vmatpush.xpose.msra.mxu0 0.0
    %5704 = vmatpush.xpose.msra.mxu0 0.0
    %5705 = vmatpush.xpose.msra.mxu0 0.0
    %5706 = vmatpush.xpose.msra.mxu0 0.0
    %5707 = vmatpush.xpose.msra.mxu0 0.0
    %5708 = vmatpush.xpose.msra.mxu0 0.0
    %5709 = vmatpush.xpose.msra.mxu0 0.0
    %5710 = vmatpush.xpose.msra.mxu0 0.0
    %5711 = vmatpush.xpose.msra.mxu0 0.0
    %5712 = vmatpush.xpose.msra.mxu0 %v1147
    %5713 = vmatmul.f32.gmra.mxu0 %v506
    %v5714 = vpop.f32.mrf.mxu0
    %v5715 = vadd.f32 %v5695, %v5714
    %5716 = vdwg.mxu0
    %5717 = vmatpush.xpose.msra.mxu0 0.0
    %5718 = vmatpush.xpose.msra.mxu0 0.0
    %5719 = vmatpush.xpose.msra.mxu0 0.0
    %5720 = vmatpush.xpose.msra.mxu0 0.0
    %5721 = vmatpush.xpose.msra.mxu0 0.0
    %5722 = vmatpush.xpose.msra.mxu0 0.0
    %5723 = vmatpush.xpose.msra.mxu0 0.0
    %5724 = vmatpush.xpose.msra.mxu0 0.0
    %5725 = vmatpush.xpose.msra.mxu0 0.0
    %5726 = vmatpush.xpose.msra.mxu0 0.0
    %5727 = vmatpush.xpose.msra.mxu0 0.0
    %5728 = vmatpush.xpose.msra.mxu0 0.0
    %5729 = vmatpush.xpose.msra.mxu0 0.0
    %5730 = vmatpush.xpose.msra.mxu0 0.0
    %5731 = vmatpush.xpose.msra.mxu0 0.0
    %5732 = vmatpush.xpose.msra.mxu0 %v1148
    %5733 = vmatmul.f32.gmra.mxu0 %v507
    %v5734 = vpop.f32.mrf.mxu0
    %v5735 = vadd.f32 %v5715, %v5734
    %5736 = vdwg.mxu0
    %5737 = vmatpush.xpose.msra.mxu0 0.0
    %5738 = vmatpush.xpose.msra.mxu0 0.0
    %5739 = vmatpush.xpose.msra.mxu0 0.0
    %5740 = vmatpush.xpose.msra.mxu0 0.0
    %5741 = vmatpush.xpose.msra.mxu0 0.0
    %5742 = vmatpush.xpose.msra.mxu0 0.0
    %5743 = vmatpush.xpose.msra.mxu0 0.0
    %5744 = vmatpush.xpose.msra.mxu0 0.0
    %5745 = vmatpush.xpose.msra.mxu0 0.0
    %5746 = vmatpush.xpose.msra.mxu0 0.0
    %5747 = vmatpush.xpose.msra.mxu0 0.0
    %5748 = vmatpush.xpose.msra.mxu0 0.0
    %5749 = vmatpush.xpose.msra.mxu0 0.0
    %5750 = vmatpush.xpose.msra.mxu0 0.0
    %5751 = vmatpush.xpose.msra.mxu0 0.0
    %5752 = vmatpush.xpose.msra.mxu0 %v1149
    %5753 = vmatmul.f32.gmra.mxu0 %v508
    %v5754 = vpop.f32.mrf.mxu0
    %v5755 = vadd.f32 %v5735, %v5754
    %5756 = vdwg.mxu0
    %5757 = vmatpush.xpose.msra.mxu0 0.0
    %5758 = vmatpush.xpose.msra.mxu0 0.0
    %5759 = vmatpush.xpose.msra.mxu0 0.0
    %5760 = vmatpush.xpose.msra.mxu0 0.0
    %5761 = vmatpush.xpose.msra.mxu0 0.0
    %5762 = vmatpush.xpose.msra.mxu0 0.0
    %5763 = vmatpush.xpose.msra.mxu0 0.0
    %5764 = vmatpush.xpose.msra.mxu0 0.0
    %5765 = vmatpush.xpose.msra.mxu0 0.0
    %5766 = vmatpush.xpose.msra.mxu0 0.0
    %5767 = vmatpush.xpose.msra.mxu0 0.0
    %5768 = vmatpush.xpose.msra.mxu0 0.0
    %5769 = vmatpush.xpose.msra.mxu0 0.0
    %5770 = vmatpush.xpose.msra.mxu0 0.0
    %5771 = vmatpush.xpose.msra.mxu0 0.0
    %5772 = vmatpush.xpose.msra.mxu0 %v1150
    %5773 = vmatmul.f32.gmra.mxu0 %v509
    %v5774 = vpop.f32.mrf.mxu0
    %v5775 = vadd.f32 %v5755, %v5774
    %5776 = vdwg.mxu0
    %5777 = vmatpush.xpose.msra.mxu0 0.0
    %5778 = vmatpush.xpose.msra.mxu0 0.0
    %5779 = vmatpush.xpose.msra.mxu0 0.0
    %5780 = vmatpush.xpose.msra.mxu0 0.0
    %5781 = vmatpush.xpose.msra.mxu0 0.0
    %5782 = vmatpush.xpose.msra.mxu0 0.0
    %5783 = vmatpush.xpose.msra.mxu0 0.0
    %5784 = vmatpush.xpose.msra.mxu0 0.0
    %5785 = vmatpush.xpose.msra.mxu0 0.0
    %5786 = vmatpush.xpose.msra.mxu0 0.0
    %5787 = vmatpush.xpose.msra.mxu0 0.0
    %5788 = vmatpush.xpose.msra.mxu0 0.0
    %5789 = vmatpush.xpose.msra.mxu0 0.0
    %5790 = vmatpush.xpose.msra.mxu0 0.0
    %5791 = vmatpush.xpose.msra.mxu0 0.0
    %5792 = vmatpush.xpose.msra.mxu0 %v1153
    %5793 = vmatmul.f32.gmra.mxu0 %v512
    %v5794 = vpop.f32.mrf.mxu0
    %v5795 = vadd.f32 %v5775, %v5794
    %5796 = vdwg.mxu0
    %5797 = vmatpush.xpose.msra.mxu0 0.0
    %5798 = vmatpush.xpose.msra.mxu0 0.0
    %5799 = vmatpush.xpose.msra.mxu0 0.0
    %5800 = vmatpush.xpose.msra.mxu0 0.0
    %5801 = vmatpush.xpose.msra.mxu0 0.0
    %5802 = vmatpush.xpose.msra.mxu0 0.0
    %5803 = vmatpush.xpose.msra.mxu0 0.0
    %5804 = vmatpush.xpose.msra.mxu0 0.0
    %5805 = vmatpush.xpose.msra.mxu0 0.0
    %5806 = vmatpush.xpose.msra.mxu0 0.0
    %5807 = vmatpush.xpose.msra.mxu0 0.0
    %5808 = vmatpush.xpose.msra.mxu0 0.0
    %5809 = vmatpush.xpose.msra.mxu0 0.0
    %5810 = vmatpush.xpose.msra.mxu0 0.0
    %5811 = vmatpush.xpose.msra.mxu0 0.0
    %5812 = vmatpush.xpose.msra.mxu0 %v1154
    %5813 = vmatmul.f32.gmra.mxu0 %v513
    %v5814 = vpop.f32.mrf.mxu0
    %v5815 = vadd.f32 %v5795, %v5814
    %5816 = vdwg.mxu0
    %5817 = vmatpush.xpose.msra.mxu0 0.0
    %5818 = vmatpush.xpose.msra.mxu0 0.0
    %5819 = vmatpush.xpose.msra.mxu0 0.0
    %5820 = vmatpush.xpose.msra.mxu0 0.0
    %5821 = vmatpush.xpose.msra.mxu0 0.0
    %5822 = vmatpush.xpose.msra.mxu0 0.0
    %5823 = vmatpush.xpose.msra.mxu0 0.0
    %5824 = vmatpush.xpose.msra.mxu0 0.0
    %5825 = vmatpush.xpose.msra.mxu0 0.0
    %5826 = vmatpush.xpose.msra.mxu0 0.0
    %5827 = vmatpush.xpose.msra.mxu0 0.0
    %5828 = vmatpush.xpose.msra.mxu0 0.0
    %5829 = vmatpush.xpose.msra.mxu0 0.0
    %5830 = vmatpush.xpose.msra.mxu0 0.0
    %5831 = vmatpush.xpose.msra.mxu0 0.0
    %5832 = vmatpush.xpose.msra.mxu0 %v1155
    %5833 = vmatmul.f32.gmra.mxu0 %v514
    %v5834 = vpop.f32.mrf.mxu0
    %v5835 = vadd.f32 %v5815, %v5834
    %5836 = vdwg.mxu0
    %5837 = vmatpush.xpose.msra.mxu0 0.0
    %5838 = vmatpush.xpose.msra.mxu0 0.0
    %5839 = vmatpush.xpose.msra.mxu0 0.0
    %5840 = vmatpush.xpose.msra.mxu0 0.0
    %5841 = vmatpush.xpose.msra.mxu0 0.0
    %5842 = vmatpush.xpose.msra.mxu0 0.0
    %5843 = vmatpush.xpose.msra.mxu0 0.0
    %5844 = vmatpush.xpose.msra.mxu0 0.0
    %5845 = vmatpush.xpose.msra.mxu0 0.0
    %5846 = vmatpush.xpose.msra.mxu0 0.0
    %5847 = vmatpush.xpose.msra.mxu0 0.0
    %5848 = vmatpush.xpose.msra.mxu0 0.0
    %5849 = vmatpush.xpose.msra.mxu0 0.0
    %5850 = vmatpush.xpose.msra.mxu0 0.0
    %5851 = vmatpush.xpose.msra.mxu0 0.0
    %5852 = vmatpush.xpose.msra.mxu0 %v1156
    %5853 = vmatmul.f32.gmra.mxu0 %v515
    %v5854 = vpop.f32.mrf.mxu0
    %v5855 = vadd.f32 %v5835, %v5854
    %5856 = vdwg.mxu0
    %5857 = vmatpush.xpose.msra.mxu0 0.0
    %5858 = vmatpush.xpose.msra.mxu0 0.0
    %5859 = vmatpush.xpose.msra.mxu0 0.0
    %5860 = vmatpush.xpose.msra.mxu0 0.0
    %5861 = vmatpush.xpose.msra.mxu0 0.0
    %5862 = vmatpush.xpose.msra.mxu0 0.0
    %5863 = vmatpush.xpose.msra.mxu0 0.0
    %5864 = vmatpush.xpose.msra.mxu0 0.0
    %5865 = vmatpush.xpose.msra.mxu0 0.0
    %5866 = vmatpush.xpose.msra.mxu0 0.0
    %5867 = vmatpush.xpose.msra.mxu0 0.0
    %5868 = vmatpush.xpose.msra.mxu0 0.0
    %5869 = vmatpush.xpose.msra.mxu0 0.0
    %5870 = vmatpush.xpose.msra.mxu0 0.0
    %5871 = vmatpush.xpose.msra.mxu0 0.0
    %5872 = vmatpush.xpose.msra.mxu0 %v1157
    %5873 = vmatmul.f32.gmra.mxu0 %v516
    %v5874 = vpop.f32.mrf.mxu0
    %v5875 = vadd.f32 %v5855, %v5874
    %5876 = vdwg.mxu0
    %5877 = vmatpush.xpose.msra.mxu0 0.0
    %5878 = vmatpush.xpose.msra.mxu0 0.0
    %5879 = vmatpush.xpose.msra.mxu0 0.0
    %5880 = vmatpush.xpose.msra.mxu0 0.0
    %5881 = vmatpush.xpose.msra.mxu0 0.0
    %5882 = vmatpush.xpose.msra.mxu0 0.0
    %5883 = vmatpush.xpose.msra.mxu0 0.0
    %5884 = vmatpush.xpose.msra.mxu0 0.0
    %5885 = vmatpush.xpose.msra.mxu0 0.0
    %5886 = vmatpush.xpose.msra.mxu0 0.0
    %5887 = vmatpush.xpose.msra.mxu0 0.0
    %5888 = vmatpush.xpose.msra.mxu0 0.0
    %5889 = vmatpush.xpose.msra.mxu0 0.0
    %5890 = vmatpush.xpose.msra.mxu0 0.0
    %5891 = vmatpush.xpose.msra.mxu0 0.0
    %5892 = vmatpush.xpose.msra.mxu0 %v1158
    %5893 = vmatmul.f32.gmra.mxu0 %v517
    %v5894 = vpop.f32.mrf.mxu0
    %v5895 = vadd.f32 %v5875, %v5894
    %5896 = vdwg.mxu0
    %5897 = vmatpush.xpose.msra.mxu0 0.0
    %5898 = vmatpush.xpose.msra.mxu0 0.0
    %5899 = vmatpush.xpose.msra.mxu0 0.0
    %5900 = vmatpush.xpose.msra.mxu0 0.0
    %5901 = vmatpush.xpose.msra.mxu0 0.0
    %5902 = vmatpush.xpose.msra.mxu0 0.0
    %5903 = vmatpush.xpose.msra.mxu0 0.0
    %5904 = vmatpush.xpose.msra.mxu0 0.0
    %5905 = vmatpush.xpose.msra.mxu0 0.0
    %5906 = vmatpush.xpose.msra.mxu0 0.0
    %5907 = vmatpush.xpose.msra.mxu0 0.0
    %5908 = vmatpush.xpose.msra.mxu0 0.0
    %5909 = vmatpush.xpose.msra.mxu0 0.0
    %5910 = vmatpush.xpose.msra.mxu0 0.0
    %5911 = vmatpush.xpose.msra.mxu0 0.0
    %5912 = vmatpush.xpose.msra.mxu0 %v1159
    %5913 = vmatmul.f32.gmra.mxu0 %v518
    %v5914 = vpop.f32.mrf.mxu0
    %v5915 = vadd.f32 %v5895, %v5914
    %5916 = vdwg.mxu0
    %5917 = vmatpush.xpose.msra.mxu0 0.0
    %5918 = vmatpush.xpose.msra.mxu0 0.0
    %5919 = vmatpush.xpose.msra.mxu0 0.0
    %5920 = vmatpush.xpose.msra.mxu0 0.0
    %5921 = vmatpush.xpose.msra.mxu0 0.0
    %5922 = vmatpush.xpose.msra.mxu0 0.0
    %5923 = vmatpush.xpose.msra.mxu0 0.0
    %5924 = vmatpush.xpose.msra.mxu0 0.0
    %5925 = vmatpush.xpose.msra.mxu0 0.0
    %5926 = vmatpush.xpose.msra.mxu0 0.0
    %5927 = vmatpush.xpose.msra.mxu0 0.0
    %5928 = vmatpush.xpose.msra.mxu0 0.0
    %5929 = vmatpush.xpose.msra.mxu0 0.0
    %5930 = vmatpush.xpose.msra.mxu0 0.0
    %5931 = vmatpush.xpose.msra.mxu0 0.0
    %5932 = vmatpush.xpose.msra.mxu0 %v1160
    %5933 = vmatmul.f32.gmra.mxu0 %v519
    %v5934 = vpop.f32.mrf.mxu0
    %v5935 = vadd.f32 %v5915, %v5934
    %5936 = vdwg.mxu0
    %5937 = vmatpush.xpose.msra.mxu0 0.0
    %5938 = vmatpush.xpose.msra.mxu0 0.0
    %5939 = vmatpush.xpose.msra.mxu0 0.0
    %5940 = vmatpush.xpose.msra.mxu0 0.0
    %5941 = vmatpush.xpose.msra.mxu0 0.0
    %5942 = vmatpush.xpose.msra.mxu0 0.0
    %5943 = vmatpush.xpose.msra.mxu0 0.0
    %5944 = vmatpush.xpose.msra.mxu0 0.0
    %5945 = vmatpush.xpose.msra.mxu0 0.0
    %5946 = vmatpush.xpose.msra.mxu0 0.0
    %5947 = vmatpush.xpose.msra.mxu0 0.0
    %5948 = vmatpush.xpose.msra.mxu0 0.0
    %5949 = vmatpush.xpose.msra.mxu0 0.0
    %5950 = vmatpush.xpose.msra.mxu0 0.0
    %5951 = vmatpush.xpose.msra.mxu0 0.0
    %5952 = vmatpush.xpose.msra.mxu0 %v1163
    %5953 = vmatmul.f32.gmra.mxu0 %v522
    %v5954 = vpop.f32.mrf.mxu0
    %v5955 = vadd.f32 %v5935, %v5954
    %5956 = vdwg.mxu0
    %5957 = vmatpush.xpose.msra.mxu0 0.0
    %5958 = vmatpush.xpose.msra.mxu0 0.0
    %5959 = vmatpush.xpose.msra.mxu0 0.0
    %5960 = vmatpush.xpose.msra.mxu0 0.0
    %5961 = vmatpush.xpose.msra.mxu0 0.0
    %5962 = vmatpush.xpose.msra.mxu0 0.0
    %5963 = vmatpush.xpose.msra.mxu0 0.0
    %5964 = vmatpush.xpose.msra.mxu0 0.0
    %5965 = vmatpush.xpose.msra.mxu0 0.0
    %5966 = vmatpush.xpose.msra.mxu0 0.0
    %5967 = vmatpush.xpose.msra.mxu0 0.0
    %5968 = vmatpush.xpose.msra.mxu0 0.0
    %5969 = vmatpush.xpose.msra.mxu0 0.0
    %5970 = vmatpush.xpose.msra.mxu0 0.0
    %5971 = vmatpush.xpose.msra.mxu0 0.0
    %5972 = vmatpush.xpose.msra.mxu0 %v1164
    %5973 = vmatmul.f32.gmra.mxu0 %v523
    %v5974 = vpop.f32.mrf.mxu0
    %v5975 = vadd.f32 %v5955, %v5974
    %5976 = vdwg.mxu0
    %5977 = vmatpush.xpose.msra.mxu0 0.0
    %5978 = vmatpush.xpose.msra.mxu0 0.0
    %5979 = vmatpush.xpose.msra.mxu0 0.0
    %5980 = vmatpush.xpose.msra.mxu0 0.0
    %5981 = vmatpush.xpose.msra.mxu0 0.0
    %5982 = vmatpush.xpose.msra.mxu0 0.0
    %5983 = vmatpush.xpose.msra.mxu0 0.0
    %5984 = vmatpush.xpose.msra.mxu0 0.0
    %5985 = vmatpush.xpose.msra.mxu0 0.0
    %5986 = vmatpush.xpose.msra.mxu0 0.0
    %5987 = vmatpush.xpose.msra.mxu0 0.0
    %5988 = vmatpush.xpose.msra.mxu0 0.0
    %5989 = vmatpush.xpose.msra.mxu0 0.0
    %5990 = vmatpush.xpose.msra.mxu0 0.0
    %5991 = vmatpush.xpose.msra.mxu0 0.0
    %5992 = vmatpush.xpose.msra.mxu0 %v1165
    %5993 = vmatmul.f32.gmra.mxu0 %v524
    %v5994 = vpop.f32.mrf.mxu0
    %v5995 = vadd.f32 %v5975, %v5994
    %5996 = vdwg.mxu0
    %5997 = vmatpush.xpose.msra.mxu0 0.0
    %5998 = vmatpush.xpose.msra.mxu0 0.0
    %5999 = vmatpush.xpose.msra.mxu0 0.0
    %6000 = vmatpush.xpose.msra.mxu0 0.0
    %6001 = vmatpush.xpose.msra.mxu0 0.0
    %6002 = vmatpush.xpose.msra.mxu0 0.0
    %6003 = vmatpush.xpose.msra.mxu0 0.0
    %6004 = vmatpush.xpose.msra.mxu0 0.0
    %6005 = vmatpush.xpose.msra.mxu0 0.0
    %6006 = vmatpush.xpose.msra.mxu0 0.0
    %6007 = vmatpush.xpose.msra.mxu0 0.0
    %6008 = vmatpush.xpose.msra.mxu0 0.0
    %6009 = vmatpush.xpose.msra.mxu0 0.0
    %6010 = vmatpush.xpose.msra.mxu0 0.0
    %6011 = vmatpush.xpose.msra.mxu0 0.0
    %6012 = vmatpush.xpose.msra.mxu0 %v1166
    %6013 = vmatmul.f32.gmra.mxu0 %v525
    %v6014 = vpop.f32.mrf.mxu0
    %v6015 = vadd.f32 %v5995, %v6014
    %6016 = vdwg.mxu0
    %6017 = vmatpush.xpose.msra.mxu0 0.0
    %6018 = vmatpush.xpose.msra.mxu0 0.0
    %6019 = vmatpush.xpose.msra.mxu0 0.0
    %6020 = vmatpush.xpose.msra.mxu0 0.0
    %6021 = vmatpush.xpose.msra.mxu0 0.0
    %6022 = vmatpush.xpose.msra.mxu0 0.0
    %6023 = vmatpush.xpose.msra.mxu0 0.0
    %6024 = vmatpush.xpose.msra.mxu0 0.0
    %6025 = vmatpush.xpose.msra.mxu0 0.0
    %6026 = vmatpush.xpose.msra.mxu0 0.0
    %6027 = vmatpush.xpose.msra.mxu0 0.0
    %6028 = vmatpush.xpose.msra.mxu0 0.0
    %6029 = vmatpush.xpose.msra.mxu0 0.0
    %6030 = vmatpush.xpose.msra.mxu0 0.0
    %6031 = vmatpush.xpose.msra.mxu0 0.0
    %6032 = vmatpush.xpose.msra.mxu0 %v1167
    %6033 = vmatmul.f32.gmra.mxu0 %v526
    %v6034 = vpop.f32.mrf.mxu0
    %v6035 = vadd.f32 %v6015, %v6034
    %6036 = vdwg.mxu0
    %6037 = vmatpush.xpose.msra.mxu0 0.0
    %6038 = vmatpush.xpose.msra.mxu0 0.0
    %6039 = vmatpush.xpose.msra.mxu0 0.0
    %6040 = vmatpush.xpose.msra.mxu0 0.0
    %6041 = vmatpush.xpose.msra.mxu0 0.0
    %6042 = vmatpush.xpose.msra.mxu0 0.0
    %6043 = vmatpush.xpose.msra.mxu0 0.0
    %6044 = vmatpush.xpose.msra.mxu0 0.0
    %6045 = vmatpush.xpose.msra.mxu0 0.0
    %6046 = vmatpush.xpose.msra.mxu0 0.0
    %6047 = vmatpush.xpose.msra.mxu0 0.0
    %6048 = vmatpush.xpose.msra.mxu0 0.0
    %6049 = vmatpush.xpose.msra.mxu0 0.0
    %6050 = vmatpush.xpose.msra.mxu0 0.0
    %6051 = vmatpush.xpose.msra.mxu0 0.0
    %6052 = vmatpush.xpose.msra.mxu0 %v1168
    %6053 = vmatmul.f32.gmra.mxu0 %v527
    %v6054 = vpop.f32.mrf.mxu0
    %v6055 = vadd.f32 %v6035, %v6054
    %6056 = vdwg.mxu0
    %6057 = vmatpush.xpose.msra.mxu0 0.0
    %6058 = vmatpush.xpose.msra.mxu0 0.0
    %6059 = vmatpush.xpose.msra.mxu0 0.0
    %6060 = vmatpush.xpose.msra.mxu0 0.0
    %6061 = vmatpush.xpose.msra.mxu0 0.0
    %6062 = vmatpush.xpose.msra.mxu0 0.0
    %6063 = vmatpush.xpose.msra.mxu0 0.0
    %6064 = vmatpush.xpose.msra.mxu0 0.0
    %6065 = vmatpush.xpose.msra.mxu0 0.0
    %6066 = vmatpush.xpose.msra.mxu0 0.0
    %6067 = vmatpush.xpose.msra.mxu0 0.0
    %6068 = vmatpush.xpose.msra.mxu0 0.0
    %6069 = vmatpush.xpose.msra.mxu0 0.0
    %6070 = vmatpush.xpose.msra.mxu0 0.0
    %6071 = vmatpush.xpose.msra.mxu0 0.0
    %6072 = vmatpush.xpose.msra.mxu0 %v1169
    %6073 = vmatmul.f32.gmra.mxu0 %v528
    %v6074 = vpop.f32.mrf.mxu0
    %v6075 = vadd.f32 %v6055, %v6074
    %6076 = vdwg.mxu0
    %6077 = vmatpush.xpose.msra.mxu0 0.0
    %6078 = vmatpush.xpose.msra.mxu0 0.0
    %6079 = vmatpush.xpose.msra.mxu0 0.0
    %6080 = vmatpush.xpose.msra.mxu0 0.0
    %6081 = vmatpush.xpose.msra.mxu0 0.0
    %6082 = vmatpush.xpose.msra.mxu0 0.0
    %6083 = vmatpush.xpose.msra.mxu0 0.0
    %6084 = vmatpush.xpose.msra.mxu0 0.0
    %6085 = vmatpush.xpose.msra.mxu0 0.0
    %6086 = vmatpush.xpose.msra.mxu0 0.0
    %6087 = vmatpush.xpose.msra.mxu0 0.0
    %6088 = vmatpush.xpose.msra.mxu0 0.0
    %6089 = vmatpush.xpose.msra.mxu0 0.0
    %6090 = vmatpush.xpose.msra.mxu0 0.0
    %6091 = vmatpush.xpose.msra.mxu0 0.0
    %6092 = vmatpush.xpose.msra.mxu0 %v1170
    %6093 = vmatmul.f32.gmra.mxu0 %v529
    %v6094 = vpop.f32.mrf.mxu0
    %v6095 = vadd.f32 %v6075, %v6094
    %6096 = vdwg.mxu0
    %6097 = vmatpush.xpose.msra.mxu0 0.0
    %6098 = vmatpush.xpose.msra.mxu0 0.0
    %6099 = vmatpush.xpose.msra.mxu0 0.0
    %6100 = vmatpush.xpose.msra.mxu0 0.0
    %6101 = vmatpush.xpose.msra.mxu0 0.0
    %6102 = vmatpush.xpose.msra.mxu0 0.0
    %6103 = vmatpush.xpose.msra.mxu0 0.0
    %6104 = vmatpush.xpose.msra.mxu0 0.0
    %6105 = vmatpush.xpose.msra.mxu0 0.0
    %6106 = vmatpush.xpose.msra.mxu0 0.0
    %6107 = vmatpush.xpose.msra.mxu0 0.0
    %6108 = vmatpush.xpose.msra.mxu0 0.0
    %6109 = vmatpush.xpose.msra.mxu0 0.0
    %6110 = vmatpush.xpose.msra.mxu0 0.0
    %6111 = vmatpush.xpose.msra.mxu0 0.0
    %6112 = vmatpush.xpose.msra.mxu0 %v1173
    %6113 = vmatmul.f32.gmra.mxu0 %v532
    %v6114 = vpop.f32.mrf.mxu0
    %v6115 = vadd.f32 %v6095, %v6114
    %6116 = vdwg.mxu0
    %6117 = vmatpush.xpose.msra.mxu0 0.0
    %6118 = vmatpush.xpose.msra.mxu0 0.0
    %6119 = vmatpush.xpose.msra.mxu0 0.0
    %6120 = vmatpush.xpose.msra.mxu0 0.0
    %6121 = vmatpush.xpose.msra.mxu0 0.0
    %6122 = vmatpush.xpose.msra.mxu0 0.0
    %6123 = vmatpush.xpose.msra.mxu0 0.0
    %6124 = vmatpush.xpose.msra.mxu0 0.0
    %6125 = vmatpush.xpose.msra.mxu0 0.0
    %6126 = vmatpush.xpose.msra.mxu0 0.0
    %6127 = vmatpush.xpose.msra.mxu0 0.0
    %6128 = vmatpush.xpose.msra.mxu0 0.0
    %6129 = vmatpush.xpose.msra.mxu0 0.0
    %6130 = vmatpush.xpose.msra.mxu0 0.0
    %6131 = vmatpush.xpose.msra.mxu0 0.0
    %6132 = vmatpush.xpose.msra.mxu0 %v1174
    %6133 = vmatmul.f32.gmra.mxu0 %v533
    %v6134 = vpop.f32.mrf.mxu0
    %v6135 = vadd.f32 %v6115, %v6134
    %6136 = vdwg.mxu0
    %6137 = vmatpush.xpose.msra.mxu0 0.0
    %6138 = vmatpush.xpose.msra.mxu0 0.0
    %6139 = vmatpush.xpose.msra.mxu0 0.0
    %6140 = vmatpush.xpose.msra.mxu0 0.0
    %6141 = vmatpush.xpose.msra.mxu0 0.0
    %6142 = vmatpush.xpose.msra.mxu0 0.0
    %6143 = vmatpush.xpose.msra.mxu0 0.0
    %6144 = vmatpush.xpose.msra.mxu0 0.0
    %6145 = vmatpush.xpose.msra.mxu0 0.0
    %6146 = vmatpush.xpose.msra.mxu0 0.0
    %6147 = vmatpush.xpose.msra.mxu0 0.0
    %6148 = vmatpush.xpose.msra.mxu0 0.0
    %6149 = vmatpush.xpose.msra.mxu0 0.0
    %6150 = vmatpush.xpose.msra.mxu0 0.0
    %6151 = vmatpush.xpose.msra.mxu0 0.0
    %6152 = vmatpush.xpose.msra.mxu0 %v1175
    %6153 = vmatmul.f32.gmra.mxu0 %v534
    %v6154 = vpop.f32.mrf.mxu0
    %v6155 = vadd.f32 %v6135, %v6154
    %6156 = vdwg.mxu0
    %6157 = vmatpush.xpose.msra.mxu0 0.0
    %6158 = vmatpush.xpose.msra.mxu0 0.0
    %6159 = vmatpush.xpose.msra.mxu0 0.0
    %6160 = vmatpush.xpose.msra.mxu0 0.0
    %6161 = vmatpush.xpose.msra.mxu0 0.0
    %6162 = vmatpush.xpose.msra.mxu0 0.0
    %6163 = vmatpush.xpose.msra.mxu0 0.0
    %6164 = vmatpush.xpose.msra.mxu0 0.0
    %6165 = vmatpush.xpose.msra.mxu0 0.0
    %6166 = vmatpush.xpose.msra.mxu0 0.0
    %6167 = vmatpush.xpose.msra.mxu0 0.0
    %6168 = vmatpush.xpose.msra.mxu0 0.0
    %6169 = vmatpush.xpose.msra.mxu0 0.0
    %6170 = vmatpush.xpose.msra.mxu0 0.0
    %6171 = vmatpush.xpose.msra.mxu0 0.0
    %6172 = vmatpush.xpose.msra.mxu0 %v1176
    %6173 = vmatmul.f32.gmra.mxu0 %v535
    %v6174 = vpop.f32.mrf.mxu0
    %v6175 = vadd.f32 %v6155, %v6174
    %6176 = vdwg.mxu0
    %6177 = vmatpush.xpose.msra.mxu0 0.0
    %6178 = vmatpush.xpose.msra.mxu0 0.0
    %6179 = vmatpush.xpose.msra.mxu0 0.0
    %6180 = vmatpush.xpose.msra.mxu0 0.0
    %6181 = vmatpush.xpose.msra.mxu0 0.0
    %6182 = vmatpush.xpose.msra.mxu0 0.0
    %6183 = vmatpush.xpose.msra.mxu0 0.0
    %6184 = vmatpush.xpose.msra.mxu0 0.0
    %6185 = vmatpush.xpose.msra.mxu0 0.0
    %6186 = vmatpush.xpose.msra.mxu0 0.0
    %6187 = vmatpush.xpose.msra.mxu0 0.0
    %6188 = vmatpush.xpose.msra.mxu0 0.0
    %6189 = vmatpush.xpose.msra.mxu0 0.0
    %6190 = vmatpush.xpose.msra.mxu0 0.0
    %6191 = vmatpush.xpose.msra.mxu0 0.0
    %6192 = vmatpush.xpose.msra.mxu0 %v1177
    %6193 = vmatmul.f32.gmra.mxu0 %v536
    %v6194 = vpop.f32.mrf.mxu0
    %v6195 = vadd.f32 %v6175, %v6194
    %6196 = vdwg.mxu0
    %6197 = vmatpush.xpose.msra.mxu0 0.0
    %6198 = vmatpush.xpose.msra.mxu0 0.0
    %6199 = vmatpush.xpose.msra.mxu0 0.0
    %6200 = vmatpush.xpose.msra.mxu0 0.0
    %6201 = vmatpush.xpose.msra.mxu0 0.0
    %6202 = vmatpush.xpose.msra.mxu0 0.0
    %6203 = vmatpush.xpose.msra.mxu0 0.0
    %6204 = vmatpush.xpose.msra.mxu0 0.0
    %6205 = vmatpush.xpose.msra.mxu0 0.0
    %6206 = vmatpush.xpose.msra.mxu0 0.0
    %6207 = vmatpush.xpose.msra.mxu0 0.0
    %6208 = vmatpush.xpose.msra.mxu0 0.0
    %6209 = vmatpush.xpose.msra.mxu0 0.0
    %6210 = vmatpush.xpose.msra.mxu0 0.0
    %6211 = vmatpush.xpose.msra.mxu0 0.0
    %6212 = vmatpush.xpose.msra.mxu0 %v1178
    %6213 = vmatmul.f32.gmra.mxu0 %v537
    %v6214 = vpop.f32.mrf.mxu0
    %v6215 = vadd.f32 %v6195, %v6214
    %6216 = vdwg.mxu0
    %6217 = vmatpush.xpose.msra.mxu0 0.0
    %6218 = vmatpush.xpose.msra.mxu0 0.0
    %6219 = vmatpush.xpose.msra.mxu0 0.0
    %6220 = vmatpush.xpose.msra.mxu0 0.0
    %6221 = vmatpush.xpose.msra.mxu0 0.0
    %6222 = vmatpush.xpose.msra.mxu0 0.0
    %6223 = vmatpush.xpose.msra.mxu0 0.0
    %6224 = vmatpush.xpose.msra.mxu0 0.0
    %6225 = vmatpush.xpose.msra.mxu0 0.0
    %6226 = vmatpush.xpose.msra.mxu0 0.0
    %6227 = vmatpush.xpose.msra.mxu0 0.0
    %6228 = vmatpush.xpose.msra.mxu0 0.0
    %6229 = vmatpush.xpose.msra.mxu0 0.0
    %6230 = vmatpush.xpose.msra.mxu0 0.0
    %6231 = vmatpush.xpose.msra.mxu0 0.0
    %6232 = vmatpush.xpose.msra.mxu0 %v1179
    %6233 = vmatmul.f32.gmra.mxu0 %v538
    %v6234 = vpop.f32.mrf.mxu0
    %v6235 = vadd.f32 %v6215, %v6234
    %6236 = vdwg.mxu0
    %6237 = vmatpush.xpose.msra.mxu0 0.0
    %6238 = vmatpush.xpose.msra.mxu0 0.0
    %6239 = vmatpush.xpose.msra.mxu0 0.0
    %6240 = vmatpush.xpose.msra.mxu0 0.0
    %6241 = vmatpush.xpose.msra.mxu0 0.0
    %6242 = vmatpush.xpose.msra.mxu0 0.0
    %6243 = vmatpush.xpose.msra.mxu0 0.0
    %6244 = vmatpush.xpose.msra.mxu0 0.0
    %6245 = vmatpush.xpose.msra.mxu0 0.0
    %6246 = vmatpush.xpose.msra.mxu0 0.0
    %6247 = vmatpush.xpose.msra.mxu0 0.0
    %6248 = vmatpush.xpose.msra.mxu0 0.0
    %6249 = vmatpush.xpose.msra.mxu0 0.0
    %6250 = vmatpush.xpose.msra.mxu0 0.0
    %6251 = vmatpush.xpose.msra.mxu0 0.0
    %6252 = vmatpush.xpose.msra.mxu0 %v1180
    %6253 = vmatmul.f32.gmra.mxu0 %v539
    %v6254 = vpop.f32.mrf.mxu0
    %v6255 = vadd.f32 %v6235, %v6254
    %6256 = vdwg.mxu0
    %6257 = vmatpush.xpose.msra.mxu0 0.0
    %6258 = vmatpush.xpose.msra.mxu0 0.0
    %6259 = vmatpush.xpose.msra.mxu0 0.0
    %6260 = vmatpush.xpose.msra.mxu0 0.0
    %6261 = vmatpush.xpose.msra.mxu0 0.0
    %6262 = vmatpush.xpose.msra.mxu0 0.0
    %6263 = vmatpush.xpose.msra.mxu0 0.0
    %6264 = vmatpush.xpose.msra.mxu0 0.0
    %6265 = vmatpush.xpose.msra.mxu0 0.0
    %6266 = vmatpush.xpose.msra.mxu0 0.0
    %6267 = vmatpush.xpose.msra.mxu0 0.0
    %6268 = vmatpush.xpose.msra.mxu0 0.0
    %6269 = vmatpush.xpose.msra.mxu0 0.0
    %6270 = vmatpush.xpose.msra.mxu0 0.0
    %6271 = vmatpush.xpose.msra.mxu0 0.0
    %6272 = vmatpush.xpose.msra.mxu0 %v1183
    %6273 = vmatmul.f32.gmra.mxu0 %v542
    %v6274 = vpop.f32.mrf.mxu0
    %v6275 = vadd.f32 %v6255, %v6274
    %6276 = vdwg.mxu0
    %6277 = vmatpush.xpose.msra.mxu0 0.0
    %6278 = vmatpush.xpose.msra.mxu0 0.0
    %6279 = vmatpush.xpose.msra.mxu0 0.0
    %6280 = vmatpush.xpose.msra.mxu0 0.0
    %6281 = vmatpush.xpose.msra.mxu0 0.0
    %6282 = vmatpush.xpose.msra.mxu0 0.0
    %6283 = vmatpush.xpose.msra.mxu0 0.0
    %6284 = vmatpush.xpose.msra.mxu0 0.0
    %6285 = vmatpush.xpose.msra.mxu0 0.0
    %6286 = vmatpush.xpose.msra.mxu0 0.0
    %6287 = vmatpush.xpose.msra.mxu0 0.0
    %6288 = vmatpush.xpose.msra.mxu0 0.0
    %6289 = vmatpush.xpose.msra.mxu0 0.0
    %6290 = vmatpush.xpose.msra.mxu0 0.0
    %6291 = vmatpush.xpose.msra.mxu0 0.0
    %6292 = vmatpush.xpose.msra.mxu0 %v1184
    %6293 = vmatmul.f32.gmra.mxu0 %v543
    %v6294 = vpop.f32.mrf.mxu0
    %v6295 = vadd.f32 %v6275, %v6294
    %6296 = vdwg.mxu0
    %6297 = vmatpush.xpose.msra.mxu0 0.0
    %6298 = vmatpush.xpose.msra.mxu0 0.0
    %6299 = vmatpush.xpose.msra.mxu0 0.0
    %6300 = vmatpush.xpose.msra.mxu0 0.0
    %6301 = vmatpush.xpose.msra.mxu0 0.0
    %6302 = vmatpush.xpose.msra.mxu0 0.0
    %6303 = vmatpush.xpose.msra.mxu0 0.0
    %6304 = vmatpush.xpose.msra.mxu0 0.0
    %6305 = vmatpush.xpose.msra.mxu0 0.0
    %6306 = vmatpush.xpose.msra.mxu0 0.0
    %6307 = vmatpush.xpose.msra.mxu0 0.0
    %6308 = vmatpush.xpose.msra.mxu0 0.0
    %6309 = vmatpush.xpose.msra.mxu0 0.0
    %6310 = vmatpush.xpose.msra.mxu0 0.0
    %6311 = vmatpush.xpose.msra.mxu0 0.0
    %6312 = vmatpush.xpose.msra.mxu0 %v1185
    %6313 = vmatmul.f32.gmra.mxu0 %v544
    %v6314 = vpop.f32.mrf.mxu0
    %v6315 = vadd.f32 %v6295, %v6314
    %6316 = vdwg.mxu0
    %6317 = vmatpush.xpose.msra.mxu0 0.0
    %6318 = vmatpush.xpose.msra.mxu0 0.0
    %6319 = vmatpush.xpose.msra.mxu0 0.0
    %6320 = vmatpush.xpose.msra.mxu0 0.0
    %6321 = vmatpush.xpose.msra.mxu0 0.0
    %6322 = vmatpush.xpose.msra.mxu0 0.0
    %6323 = vmatpush.xpose.msra.mxu0 0.0
    %6324 = vmatpush.xpose.msra.mxu0 0.0
    %6325 = vmatpush.xpose.msra.mxu0 0.0
    %6326 = vmatpush.xpose.msra.mxu0 0.0
    %6327 = vmatpush.xpose.msra.mxu0 0.0
    %6328 = vmatpush.xpose.msra.mxu0 0.0
    %6329 = vmatpush.xpose.msra.mxu0 0.0
    %6330 = vmatpush.xpose.msra.mxu0 0.0
    %6331 = vmatpush.xpose.msra.mxu0 0.0
    %6332 = vmatpush.xpose.msra.mxu0 %v1186
    %6333 = vmatmul.f32.gmra.mxu0 %v545
    %v6334 = vpop.f32.mrf.mxu0
    %v6335 = vadd.f32 %v6315, %v6334
    %6336 = vdwg.mxu0
    %6337 = vmatpush.xpose.msra.mxu0 0.0
    %6338 = vmatpush.xpose.msra.mxu0 0.0
    %6339 = vmatpush.xpose.msra.mxu0 0.0
    %6340 = vmatpush.xpose.msra.mxu0 0.0
    %6341 = vmatpush.xpose.msra.mxu0 0.0
    %6342 = vmatpush.xpose.msra.mxu0 0.0
    %6343 = vmatpush.xpose.msra.mxu0 0.0
    %6344 = vmatpush.xpose.msra.mxu0 0.0
    %6345 = vmatpush.xpose.msra.mxu0 0.0
    %6346 = vmatpush.xpose.msra.mxu0 0.0
    %6347 = vmatpush.xpose.msra.mxu0 0.0
    %6348 = vmatpush.xpose.msra.mxu0 0.0
    %6349 = vmatpush.xpose.msra.mxu0 0.0
    %6350 = vmatpush.xpose.msra.mxu0 0.0
    %6351 = vmatpush.xpose.msra.mxu0 0.0
    %6352 = vmatpush.xpose.msra.mxu0 %v1187
    %6353 = vmatmul.f32.gmra.mxu0 %v546
    %v6354 = vpop.f32.mrf.mxu0
    %v6355 = vadd.f32 %v6335, %v6354
    %6356 = vdwg.mxu0
    %6357 = vmatpush.xpose.msra.mxu0 0.0
    %6358 = vmatpush.xpose.msra.mxu0 0.0
    %6359 = vmatpush.xpose.msra.mxu0 0.0
    %6360 = vmatpush.xpose.msra.mxu0 0.0
    %6361 = vmatpush.xpose.msra.mxu0 0.0
    %6362 = vmatpush.xpose.msra.mxu0 0.0
    %6363 = vmatpush.xpose.msra.mxu0 0.0
    %6364 = vmatpush.xpose.msra.mxu0 0.0
    %6365 = vmatpush.xpose.msra.mxu0 0.0
    %6366 = vmatpush.xpose.msra.mxu0 0.0
    %6367 = vmatpush.xpose.msra.mxu0 0.0
    %6368 = vmatpush.xpose.msra.mxu0 0.0
    %6369 = vmatpush.xpose.msra.mxu0 0.0
    %6370 = vmatpush.xpose.msra.mxu0 0.0
    %6371 = vmatpush.xpose.msra.mxu0 0.0
    %6372 = vmatpush.xpose.msra.mxu0 %v1188
    %6373 = vmatmul.f32.gmra.mxu0 %v547
    %v6374 = vpop.f32.mrf.mxu0
    %v6375 = vadd.f32 %v6355, %v6374
    %6376 = vdwg.mxu0
    %6377 = vmatpush.xpose.msra.mxu0 0.0
    %6378 = vmatpush.xpose.msra.mxu0 0.0
    %6379 = vmatpush.xpose.msra.mxu0 0.0
    %6380 = vmatpush.xpose.msra.mxu0 0.0
    %6381 = vmatpush.xpose.msra.mxu0 0.0
    %6382 = vmatpush.xpose.msra.mxu0 0.0
    %6383 = vmatpush.xpose.msra.mxu0 0.0
    %6384 = vmatpush.xpose.msra.mxu0 0.0
    %6385 = vmatpush.xpose.msra.mxu0 0.0
    %6386 = vmatpush.xpose.msra.mxu0 0.0
    %6387 = vmatpush.xpose.msra.mxu0 0.0
    %6388 = vmatpush.xpose.msra.mxu0 0.0
    %6389 = vmatpush.xpose.msra.mxu0 0.0
    %6390 = vmatpush.xpose.msra.mxu0 0.0
    %6391 = vmatpush.xpose.msra.mxu0 0.0
    %6392 = vmatpush.xpose.msra.mxu0 %v1189
    %6393 = vmatmul.f32.gmra.mxu0 %v548
    %v6394 = vpop.f32.mrf.mxu0
    %v6395 = vadd.f32 %v6375, %v6394
    %6396 = vdwg.mxu0
    %6397 = vmatpush.xpose.msra.mxu0 0.0
    %6398 = vmatpush.xpose.msra.mxu0 0.0
    %6399 = vmatpush.xpose.msra.mxu0 0.0
    %6400 = vmatpush.xpose.msra.mxu0 0.0
    %6401 = vmatpush.xpose.msra.mxu0 0.0
    %6402 = vmatpush.xpose.msra.mxu0 0.0
    %6403 = vmatpush.xpose.msra.mxu0 0.0
    %6404 = vmatpush.xpose.msra.mxu0 0.0
    %6405 = vmatpush.xpose.msra.mxu0 0.0
    %6406 = vmatpush.xpose.msra.mxu0 0.0
    %6407 = vmatpush.xpose.msra.mxu0 0.0
    %6408 = vmatpush.xpose.msra.mxu0 0.0
    %6409 = vmatpush.xpose.msra.mxu0 0.0
    %6410 = vmatpush.xpose.msra.mxu0 0.0
    %6411 = vmatpush.xpose.msra.mxu0 0.0
    %6412 = vmatpush.xpose.msra.mxu0 %v1190
    %6413 = vmatmul.f32.gmra.mxu0 %v549
    %v6414 = vpop.f32.mrf.mxu0
    %v6415 = vadd.f32 %v6395, %v6414
    %6416 = vdwg.mxu0
    %6417 = vmatpush.xpose.msra.mxu0 0.0
    %6418 = vmatpush.xpose.msra.mxu0 0.0
    %6419 = vmatpush.xpose.msra.mxu0 0.0
    %6420 = vmatpush.xpose.msra.mxu0 0.0
    %6421 = vmatpush.xpose.msra.mxu0 0.0
    %6422 = vmatpush.xpose.msra.mxu0 0.0
    %6423 = vmatpush.xpose.msra.mxu0 0.0
    %6424 = vmatpush.xpose.msra.mxu0 0.0
    %6425 = vmatpush.xpose.msra.mxu0 0.0
    %6426 = vmatpush.xpose.msra.mxu0 0.0
    %6427 = vmatpush.xpose.msra.mxu0 0.0
    %6428 = vmatpush.xpose.msra.mxu0 0.0
    %6429 = vmatpush.xpose.msra.mxu0 0.0
    %6430 = vmatpush.xpose.msra.mxu0 0.0
    %6431 = vmatpush.xpose.msra.mxu0 0.0
    %6432 = vmatpush.xpose.msra.mxu0 %v1193
    %6433 = vmatmul.f32.gmra.mxu0 %v552
    %v6434 = vpop.f32.mrf.mxu0
    %v6435 = vadd.f32 %v6415, %v6434
    %6436 = vdwg.mxu0
    %6437 = vmatpush.xpose.msra.mxu0 0.0
    %6438 = vmatpush.xpose.msra.mxu0 0.0
    %6439 = vmatpush.xpose.msra.mxu0 0.0
    %6440 = vmatpush.xpose.msra.mxu0 0.0
    %6441 = vmatpush.xpose.msra.mxu0 0.0
    %6442 = vmatpush.xpose.msra.mxu0 0.0
    %6443 = vmatpush.xpose.msra.mxu0 0.0
    %6444 = vmatpush.xpose.msra.mxu0 0.0
    %6445 = vmatpush.xpose.msra.mxu0 0.0
    %6446 = vmatpush.xpose.msra.mxu0 0.0
    %6447 = vmatpush.xpose.msra.mxu0 0.0
    %6448 = vmatpush.xpose.msra.mxu0 0.0
    %6449 = vmatpush.xpose.msra.mxu0 0.0
    %6450 = vmatpush.xpose.msra.mxu0 0.0
    %6451 = vmatpush.xpose.msra.mxu0 0.0
    %6452 = vmatpush.xpose.msra.mxu0 %v1194
    %6453 = vmatmul.f32.gmra.mxu0 %v553
    %v6454 = vpop.f32.mrf.mxu0
    %v6455 = vadd.f32 %v6435, %v6454
    %6456 = vdwg.mxu0
    %6457 = vmatpush.xpose.msra.mxu0 0.0
    %6458 = vmatpush.xpose.msra.mxu0 0.0
    %6459 = vmatpush.xpose.msra.mxu0 0.0
    %6460 = vmatpush.xpose.msra.mxu0 0.0
    %6461 = vmatpush.xpose.msra.mxu0 0.0
    %6462 = vmatpush.xpose.msra.mxu0 0.0
    %6463 = vmatpush.xpose.msra.mxu0 0.0
    %6464 = vmatpush.xpose.msra.mxu0 0.0
    %6465 = vmatpush.xpose.msra.mxu0 0.0
    %6466 = vmatpush.xpose.msra.mxu0 0.0
    %6467 = vmatpush.xpose.msra.mxu0 0.0
    %6468 = vmatpush.xpose.msra.mxu0 0.0
    %6469 = vmatpush.xpose.msra.mxu0 0.0
    %6470 = vmatpush.xpose.msra.mxu0 0.0
    %6471 = vmatpush.xpose.msra.mxu0 0.0
    %6472 = vmatpush.xpose.msra.mxu0 %v1195
    %6473 = vmatmul.f32.gmra.mxu0 %v554
    %v6474 = vpop.f32.mrf.mxu0
    %v6475 = vadd.f32 %v6455, %v6474
    %6476 = vdwg.mxu0
    %6477 = vmatpush.xpose.msra.mxu0 0.0
    %6478 = vmatpush.xpose.msra.mxu0 0.0
    %6479 = vmatpush.xpose.msra.mxu0 0.0
    %6480 = vmatpush.xpose.msra.mxu0 0.0
    %6481 = vmatpush.xpose.msra.mxu0 0.0
    %6482 = vmatpush.xpose.msra.mxu0 0.0
    %6483 = vmatpush.xpose.msra.mxu0 0.0
    %6484 = vmatpush.xpose.msra.mxu0 0.0
    %6485 = vmatpush.xpose.msra.mxu0 0.0
    %6486 = vmatpush.xpose.msra.mxu0 0.0
    %6487 = vmatpush.xpose.msra.mxu0 0.0
    %6488 = vmatpush.xpose.msra.mxu0 0.0
    %6489 = vmatpush.xpose.msra.mxu0 0.0
    %6490 = vmatpush.xpose.msra.mxu0 0.0
    %6491 = vmatpush.xpose.msra.mxu0 0.0
    %6492 = vmatpush.xpose.msra.mxu0 %v1196
    %6493 = vmatmul.f32.gmra.mxu0 %v555
    %v6494 = vpop.f32.mrf.mxu0
    %v6495 = vadd.f32 %v6475, %v6494
    %6496 = vdwg.mxu0
    %6497 = vmatpush.xpose.msra.mxu0 0.0
    %6498 = vmatpush.xpose.msra.mxu0 0.0
    %6499 = vmatpush.xpose.msra.mxu0 0.0
    %6500 = vmatpush.xpose.msra.mxu0 0.0
    %6501 = vmatpush.xpose.msra.mxu0 0.0
    %6502 = vmatpush.xpose.msra.mxu0 0.0
    %6503 = vmatpush.xpose.msra.mxu0 0.0
    %6504 = vmatpush.xpose.msra.mxu0 0.0
    %6505 = vmatpush.xpose.msra.mxu0 0.0
    %6506 = vmatpush.xpose.msra.mxu0 0.0
    %6507 = vmatpush.xpose.msra.mxu0 0.0
    %6508 = vmatpush.xpose.msra.mxu0 0.0
    %6509 = vmatpush.xpose.msra.mxu0 0.0
    %6510 = vmatpush.xpose.msra.mxu0 0.0
    %6511 = vmatpush.xpose.msra.mxu0 0.0
    %6512 = vmatpush.xpose.msra.mxu0 %v1197
    %6513 = vmatmul.f32.gmra.mxu0 %v556
    %v6514 = vpop.f32.mrf.mxu0
    %v6515 = vadd.f32 %v6495, %v6514
    %6516 = vdwg.mxu0
    %6517 = vmatpush.xpose.msra.mxu0 0.0
    %6518 = vmatpush.xpose.msra.mxu0 0.0
    %6519 = vmatpush.xpose.msra.mxu0 0.0
    %6520 = vmatpush.xpose.msra.mxu0 0.0
    %6521 = vmatpush.xpose.msra.mxu0 0.0
    %6522 = vmatpush.xpose.msra.mxu0 0.0
    %6523 = vmatpush.xpose.msra.mxu0 0.0
    %6524 = vmatpush.xpose.msra.mxu0 0.0
    %6525 = vmatpush.xpose.msra.mxu0 0.0
    %6526 = vmatpush.xpose.msra.mxu0 0.0
    %6527 = vmatpush.xpose.msra.mxu0 0.0
    %6528 = vmatpush.xpose.msra.mxu0 0.0
    %6529 = vmatpush.xpose.msra.mxu0 0.0
    %6530 = vmatpush.xpose.msra.mxu0 0.0
    %6531 = vmatpush.xpose.msra.mxu0 0.0
    %6532 = vmatpush.xpose.msra.mxu0 %v1198
    %6533 = vmatmul.f32.gmra.mxu0 %v557
    %v6534 = vpop.f32.mrf.mxu0
    %v6535 = vadd.f32 %v6515, %v6534
    %6536 = vdwg.mxu0
    %6537 = vmatpush.xpose.msra.mxu0 0.0
    %6538 = vmatpush.xpose.msra.mxu0 0.0
    %6539 = vmatpush.xpose.msra.mxu0 0.0
    %6540 = vmatpush.xpose.msra.mxu0 0.0
    %6541 = vmatpush.xpose.msra.mxu0 0.0
    %6542 = vmatpush.xpose.msra.mxu0 0.0
    %6543 = vmatpush.xpose.msra.mxu0 0.0
    %6544 = vmatpush.xpose.msra.mxu0 0.0
    %6545 = vmatpush.xpose.msra.mxu0 0.0
    %6546 = vmatpush.xpose.msra.mxu0 0.0
    %6547 = vmatpush.xpose.msra.mxu0 0.0
    %6548 = vmatpush.xpose.msra.mxu0 0.0
    %6549 = vmatpush.xpose.msra.mxu0 0.0
    %6550 = vmatpush.xpose.msra.mxu0 0.0
    %6551 = vmatpush.xpose.msra.mxu0 0.0
    %6552 = vmatpush.xpose.msra.mxu0 %v1199
    %6553 = vmatmul.f32.gmra.mxu0 %v558
    %v6554 = vpop.f32.mrf.mxu0
    %v6555 = vadd.f32 %v6535, %v6554
    %6556 = vdwg.mxu0
    %6557 = vmatpush.xpose.msra.mxu0 0.0
    %6558 = vmatpush.xpose.msra.mxu0 0.0
    %6559 = vmatpush.xpose.msra.mxu0 0.0
    %6560 = vmatpush.xpose.msra.mxu0 0.0
    %6561 = vmatpush.xpose.msra.mxu0 0.0
    %6562 = vmatpush.xpose.msra.mxu0 0.0
    %6563 = vmatpush.xpose.msra.mxu0 0.0
    %6564 = vmatpush.xpose.msra.mxu0 0.0
    %6565 = vmatpush.xpose.msra.mxu0 0.0
    %6566 = vmatpush.xpose.msra.mxu0 0.0
    %6567 = vmatpush.xpose.msra.mxu0 0.0
    %6568 = vmatpush.xpose.msra.mxu0 0.0
    %6569 = vmatpush.xpose.msra.mxu0 0.0
    %6570 = vmatpush.xpose.msra.mxu0 0.0
    %6571 = vmatpush.xpose.msra.mxu0 0.0
    %6572 = vmatpush.xpose.msra.mxu0 %v1200
    %6573 = vmatmul.f32.gmra.mxu0 %v559
    %v6574 = vpop.f32.mrf.mxu0
    %v6575 = vadd.f32 %v6555, %v6574
    %6576 = vdwg.mxu0
    %vm6577 = vcmask 9216
    %6578 = vst.msk [vmem:[#allocation7] sm:$0x3] %vm6577, %v6575
    // Predicated region
    $region22: #{tpu_custom_call.1} parent=1 // pred_check
      _
    $region23: #{tpu_custom_call.1} parent=1 // pred_check_branch
      %6580 = sbr.rel (0) target = $region25
    $region24: #{tpu_custom_call.1} parent=1 // pred_region
      %6582 = vsyncadd [#allocation4], 0
      %s6584 = sshll.u32 [#allocation7], 4
      %s6585 = int_to_ptr.vmem [resolvable:$true] %s6584
      %s6586 = sshll.u32 %s3, 4
      %s6587 = int_to_ptr.hbm [resolvable:$true] %s6586
      %6589 = dma.vmem_to_hbm [thread:$0]  %s6585, 32, %s6587, [#allocation4]
    $region25: #{tpu_custom_call.1} parent=1 // pred_fallthru
      _
    // Predicated region
    $region26: #{tpu_custom_call.1} parent=1 // pred_check
      _
    $region27: #{tpu_custom_call.1} parent=1 // pred_check_branch
      %6591 = sbr.rel (0) target = $region29
    $region28: #{tpu_custom_call.1} parent=1 // pred_region
      %6593 = dma.done [#allocation4], 32
    $region29: #{tpu_custom_call.1} parent=1 // pred_fallthru
      _
    %6594 = vsyncpa [#allocation3], 1
    %6595 = vsyncpa [#allocation6], 1
    %6596 = vsyncpa [#allocation4], 1

</llo_original>
